<compile_context>
chip_gen: v6e
topology: v6e:2x2x1
jax: 0.10.0
libtpu: 0.0.40
codegen_flags: <defaults>
</compile_context>

<pallas_src>
import numpy as np

import jax
import jax.numpy as jnp
from jax import lax
from jax.experimental import pallas as pl
from jax.experimental.pallas import tpu as pltpu


# ---------------------------------------------------------------------------
# Pallas kernel: one full conv_block (5 convs + LeakyReLU + residual)
# ---------------------------------------------------------------------------
def _make_block_kernel(H, W, K, Cin, nf, n_mid):
    P = K // 2
    HW = H * W
    NEG_SLOPE = 0.01  # LeakyReLU(0.01) from lrelu()

    def _lrelu(a):
        return jnp.maximum(a, NEG_SLOPE * a)

    def _im2col(img, C):
        # img: (H+2P, W+2P, C) value -> (H*W, K*K*C) patch matrix.
        # Column order (tap-major, channel-minor) matches w.reshape(K*K*C, Cout)
        # of an HWIO weight tensor.
        cols = []
        for dy in range(K):
            for dx in range(K):
                cols.append(img[dy:dy + H, dx:dx + W, :].reshape(HW, C))
        return jnp.concatenate(cols, axis=1)

    def kernel(xp_ref, w1_ref, b1_ref, wm_ref, bm_ref, w5_ref, b5_ref,
               out_ref, apad_ref):
        # xp_ref : (1, Hp, Wp, Cin)   spatially pre-padded input image
        # w1_ref : (K*K*Cin, nf)      b1_ref : (1, nf)
        # wm_ref : (n_mid, K*K*nf, nf) bm_ref: (n_mid, 1, nf)
        # w5_ref : (K*K*nf, Cin)      b5_ref : (1, Cin)
        # out_ref: (1, H, W, Cin)
        # apad_ref: (Hp, Wp, nf) VMEM scratch (padded hidden activations)

        # Zero the padded activation scratch (SAME-conv borders must stay 0).
        apad_ref[...] = jnp.zeros_like(apad_ref)

        xp = xp_ref[0]                                   # (Hp, Wp, Cin)

        # ---- layer 1: Cin -> nf, one fused im2col matmul (K = K*K*Cin) ----
        h = jnp.dot(_im2col(xp, Cin), w1_ref[...],
                    preferred_element_type=jnp.float32)
        h = _lrelu(h + b1_ref[...])
        apad_ref[P:P + H, P:P + W, :] = h.reshape(H, W, nf)

        # ---- middle layers: nf -> nf, contraction K*K*nf (=288 for nf=32) --
        for layer in range(n_mid):
            ap = apad_ref[...]
            h = jnp.dot(_im2col(ap, nf), wm_ref[layer],
                        preferred_element_type=jnp.float32)
            h = _lrelu(h + bm_ref[layer])
            apad_ref[P:P + H, P:P + W, :] = h.reshape(H, W, nf)

        # ---- final layer: nf -> Cin, fused residual out = x + cnn(x) -------
        ap = apad_ref[...]
        h = jnp.dot(_im2col(ap, nf), w5_ref[...],
                    preferred_element_type=jnp.float32)
        h = h + b5_ref[...]
        x_res = xp[P:P + H, P:P + W, :].reshape(HW, Cin)
        out_ref[0] = (x_res + h).reshape(H, W, Cin)

    return kernel


def _build_block_call(nb, H, W, Cin, nf, K, n_mid):
    P = K // 2
    Hp, Wp = H + 2 * P, W + 2 * P
    kernel = _make_block_kernel(H, W, K, Cin, nf, n_mid)
    return pl.pallas_call(
        kernel,
        out_shape=jax.ShapeDtypeStruct((nb, H, W, Cin), jnp.float32),
        grid=(nb,),
        in_specs=[
            pl.BlockSpec((1, Hp, Wp, Cin), lambda b: (b, 0, 0, 0)),
            pl.BlockSpec((K * K * Cin, nf), lambda b: (0, 0)),
            pl.BlockSpec((1, nf), lambda b: (0, 0)),
            pl.BlockSpec((n_mid, K * K * nf, nf), lambda b: (0, 0, 0)),
            pl.BlockSpec((n_mid, 1, nf), lambda b: (0, 0, 0)),
            pl.BlockSpec((K * K * nf, Cin), lambda b: (0, 0)),
            pl.BlockSpec((1, Cin), lambda b: (0, 0)),
        ],
        out_specs=pl.BlockSpec((1, H, W, Cin), lambda b: (b, 0, 0, 0)),
        scratch_shapes=[pltpu.VMEM((Hp, Wp, nf), jnp.float32)],
        compiler_params=pltpu.CompilerParams(
            dimension_semantics=("parallel",)),
    )


# ---------------------------------------------------------------------------
# Data consistency in k-space (DataConsistencyInKspace, norm='ortho') — JAX glue
# ---------------------------------------------------------------------------
def _data_consistency(x_ri, k0_ri, mask_ri):
    # x_ri, k0_ri, mask_ri: (nb, H, W, 2) with last dim = (real, imag)
    xc = x_ri[..., 0] + 1j * x_ri[..., 1]
    kc = jnp.fft.fft2(xc, norm="ortho")
    k_ri = jnp.stack([jnp.real(kc), jnp.imag(kc)], axis=-1)
    out_ri = (1.0 - mask_ri) * k_ri + mask_ri * k0_ri
    oc = out_ri[..., 0] + 1j * out_ri[..., 1]
    xr = jnp.fft.ifft2(oc, norm="ortho")
    return jnp.stack([jnp.real(xr), jnp.imag(xr)], axis=-1).astype(jnp.float32)


# ---------------------------------------------------------------------------
# Full StochasticDnCn forward
# ---------------------------------------------------------------------------
def stochastic_dncn_forward(x, k, m, params, *, p=None, training=False,
                            sample=False):
    """x, k, m: (nb, 2, H, W) NCHW float32 (channel dim = real/imag).
    params: list of nc tuples (w1, b1, wm, bm, w5, b5) with HWIO conv weights.
    Returns (nb, 2, H, W)."""
    nb, C, H, W = x.shape
    nc = len(params)
    w1_0 = params[0][0]
    K = w1_0.shape[0]
    nf = w1_0.shape[-1]
    n_mid = params[0][2].shape[0]
    P = K // 2

    block_call = _build_block_call(nb, H, W, C, nf, K, n_mid)

    x_n = jnp.transpose(x, (0, 2, 3, 1)).astype(jnp.float32)    # (nb,H,W,2)
    k0_ri = jnp.transpose(k, (0, 2, 3, 1)).astype(jnp.float32)
    mask_ri = jnp.transpose(m, (0, 2, 3, 1)).astype(jnp.float32)

    # Host-side stochastic block skipping, exactly as in the PyTorch module
    # (np.random in Python control flow). Disabled in eval mode.
    skip = [False] * nc
    if training or sample:
        pvec = np.linspace(0, 0.5, nc) if p is None else np.asarray(p)
        skip = [np.random.random() <= pvec[i] for i in range(nc)]

    pad = ((0, 0), (P, P), (P, P), (0, 0))
    for i in range(nc):
        if skip[i]:
            continue
        w1, b1, wm, bm, w5, b5 = params[i]
        w1f = w1.reshape(K * K * C, nf).astype(jnp.float32)
        wmf = wm.reshape(n_mid, K * K * nf, nf).astype(jnp.float32)
        w5f = w5.reshape(K * K * nf, C).astype(jnp.float32)
        xp = jnp.pad(x_n, pad)
        # conv_block + residual (x + x_cnn) fused in one Pallas kernel
        x_n = block_call(xp, w1f, b1.reshape(1, nf).astype(jnp.float32),
                         wmf, bm.reshape(n_mid, 1, nf).astype(jnp.float32),
                         w5f, b5.reshape(1, C).astype(jnp.float32))
        # k-space data consistency (FFT done in XLA — no Pallas FFT)
        x_n = _data_consistency(x_n, k0_ri, mask_ri)

    return jnp.transpose(x_n, (0, 3, 1, 2))


# ---------------------------------------------------------------------------
# Parameter construction (Conv2d weights stored as HWIO) + pure-JAX reference
# ---------------------------------------------------------------------------
def init_params(key, nc, n_channels, nf, K, nd):
    n_mid = nd - 2
    s = 0.05
    params = []
    for _ in range(nc):
        key, k1, k2, k3, k4, k5, k6 = jax.random.split(key, 7)
        w1 = s * jax.random.normal(k1, (K, K, n_channels, nf), jnp.float32)
        b1 = s * jax.random.normal(k2, (nf,), jnp.float32)
        wm = s * jax.random.normal(k3, (n_mid, K, K, nf, nf), jnp.float32)
        bm = s * jax.random.normal(k4, (n_mid, nf), jnp.float32)
        w5 = s * jax.random.normal(k5, (K, K, nf, n_channels), jnp.float32)
        b5 = s * jax.random.normal(k6, (n_channels,), jnp.float32)
        params.append((w1, b1, wm, bm, w5, b5))
    return params


def _ref_forward(x, k, m, params):
    nb, C, H, W = x.shape
    x_n = jnp.transpose(x, (0, 2, 3, 1)).astype(jnp.float32)
    k0_ri = jnp.transpose(k, (0, 2, 3, 1)).astype(jnp.float32)
    mask_ri = jnp.transpose(m, (0, 2, 3, 1)).astype(jnp.float32)

    def conv(z, w, b):
        y = lax.conv_general_dilated(
            z, w, (1, 1), "SAME",
            dimension_numbers=("NHWC", "HWIO", "NHWC"),
            precision=lax.Precision.HIGHEST)
        return y + b

    def lrelu(a):
        return jnp.where(a > 0, a, 0.01 * a)

    for (w1, b1, wm, bm, w5, b5) in params:
        h = lrelu(conv(x_n, w1, b1))
        for j in range(wm.shape[0]):
            h = lrelu(conv(h, wm[j], bm[j]))
        h = conv(h, w5, b5)
        x_n = x_n + h
        x_n = _data_consistency(x_n, k0_ri, mask_ri)

    return jnp.transpose(x_n, (0, 3, 1, 2))


# ---------------------------------------------------------------------------
if __name__ == "__main__":
    # Small shapes consistent with the module defaults: D5C5, n_channels=2, nf=32.
    nb, n_channels, H, W = 2, 2, 16, 16
    nc, nd, nf, K = 5, 5, 32, 3

    key = jax.random.PRNGKey(0)
    kx, kk, km, kp = jax.random.split(key, 4)

    x = jax.random.normal(kx, (nb, n_channels, H, W), jnp.float32)
    k = jax.random.normal(kk, (nb, n_channels, H, W), jnp.float32)
    # Cartesian line undersampling mask, identical across real/imag channels.
    lines = (jax.random.uniform(km, (nb, 1, H, 1)) < 0.4).astype(jnp.float32)
    m = jnp.broadcast_to(lines, (nb, n_channels, H, W))

    params = init_params(kp, nc, n_channels, nf, K, nd)

    out = stochastic_dncn_forward(x, k, m, params)   # eval path (deterministic)
    out = jax.block_until_ready(out)

    ref = _ref_forward(x, k, m, params)
    ref = jax.block_until_ready(ref)

    assert out.shape == ref.shape == (nb, n_channels, H, W), (out.shape, ref.shape)
    max_err = float(jnp.max(jnp.abs(out - ref)))
    assert jnp.allclose(out, ref, rtol=5e-3, atol=5e-3), max_err

    print("KERNEL_OK")
</pallas_src>

<mosaic_0001>
module attributes {stable_mosaic.version = 11 : i64} {
  func.func @kernel(%arg0: i32, %arg1: memref<1x18x18x2xf32, #tpu.memory_space<vmem>>, %arg2: memref<18x32xf32, #tpu.memory_space<vmem>>, %arg3: memref<1x32xf32, #tpu.memory_space<vmem>>, %arg4: memref<3x288x32xf32, #tpu.memory_space<vmem>>, %arg5: memref<3x1x32xf32, #tpu.memory_space<vmem>>, %arg6: memref<288x2xf32, #tpu.memory_space<vmem>>, %arg7: memref<1x2xf32, #tpu.memory_space<vmem>>, %arg8: memref<1x16x16x2xf32, #tpu.memory_space<vmem>>, %arg9: memref<18x18x32xf32, #tpu.memory_space<vmem>>) attributes {dimension_semantics = [#tpu.dimension_semantics<parallel>], iteration_bounds = array<i64: 2>, scalar_prefetch = 0 : i64, scratch_operands = 1 : i64, tpu.core_type = #tpu.core_type<tc>, window_params = [{transform_indices = @transform_0, window_bounds = array<i64: 1, 18, 18, 2>}, {pipeline_mode = #tpu.pipeline_mode<synchronous>, transform_indices = @transform_1, window_bounds = array<i64: 18, 32>}, {pipeline_mode = #tpu.pipeline_mode<synchronous>, transform_indices = @transform_2, window_bounds = array<i64: 1, 32>}, {pipeline_mode = #tpu.pipeline_mode<synchronous>, transform_indices = @transform_3, window_bounds = array<i64: 3, 288, 32>}, {pipeline_mode = #tpu.pipeline_mode<synchronous>, transform_indices = @transform_4, window_bounds = array<i64: 3, 1, 32>}, {pipeline_mode = #tpu.pipeline_mode<synchronous>, transform_indices = @transform_5, window_bounds = array<i64: 288, 2>}, {pipeline_mode = #tpu.pipeline_mode<synchronous>, transform_indices = @transform_6, window_bounds = array<i64: 1, 2>}, {transform_indices = @transform_7, window_bounds = array<i64: 1, 16, 16, 2>}]} {
    %cst = arith.constant 0.000000e+00 : f32
    %0 = vector.broadcast %cst : f32 to vector<18x18x32xf32>
    %c0 = arith.constant 0 : index
    %c0_0 = arith.constant 0 : index
    %c0_1 = arith.constant 0 : index
    %1 = vector.load %arg9[%c0, %c0_0, %c0_1] : memref<18x18x32xf32, #tpu.memory_space<vmem>>, vector<18x18x32xf32>
    tpu.vector_store %arg9[%c0, %c0_0, %c0_1], %0 {strides = array<i32>} : memref<18x18x32xf32, #tpu.memory_space<vmem>>, vector<18x18x32xf32>,
    %c0_2 = arith.constant 0 : index
    %c0_3 = arith.constant 0 : index
    %c0_4 = arith.constant 0 : index
    %c0_5 = arith.constant 0 : index
    %2 = vector.load %arg1[%c0_2, %c0_3, %c0_4, %c0_5] : memref<1x18x18x2xf32, #tpu.memory_space<vmem>>, vector<1x18x18x2xf32>
    %3 = vector.shape_cast %2 : vector<1x18x18x2xf32> to vector<18x18x2xf32>
    %4 = vector.extract_strided_slice %3 {offsets = [0, 0, 0], sizes = [16, 16, 2], strides = [1, 1, 1]} : vector<18x18x2xf32> to vector<16x16x2xf32>
    %5 = vector.shape_cast %4 : vector<16x16x2xf32> to vector<256x2xf32>
    %6 = vector.extract_strided_slice %3 {offsets = [0, 1, 0], sizes = [16, 16, 2], strides = [1, 1, 1]} : vector<18x18x2xf32> to vector<16x16x2xf32>
    %7 = vector.shape_cast %6 : vector<16x16x2xf32> to vector<256x2xf32>
    %8 = vector.extract_strided_slice %3 {offsets = [0, 2, 0], sizes = [16, 16, 2], strides = [1, 1, 1]} : vector<18x18x2xf32> to vector<16x16x2xf32>
    %9 = vector.shape_cast %8 : vector<16x16x2xf32> to vector<256x2xf32>
    %10 = vector.extract_strided_slice %3 {offsets = [1, 0, 0], sizes = [16, 16, 2], strides = [1, 1, 1]} : vector<18x18x2xf32> to vector<16x16x2xf32>
    %11 = vector.shape_cast %10 : vector<16x16x2xf32> to vector<256x2xf32>
    %12 = vector.extract_strided_slice %3 {offsets = [1, 1, 0], sizes = [16, 16, 2], strides = [1, 1, 1]} : vector<18x18x2xf32> to vector<16x16x2xf32>
    %13 = vector.shape_cast %12 : vector<16x16x2xf32> to vector<256x2xf32>
    %14 = vector.extract_strided_slice %3 {offsets = [1, 2, 0], sizes = [16, 16, 2], strides = [1, 1, 1]} : vector<18x18x2xf32> to vector<16x16x2xf32>
    %15 = vector.shape_cast %14 : vector<16x16x2xf32> to vector<256x2xf32>
    %16 = vector.extract_strided_slice %3 {offsets = [2, 0, 0], sizes = [16, 16, 2], strides = [1, 1, 1]} : vector<18x18x2xf32> to vector<16x16x2xf32>
    %17 = vector.shape_cast %16 : vector<16x16x2xf32> to vector<256x2xf32>
    %18 = vector.extract_strided_slice %3 {offsets = [2, 1, 0], sizes = [16, 16, 2], strides = [1, 1, 1]} : vector<18x18x2xf32> to vector<16x16x2xf32>
    %19 = vector.shape_cast %18 : vector<16x16x2xf32> to vector<256x2xf32>
    %20 = vector.extract_strided_slice %3 {offsets = [2, 2, 0], sizes = [16, 16, 2], strides = [1, 1, 1]} : vector<18x18x2xf32> to vector<16x16x2xf32>
    %21 = vector.shape_cast %20 : vector<16x16x2xf32> to vector<256x2xf32>
    %22 = tpu.concatenate %5, %7, %9, %11, %13, %15, %17, %19, %21 in 1 : vector<256x2xf32>, vector<256x2xf32>, vector<256x2xf32>, vector<256x2xf32>, vector<256x2xf32>, vector<256x2xf32>, vector<256x2xf32>, vector<256x2xf32>, vector<256x2xf32> -> vector<256x18xf32>
    %c0_6 = arith.constant 0 : index
    %c0_7 = arith.constant 0 : index
    %23 = vector.load %arg2[%c0_6, %c0_7] : memref<18x32xf32, #tpu.memory_space<vmem>>, vector<18x32xf32>
    %cst_8 = arith.constant dense<0.000000e+00> : vector<256x32xf32>
    %24 = tpu.matmul %22, %23, %cst_8 {dimension_numbers = #tpu.dot_dimension_numbers<[1], [0], [0], [1], [0, 0, 1, 1], [], []>} : vector<256x18xf32>, vector<18x32xf32>, vector<256x32xf32> -> vector<256x32xf32>
    %c0_9 = arith.constant 0 : index
    %c0_10 = arith.constant 0 : index
    %25 = vector.load %arg3[%c0_9, %c0_10] : memref<1x32xf32, #tpu.memory_space<vmem>>, vector<1x32xf32>
    %26 = vector.broadcast %25 : vector<1x32xf32> to vector<256x32xf32>
    %27 = arith.addf %24, %26 : vector<256x32xf32>
    %cst_11 = arith.constant 0.00999999977 : f32
    %28 = vector.broadcast %cst_11 : f32 to vector<256x32xf32>
    %29 = arith.mulf %28, %27 : vector<256x32xf32>
    %30 = arith.maximumf %27, %29 : vector<256x32xf32>
    %31 = vector.shape_cast %30 : vector<256x32xf32> to vector<16x16x32xf32>
    %c1 = arith.constant 1 : index
    %c1_12 = arith.constant 1 : index
    %c0_13 = arith.constant 0 : index
    %32 = vector.load %arg9[%c1, %c1_12, %c0_13] : memref<18x18x32xf32, #tpu.memory_space<vmem>>, vector<16x16x32xf32>
    tpu.vector_store %arg9[%c1, %c1_12, %c0_13], %31 {strides = array<i32>} : memref<18x18x32xf32, #tpu.memory_space<vmem>>, vector<16x16x32xf32>,
    %c0_14 = arith.constant 0 : index
    %c0_15 = arith.constant 0 : index
    %c0_16 = arith.constant 0 : index
    %33 = vector.load %arg9[%c0_14, %c0_15, %c0_16] : memref<18x18x32xf32, #tpu.memory_space<vmem>>, vector<18x18x32xf32>
    %34 = vector.extract_strided_slice %33 {offsets = [0, 0, 0], sizes = [16, 16, 32], strides = [1, 1, 1]} : vector<18x18x32xf32> to vector<16x16x32xf32>
    %35 = vector.shape_cast %34 : vector<16x16x32xf32> to vector<256x32xf32>
    %36 = vector.extract_strided_slice %33 {offsets = [0, 1, 0], sizes = [16, 16, 32], strides = [1, 1, 1]} : vector<18x18x32xf32> to vector<16x16x32xf32>
    %37 = vector.shape_cast %36 : vector<16x16x32xf32> to vector<256x32xf32>
    %38 = vector.extract_strided_slice %33 {offsets = [0, 2, 0], sizes = [16, 16, 32], strides = [1, 1, 1]} : vector<18x18x32xf32> to vector<16x16x32xf32>
    %39 = vector.shape_cast %38 : vector<16x16x32xf32> to vector<256x32xf32>
    %40 = vector.extract_strided_slice %33 {offsets = [1, 0, 0], sizes = [16, 16, 32], strides = [1, 1, 1]} : vector<18x18x32xf32> to vector<16x16x32xf32>
    %41 = vector.shape_cast %40 : vector<16x16x32xf32> to vector<256x32xf32>
    %42 = vector.extract_strided_slice %33 {offsets = [1, 1, 0], sizes = [16, 16, 32], strides = [1, 1, 1]} : vector<18x18x32xf32> to vector<16x16x32xf32>
    %43 = vector.shape_cast %42 : vector<16x16x32xf32> to vector<256x32xf32>
    %44 = vector.extract_strided_slice %33 {offsets = [1, 2, 0], sizes = [16, 16, 32], strides = [1, 1, 1]} : vector<18x18x32xf32> to vector<16x16x32xf32>
    %45 = vector.shape_cast %44 : vector<16x16x32xf32> to vector<256x32xf32>
    %46 = vector.extract_strided_slice %33 {offsets = [2, 0, 0], sizes = [16, 16, 32], strides = [1, 1, 1]} : vector<18x18x32xf32> to vector<16x16x32xf32>
    %47 = vector.shape_cast %46 : vector<16x16x32xf32> to vector<256x32xf32>
    %48 = vector.extract_strided_slice %33 {offsets = [2, 1, 0], sizes = [16, 16, 32], strides = [1, 1, 1]} : vector<18x18x32xf32> to vector<16x16x32xf32>
    %49 = vector.shape_cast %48 : vector<16x16x32xf32> to vector<256x32xf32>
    %50 = vector.extract_strided_slice %33 {offsets = [2, 2, 0], sizes = [16, 16, 32], strides = [1, 1, 1]} : vector<18x18x32xf32> to vector<16x16x32xf32>
    %51 = vector.shape_cast %50 : vector<16x16x32xf32> to vector<256x32xf32>
    %52 = tpu.concatenate %35, %37, %39, %41, %43, %45, %47, %49, %51 in 1 : vector<256x32xf32>, vector<256x32xf32>, vector<256x32xf32>, vector<256x32xf32>, vector<256x32xf32>, vector<256x32xf32>, vector<256x32xf32>, vector<256x32xf32>, vector<256x32xf32> -> vector<256x288xf32>
    %c0_17 = arith.constant 0 : index
    %c0_18 = arith.constant 0 : index
    %c0_19 = arith.constant 0 : index
    %53 = vector.load %arg4[%c0_17, %c0_18, %c0_19] : memref<3x288x32xf32, #tpu.memory_space<vmem>>, vector<1x288x32xf32>
    %54 = vector.shape_cast %53 : vector<1x288x32xf32> to vector<288x32xf32>
    %cst_20 = arith.constant dense<0.000000e+00> : vector<256x32xf32>
    %55 = tpu.matmul %52, %54, %cst_20 {dimension_numbers = #tpu.dot_dimension_numbers<[1], [0], [0], [1], [0, 0, 1, 1], [], []>} : vector<256x288xf32>, vector<288x32xf32>, vector<256x32xf32> -> vector<256x32xf32>
    %c0_21 = arith.constant 0 : index
    %c0_22 = arith.constant 0 : index
    %c0_23 = arith.constant 0 : index
    %56 = vector.load %arg5[%c0_21, %c0_22, %c0_23] : memref<3x1x32xf32, #tpu.memory_space<vmem>>, vector<1x1x32xf32>
    %57 = vector.shape_cast %56 : vector<1x1x32xf32> to vector<1x32xf32>
    %58 = vector.broadcast %57 : vector<1x32xf32> to vector<256x32xf32>
    %59 = arith.addf %55, %58 : vector<256x32xf32>
    %cst_24 = arith.constant 0.00999999977 : f32
    %60 = vector.broadcast %cst_24 : f32 to vector<256x32xf32>
    %61 = arith.mulf %60, %59 : vector<256x32xf32>
    %62 = arith.maximumf %59, %61 : vector<256x32xf32>
    %63 = vector.shape_cast %62 : vector<256x32xf32> to vector<16x16x32xf32>
    %c1_25 = arith.constant 1 : index
    %c1_26 = arith.constant 1 : index
    %c0_27 = arith.constant 0 : index
    %64 = vector.load %arg9[%c1_25, %c1_26, %c0_27] : memref<18x18x32xf32, #tpu.memory_space<vmem>>, vector<16x16x32xf32>
    tpu.vector_store %arg9[%c1_25, %c1_26, %c0_27], %63 {strides = array<i32>} : memref<18x18x32xf32, #tpu.memory_space<vmem>>, vector<16x16x32xf32>,
    %c0_28 = arith.constant 0 : index
    %c0_29 = arith.constant 0 : index
    %c0_30 = arith.constant 0 : index
    %65 = vector.load %arg9[%c0_28, %c0_29, %c0_30] : memref<18x18x32xf32, #tpu.memory_space<vmem>>, vector<18x18x32xf32>
    %66 = vector.extract_strided_slice %65 {offsets = [0, 0, 0], sizes = [16, 16, 32], strides = [1, 1, 1]} : vector<18x18x32xf32> to vector<16x16x32xf32>
    %67 = vector.shape_cast %66 : vector<16x16x32xf32> to vector<256x32xf32>
    %68 = vector.extract_strided_slice %65 {offsets = [0, 1, 0], sizes = [16, 16, 32], strides = [1, 1, 1]} : vector<18x18x32xf32> to vector<16x16x32xf32>
    %69 = vector.shape_cast %68 : vector<16x16x32xf32> to vector<256x32xf32>
    %70 = vector.extract_strided_slice %65 {offsets = [0, 2, 0], sizes = [16, 16, 32], strides = [1, 1, 1]} : vector<18x18x32xf32> to vector<16x16x32xf32>
    %71 = vector.shape_cast %70 : vector<16x16x32xf32> to vector<256x32xf32>
    %72 = vector.extract_strided_slice %65 {offsets = [1, 0, 0], sizes = [16, 16, 32], strides = [1, 1, 1]} : vector<18x18x32xf32> to vector<16x16x32xf32>
    %73 = vector.shape_cast %72 : vector<16x16x32xf32> to vector<256x32xf32>
    %74 = vector.extract_strided_slice %65 {offsets = [1, 1, 0], sizes = [16, 16, 32], strides = [1, 1, 1]} : vector<18x18x32xf32> to vector<16x16x32xf32>
    %75 = vector.shape_cast %74 : vector<16x16x32xf32> to vector<256x32xf32>
    %76 = vector.extract_strided_slice %65 {offsets = [1, 2, 0], sizes = [16, 16, 32], strides = [1, 1, 1]} : vector<18x18x32xf32> to vector<16x16x32xf32>
    %77 = vector.shape_cast %76 : vector<16x16x32xf32> to vector<256x32xf32>
    %78 = vector.extract_strided_slice %65 {offsets = [2, 0, 0], sizes = [16, 16, 32], strides = [1, 1, 1]} : vector<18x18x32xf32> to vector<16x16x32xf32>
    %79 = vector.shape_cast %78 : vector<16x16x32xf32> to vector<256x32xf32>
    %80 = vector.extract_strided_slice %65 {offsets = [2, 1, 0], sizes = [16, 16, 32], strides = [1, 1, 1]} : vector<18x18x32xf32> to vector<16x16x32xf32>
    %81 = vector.shape_cast %80 : vector<16x16x32xf32> to vector<256x32xf32>
    %82 = vector.extract_strided_slice %65 {offsets = [2, 2, 0], sizes = [16, 16, 32], strides = [1, 1, 1]} : vector<18x18x32xf32> to vector<16x16x32xf32>
    %83 = vector.shape_cast %82 : vector<16x16x32xf32> to vector<256x32xf32>
    %84 = tpu.concatenate %67, %69, %71, %73, %75, %77, %79, %81, %83 in 1 : vector<256x32xf32>, vector<256x32xf32>, vector<256x32xf32>, vector<256x32xf32>, vector<256x32xf32>, vector<256x32xf32>, vector<256x32xf32>, vector<256x32xf32>, vector<256x32xf32> -> vector<256x288xf32>
    %c1_31 = arith.constant 1 : index
    %c0_32 = arith.constant 0 : index
    %c0_33 = arith.constant 0 : index
    %85 = vector.load %arg4[%c1_31, %c0_32, %c0_33] : memref<3x288x32xf32, #tpu.memory_space<vmem>>, vector<1x288x32xf32>
    %86 = vector.shape_cast %85 : vector<1x288x32xf32> to vector<288x32xf32>
    %cst_34 = arith.constant dense<0.000000e+00> : vector<256x32xf32>
    %87 = tpu.matmul %84, %86, %cst_34 {dimension_numbers = #tpu.dot_dimension_numbers<[1], [0], [0], [1], [0, 0, 1, 1], [], []>} : vector<256x288xf32>, vector<288x32xf32>, vector<256x32xf32> -> vector<256x32xf32>
    %c1_35 = arith.constant 1 : index
    %c0_36 = arith.constant 0 : index
    %c0_37 = arith.constant 0 : index
    %88 = vector.load %arg5[%c1_35, %c0_36, %c0_37] : memref<3x1x32xf32, #tpu.memory_space<vmem>>, vector<1x1x32xf32>
    %89 = vector.shape_cast %88 : vector<1x1x32xf32> to vector<1x32xf32>
    %90 = vector.broadcast %89 : vector<1x32xf32> to vector<256x32xf32>
    %91 = arith.addf %87, %90 : vector<256x32xf32>
    %cst_38 = arith.constant 0.00999999977 : f32
    %92 = vector.broadcast %cst_38 : f32 to vector<256x32xf32>
    %93 = arith.mulf %92, %91 : vector<256x32xf32>
    %94 = arith.maximumf %91, %93 : vector<256x32xf32>
    %95 = vector.shape_cast %94 : vector<256x32xf32> to vector<16x16x32xf32>
    %c1_39 = arith.constant 1 : index
    %c1_40 = arith.constant 1 : index
    %c0_41 = arith.constant 0 : index
    %96 = vector.load %arg9[%c1_39, %c1_40, %c0_41] : memref<18x18x32xf32, #tpu.memory_space<vmem>>, vector<16x16x32xf32>
    tpu.vector_store %arg9[%c1_39, %c1_40, %c0_41], %95 {strides = array<i32>} : memref<18x18x32xf32, #tpu.memory_space<vmem>>, vector<16x16x32xf32>,
    %c0_42 = arith.constant 0 : index
    %c0_43 = arith.constant 0 : index
    %c0_44 = arith.constant 0 : index
    %97 = vector.load %arg9[%c0_42, %c0_43, %c0_44] : memref<18x18x32xf32, #tpu.memory_space<vmem>>, vector<18x18x32xf32>
    %98 = vector.extract_strided_slice %97 {offsets = [0, 0, 0], sizes = [16, 16, 32], strides = [1, 1, 1]} : vector<18x18x32xf32> to vector<16x16x32xf32>
    %99 = vector.shape_cast %98 : vector<16x16x32xf32> to vector<256x32xf32>
    %100 = vector.extract_strided_slice %97 {offsets = [0, 1, 0], sizes = [16, 16, 32], strides = [1, 1, 1]} : vector<18x18x32xf32> to vector<16x16x32xf32>
    %101 = vector.shape_cast %100 : vector<16x16x32xf32> to vector<256x32xf32>
    %102 = vector.extract_strided_slice %97 {offsets = [0, 2, 0], sizes = [16, 16, 32], strides = [1, 1, 1]} : vector<18x18x32xf32> to vector<16x16x32xf32>
    %103 = vector.shape_cast %102 : vector<16x16x32xf32> to vector<256x32xf32>
    %104 = vector.extract_strided_slice %97 {offsets = [1, 0, 0], sizes = [16, 16, 32], strides = [1, 1, 1]} : vector<18x18x32xf32> to vector<16x16x32xf32>
    %105 = vector.shape_cast %104 : vector<16x16x32xf32> to vector<256x32xf32>
    %106 = vector.extract_strided_slice %97 {offsets = [1, 1, 0], sizes = [16, 16, 32], strides = [1, 1, 1]} : vector<18x18x32xf32> to vector<16x16x32xf32>
    %107 = vector.shape_cast %106 : vector<16x16x32xf32> to vector<256x32xf32>
    %108 = vector.extract_strided_slice %97 {offsets = [1, 2, 0], sizes = [16, 16, 32], strides = [1, 1, 1]} : vector<18x18x32xf32> to vector<16x16x32xf32>
    %109 = vector.shape_cast %108 : vector<16x16x32xf32> to vector<256x32xf32>
    %110 = vector.extract_strided_slice %97 {offsets = [2, 0, 0], sizes = [16, 16, 32], strides = [1, 1, 1]} : vector<18x18x32xf32> to vector<16x16x32xf32>
    %111 = vector.shape_cast %110 : vector<16x16x32xf32> to vector<256x32xf32>
    %112 = vector.extract_strided_slice %97 {offsets = [2, 1, 0], sizes = [16, 16, 32], strides = [1, 1, 1]} : vector<18x18x32xf32> to vector<16x16x32xf32>
    %113 = vector.shape_cast %112 : vector<16x16x32xf32> to vector<256x32xf32>
    %114 = vector.extract_strided_slice %97 {offsets = [2, 2, 0], sizes = [16, 16, 32], strides = [1, 1, 1]} : vector<18x18x32xf32> to vector<16x16x32xf32>
    %115 = vector.shape_cast %114 : vector<16x16x32xf32> to vector<256x32xf32>
    %116 = tpu.concatenate %99, %101, %103, %105, %107, %109, %111, %113, %115 in 1 : vector<256x32xf32>, vector<256x32xf32>, vector<256x32xf32>, vector<256x32xf32>, vector<256x32xf32>, vector<256x32xf32>, vector<256x32xf32>, vector<256x32xf32>, vector<256x32xf32> -> vector<256x288xf32>
    %c2 = arith.constant 2 : index
    %c0_45 = arith.constant 0 : index
    %c0_46 = arith.constant 0 : index
    %117 = vector.load %arg4[%c2, %c0_45, %c0_46] : memref<3x288x32xf32, #tpu.memory_space<vmem>>, vector<1x288x32xf32>
    %118 = vector.shape_cast %117 : vector<1x288x32xf32> to vector<288x32xf32>
    %cst_47 = arith.constant dense<0.000000e+00> : vector<256x32xf32>
    %119 = tpu.matmul %116, %118, %cst_47 {dimension_numbers = #tpu.dot_dimension_numbers<[1], [0], [0], [1], [0, 0, 1, 1], [], []>} : vector<256x288xf32>, vector<288x32xf32>, vector<256x32xf32> -> vector<256x32xf32>
    %c2_48 = arith.constant 2 : index
    %c0_49 = arith.constant 0 : index
    %c0_50 = arith.constant 0 : index
    %120 = vector.load %arg5[%c2_48, %c0_49, %c0_50] : memref<3x1x32xf32, #tpu.memory_space<vmem>>, vector<1x1x32xf32>
    %121 = vector.shape_cast %120 : vector<1x1x32xf32> to vector<1x32xf32>
    %122 = vector.broadcast %121 : vector<1x32xf32> to vector<256x32xf32>
    %123 = arith.addf %119, %122 : vector<256x32xf32>
    %cst_51 = arith.constant 0.00999999977 : f32
    %124 = vector.broadcast %cst_51 : f32 to vector<256x32xf32>
    %125 = arith.mulf %124, %123 : vector<256x32xf32>
    %126 = arith.maximumf %123, %125 : vector<256x32xf32>
    %127 = vector.shape_cast %126 : vector<256x32xf32> to vector<16x16x32xf32>
    %c1_52 = arith.constant 1 : index
    %c1_53 = arith.constant 1 : index
    %c0_54 = arith.constant 0 : index
    %128 = vector.load %arg9[%c1_52, %c1_53, %c0_54] : memref<18x18x32xf32, #tpu.memory_space<vmem>>, vector<16x16x32xf32>
    tpu.vector_store %arg9[%c1_52, %c1_53, %c0_54], %127 {strides = array<i32>} : memref<18x18x32xf32, #tpu.memory_space<vmem>>, vector<16x16x32xf32>,
    %c0_55 = arith.constant 0 : index
    %c0_56 = arith.constant 0 : index
    %c0_57 = arith.constant 0 : index
    %129 = vector.load %arg9[%c0_55, %c0_56, %c0_57] : memref<18x18x32xf32, #tpu.memory_space<vmem>>, vector<18x18x32xf32>
    %130 = vector.extract_strided_slice %129 {offsets = [0, 0, 0], sizes = [16, 16, 32], strides = [1, 1, 1]} : vector<18x18x32xf32> to vector<16x16x32xf32>
    %131 = vector.shape_cast %130 : vector<16x16x32xf32> to vector<256x32xf32>
    %132 = vector.extract_strided_slice %129 {offsets = [0, 1, 0], sizes = [16, 16, 32], strides = [1, 1, 1]} : vector<18x18x32xf32> to vector<16x16x32xf32>
    %133 = vector.shape_cast %132 : vector<16x16x32xf32> to vector<256x32xf32>
    %134 = vector.extract_strided_slice %129 {offsets = [0, 2, 0], sizes = [16, 16, 32], strides = [1, 1, 1]} : vector<18x18x32xf32> to vector<16x16x32xf32>
    %135 = vector.shape_cast %134 : vector<16x16x32xf32> to vector<256x32xf32>
    %136 = vector.extract_strided_slice %129 {offsets = [1, 0, 0], sizes = [16, 16, 32], strides = [1, 1, 1]} : vector<18x18x32xf32> to vector<16x16x32xf32>
    %137 = vector.shape_cast %136 : vector<16x16x32xf32> to vector<256x32xf32>
    %138 = vector.extract_strided_slice %129 {offsets = [1, 1, 0], sizes = [16, 16, 32], strides = [1, 1, 1]} : vector<18x18x32xf32> to vector<16x16x32xf32>
    %139 = vector.shape_cast %138 : vector<16x16x32xf32> to vector<256x32xf32>
    %140 = vector.extract_strided_slice %129 {offsets = [1, 2, 0], sizes = [16, 16, 32], strides = [1, 1, 1]} : vector<18x18x32xf32> to vector<16x16x32xf32>
    %141 = vector.shape_cast %140 : vector<16x16x32xf32> to vector<256x32xf32>
    %142 = vector.extract_strided_slice %129 {offsets = [2, 0, 0], sizes = [16, 16, 32], strides = [1, 1, 1]} : vector<18x18x32xf32> to vector<16x16x32xf32>
    %143 = vector.shape_cast %142 : vector<16x16x32xf32> to vector<256x32xf32>
    %144 = vector.extract_strided_slice %129 {offsets = [2, 1, 0], sizes = [16, 16, 32], strides = [1, 1, 1]} : vector<18x18x32xf32> to vector<16x16x32xf32>
    %145 = vector.shape_cast %144 : vector<16x16x32xf32> to vector<256x32xf32>
    %146 = vector.extract_strided_slice %129 {offsets = [2, 2, 0], sizes = [16, 16, 32], strides = [1, 1, 1]} : vector<18x18x32xf32> to vector<16x16x32xf32>
    %147 = vector.shape_cast %146 : vector<16x16x32xf32> to vector<256x32xf32>
    %148 = tpu.concatenate %131, %133, %135, %137, %139, %141, %143, %145, %147 in 1 : vector<256x32xf32>, vector<256x32xf32>, vector<256x32xf32>, vector<256x32xf32>, vector<256x32xf32>, vector<256x32xf32>, vector<256x32xf32>, vector<256x32xf32>, vector<256x32xf32> -> vector<256x288xf32>
    %c0_58 = arith.constant 0 : index
    %c0_59 = arith.constant 0 : index
    %149 = vector.load %arg6[%c0_58, %c0_59] : memref<288x2xf32, #tpu.memory_space<vmem>>, vector<288x2xf32>
    %cst_60 = arith.constant dense<0.000000e+00> : vector<256x2xf32>
    %150 = tpu.matmul %148, %149, %cst_60 {dimension_numbers = #tpu.dot_dimension_numbers<[1], [0], [0], [1], [0, 0, 1, 1], [], []>} : vector<256x288xf32>, vector<288x2xf32>, vector<256x2xf32> -> vector<256x2xf32>
    %c0_61 = arith.constant 0 : index
    %c0_62 = arith.constant 0 : index
    %151 = vector.load %arg7[%c0_61, %c0_62] : memref<1x2xf32, #tpu.memory_space<vmem>>, vector<1x2xf32>
    %152 = vector.broadcast %151 : vector<1x2xf32> to vector<256x2xf32>
    %153 = arith.addf %150, %152 : vector<256x2xf32>
    %154 = vector.extract_strided_slice %3 {offsets = [1, 1, 0], sizes = [16, 16, 2], strides = [1, 1, 1]} : vector<18x18x2xf32> to vector<16x16x2xf32>
    %155 = vector.shape_cast %154 : vector<16x16x2xf32> to vector<256x2xf32>
    %156 = arith.addf %155, %153 : vector<256x2xf32>
    %157 = vector.shape_cast %156 : vector<256x2xf32> to vector<16x16x2xf32>
    %c0_63 = arith.constant 0 : index
    %c0_64 = arith.constant 0 : index
    %c0_65 = arith.constant 0 : index
    %c0_66 = arith.constant 0 : index
    %158 = vector.load %arg8[%c0_63, %c0_64, %c0_65, %c0_66] : memref<1x16x16x2xf32, #tpu.memory_space<vmem>>, vector<1x16x16x2xf32>
    %159 = vector.shape_cast %158 : vector<1x16x16x2xf32> to vector<16x16x2xf32>
    %160 = vector.shape_cast %157 : vector<16x16x2xf32> to vector<1x16x16x2xf32>
    tpu.vector_store %arg8[%c0_63, %c0_64, %c0_65, %c0_66], %160 {strides = array<i32>} : memref<1x16x16x2xf32, #tpu.memory_space<vmem>>, vector<1x16x16x2xf32>,
    return
  }
  func.func @transform_0(%arg0: i32) -> (i32, i32, i32, i32) {
    %c0_i32 = arith.constant 0 : i32
    %c0_i32_0 = arith.constant 0 : i32
    %c0_i32_1 = arith.constant 0 : i32
    %c0_i32_2 = arith.constant 0 : i32
    return %arg0, %c0_i32, %c0_i32_0, %c0_i32_1 : i32, i32, i32, i32
  }
  func.func @transform_1(%arg0: i32) -> (i32, i32) {
    %c0_i32 = arith.constant 0 : i32
    %c0_i32_0 = arith.constant 0 : i32
    %c0_i32_1 = arith.constant 0 : i32
    return %c0_i32, %c0_i32_0 : i32, i32
  }
  func.func @transform_2(%arg0: i32) -> (i32, i32) {
    %c0_i32 = arith.constant 0 : i32
    %c0_i32_0 = arith.constant 0 : i32
    %c0_i32_1 = arith.constant 0 : i32
    return %c0_i32, %c0_i32_0 : i32, i32
  }
  func.func @transform_3(%arg0: i32) -> (i32, i32, i32) {
    %c0_i32 = arith.constant 0 : i32
    %c0_i32_0 = arith.constant 0 : i32
    %c0_i32_1 = arith.constant 0 : i32
    %c0_i32_2 = arith.constant 0 : i32
    return %c0_i32, %c0_i32_0, %c0_i32_1 : i32, i32, i32
  }
  func.func @transform_4(%arg0: i32) -> (i32, i32, i32) {
    %c0_i32 = arith.constant 0 : i32
    %c0_i32_0 = arith.constant 0 : i32
    %c0_i32_1 = arith.constant 0 : i32
    %c0_i32_2 = arith.constant 0 : i32
    return %c0_i32, %c0_i32_0, %c0_i32_1 : i32, i32, i32
  }
  func.func @transform_5(%arg0: i32) -> (i32, i32) {
    %c0_i32 = arith.constant 0 : i32
    %c0_i32_0 = arith.constant 0 : i32
    %c0_i32_1 = arith.constant 0 : i32
    return %c0_i32, %c0_i32_0 : i32, i32
  }
  func.func @transform_6(%arg0: i32) -> (i32, i32) {
    %c0_i32 = arith.constant 0 : i32
    %c0_i32_0 = arith.constant 0 : i32
    %c0_i32_1 = arith.constant 0 : i32
    return %c0_i32, %c0_i32_0 : i32, i32
  }
  func.func @transform_7(%arg0: i32) -> (i32, i32, i32, i32) {
    %c0_i32 = arith.constant 0 : i32
    %c0_i32_0 = arith.constant 0 : i32
    %c0_i32_1 = arith.constant 0 : i32
    %c0_i32_2 = arith.constant 0 : i32
    return %arg0, %c0_i32, %c0_i32_0, %c0_i32_1 : i32, i32, i32, i32
  }
}

</mosaic_0001>

<llo_original>
// kernel: tpu_custom_call.1
$region0: #{tpu_custom_call.1}
  #allocation0 [shape = 'u32[]', space=smem, size = 0x4, offset = 0x4, fixed_abs, tag = 'smem constant byte address 0x4 - core index']
  #allocation1 [shape = 'u32[144,128]{1,0:T(1,128)}', space=vmem, size = 0x12000, scoped, tag = 'internal scratch']
  #allocation2 [shape = 'f32[18,18,32]{2,1,0:T(8,128)}', space=vmem, size = 0x36000, scoped, tag = 'scratch operand']
  %s0 = inlined_call_operand.vmem [shape: f32[2,18,18,2], index: 0, kind: input, shape index: {}]
  %s1 = inlined_call_operand.vmem [shape: f32[18,32], index: 1, kind: input, shape index: {}]
  %s2 = inlined_call_operand.vmem [shape: f32[1,32], index: 2, kind: input, shape index: {}]
  %s3 = inlined_call_operand.vmem [shape: f32[3,288,32], index: 3, kind: input, shape index: {}]
  %s4 = inlined_call_operand.vmem [shape: f32[3,1,32], index: 4, kind: input, shape index: {}]
  %s5 = inlined_call_operand.vmem [shape: f32[288,2], index: 5, kind: input, shape index: {}]
  %s6 = inlined_call_operand.vmem [shape: f32[1,2], index: 6, kind: input, shape index: {}]
  %s7 = inlined_call_operand.vmem [shape: f32[2,16,16,2], index: 7, kind: output, shape index: {}]
  %s8 = sld [smem:[#allocation0]]
  $region61: #{tpu_custom_call.1} parent=0
    _
  %s10 = ssub.s32 1, %s8
  %s11 = scalar_select 0, %s10, %s8
  loop: start=0, step=1, limit=4
  $region2: #{tpu_custom_call.1} parent=0 // loop_pre_header
    _
  $region3: #{tpu_custom_call.1} parent=0 // loop_header
    %s13 = sphi 0, %s17
    %p14 = scmp.ge.s32.totalorder %s13, 4
    %s23 = sphi 0, %s25
    %s26 = sphi 0, %s23
    %s27 = sphi 0, %s26
    %s43 = sphi 0, %s27
    %s47 = sphi 0, %s47
    %s49 = sphi 0, %s47
    %s50 = sphi 0, %s49
    %s64 = sphi 0, %s50
    %s68 = sphi 0, %s68
    %s70 = sphi 0, %s68
    %s71 = sphi 0, %s70
    %s85 = sphi 0, %s71
    %s89 = sphi 0, %s89
    %s91 = sphi 0, %s89
    %s92 = sphi 0, %s91
    %s106 = sphi 0, %s92
    %s110 = sphi 0, %s110
    %s112 = sphi 0, %s110
    %s113 = sphi 0, %s112
    %s127 = sphi 0, %s113
    %s131 = sphi 0, %s131
    %s133 = sphi 0, %s131
    %s134 = sphi 0, %s133
    %s148 = sphi 0, %s134
    %s152 = sphi 0, %s152
    %s154 = sphi 0, %s152
    %s155 = sphi 0, %s154
    %s169 = sphi 0, %s155
    %s175 = sphi 0, %s177
    %s178 = sphi 0, %s175
    %s179 = sphi 0, %s178
    %s195 = sphi 0, %s179
  $region4: #{tpu_custom_call.1} parent=0 // loop_header_branch
    %16 = sbr.rel (%p14) target = $region8
  $region5: #{tpu_custom_call.1} parent=0 // loop_body
    %s18 = ssub.s32 %s13, 1
    %s19 = ssub.s32 %s13, 2
    %s20 = sadd.s32 %s13, 1
    %s21 = ssub.s32 %s13, %s20
    %p22 = scmp.eq.s32.totalorder %s21, 0
    %s24 = sadd.s32 %s23, 1
    %s25 = scalar_select %p22, %s23, %s24
    %p28 = pneg %p22
    %p29 = scmp.eq.s32.totalorder %s13, 1
    %p30 = por %p28, %p29
    %p31 = scmp.ne.s32.totalorder %s23, %s26
    %p32 = scmp.eq.s32.totalorder %s13, 0
    %p33 = por %p31, %p32
    %p34 = scmp.ne.s32.totalorder %s23, %s26
    %p35 = scmp.eq.s32.totalorder %s18, 1
    %p36 = por %p34, %p35
    %p37 = scmp.ne.s32.totalorder %s26, %s27
    %p38 = scmp.eq.s32.totalorder %s18, 0
    %p39 = por %p37, %p38
    %p40 = scmp.ne.s32.totalorder %s26, %s27
    %p41 = scmp.eq.s32.totalorder %s19, 1
    %p42 = por %p40, %p41
    %p44 = scmp.ne.s32.totalorder %s27, %s43
    %p45 = scmp.eq.s32.totalorder %s19, 0
    %p46 = por %p44, %p45
    %s48 = sadd.s32 %s47, 1
    %p51 = scmp.eq.s32.totalorder %s13, 1
    %p52 = scmp.ne.s32.totalorder %s47, %s49
    %p53 = scmp.eq.s32.totalorder %s13, 0
    %p54 = por %p52, %p53
    %p55 = scmp.ne.s32.totalorder %s47, %s49
    %p56 = scmp.eq.s32.totalorder %s18, 1
    %p57 = por %p55, %p56
    %p58 = scmp.ne.s32.totalorder %s49, %s50
    %p59 = scmp.eq.s32.totalorder %s18, 0
    %p60 = por %p58, %p59
    %p61 = scmp.ne.s32.totalorder %s49, %s50
    %p62 = scmp.eq.s32.totalorder %s19, 1
    %p63 = por %p61, %p62
    %p65 = scmp.ne.s32.totalorder %s50, %s64
    %p66 = scmp.eq.s32.totalorder %s19, 0
    %p67 = por %p65, %p66
    %s69 = sadd.s32 %s68, 1
    %p72 = scmp.eq.s32.totalorder %s13, 1
    %p73 = scmp.ne.s32.totalorder %s68, %s70
    %p74 = scmp.eq.s32.totalorder %s13, 0
    %p75 = por %p73, %p74
    %p76 = scmp.ne.s32.totalorder %s68, %s70
    %p77 = scmp.eq.s32.totalorder %s18, 1
    %p78 = por %p76, %p77
    %p79 = scmp.ne.s32.totalorder %s70, %s71
    %p80 = scmp.eq.s32.totalorder %s18, 0
    %p81 = por %p79, %p80
    %p82 = scmp.ne.s32.totalorder %s70, %s71
    %p83 = scmp.eq.s32.totalorder %s19, 1
    %p84 = por %p82, %p83
    %p86 = scmp.ne.s32.totalorder %s71, %s85
    %p87 = scmp.eq.s32.totalorder %s19, 0
    %p88 = por %p86, %p87
    %s90 = sadd.s32 %s89, 1
    %p93 = scmp.eq.s32.totalorder %s13, 1
    %p94 = scmp.ne.s32.totalorder %s89, %s91
    %p95 = scmp.eq.s32.totalorder %s13, 0
    %p96 = por %p94, %p95
    %p97 = scmp.ne.s32.totalorder %s89, %s91
    %p98 = scmp.eq.s32.totalorder %s18, 1
    %p99 = por %p97, %p98
    %p100 = scmp.ne.s32.totalorder %s91, %s92
    %p101 = scmp.eq.s32.totalorder %s18, 0
    %p102 = por %p100, %p101
    %p103 = scmp.ne.s32.totalorder %s91, %s92
    %p104 = scmp.eq.s32.totalorder %s19, 1
    %p105 = por %p103, %p104
    %p107 = scmp.ne.s32.totalorder %s92, %s106
    %p108 = scmp.eq.s32.totalorder %s19, 0
    %p109 = por %p107, %p108
    %s111 = sadd.s32 %s110, 1
    %p114 = scmp.eq.s32.totalorder %s13, 1
    %p115 = scmp.ne.s32.totalorder %s110, %s112
    %p116 = scmp.eq.s32.totalorder %s13, 0
    %p117 = por %p115, %p116
    %p118 = scmp.ne.s32.totalorder %s110, %s112
    %p119 = scmp.eq.s32.totalorder %s18, 1
    %p120 = por %p118, %p119
    %p121 = scmp.ne.s32.totalorder %s112, %s113
    %p122 = scmp.eq.s32.totalorder %s18, 0
    %p123 = por %p121, %p122
    %p124 = scmp.ne.s32.totalorder %s112, %s113
    %p125 = scmp.eq.s32.totalorder %s19, 1
    %p126 = por %p124, %p125
    %p128 = scmp.ne.s32.totalorder %s113, %s127
    %p129 = scmp.eq.s32.totalorder %s19, 0
    %p130 = por %p128, %p129
    %s132 = sadd.s32 %s131, 1
    %p135 = scmp.eq.s32.totalorder %s13, 1
    %p136 = scmp.ne.s32.totalorder %s131, %s133
    %p137 = scmp.eq.s32.totalorder %s13, 0
    %p138 = por %p136, %p137
    %p139 = scmp.ne.s32.totalorder %s131, %s133
    %p140 = scmp.eq.s32.totalorder %s18, 1
    %p141 = por %p139, %p140
    %p142 = scmp.ne.s32.totalorder %s133, %s134
    %p143 = scmp.eq.s32.totalorder %s18, 0
    %p144 = por %p142, %p143
    %p145 = scmp.ne.s32.totalorder %s133, %s134
    %p146 = scmp.eq.s32.totalorder %s19, 1
    %p147 = por %p145, %p146
    %p149 = scmp.ne.s32.totalorder %s134, %s148
    %p150 = scmp.eq.s32.totalorder %s19, 0
    %p151 = por %p149, %p150
    %s153 = sadd.s32 %s152, 1
    %p156 = scmp.eq.s32.totalorder %s13, 1
    %p157 = scmp.ne.s32.totalorder %s152, %s154
    %p158 = scmp.eq.s32.totalorder %s13, 0
    %p159 = por %p157, %p158
    %p160 = scmp.ne.s32.totalorder %s152, %s154
    %p161 = scmp.eq.s32.totalorder %s18, 1
    %p162 = por %p160, %p161
    %p163 = scmp.ne.s32.totalorder %s154, %s155
    %p164 = scmp.eq.s32.totalorder %s18, 0
    %p165 = por %p163, %p164
    %p166 = scmp.ne.s32.totalorder %s154, %s155
    %p167 = scmp.eq.s32.totalorder %s19, 1
    %p168 = por %p166, %p167
    %p170 = scmp.ne.s32.totalorder %s155, %s169
    %p171 = scmp.eq.s32.totalorder %s19, 0
    %p172 = por %p170, %p171
    %s173 = ssub.s32 %s13, %s20
    %p174 = scmp.eq.s32.totalorder %s173, 0
    %s176 = sadd.s32 %s175, 1
    %s177 = scalar_select %p174, %s175, %s176
    %p180 = pneg %p174
    %p181 = scmp.eq.s32.totalorder %s13, 1
    %p182 = por %p180, %p181
    %p183 = scmp.ne.s32.totalorder %s175, %s178
    %p184 = scmp.eq.s32.totalorder %s13, 0
    %p185 = por %p183, %p184
    %p186 = scmp.ne.s32.totalorder %s175, %s178
    %p187 = scmp.eq.s32.totalorder %s18, 1
    %p188 = por %p186, %p187
    %p189 = scmp.ne.s32.totalorder %s178, %s179
    %p190 = scmp.eq.s32.totalorder %s18, 0
    %p191 = por %p189, %p190
    %p192 = scmp.ne.s32.totalorder %s178, %s179
    %p193 = scmp.eq.s32.totalorder %s19, 1
    %p194 = por %p192, %p193
    %p196 = scmp.ne.s32.totalorder %s179, %s195
    %p197 = scmp.eq.s32.totalorder %s19, 0
    %p198 = por %p196, %p197
    %p199 = scmp.le.s32.totalorder 1, %s13
    %p200 = scmp.lt.s32.totalorder %s13, 3
    %p201 = pnand %p199, %p200
    %p202 = pneg %p201
    // Predicated region
    $region9: #{tpu_custom_call.1} parent=5 // pred_check
      _
    $region10: #{tpu_custom_call.1} parent=5 // pred_check_branch
      %204 = sbr.rel (%p201) target = $region12
    $region11: #{tpu_custom_call.1} parent=5 // pred_region
      %s205 = ssub.s32 %s13, 1
      // Predicated region
      $region13: #{tpu_custom_call.1} parent=11 // pred_check
        %p206 = pneg %p60
      $region14: #{tpu_custom_call.1} parent=11 // pred_check_branch
        %208 = sbr.rel (%p206) target = $region16
      $region15: #{tpu_custom_call.1} parent=11 // pred_region
        _
      $region16: #{tpu_custom_call.1} parent=11 // pred_fallthru
        _
      // Predicated region
      $region17: #{tpu_custom_call.1} parent=11 // pred_check
        %p209 = pneg %p81
      $region18: #{tpu_custom_call.1} parent=11 // pred_check_branch
        %211 = sbr.rel (%p209) target = $region20
      $region19: #{tpu_custom_call.1} parent=11 // pred_region
        _
      $region20: #{tpu_custom_call.1} parent=11 // pred_fallthru
        _
      // Predicated region
      $region21: #{tpu_custom_call.1} parent=11 // pred_check
        %p212 = pneg %p102
      $region22: #{tpu_custom_call.1} parent=11 // pred_check_branch
        %214 = sbr.rel (%p212) target = $region24
      $region23: #{tpu_custom_call.1} parent=11 // pred_region
        _
      $region24: #{tpu_custom_call.1} parent=11 // pred_fallthru
        _
      // Predicated region
      $region25: #{tpu_custom_call.1} parent=11 // pred_check
        %p215 = pneg %p123
      $region26: #{tpu_custom_call.1} parent=11 // pred_check_branch
        %217 = sbr.rel (%p215) target = $region28
      $region27: #{tpu_custom_call.1} parent=11 // pred_region
        _
      $region28: #{tpu_custom_call.1} parent=11 // pred_fallthru
        _
      // Predicated region
      $region29: #{tpu_custom_call.1} parent=11 // pred_check
        %p218 = pneg %p144
      $region30: #{tpu_custom_call.1} parent=11 // pred_check_branch
        %220 = sbr.rel (%p218) target = $region32
      $region31: #{tpu_custom_call.1} parent=11 // pred_region
        _
      $region32: #{tpu_custom_call.1} parent=11 // pred_fallthru
        _
      // Predicated region
      $region33: #{tpu_custom_call.1} parent=11 // pred_check
        %p221 = pneg %p165
      $region34: #{tpu_custom_call.1} parent=11 // pred_check_branch
        %223 = sbr.rel (%p221) target = $region36
      $region35: #{tpu_custom_call.1} parent=11 // pred_region
        _
      $region36: #{tpu_custom_call.1} parent=11 // pred_fallthru
        _
    $region12: #{tpu_custom_call.1} parent=5 // pred_fallthru
      _
    %p224 = scmp.lt.s32.totalorder %s13, 2
    // Predicated region
    $region37: #{tpu_custom_call.1} parent=5 // pred_check
      %p225 = pneg %p224
    $region38: #{tpu_custom_call.1} parent=5 // pred_check_branch
      %227 = sbr.rel (%p225) target = $region40
    $region39: #{tpu_custom_call.1} parent=5 // pred_region
      // Predicated region
      $region41: #{tpu_custom_call.1} parent=39 // pred_check
        %p228 = pneg %p33
      $region42: #{tpu_custom_call.1} parent=39 // pred_check_branch
        %230 = sbr.rel (%p228) target = $region44
      $region43: #{tpu_custom_call.1} parent=39 // pred_region
        %p231 = scmp.lt.s32.totalorder %s13, 1
        %s232 = scalar_select %p231, %s13, 1
        %s233 = smul.addr %s232, 54
        %s234 = smul.addr %s233, 8
        %s235 = scalar_lea.vmem %s0, %s234
      $region44: #{tpu_custom_call.1} parent=39 // pred_fallthru
        _
    $region40: #{tpu_custom_call.1} parent=5 // pred_fallthru
      _
    %p236 = scmp.le.s32.totalorder 1, %s13
    %p237 = scmp.lt.s32.totalorder %s13, 3
    %p238 = pnand %p236, %p237
    %p239 = pneg %p238
    // Predicated region
    $region45: #{tpu_custom_call.1} parent=5 // pred_check
      _
    $region46: #{tpu_custom_call.1} parent=5 // pred_check_branch
      %241 = sbr.rel (%p238) target = $region48
    $region47: #{tpu_custom_call.1} parent=5 // pred_region
      %s242 = ssub.s32 %s13, 1
      %p243 = scmp.lt.s32.totalorder %s18, 1
      %s244 = scalar_select %p243, %s18, 1
      %s245 = smul.addr %s244, 54
      %s246 = smul.addr %s245, 8
      %s247 = scalar_lea.vmem %s0, %s246
      %p248 = pneg %p39
      %p249 = pneg %p36
      %p250 = pneg %p60
      %p251 = pneg %p57
      %p252 = pneg %p81
      %p253 = pneg %p78
      %p254 = pneg %p102
      %p255 = pneg %p99
      %p256 = pneg %p123
      %p257 = pneg %p120
      %p258 = pneg %p144
      %p259 = pneg %p141
      %p260 = pneg %p165
      %p261 = pneg %p162
      %p262 = pneg %p191
      %p263 = pneg %p188
      %p264 = scmp.lt.s32.totalorder %s18, 1
      %s265 = scalar_select %p264, %s18, 1
      %s266 = smul.addr %s265, 32
      %s267 = smul.addr %s266, 8
      %s268 = scalar_lea.vmem %s7, %s267
      %p269 = scmp.lt.s32.totalorder %s18, 1
      %s270 = scalar_select %p269, %s18, 1
      %s271 = smul.addr %s270, 54
      %s272 = smul.addr %s271, 8
      %s273 = scalar_lea.vmem %s0, %s272
      %p274 = scmp.lt.s32.totalorder %s18, 1
      %s275 = scalar_select %p274, %s18, 1
      %s276 = smul.addr %s275, 32
      %s277 = smul.addr %s276, 8
      %s278 = scalar_lea.vmem %s7, %s277
      %vm279 = vcmask 261120
      %280 = vst.msk [vmem:[#allocation2] sm:$0xff] %vm279, 0.0
      %281 = vst.msk [vmem:[#allocation2 + $0x8] sm:$0xff] %vm279, 0.0
      %vm282 = vcmask 254976
      %283 = vst.msk [vmem:[#allocation2 + $0x10] sm:$0x3] %vm282, 0.0
      %284 = vst.msk [vmem:[#allocation2 + $0x18] sm:$0xff] %vm279, 0.0
      %285 = vst.msk [vmem:[#allocation2 + $0x20] sm:$0xff] %vm279, 0.0
      %286 = vst.msk [vmem:[#allocation2 + $0x28] sm:$0x3] %vm282, 0.0
      %287 = vst.msk [vmem:[#allocation2 + $0x30] sm:$0xff] %vm279, 0.0
      %288 = vst.msk [vmem:[#allocation2 + $0x38] sm:$0xff] %vm279, 0.0
      %289 = vst.msk [vmem:[#allocation2 + $0x40] sm:$0x3] %vm282, 0.0
      %290 = vst.msk [vmem:[#allocation2 + $0x48] sm:$0xff] %vm279, 0.0
      %291 = vst.msk [vmem:[#allocation2 + $0x50] sm:$0xff] %vm279, 0.0
      %292 = vst.msk [vmem:[#allocation2 + $0x58] sm:$0x3] %vm282, 0.0
      %293 = vst.msk [vmem:[#allocation2 + $0x60] sm:$0xff] %vm279, 0.0
      %294 = vst.msk [vmem:[#allocation2 + $0x68] sm:$0xff] %vm279, 0.0
      %295 = vst.msk [vmem:[#allocation2 + $0x70] sm:$0x3] %vm282, 0.0
      %296 = vst.msk [vmem:[#allocation2 + $0x78] sm:$0xff] %vm279, 0.0
      %297 = vst.msk [vmem:[#allocation2 + $0x80] sm:$0xff] %vm279, 0.0
      %298 = vst.msk [vmem:[#allocation2 + $0x88] sm:$0x3] %vm282, 0.0
      %299 = vst.msk [vmem:[#allocation2 + $0x90] sm:$0xff] %vm279, 0.0
      %300 = vst.msk [vmem:[#allocation2 + $0x98] sm:$0xff] %vm279, 0.0
      %301 = vst.msk [vmem:[#allocation2 + $0xa0] sm:$0x3] %vm282, 0.0
      %302 = vst.msk [vmem:[#allocation2 + $0xa8] sm:$0xff] %vm279, 0.0
      %303 = vst.msk [vmem:[#allocation2 + $0xb0] sm:$0xff] %vm279, 0.0
      %304 = vst.msk [vmem:[#allocation2 + $0xb8] sm:$0x3] %vm282, 0.0
      %305 = vst.msk [vmem:[#allocation2 + $0xc0] sm:$0xff] %vm279, 0.0
      %306 = vst.msk [vmem:[#allocation2 + $0xc8] sm:$0xff] %vm279, 0.0
      %307 = vst.msk [vmem:[#allocation2 + $0xd0] sm:$0x3] %vm282, 0.0
      %308 = vst.msk [vmem:[#allocation2 + $0xd8] sm:$0xff] %vm279, 0.0
      %309 = vst.msk [vmem:[#allocation2 + $0xe0] sm:$0xff] %vm279, 0.0
      %310 = vst.msk [vmem:[#allocation2 + $0xe8] sm:$0x3] %vm282, 0.0
      %311 = vst.msk [vmem:[#allocation2 + $0xf0] sm:$0xff] %vm279, 0.0
      %312 = vst.msk [vmem:[#allocation2 + $0xf8] sm:$0xff] %vm279, 0.0
      %313 = vst.msk [vmem:[#allocation2 + $0x100] sm:$0x3] %vm282, 0.0
      %314 = vst.msk [vmem:[#allocation2 + $0x108] sm:$0xff] %vm279, 0.0
      %315 = vst.msk [vmem:[#allocation2 + $0x110] sm:$0xff] %vm279, 0.0
      %316 = vst.msk [vmem:[#allocation2 + $0x118] sm:$0x3] %vm282, 0.0
      %317 = vst.msk [vmem:[#allocation2 + $0x120] sm:$0xff] %vm279, 0.0
      %318 = vst.msk [vmem:[#allocation2 + $0x128] sm:$0xff] %vm279, 0.0
      %319 = vst.msk [vmem:[#allocation2 + $0x130] sm:$0x3] %vm282, 0.0
      %320 = vst.msk [vmem:[#allocation2 + $0x138] sm:$0xff] %vm279, 0.0
      %321 = vst.msk [vmem:[#allocation2 + $0x140] sm:$0xff] %vm279, 0.0
      %322 = vst.msk [vmem:[#allocation2 + $0x148] sm:$0x3] %vm282, 0.0
      %323 = vst.msk [vmem:[#allocation2 + $0x150] sm:$0xff] %vm279, 0.0
      %324 = vst.msk [vmem:[#allocation2 + $0x158] sm:$0xff] %vm279, 0.0
      %325 = vst.msk [vmem:[#allocation2 + $0x160] sm:$0x3] %vm282, 0.0
      %326 = vst.msk [vmem:[#allocation2 + $0x168] sm:$0xff] %vm279, 0.0
      %327 = vst.msk [vmem:[#allocation2 + $0x170] sm:$0xff] %vm279, 0.0
      %328 = vst.msk [vmem:[#allocation2 + $0x178] sm:$0x3] %vm282, 0.0
      %329 = vst.msk [vmem:[#allocation2 + $0x180] sm:$0xff] %vm279, 0.0
      %330 = vst.msk [vmem:[#allocation2 + $0x188] sm:$0xff] %vm279, 0.0
      %331 = vst.msk [vmem:[#allocation2 + $0x190] sm:$0x3] %vm282, 0.0
      %332 = vst.msk [vmem:[#allocation2 + $0x198] sm:$0xff] %vm279, 0.0
      %333 = vst.msk [vmem:[#allocation2 + $0x1a0] sm:$0xff] %vm279, 0.0
      %334 = vst.msk [vmem:[#allocation2 + $0x1a8] sm:$0x3] %vm282, 0.0
      %v335 = vld [vmem:[%s273] sm:$0xff]
      %v336 = vld [vmem:[%s273 + $0x8] sm:$0xff]
      %v337 = vld [vmem:[%s273 + $0x10] sm:$0x3]
      %v338 = vld [vmem:[%s273 + $0x18] sm:$0xff]
      %v339 = vld [vmem:[%s273 + $0x20] sm:$0xff]
      %v340 = vld [vmem:[%s273 + $0x28] sm:$0x3]
      %v341 = vld [vmem:[%s273 + $0x30] sm:$0xff]
      %v342 = vld [vmem:[%s273 + $0x38] sm:$0xff]
      %v343 = vld [vmem:[%s273 + $0x40] sm:$0x3]
      %v344 = vld [vmem:[%s273 + $0x48] sm:$0xff]
      %v345 = vld [vmem:[%s273 + $0x50] sm:$0xff]
      %v346 = vld [vmem:[%s273 + $0x58] sm:$0x3]
      %v347 = vld [vmem:[%s273 + $0x60] sm:$0xff]
      %v348 = vld [vmem:[%s273 + $0x68] sm:$0xff]
      %v349 = vld [vmem:[%s273 + $0x70] sm:$0x3]
      %v350 = vld [vmem:[%s273 + $0x78] sm:$0xff]
      %v351 = vld [vmem:[%s273 + $0x80] sm:$0xff]
      %v352 = vld [vmem:[%s273 + $0x88] sm:$0x3]
      %v353 = vld [vmem:[%s273 + $0x90] sm:$0xff]
      %v354 = vld [vmem:[%s273 + $0x98] sm:$0xff]
      %v355 = vld [vmem:[%s273 + $0xa0] sm:$0x3]
      %v356 = vld [vmem:[%s273 + $0xa8] sm:$0xff]
      %v357 = vld [vmem:[%s273 + $0xb0] sm:$0xff]
      %v358 = vld [vmem:[%s273 + $0xb8] sm:$0x3]
      %v359 = vld [vmem:[%s273 + $0xc0] sm:$0xff]
      %v360 = vld [vmem:[%s273 + $0xc8] sm:$0xff]
      %v361 = vld [vmem:[%s273 + $0xd0] sm:$0x3]
      %v362 = vld [vmem:[%s273 + $0xd8] sm:$0xff]
      %v363 = vld [vmem:[%s273 + $0xe0] sm:$0xff]
      %v364 = vld [vmem:[%s273 + $0xe8] sm:$0x3]
      %v365 = vld [vmem:[%s273 + $0xf0] sm:$0xff]
      %v366 = vld [vmem:[%s273 + $0xf8] sm:$0xff]
      %v367 = vld [vmem:[%s273 + $0x100] sm:$0x3]
      %v368 = vld [vmem:[%s273 + $0x108] sm:$0xff]
      %v369 = vld [vmem:[%s273 + $0x110] sm:$0xff]
      %v370 = vld [vmem:[%s273 + $0x118] sm:$0x3]
      %v371 = vld [vmem:[%s273 + $0x120] sm:$0xff]
      %v372 = vld [vmem:[%s273 + $0x128] sm:$0xff]
      %v373 = vld [vmem:[%s273 + $0x130] sm:$0x3]
      %v374 = vld [vmem:[%s273 + $0x138] sm:$0xff]
      %v375 = vld [vmem:[%s273 + $0x140] sm:$0xff]
      %v376 = vld [vmem:[%s273 + $0x148] sm:$0x3]
      %v377 = vld [vmem:[%s273 + $0x150] sm:$0xff]
      %v378 = vld [vmem:[%s273 + $0x158] sm:$0xff]
      %v379 = vld [vmem:[%s273 + $0x160] sm:$0x3]
      %v380 = vld [vmem:[%s273 + $0x168] sm:$0xff]
      %v381 = vld [vmem:[%s273 + $0x170] sm:$0xff]
      %v382 = vld [vmem:[%s273 + $0x178] sm:$0x3]
      %v383 = vld [vmem:[%s273 + $0x180] sm:$0xff]
      %v384 = vld [vmem:[%s273 + $0x188] sm:$0xff]
      %v385 = vld [vmem:[%s273 + $0x190] sm:$0x3]
      %v386 = vld [vmem:[%s273 + $0x198] sm:$0xff]
      %v387 = vld [vmem:[%s273 + $0x1a0] sm:$0xff]
      %v388 = vld [vmem:[%s273 + $0x1a8] sm:$0x3]
      %vm437 = vcmask 1046528
      %v438 = vrot.slane %v335, 1
      %v439 = vrot.slane %v336, 1
      %v440 = vsel %vm437, %v438, %v439
      %v441 = vrot.slane %v337, 1
      %v442 = vsel %vm437, %v439, %v441
      %v443 = vrot.slane %v338, 1
      %v444 = vrot.slane %v339, 1
      %v445 = vsel %vm437, %v443, %v444
      %v446 = vrot.slane %v340, 1
      %v447 = vsel %vm437, %v444, %v446
      %v448 = vrot.slane %v341, 1
      %v449 = vrot.slane %v342, 1
      %v450 = vsel %vm437, %v448, %v449
      %v451 = vrot.slane %v343, 1
      %v452 = vsel %vm437, %v449, %v451
      %v453 = vrot.slane %v344, 1
      %v454 = vrot.slane %v345, 1
      %v455 = vsel %vm437, %v453, %v454
      %v456 = vrot.slane %v346, 1
      %v457 = vsel %vm437, %v454, %v456
      %v458 = vrot.slane %v347, 1
      %v459 = vrot.slane %v348, 1
      %v460 = vsel %vm437, %v458, %v459
      %v461 = vrot.slane %v349, 1
      %v462 = vsel %vm437, %v459, %v461
      %v463 = vrot.slane %v350, 1
      %v464 = vrot.slane %v351, 1
      %v465 = vsel %vm437, %v463, %v464
      %v466 = vrot.slane %v352, 1
      %v467 = vsel %vm437, %v464, %v466
      %v468 = vrot.slane %v353, 1
      %v469 = vrot.slane %v354, 1
      %v470 = vsel %vm437, %v468, %v469
      %v471 = vrot.slane %v355, 1
      %v472 = vsel %vm437, %v469, %v471
      %v473 = vrot.slane %v356, 1
      %v474 = vrot.slane %v357, 1
      %v475 = vsel %vm437, %v473, %v474
      %v476 = vrot.slane %v358, 1
      %v477 = vsel %vm437, %v474, %v476
      %v478 = vrot.slane %v359, 1
      %v479 = vrot.slane %v360, 1
      %v480 = vsel %vm437, %v478, %v479
      %v481 = vrot.slane %v361, 1
      %v482 = vsel %vm437, %v479, %v481
      %v483 = vrot.slane %v362, 1
      %v484 = vrot.slane %v363, 1
      %v485 = vsel %vm437, %v483, %v484
      %v486 = vrot.slane %v364, 1
      %v487 = vsel %vm437, %v484, %v486
      %v488 = vrot.slane %v365, 1
      %v489 = vrot.slane %v366, 1
      %v490 = vsel %vm437, %v488, %v489
      %v491 = vrot.slane %v367, 1
      %v492 = vsel %vm437, %v489, %v491
      %v493 = vrot.slane %v368, 1
      %v494 = vrot.slane %v369, 1
      %v495 = vsel %vm437, %v493, %v494
      %v496 = vrot.slane %v370, 1
      %v497 = vsel %vm437, %v494, %v496
      %v498 = vrot.slane %v371, 1
      %v499 = vrot.slane %v372, 1
      %v500 = vsel %vm437, %v498, %v499
      %v501 = vrot.slane %v373, 1
      %v502 = vsel %vm437, %v499, %v501
      %v503 = vrot.slane %v374, 1
      %v504 = vrot.slane %v375, 1
      %v505 = vsel %vm437, %v503, %v504
      %v506 = vrot.slane %v376, 1
      %v507 = vsel %vm437, %v504, %v506
      %v508 = vrot.slane %v377, 1
      %v509 = vrot.slane %v378, 1
      %v510 = vsel %vm437, %v508, %v509
      %v511 = vrot.slane %v379, 1
      %v512 = vsel %vm437, %v509, %v511
      %v513 = vrot.slane %v380, 1
      %v514 = vrot.slane %v381, 1
      %v515 = vsel %vm437, %v513, %v514
      %v516 = vrot.slane %v382, 1
      %v517 = vsel %vm437, %v514, %v516
      %vm518 = vcmask 1045504
      %v519 = vrot.slane %v335, 2
      %v520 = vrot.slane %v336, 2
      %v521 = vsel %vm518, %v519, %v520
      %v522 = vrot.slane %v337, 2
      %v523 = vsel %vm518, %v520, %v522
      %v524 = vrot.slane %v338, 2
      %v525 = vrot.slane %v339, 2
      %v526 = vsel %vm518, %v524, %v525
      %v527 = vrot.slane %v340, 2
      %v528 = vsel %vm518, %v525, %v527
      %v529 = vrot.slane %v341, 2
      %v530 = vrot.slane %v342, 2
      %v531 = vsel %vm518, %v529, %v530
      %v532 = vrot.slane %v343, 2
      %v533 = vsel %vm518, %v530, %v532
      %v534 = vrot.slane %v344, 2
      %v535 = vrot.slane %v345, 2
      %v536 = vsel %vm518, %v534, %v535
      %v537 = vrot.slane %v346, 2
      %v538 = vsel %vm518, %v535, %v537
      %v539 = vrot.slane %v347, 2
      %v540 = vrot.slane %v348, 2
      %v541 = vsel %vm518, %v539, %v540
      %v542 = vrot.slane %v349, 2
      %v543 = vsel %vm518, %v540, %v542
      %v544 = vrot.slane %v350, 2
      %v545 = vrot.slane %v351, 2
      %v546 = vsel %vm518, %v544, %v545
      %v547 = vrot.slane %v352, 2
      %v548 = vsel %vm518, %v545, %v547
      %v549 = vrot.slane %v353, 2
      %v550 = vrot.slane %v354, 2
      %v551 = vsel %vm518, %v549, %v550
      %v552 = vrot.slane %v355, 2
      %v553 = vsel %vm518, %v550, %v552
      %v554 = vrot.slane %v356, 2
      %v555 = vrot.slane %v357, 2
      %v556 = vsel %vm518, %v554, %v555
      %v557 = vrot.slane %v358, 2
      %v558 = vsel %vm518, %v555, %v557
      %v559 = vrot.slane %v359, 2
      %v560 = vrot.slane %v360, 2
      %v561 = vsel %vm518, %v559, %v560
      %v562 = vrot.slane %v361, 2
      %v563 = vsel %vm518, %v560, %v562
      %v564 = vrot.slane %v362, 2
      %v565 = vrot.slane %v363, 2
      %v566 = vsel %vm518, %v564, %v565
      %v567 = vrot.slane %v364, 2
      %v568 = vsel %vm518, %v565, %v567
      %v569 = vrot.slane %v365, 2
      %v570 = vrot.slane %v366, 2
      %v571 = vsel %vm518, %v569, %v570
      %v572 = vrot.slane %v367, 2
      %v573 = vsel %vm518, %v570, %v572
      %v574 = vrot.slane %v368, 2
      %v575 = vrot.slane %v369, 2
      %v576 = vsel %vm518, %v574, %v575
      %v577 = vrot.slane %v370, 2
      %v578 = vsel %vm518, %v575, %v577
      %v579 = vrot.slane %v371, 2
      %v580 = vrot.slane %v372, 2
      %v581 = vsel %vm518, %v579, %v580
      %v582 = vrot.slane %v373, 2
      %v583 = vsel %vm518, %v580, %v582
      %v584 = vrot.slane %v374, 2
      %v585 = vrot.slane %v375, 2
      %v586 = vsel %vm518, %v584, %v585
      %v587 = vrot.slane %v376, 2
      %v588 = vsel %vm518, %v585, %v587
      %v589 = vrot.slane %v377, 2
      %v590 = vrot.slane %v378, 2
      %v591 = vsel %vm518, %v589, %v590
      %v592 = vrot.slane %v379, 2
      %v593 = vsel %vm518, %v590, %v592
      %v594 = vrot.slane %v380, 2
      %v595 = vrot.slane %v381, 2
      %v596 = vsel %vm518, %v594, %v595
      %v597 = vrot.slane %v382, 2
      %v598 = vsel %vm518, %v595, %v597
      %v602 = vrot.slane %v383, 1
      %v603 = vrot.slane %v384, 1
      %v604 = vsel %vm437, %v602, %v603
      %v605 = vrot.slane %v385, 1
      %v606 = vsel %vm437, %v603, %v605
      %v639 = vrot.slane %v383, 2
      %v640 = vrot.slane %v384, 2
      %v641 = vsel %vm518, %v639, %v640
      %v642 = vrot.slane %v385, 2
      %v643 = vsel %vm518, %v640, %v642
      %v647 = vrot.slane %v386, 1
      %v648 = vrot.slane %v387, 1
      %v649 = vsel %vm437, %v647, %v648
      %v650 = vrot.slane %v388, 1
      %v651 = vsel %vm437, %v648, %v650
      %v652 = vrot.slane %v386, 2
      %v653 = vrot.slane %v387, 2
      %v654 = vsel %vm518, %v652, %v653
      %v655 = vrot.slane %v388, 2
      %v656 = vsel %vm518, %v653, %v655
      %657 = vrot.lane.b32.xlu0 %v440, 2
      %v658 = vpop.permute.xlu0 %657
      %659 = vrot.lane.b32.xlu0 %v442, 2
      %v660 = vpop.permute.xlu0 %659
      %661 = vrot.lane.b32.xlu0 %v445, 2
      %v662 = vpop.permute.xlu0 %661
      %663 = vrot.lane.b32.xlu0 %v447, 2
      %v664 = vpop.permute.xlu0 %663
      %665 = vrot.lane.b32.xlu0 %v450, 2
      %v666 = vpop.permute.xlu0 %665
      %667 = vrot.lane.b32.xlu0 %v452, 2
      %v668 = vpop.permute.xlu0 %667
      %669 = vrot.lane.b32.xlu0 %v455, 2
      %v670 = vpop.permute.xlu0 %669
      %671 = vrot.lane.b32.xlu0 %v457, 2
      %v672 = vpop.permute.xlu0 %671
      %673 = vrot.lane.b32.xlu0 %v460, 2
      %v674 = vpop.permute.xlu0 %673
      %675 = vrot.lane.b32.xlu0 %v462, 2
      %v676 = vpop.permute.xlu0 %675
      %677 = vrot.lane.b32.xlu0 %v465, 2
      %v678 = vpop.permute.xlu0 %677
      %679 = vrot.lane.b32.xlu0 %v467, 2
      %v680 = vpop.permute.xlu0 %679
      %681 = vrot.lane.b32.xlu0 %v470, 2
      %v682 = vpop.permute.xlu0 %681
      %683 = vrot.lane.b32.xlu0 %v472, 2
      %v684 = vpop.permute.xlu0 %683
      %685 = vrot.lane.b32.xlu0 %v475, 2
      %v686 = vpop.permute.xlu0 %685
      %687 = vrot.lane.b32.xlu0 %v477, 2
      %v688 = vpop.permute.xlu0 %687
      %689 = vrot.lane.b32.xlu0 %v480, 2
      %v690 = vpop.permute.xlu0 %689
      %691 = vrot.lane.b32.xlu0 %v482, 2
      %v692 = vpop.permute.xlu0 %691
      %693 = vrot.lane.b32.xlu0 %v485, 2
      %v694 = vpop.permute.xlu0 %693
      %695 = vrot.lane.b32.xlu0 %v487, 2
      %v696 = vpop.permute.xlu0 %695
      %697 = vrot.lane.b32.xlu0 %v490, 2
      %v698 = vpop.permute.xlu0 %697
      %699 = vrot.lane.b32.xlu0 %v492, 2
      %v700 = vpop.permute.xlu0 %699
      %701 = vrot.lane.b32.xlu0 %v495, 2
      %v702 = vpop.permute.xlu0 %701
      %703 = vrot.lane.b32.xlu0 %v497, 2
      %v704 = vpop.permute.xlu0 %703
      %705 = vrot.lane.b32.xlu0 %v500, 2
      %v706 = vpop.permute.xlu0 %705
      %707 = vrot.lane.b32.xlu0 %v502, 2
      %v708 = vpop.permute.xlu0 %707
      %709 = vrot.lane.b32.xlu0 %v505, 2
      %v710 = vpop.permute.xlu0 %709
      %711 = vrot.lane.b32.xlu0 %v507, 2
      %v712 = vpop.permute.xlu0 %711
      %713 = vrot.lane.b32.xlu0 %v510, 2
      %v714 = vpop.permute.xlu0 %713
      %715 = vrot.lane.b32.xlu0 %v512, 2
      %v716 = vpop.permute.xlu0 %715
      %717 = vrot.lane.b32.xlu0 %v515, 2
      %v718 = vpop.permute.xlu0 %717
      %719 = vrot.lane.b32.xlu0 %v517, 2
      %v720 = vpop.permute.xlu0 %719
      %753 = vrot.lane.b32.xlu0 %v521, 4
      %v754 = vpop.permute.xlu0 %753
      %755 = vrot.lane.b32.xlu0 %v523, 4
      %v756 = vpop.permute.xlu0 %755
      %757 = vrot.lane.b32.xlu0 %v526, 4
      %v758 = vpop.permute.xlu0 %757
      %759 = vrot.lane.b32.xlu0 %v528, 4
      %v760 = vpop.permute.xlu0 %759
      %761 = vrot.lane.b32.xlu0 %v531, 4
      %v762 = vpop.permute.xlu0 %761
      %763 = vrot.lane.b32.xlu0 %v533, 4
      %v764 = vpop.permute.xlu0 %763
      %765 = vrot.lane.b32.xlu0 %v536, 4
      %v766 = vpop.permute.xlu0 %765
      %767 = vrot.lane.b32.xlu0 %v538, 4
      %v768 = vpop.permute.xlu0 %767
      %769 = vrot.lane.b32.xlu0 %v541, 4
      %v770 = vpop.permute.xlu0 %769
      %771 = vrot.lane.b32.xlu0 %v543, 4
      %v772 = vpop.permute.xlu0 %771
      %773 = vrot.lane.b32.xlu0 %v546, 4
      %v774 = vpop.permute.xlu0 %773
      %775 = vrot.lane.b32.xlu0 %v548, 4
      %v776 = vpop.permute.xlu0 %775
      %777 = vrot.lane.b32.xlu0 %v551, 4
      %v778 = vpop.permute.xlu0 %777
      %779 = vrot.lane.b32.xlu0 %v553, 4
      %v780 = vpop.permute.xlu0 %779
      %781 = vrot.lane.b32.xlu0 %v556, 4
      %v782 = vpop.permute.xlu0 %781
      %783 = vrot.lane.b32.xlu0 %v558, 4
      %v784 = vpop.permute.xlu0 %783
      %785 = vrot.lane.b32.xlu0 %v561, 4
      %v786 = vpop.permute.xlu0 %785
      %787 = vrot.lane.b32.xlu0 %v563, 4
      %v788 = vpop.permute.xlu0 %787
      %789 = vrot.lane.b32.xlu0 %v566, 4
      %v790 = vpop.permute.xlu0 %789
      %791 = vrot.lane.b32.xlu0 %v568, 4
      %v792 = vpop.permute.xlu0 %791
      %793 = vrot.lane.b32.xlu0 %v571, 4
      %v794 = vpop.permute.xlu0 %793
      %795 = vrot.lane.b32.xlu0 %v573, 4
      %v796 = vpop.permute.xlu0 %795
      %797 = vrot.lane.b32.xlu0 %v576, 4
      %v798 = vpop.permute.xlu0 %797
      %799 = vrot.lane.b32.xlu0 %v578, 4
      %v800 = vpop.permute.xlu0 %799
      %801 = vrot.lane.b32.xlu0 %v581, 4
      %v802 = vpop.permute.xlu0 %801
      %803 = vrot.lane.b32.xlu0 %v583, 4
      %v804 = vpop.permute.xlu0 %803
      %805 = vrot.lane.b32.xlu0 %v586, 4
      %v806 = vpop.permute.xlu0 %805
      %807 = vrot.lane.b32.xlu0 %v588, 4
      %v808 = vpop.permute.xlu0 %807
      %809 = vrot.lane.b32.xlu0 %v591, 4
      %v810 = vpop.permute.xlu0 %809
      %811 = vrot.lane.b32.xlu0 %v593, 4
      %v812 = vpop.permute.xlu0 %811
      %813 = vrot.lane.b32.xlu0 %v596, 4
      %v814 = vpop.permute.xlu0 %813
      %815 = vrot.lane.b32.xlu0 %v598, 4
      %v816 = vpop.permute.xlu0 %815
      %849 = vrot.lane.b32.xlu0 %v338, 6
      %v850 = vpop.permute.xlu0 %849
      %851 = vrot.lane.b32.xlu0 %v339, 6
      %v852 = vpop.permute.xlu0 %851
      %853 = vrot.lane.b32.xlu0 %v341, 6
      %v854 = vpop.permute.xlu0 %853
      %855 = vrot.lane.b32.xlu0 %v342, 6
      %v856 = vpop.permute.xlu0 %855
      %857 = vrot.lane.b32.xlu0 %v344, 6
      %v858 = vpop.permute.xlu0 %857
      %859 = vrot.lane.b32.xlu0 %v345, 6
      %v860 = vpop.permute.xlu0 %859
      %861 = vrot.lane.b32.xlu0 %v347, 6
      %v862 = vpop.permute.xlu0 %861
      %863 = vrot.lane.b32.xlu0 %v348, 6
      %v864 = vpop.permute.xlu0 %863
      %865 = vrot.lane.b32.xlu0 %v350, 6
      %v866 = vpop.permute.xlu0 %865
      %867 = vrot.lane.b32.xlu0 %v351, 6
      %v868 = vpop.permute.xlu0 %867
      %869 = vrot.lane.b32.xlu0 %v353, 6
      %v870 = vpop.permute.xlu0 %869
      %871 = vrot.lane.b32.xlu0 %v354, 6
      %v872 = vpop.permute.xlu0 %871
      %873 = vrot.lane.b32.xlu0 %v356, 6
      %v874 = vpop.permute.xlu0 %873
      %875 = vrot.lane.b32.xlu0 %v357, 6
      %v876 = vpop.permute.xlu0 %875
      %877 = vrot.lane.b32.xlu0 %v359, 6
      %v878 = vpop.permute.xlu0 %877
      %879 = vrot.lane.b32.xlu0 %v360, 6
      %v880 = vpop.permute.xlu0 %879
      %881 = vrot.lane.b32.xlu0 %v362, 6
      %v882 = vpop.permute.xlu0 %881
      %883 = vrot.lane.b32.xlu0 %v363, 6
      %v884 = vpop.permute.xlu0 %883
      %885 = vrot.lane.b32.xlu0 %v365, 6
      %v886 = vpop.permute.xlu0 %885
      %887 = vrot.lane.b32.xlu0 %v366, 6
      %v888 = vpop.permute.xlu0 %887
      %889 = vrot.lane.b32.xlu0 %v368, 6
      %v890 = vpop.permute.xlu0 %889
      %891 = vrot.lane.b32.xlu0 %v369, 6
      %v892 = vpop.permute.xlu0 %891
      %893 = vrot.lane.b32.xlu0 %v371, 6
      %v894 = vpop.permute.xlu0 %893
      %895 = vrot.lane.b32.xlu0 %v372, 6
      %v896 = vpop.permute.xlu0 %895
      %897 = vrot.lane.b32.xlu0 %v374, 6
      %v898 = vpop.permute.xlu0 %897
      %899 = vrot.lane.b32.xlu0 %v375, 6
      %v900 = vpop.permute.xlu0 %899
      %901 = vrot.lane.b32.xlu0 %v377, 6
      %v902 = vpop.permute.xlu0 %901
      %903 = vrot.lane.b32.xlu0 %v378, 6
      %v904 = vpop.permute.xlu0 %903
      %905 = vrot.lane.b32.xlu0 %v380, 6
      %v906 = vpop.permute.xlu0 %905
      %907 = vrot.lane.b32.xlu0 %v381, 6
      %v908 = vpop.permute.xlu0 %907
      %909 = vrot.lane.b32.xlu0 %v383, 6
      %v910 = vpop.permute.xlu0 %909
      %911 = vrot.lane.b32.xlu0 %v384, 6
      %v912 = vpop.permute.xlu0 %911
      %945 = vrot.lane.b32.xlu0 %v445, 8
      %v946 = vpop.permute.xlu0 %945
      %947 = vrot.lane.b32.xlu0 %v447, 8
      %v948 = vpop.permute.xlu0 %947
      %949 = vrot.lane.b32.xlu0 %v450, 8
      %v950 = vpop.permute.xlu0 %949
      %951 = vrot.lane.b32.xlu0 %v452, 8
      %v952 = vpop.permute.xlu0 %951
      %953 = vrot.lane.b32.xlu0 %v455, 8
      %v954 = vpop.permute.xlu0 %953
      %955 = vrot.lane.b32.xlu0 %v457, 8
      %v956 = vpop.permute.xlu0 %955
      %957 = vrot.lane.b32.xlu0 %v460, 8
      %v958 = vpop.permute.xlu0 %957
      %959 = vrot.lane.b32.xlu0 %v462, 8
      %v960 = vpop.permute.xlu0 %959
      %961 = vrot.lane.b32.xlu0 %v465, 8
      %v962 = vpop.permute.xlu0 %961
      %963 = vrot.lane.b32.xlu0 %v467, 8
      %v964 = vpop.permute.xlu0 %963
      %965 = vrot.lane.b32.xlu0 %v470, 8
      %v966 = vpop.permute.xlu0 %965
      %967 = vrot.lane.b32.xlu0 %v472, 8
      %v968 = vpop.permute.xlu0 %967
      %969 = vrot.lane.b32.xlu0 %v475, 8
      %v970 = vpop.permute.xlu0 %969
      %971 = vrot.lane.b32.xlu0 %v477, 8
      %v972 = vpop.permute.xlu0 %971
      %973 = vrot.lane.b32.xlu0 %v480, 8
      %v974 = vpop.permute.xlu0 %973
      %975 = vrot.lane.b32.xlu0 %v482, 8
      %v976 = vpop.permute.xlu0 %975
      %977 = vrot.lane.b32.xlu0 %v485, 8
      %v978 = vpop.permute.xlu0 %977
      %979 = vrot.lane.b32.xlu0 %v487, 8
      %v980 = vpop.permute.xlu0 %979
      %981 = vrot.lane.b32.xlu0 %v490, 8
      %v982 = vpop.permute.xlu0 %981
      %983 = vrot.lane.b32.xlu0 %v492, 8
      %v984 = vpop.permute.xlu0 %983
      %985 = vrot.lane.b32.xlu0 %v495, 8
      %v986 = vpop.permute.xlu0 %985
      %987 = vrot.lane.b32.xlu0 %v497, 8
      %v988 = vpop.permute.xlu0 %987
      %989 = vrot.lane.b32.xlu0 %v500, 8
      %v990 = vpop.permute.xlu0 %989
      %991 = vrot.lane.b32.xlu0 %v502, 8
      %v992 = vpop.permute.xlu0 %991
      %993 = vrot.lane.b32.xlu0 %v505, 8
      %v994 = vpop.permute.xlu0 %993
      %995 = vrot.lane.b32.xlu0 %v507, 8
      %v996 = vpop.permute.xlu0 %995
      %997 = vrot.lane.b32.xlu0 %v510, 8
      %v998 = vpop.permute.xlu0 %997
      %999 = vrot.lane.b32.xlu0 %v512, 8
      %v1000 = vpop.permute.xlu0 %999
      %1001 = vrot.lane.b32.xlu0 %v515, 8
      %v1002 = vpop.permute.xlu0 %1001
      %1003 = vrot.lane.b32.xlu0 %v517, 8
      %v1004 = vpop.permute.xlu0 %1003
      %1005 = vrot.lane.b32.xlu0 %v604, 8
      %v1006 = vpop.permute.xlu0 %1005
      %1007 = vrot.lane.b32.xlu0 %v606, 8
      %v1008 = vpop.permute.xlu0 %1007
      %1041 = vrot.lane.b32.xlu0 %v526, 10
      %v1042 = vpop.permute.xlu0 %1041
      %1043 = vrot.lane.b32.xlu0 %v528, 10
      %v1044 = vpop.permute.xlu0 %1043
      %1045 = vrot.lane.b32.xlu0 %v531, 10
      %v1046 = vpop.permute.xlu0 %1045
      %1047 = vrot.lane.b32.xlu0 %v533, 10
      %v1048 = vpop.permute.xlu0 %1047
      %1049 = vrot.lane.b32.xlu0 %v536, 10
      %v1050 = vpop.permute.xlu0 %1049
      %1051 = vrot.lane.b32.xlu0 %v538, 10
      %v1052 = vpop.permute.xlu0 %1051
      %1053 = vrot.lane.b32.xlu0 %v541, 10
      %v1054 = vpop.permute.xlu0 %1053
      %1055 = vrot.lane.b32.xlu0 %v543, 10
      %v1056 = vpop.permute.xlu0 %1055
      %1057 = vrot.lane.b32.xlu0 %v546, 10
      %v1058 = vpop.permute.xlu0 %1057
      %1059 = vrot.lane.b32.xlu0 %v548, 10
      %v1060 = vpop.permute.xlu0 %1059
      %1061 = vrot.lane.b32.xlu0 %v551, 10
      %v1062 = vpop.permute.xlu0 %1061
      %1063 = vrot.lane.b32.xlu0 %v553, 10
      %v1064 = vpop.permute.xlu0 %1063
      %1065 = vrot.lane.b32.xlu0 %v556, 10
      %v1066 = vpop.permute.xlu0 %1065
      %1067 = vrot.lane.b32.xlu0 %v558, 10
      %v1068 = vpop.permute.xlu0 %1067
      %1069 = vrot.lane.b32.xlu0 %v561, 10
      %v1070 = vpop.permute.xlu0 %1069
      %1071 = vrot.lane.b32.xlu0 %v563, 10
      %v1072 = vpop.permute.xlu0 %1071
      %1073 = vrot.lane.b32.xlu0 %v566, 10
      %v1074 = vpop.permute.xlu0 %1073
      %1075 = vrot.lane.b32.xlu0 %v568, 10
      %v1076 = vpop.permute.xlu0 %1075
      %1077 = vrot.lane.b32.xlu0 %v571, 10
      %v1078 = vpop.permute.xlu0 %1077
      %1079 = vrot.lane.b32.xlu0 %v573, 10
      %v1080 = vpop.permute.xlu0 %1079
      %1081 = vrot.lane.b32.xlu0 %v576, 10
      %v1082 = vpop.permute.xlu0 %1081
      %1083 = vrot.lane.b32.xlu0 %v578, 10
      %v1084 = vpop.permute.xlu0 %1083
      %1085 = vrot.lane.b32.xlu0 %v581, 10
      %v1086 = vpop.permute.xlu0 %1085
      %1087 = vrot.lane.b32.xlu0 %v583, 10
      %v1088 = vpop.permute.xlu0 %1087
      %1089 = vrot.lane.b32.xlu0 %v586, 10
      %v1090 = vpop.permute.xlu0 %1089
      %1091 = vrot.lane.b32.xlu0 %v588, 10
      %v1092 = vpop.permute.xlu0 %1091
      %1093 = vrot.lane.b32.xlu0 %v591, 10
      %v1094 = vpop.permute.xlu0 %1093
      %1095 = vrot.lane.b32.xlu0 %v593, 10
      %v1096 = vpop.permute.xlu0 %1095
      %1097 = vrot.lane.b32.xlu0 %v596, 10
      %v1098 = vpop.permute.xlu0 %1097
      %1099 = vrot.lane.b32.xlu0 %v598, 10
      %v1100 = vpop.permute.xlu0 %1099
      %1101 = vrot.lane.b32.xlu0 %v641, 10
      %v1102 = vpop.permute.xlu0 %1101
      %1103 = vrot.lane.b32.xlu0 %v643, 10
      %v1104 = vpop.permute.xlu0 %1103
      %1137 = vrot.lane.b32.xlu0 %v341, 12
      %v1138 = vpop.permute.xlu0 %1137
      %1139 = vrot.lane.b32.xlu0 %v342, 12
      %v1140 = vpop.permute.xlu0 %1139
      %1141 = vrot.lane.b32.xlu0 %v344, 12
      %v1142 = vpop.permute.xlu0 %1141
      %1143 = vrot.lane.b32.xlu0 %v345, 12
      %v1144 = vpop.permute.xlu0 %1143
      %1145 = vrot.lane.b32.xlu0 %v347, 12
      %v1146 = vpop.permute.xlu0 %1145
      %1147 = vrot.lane.b32.xlu0 %v348, 12
      %v1148 = vpop.permute.xlu0 %1147
      %1149 = vrot.lane.b32.xlu0 %v350, 12
      %v1150 = vpop.permute.xlu0 %1149
      %1151 = vrot.lane.b32.xlu0 %v351, 12
      %v1152 = vpop.permute.xlu0 %1151
      %1153 = vrot.lane.b32.xlu0 %v353, 12
      %v1154 = vpop.permute.xlu0 %1153
      %1155 = vrot.lane.b32.xlu0 %v354, 12
      %v1156 = vpop.permute.xlu0 %1155
      %1157 = vrot.lane.b32.xlu0 %v356, 12
      %v1158 = vpop.permute.xlu0 %1157
      %1159 = vrot.lane.b32.xlu0 %v357, 12
      %v1160 = vpop.permute.xlu0 %1159
      %1161 = vrot.lane.b32.xlu0 %v359, 12
      %v1162 = vpop.permute.xlu0 %1161
      %1163 = vrot.lane.b32.xlu0 %v360, 12
      %v1164 = vpop.permute.xlu0 %1163
      %1165 = vrot.lane.b32.xlu0 %v362, 12
      %v1166 = vpop.permute.xlu0 %1165
      %1167 = vrot.lane.b32.xlu0 %v363, 12
      %v1168 = vpop.permute.xlu0 %1167
      %1169 = vrot.lane.b32.xlu0 %v365, 12
      %v1170 = vpop.permute.xlu0 %1169
      %1171 = vrot.lane.b32.xlu0 %v366, 12
      %v1172 = vpop.permute.xlu0 %1171
      %1173 = vrot.lane.b32.xlu0 %v368, 12
      %v1174 = vpop.permute.xlu0 %1173
      %1175 = vrot.lane.b32.xlu0 %v369, 12
      %v1176 = vpop.permute.xlu0 %1175
      %1177 = vrot.lane.b32.xlu0 %v371, 12
      %v1178 = vpop.permute.xlu0 %1177
      %1179 = vrot.lane.b32.xlu0 %v372, 12
      %v1180 = vpop.permute.xlu0 %1179
      %1181 = vrot.lane.b32.xlu0 %v374, 12
      %v1182 = vpop.permute.xlu0 %1181
      %1183 = vrot.lane.b32.xlu0 %v375, 12
      %v1184 = vpop.permute.xlu0 %1183
      %1185 = vrot.lane.b32.xlu0 %v377, 12
      %v1186 = vpop.permute.xlu0 %1185
      %1187 = vrot.lane.b32.xlu0 %v378, 12
      %v1188 = vpop.permute.xlu0 %1187
      %1189 = vrot.lane.b32.xlu0 %v380, 12
      %v1190 = vpop.permute.xlu0 %1189
      %1191 = vrot.lane.b32.xlu0 %v381, 12
      %v1192 = vpop.permute.xlu0 %1191
      %1193 = vrot.lane.b32.xlu0 %v383, 12
      %v1194 = vpop.permute.xlu0 %1193
      %1195 = vrot.lane.b32.xlu0 %v384, 12
      %v1196 = vpop.permute.xlu0 %1195
      %1197 = vrot.lane.b32.xlu0 %v386, 12
      %v1198 = vpop.permute.xlu0 %1197
      %1199 = vrot.lane.b32.xlu0 %v387, 12
      %v1200 = vpop.permute.xlu0 %1199
      %1233 = vrot.lane.b32.xlu0 %v450, 14
      %v1234 = vpop.permute.xlu0 %1233
      %1235 = vrot.lane.b32.xlu0 %v452, 14
      %v1236 = vpop.permute.xlu0 %1235
      %1237 = vrot.lane.b32.xlu0 %v455, 14
      %v1238 = vpop.permute.xlu0 %1237
      %1239 = vrot.lane.b32.xlu0 %v457, 14
      %v1240 = vpop.permute.xlu0 %1239
      %1241 = vrot.lane.b32.xlu0 %v460, 14
      %v1242 = vpop.permute.xlu0 %1241
      %1243 = vrot.lane.b32.xlu0 %v462, 14
      %v1244 = vpop.permute.xlu0 %1243
      %1245 = vrot.lane.b32.xlu0 %v465, 14
      %v1246 = vpop.permute.xlu0 %1245
      %1247 = vrot.lane.b32.xlu0 %v467, 14
      %v1248 = vpop.permute.xlu0 %1247
      %1249 = vrot.lane.b32.xlu0 %v470, 14
      %v1250 = vpop.permute.xlu0 %1249
      %1251 = vrot.lane.b32.xlu0 %v472, 14
      %v1252 = vpop.permute.xlu0 %1251
      %1253 = vrot.lane.b32.xlu0 %v475, 14
      %v1254 = vpop.permute.xlu0 %1253
      %1255 = vrot.lane.b32.xlu0 %v477, 14
      %v1256 = vpop.permute.xlu0 %1255
      %1257 = vrot.lane.b32.xlu0 %v480, 14
      %v1258 = vpop.permute.xlu0 %1257
      %1259 = vrot.lane.b32.xlu0 %v482, 14
      %v1260 = vpop.permute.xlu0 %1259
      %1261 = vrot.lane.b32.xlu0 %v485, 14
      %v1262 = vpop.permute.xlu0 %1261
      %1263 = vrot.lane.b32.xlu0 %v487, 14
      %v1264 = vpop.permute.xlu0 %1263
      %1265 = vrot.lane.b32.xlu0 %v490, 14
      %v1266 = vpop.permute.xlu0 %1265
      %1267 = vrot.lane.b32.xlu0 %v492, 14
      %v1268 = vpop.permute.xlu0 %1267
      %1269 = vrot.lane.b32.xlu0 %v495, 14
      %v1270 = vpop.permute.xlu0 %1269
      %1271 = vrot.lane.b32.xlu0 %v497, 14
      %v1272 = vpop.permute.xlu0 %1271
      %1273 = vrot.lane.b32.xlu0 %v500, 14
      %v1274 = vpop.permute.xlu0 %1273
      %1275 = vrot.lane.b32.xlu0 %v502, 14
      %v1276 = vpop.permute.xlu0 %1275
      %1277 = vrot.lane.b32.xlu0 %v505, 14
      %v1278 = vpop.permute.xlu0 %1277
      %1279 = vrot.lane.b32.xlu0 %v507, 14
      %v1280 = vpop.permute.xlu0 %1279
      %1281 = vrot.lane.b32.xlu0 %v510, 14
      %v1282 = vpop.permute.xlu0 %1281
      %1283 = vrot.lane.b32.xlu0 %v512, 14
      %v1284 = vpop.permute.xlu0 %1283
      %1285 = vrot.lane.b32.xlu0 %v515, 14
      %v1286 = vpop.permute.xlu0 %1285
      %1287 = vrot.lane.b32.xlu0 %v517, 14
      %v1288 = vpop.permute.xlu0 %1287
      %1289 = vrot.lane.b32.xlu0 %v604, 14
      %v1290 = vpop.permute.xlu0 %1289
      %1291 = vrot.lane.b32.xlu0 %v606, 14
      %v1292 = vpop.permute.xlu0 %1291
      %1293 = vrot.lane.b32.xlu0 %v649, 14
      %v1294 = vpop.permute.xlu0 %1293
      %1295 = vrot.lane.b32.xlu0 %v651, 14
      %v1296 = vpop.permute.xlu0 %1295
      %1329 = vrot.lane.b32.xlu0 %v531, 16
      %v1330 = vpop.permute.xlu0 %1329
      %1331 = vrot.lane.b32.xlu0 %v533, 16
      %v1332 = vpop.permute.xlu0 %1331
      %1333 = vrot.lane.b32.xlu0 %v536, 16
      %v1334 = vpop.permute.xlu0 %1333
      %1335 = vrot.lane.b32.xlu0 %v538, 16
      %v1336 = vpop.permute.xlu0 %1335
      %1337 = vrot.lane.b32.xlu0 %v541, 16
      %v1338 = vpop.permute.xlu0 %1337
      %1339 = vrot.lane.b32.xlu0 %v543, 16
      %v1340 = vpop.permute.xlu0 %1339
      %1341 = vrot.lane.b32.xlu0 %v546, 16
      %v1342 = vpop.permute.xlu0 %1341
      %1343 = vrot.lane.b32.xlu0 %v548, 16
      %v1344 = vpop.permute.xlu0 %1343
      %1345 = vrot.lane.b32.xlu0 %v551, 16
      %v1346 = vpop.permute.xlu0 %1345
      %1347 = vrot.lane.b32.xlu0 %v553, 16
      %v1348 = vpop.permute.xlu0 %1347
      %1349 = vrot.lane.b32.xlu0 %v556, 16
      %v1350 = vpop.permute.xlu0 %1349
      %1351 = vrot.lane.b32.xlu0 %v558, 16
      %v1352 = vpop.permute.xlu0 %1351
      %1353 = vrot.lane.b32.xlu0 %v561, 16
      %v1354 = vpop.permute.xlu0 %1353
      %1355 = vrot.lane.b32.xlu0 %v563, 16
      %v1356 = vpop.permute.xlu0 %1355
      %1357 = vrot.lane.b32.xlu0 %v566, 16
      %v1358 = vpop.permute.xlu0 %1357
      %1359 = vrot.lane.b32.xlu0 %v568, 16
      %v1360 = vpop.permute.xlu0 %1359
      %1361 = vrot.lane.b32.xlu0 %v571, 16
      %v1362 = vpop.permute.xlu0 %1361
      %1363 = vrot.lane.b32.xlu0 %v573, 16
      %v1364 = vpop.permute.xlu0 %1363
      %1365 = vrot.lane.b32.xlu0 %v576, 16
      %v1366 = vpop.permute.xlu0 %1365
      %1367 = vrot.lane.b32.xlu0 %v578, 16
      %v1368 = vpop.permute.xlu0 %1367
      %1369 = vrot.lane.b32.xlu0 %v581, 16
      %v1370 = vpop.permute.xlu0 %1369
      %1371 = vrot.lane.b32.xlu0 %v583, 16
      %v1372 = vpop.permute.xlu0 %1371
      %1373 = vrot.lane.b32.xlu0 %v586, 16
      %v1374 = vpop.permute.xlu0 %1373
      %1375 = vrot.lane.b32.xlu0 %v588, 16
      %v1376 = vpop.permute.xlu0 %1375
      %1377 = vrot.lane.b32.xlu0 %v591, 16
      %v1378 = vpop.permute.xlu0 %1377
      %1379 = vrot.lane.b32.xlu0 %v593, 16
      %v1380 = vpop.permute.xlu0 %1379
      %1381 = vrot.lane.b32.xlu0 %v596, 16
      %v1382 = vpop.permute.xlu0 %1381
      %1383 = vrot.lane.b32.xlu0 %v598, 16
      %v1384 = vpop.permute.xlu0 %1383
      %1385 = vrot.lane.b32.xlu0 %v641, 16
      %v1386 = vpop.permute.xlu0 %1385
      %1387 = vrot.lane.b32.xlu0 %v643, 16
      %v1388 = vpop.permute.xlu0 %1387
      %1389 = vrot.lane.b32.xlu0 %v654, 16
      %v1390 = vpop.permute.xlu0 %1389
      %1391 = vrot.lane.b32.xlu0 %v656, 16
      %v1392 = vpop.permute.xlu0 %1391
      %vm1425 = vcmask 15360
      %v1426 = vsel %vm1425, %v335, %v658
      %v1427 = vsel %vm1425, %v336, %v660
      %v1428 = vsel %vm1425, %v338, %v662
      %v1429 = vsel %vm1425, %v339, %v664
      %v1430 = vsel %vm1425, %v341, %v666
      %v1431 = vsel %vm1425, %v342, %v668
      %v1432 = vsel %vm1425, %v344, %v670
      %v1433 = vsel %vm1425, %v345, %v672
      %v1434 = vsel %vm1425, %v347, %v674
      %v1435 = vsel %vm1425, %v348, %v676
      %v1436 = vsel %vm1425, %v350, %v678
      %v1437 = vsel %vm1425, %v351, %v680
      %v1438 = vsel %vm1425, %v353, %v682
      %v1439 = vsel %vm1425, %v354, %v684
      %v1440 = vsel %vm1425, %v356, %v686
      %v1441 = vsel %vm1425, %v357, %v688
      %v1442 = vsel %vm1425, %v359, %v690
      %v1443 = vsel %vm1425, %v360, %v692
      %v1444 = vsel %vm1425, %v362, %v694
      %v1445 = vsel %vm1425, %v363, %v696
      %v1446 = vsel %vm1425, %v365, %v698
      %v1447 = vsel %vm1425, %v366, %v700
      %v1448 = vsel %vm1425, %v368, %v702
      %v1449 = vsel %vm1425, %v369, %v704
      %v1450 = vsel %vm1425, %v371, %v706
      %v1451 = vsel %vm1425, %v372, %v708
      %v1452 = vsel %vm1425, %v374, %v710
      %v1453 = vsel %vm1425, %v375, %v712
      %v1454 = vsel %vm1425, %v377, %v714
      %v1455 = vsel %vm1425, %v378, %v716
      %v1456 = vsel %vm1425, %v380, %v718
      %v1457 = vsel %vm1425, %v381, %v720
      %vm1458 = vcmask 31744
      %v1459 = vsel %vm1458, %v1426, %v754
      %v1460 = vsel %vm1458, %v1427, %v756
      %v1461 = vsel %vm1458, %v1428, %v758
      %v1462 = vsel %vm1458, %v1429, %v760
      %v1463 = vsel %vm1458, %v1430, %v762
      %v1464 = vsel %vm1458, %v1431, %v764
      %v1465 = vsel %vm1458, %v1432, %v766
      %v1466 = vsel %vm1458, %v1433, %v768
      %v1467 = vsel %vm1458, %v1434, %v770
      %v1468 = vsel %vm1458, %v1435, %v772
      %v1469 = vsel %vm1458, %v1436, %v774
      %v1470 = vsel %vm1458, %v1437, %v776
      %v1471 = vsel %vm1458, %v1438, %v778
      %v1472 = vsel %vm1458, %v1439, %v780
      %v1473 = vsel %vm1458, %v1440, %v782
      %v1474 = vsel %vm1458, %v1441, %v784
      %v1475 = vsel %vm1458, %v1442, %v786
      %v1476 = vsel %vm1458, %v1443, %v788
      %v1477 = vsel %vm1458, %v1444, %v790
      %v1478 = vsel %vm1458, %v1445, %v792
      %v1479 = vsel %vm1458, %v1446, %v794
      %v1480 = vsel %vm1458, %v1447, %v796
      %v1481 = vsel %vm1458, %v1448, %v798
      %v1482 = vsel %vm1458, %v1449, %v800
      %v1483 = vsel %vm1458, %v1450, %v802
      %v1484 = vsel %vm1458, %v1451, %v804
      %v1485 = vsel %vm1458, %v1452, %v806
      %v1486 = vsel %vm1458, %v1453, %v808
      %v1487 = vsel %vm1458, %v1454, %v810
      %v1488 = vsel %vm1458, %v1455, %v812
      %v1489 = vsel %vm1458, %v1456, %v814
      %v1490 = vsel %vm1458, %v1457, %v816
      %vm1491 = vcmask 48128
      %v1492 = vsel %vm1491, %v1459, %v850
      %v1493 = vsel %vm1491, %v1460, %v852
      %v1494 = vsel %vm1491, %v1461, %v854
      %v1495 = vsel %vm1491, %v1462, %v856
      %v1496 = vsel %vm1491, %v1463, %v858
      %v1497 = vsel %vm1491, %v1464, %v860
      %v1498 = vsel %vm1491, %v1465, %v862
      %v1499 = vsel %vm1491, %v1466, %v864
      %v1500 = vsel %vm1491, %v1467, %v866
      %v1501 = vsel %vm1491, %v1468, %v868
      %v1502 = vsel %vm1491, %v1469, %v870
      %v1503 = vsel %vm1491, %v1470, %v872
      %v1504 = vsel %vm1491, %v1471, %v874
      %v1505 = vsel %vm1491, %v1472, %v876
      %v1506 = vsel %vm1491, %v1473, %v878
      %v1507 = vsel %vm1491, %v1474, %v880
      %v1508 = vsel %vm1491, %v1475, %v882
      %v1509 = vsel %vm1491, %v1476, %v884
      %v1510 = vsel %vm1491, %v1477, %v886
      %v1511 = vsel %vm1491, %v1478, %v888
      %v1512 = vsel %vm1491, %v1479, %v890
      %v1513 = vsel %vm1491, %v1480, %v892
      %v1514 = vsel %vm1491, %v1481, %v894
      %v1515 = vsel %vm1491, %v1482, %v896
      %v1516 = vsel %vm1491, %v1483, %v898
      %v1517 = vsel %vm1491, %v1484, %v900
      %v1518 = vsel %vm1491, %v1485, %v902
      %v1519 = vsel %vm1491, %v1486, %v904
      %v1520 = vsel %vm1491, %v1487, %v906
      %v1521 = vsel %vm1491, %v1488, %v908
      %v1522 = vsel %vm1491, %v1489, %v910
      %v1523 = vsel %vm1491, %v1490, %v912
      %vm1524 = vcmask 64512
      %v1525 = vsel %vm1524, %v1492, %v946
      %v1526 = vsel %vm1524, %v1493, %v948
      %v1527 = vsel %vm1524, %v1494, %v950
      %v1528 = vsel %vm1524, %v1495, %v952
      %v1529 = vsel %vm1524, %v1496, %v954
      %v1530 = vsel %vm1524, %v1497, %v956
      %v1531 = vsel %vm1524, %v1498, %v958
      %v1532 = vsel %vm1524, %v1499, %v960
      %v1533 = vsel %vm1524, %v1500, %v962
      %v1534 = vsel %vm1524, %v1501, %v964
      %v1535 = vsel %vm1524, %v1502, %v966
      %v1536 = vsel %vm1524, %v1503, %v968
      %v1537 = vsel %vm1524, %v1504, %v970
      %v1538 = vsel %vm1524, %v1505, %v972
      %v1539 = vsel %vm1524, %v1506, %v974
      %v1540 = vsel %vm1524, %v1507, %v976
      %v1541 = vsel %vm1524, %v1508, %v978
      %v1542 = vsel %vm1524, %v1509, %v980
      %v1543 = vsel %vm1524, %v1510, %v982
      %v1544 = vsel %vm1524, %v1511, %v984
      %v1545 = vsel %vm1524, %v1512, %v986
      %v1546 = vsel %vm1524, %v1513, %v988
      %v1547 = vsel %vm1524, %v1514, %v990
      %v1548 = vsel %vm1524, %v1515, %v992
      %v1549 = vsel %vm1524, %v1516, %v994
      %v1550 = vsel %vm1524, %v1517, %v996
      %v1551 = vsel %vm1524, %v1518, %v998
      %v1552 = vsel %vm1524, %v1519, %v1000
      %v1553 = vsel %vm1524, %v1520, %v1002
      %v1554 = vsel %vm1524, %v1521, %v1004
      %v1555 = vsel %vm1524, %v1522, %v1006
      %v1556 = vsel %vm1524, %v1523, %v1008
      %vm1557 = vcmask 80896
      %v1558 = vsel %vm1557, %v1525, %v1042
      %v1559 = vsel %vm1557, %v1526, %v1044
      %v1560 = vsel %vm1557, %v1527, %v1046
      %v1561 = vsel %vm1557, %v1528, %v1048
      %v1562 = vsel %vm1557, %v1529, %v1050
      %v1563 = vsel %vm1557, %v1530, %v1052
      %v1564 = vsel %vm1557, %v1531, %v1054
      %v1565 = vsel %vm1557, %v1532, %v1056
      %v1566 = vsel %vm1557, %v1533, %v1058
      %v1567 = vsel %vm1557, %v1534, %v1060
      %v1568 = vsel %vm1557, %v1535, %v1062
      %v1569 = vsel %vm1557, %v1536, %v1064
      %v1570 = vsel %vm1557, %v1537, %v1066
      %v1571 = vsel %vm1557, %v1538, %v1068
      %v1572 = vsel %vm1557, %v1539, %v1070
      %v1573 = vsel %vm1557, %v1540, %v1072
      %v1574 = vsel %vm1557, %v1541, %v1074
      %v1575 = vsel %vm1557, %v1542, %v1076
      %v1576 = vsel %vm1557, %v1543, %v1078
      %v1577 = vsel %vm1557, %v1544, %v1080
      %v1578 = vsel %vm1557, %v1545, %v1082
      %v1579 = vsel %vm1557, %v1546, %v1084
      %v1580 = vsel %vm1557, %v1547, %v1086
      %v1581 = vsel %vm1557, %v1548, %v1088
      %v1582 = vsel %vm1557, %v1549, %v1090
      %v1583 = vsel %vm1557, %v1550, %v1092
      %v1584 = vsel %vm1557, %v1551, %v1094
      %v1585 = vsel %vm1557, %v1552, %v1096
      %v1586 = vsel %vm1557, %v1553, %v1098
      %v1587 = vsel %vm1557, %v1554, %v1100
      %v1588 = vsel %vm1557, %v1555, %v1102
      %v1589 = vsel %vm1557, %v1556, %v1104
      %vm1590 = vcmask 97280
      %v1591 = vsel %vm1590, %v1558, %v1138
      %v1592 = vsel %vm1590, %v1559, %v1140
      %v1593 = vsel %vm1590, %v1560, %v1142
      %v1594 = vsel %vm1590, %v1561, %v1144
      %v1595 = vsel %vm1590, %v1562, %v1146
      %v1596 = vsel %vm1590, %v1563, %v1148
      %v1597 = vsel %vm1590, %v1564, %v1150
      %v1598 = vsel %vm1590, %v1565, %v1152
      %v1599 = vsel %vm1590, %v1566, %v1154
      %v1600 = vsel %vm1590, %v1567, %v1156
      %v1601 = vsel %vm1590, %v1568, %v1158
      %v1602 = vsel %vm1590, %v1569, %v1160
      %v1603 = vsel %vm1590, %v1570, %v1162
      %v1604 = vsel %vm1590, %v1571, %v1164
      %v1605 = vsel %vm1590, %v1572, %v1166
      %v1606 = vsel %vm1590, %v1573, %v1168
      %v1607 = vsel %vm1590, %v1574, %v1170
      %v1608 = vsel %vm1590, %v1575, %v1172
      %v1609 = vsel %vm1590, %v1576, %v1174
      %v1610 = vsel %vm1590, %v1577, %v1176
      %v1611 = vsel %vm1590, %v1578, %v1178
      %v1612 = vsel %vm1590, %v1579, %v1180
      %v1613 = vsel %vm1590, %v1580, %v1182
      %v1614 = vsel %vm1590, %v1581, %v1184
      %v1615 = vsel %vm1590, %v1582, %v1186
      %v1616 = vsel %vm1590, %v1583, %v1188
      %v1617 = vsel %vm1590, %v1584, %v1190
      %v1618 = vsel %vm1590, %v1585, %v1192
      %v1619 = vsel %vm1590, %v1586, %v1194
      %v1620 = vsel %vm1590, %v1587, %v1196
      %v1621 = vsel %vm1590, %v1588, %v1198
      %v1622 = vsel %vm1590, %v1589, %v1200
      %vm1623 = vcmask 113664
      %v1624 = vsel %vm1623, %v1591, %v1234
      %v1625 = vsel %vm1623, %v1592, %v1236
      %v1626 = vsel %vm1623, %v1593, %v1238
      %v1627 = vsel %vm1623, %v1594, %v1240
      %v1628 = vsel %vm1623, %v1595, %v1242
      %v1629 = vsel %vm1623, %v1596, %v1244
      %v1630 = vsel %vm1623, %v1597, %v1246
      %v1631 = vsel %vm1623, %v1598, %v1248
      %v1632 = vsel %vm1623, %v1599, %v1250
      %v1633 = vsel %vm1623, %v1600, %v1252
      %v1634 = vsel %vm1623, %v1601, %v1254
      %v1635 = vsel %vm1623, %v1602, %v1256
      %v1636 = vsel %vm1623, %v1603, %v1258
      %v1637 = vsel %vm1623, %v1604, %v1260
      %v1638 = vsel %vm1623, %v1605, %v1262
      %v1639 = vsel %vm1623, %v1606, %v1264
      %v1640 = vsel %vm1623, %v1607, %v1266
      %v1641 = vsel %vm1623, %v1608, %v1268
      %v1642 = vsel %vm1623, %v1609, %v1270
      %v1643 = vsel %vm1623, %v1610, %v1272
      %v1644 = vsel %vm1623, %v1611, %v1274
      %v1645 = vsel %vm1623, %v1612, %v1276
      %v1646 = vsel %vm1623, %v1613, %v1278
      %v1647 = vsel %vm1623, %v1614, %v1280
      %v1648 = vsel %vm1623, %v1615, %v1282
      %v1649 = vsel %vm1623, %v1616, %v1284
      %v1650 = vsel %vm1623, %v1617, %v1286
      %v1651 = vsel %vm1623, %v1618, %v1288
      %v1652 = vsel %vm1623, %v1619, %v1290
      %v1653 = vsel %vm1623, %v1620, %v1292
      %v1654 = vsel %vm1623, %v1621, %v1294
      %v1655 = vsel %vm1623, %v1622, %v1296
      %vm1656 = vcmask 130048
      %v1657 = vsel %vm1656, %v1624, %v1330
      %v1658 = vsel %vm1656, %v1625, %v1332
      %v1659 = vsel %vm1656, %v1626, %v1334
      %v1660 = vsel %vm1656, %v1627, %v1336
      %v1661 = vsel %vm1656, %v1628, %v1338
      %v1662 = vsel %vm1656, %v1629, %v1340
      %v1663 = vsel %vm1656, %v1630, %v1342
      %v1664 = vsel %vm1656, %v1631, %v1344
      %v1665 = vsel %vm1656, %v1632, %v1346
      %v1666 = vsel %vm1656, %v1633, %v1348
      %v1667 = vsel %vm1656, %v1634, %v1350
      %v1668 = vsel %vm1656, %v1635, %v1352
      %v1669 = vsel %vm1656, %v1636, %v1354
      %v1670 = vsel %vm1656, %v1637, %v1356
      %v1671 = vsel %vm1656, %v1638, %v1358
      %v1672 = vsel %vm1656, %v1639, %v1360
      %v1673 = vsel %vm1656, %v1640, %v1362
      %v1674 = vsel %vm1656, %v1641, %v1364
      %v1675 = vsel %vm1656, %v1642, %v1366
      %v1676 = vsel %vm1656, %v1643, %v1368
      %v1677 = vsel %vm1656, %v1644, %v1370
      %v1678 = vsel %vm1656, %v1645, %v1372
      %v1679 = vsel %vm1656, %v1646, %v1374
      %v1680 = vsel %vm1656, %v1647, %v1376
      %v1681 = vsel %vm1656, %v1648, %v1378
      %v1682 = vsel %vm1656, %v1649, %v1380
      %v1683 = vsel %vm1656, %v1650, %v1382
      %v1684 = vsel %vm1656, %v1651, %v1384
      %v1685 = vsel %vm1656, %v1652, %v1386
      %v1686 = vsel %vm1656, %v1653, %v1388
      %v1687 = vsel %vm1656, %v1654, %v1390
      %v1688 = vsel %vm1656, %v1655, %v1392
      %v1689 = vld [vmem:[%s1] sm:$0xff]
      %v1690 = vld [vmem:[%s1 + $0x8] sm:$0xff]
      %v1691 = vld [vmem:[%s1 + $0x10] sm:$0x3]
      %v1692 = vld [vmem:[%s2] sm:$0x1]
      %v1694 = vlaneseq
      %v1695 = vshrl.u32 %v1694, 7
      %v1696 = vsub.s32 0, %v1695
      %v1697 = vrot.slane %v1692, %v1696
      %vm1699 = vcmask 146432
      %v1701 = vsel %vm1699, %v1657, 0
      %v1704 = vsel %vm1699, %v1658, 0
      %v1707 = vsel %vm1699, %v1659, 0
      %v1710 = vsel %vm1699, %v1660, 0
      %v1713 = vsel %vm1699, %v1661, 0
      %v1716 = vsel %vm1699, %v1662, 0
      %v1719 = vsel %vm1699, %v1663, 0
      %v1722 = vsel %vm1699, %v1664, 0
      %v1725 = vsel %vm1699, %v1665, 0
      %v1728 = vsel %vm1699, %v1666, 0
      %v1731 = vsel %vm1699, %v1667, 0
      %v1734 = vsel %vm1699, %v1668, 0
      %v1737 = vsel %vm1699, %v1669, 0
      %v1740 = vsel %vm1699, %v1670, 0
      %v1743 = vsel %vm1699, %v1671, 0
      %v1746 = vsel %vm1699, %v1672, 0
      %v1749 = vsel %vm1699, %v1673, 0
      %v1752 = vsel %vm1699, %v1674, 0
      %v1755 = vsel %vm1699, %v1675, 0
      %v1758 = vsel %vm1699, %v1676, 0
      %v1761 = vsel %vm1699, %v1677, 0
      %v1764 = vsel %vm1699, %v1678, 0
      %v1767 = vsel %vm1699, %v1679, 0
      %v1770 = vsel %vm1699, %v1680, 0
      %v1773 = vsel %vm1699, %v1681, 0
      %v1776 = vsel %vm1699, %v1682, 0
      %v1779 = vsel %vm1699, %v1683, 0
      %v1782 = vsel %vm1699, %v1684, 0
      %v1785 = vsel %vm1699, %v1685, 0
      %v1788 = vsel %vm1699, %v1686, 0
      %v1791 = vsel %vm1699, %v1687, 0
      %v1794 = vsel %vm1699, %v1688, 0
      %vm1796 = vcmask 1041408
      %v1798 = vsel %vm1796, %v1691, 0
      %1800 = vmatprep.subr.mxu0 0.0
      %1801 = vmatpush1.msra.mxu0 0.0
      %1802 = vmatprep.subr.mxu0 0.0
      %1803 = vmatpush1.msra.mxu0 0.0
      %1804 = vmatprep.subr.mxu0 0.0
      %1805 = vmatpush1.msra.mxu0 0.0
      %1806 = vmatprep.subr.mxu0 0.0
      %1807 = vmatpush1.msra.mxu0 0.0
      %1808 = vmatprep.subr.mxu0 0.0
      %1809 = vmatpush1.msra.mxu0 0.0
      %1810 = vmatprep.subr.mxu0 0.0
      %1811 = vmatpush1.msra.mxu0 0.0
      %1812 = vmatprep.subr.mxu0 0.0
      %1813 = vmatpush1.msra.mxu0 0.0
      %1814 = vmatprep.subr.mxu0 0.0
      %1815 = vmatpush1.msra.mxu0 0.0
      %1816 = vmatprep.subr.mxu0 0.0
      %1817 = vmatpush1.msra.mxu0 0.0
      %1818 = vmatprep.subr.mxu0 0.0
      %1819 = vmatpush1.msra.mxu0 0.0
      %1820 = vmatprep.subr.mxu0 0.0
      %1821 = vmatpush1.msra.mxu0 0.0
      %1822 = vmatprep.subr.mxu0 0.0
      %1823 = vmatpush1.msra.mxu0 0.0
      %1824 = vmatprep.subr.mxu0 0.0
      %1825 = vmatpush1.msra.mxu0 0.0
      %1826 = vmatprep.subr.mxu0 0.0
      %1827 = vmatpush1.msra.mxu0 %v1798
      %1828 = vmatprep.subr.mxu0 0.0
      %1829 = vmatpush1.msra.mxu0 %v1690
      %1830 = vmatprep.subr.mxu0 0.0
      %1831 = vmatpush1.msra.mxu0 %v1689
      %1832 = vmatprep.subr.mxu0 0.0
      %1833 = vmatpush2.msra.mxu0 0.0
      %1834 = vmatprep.subr.mxu0 0.0
      %1835 = vmatpush2.msra.mxu0 0.0
      %1836 = vmatprep.subr.mxu0 0.0
      %1837 = vmatpush2.msra.mxu0 0.0
      %1838 = vmatprep.subr.mxu0 0.0
      %1839 = vmatpush2.msra.mxu0 0.0
      %1840 = vmatprep.subr.mxu0 0.0
      %1841 = vmatpush2.msra.mxu0 0.0
      %1842 = vmatprep.subr.mxu0 0.0
      %1843 = vmatpush2.msra.mxu0 0.0
      %1844 = vmatprep.subr.mxu0 0.0
      %1845 = vmatpush2.msra.mxu0 0.0
      %1846 = vmatprep.subr.mxu0 0.0
      %1847 = vmatpush2.msra.mxu0 0.0
      %1848 = vmatprep.subr.mxu0 0.0
      %1849 = vmatpush2.msra.mxu0 0.0
      %1850 = vmatprep.subr.mxu0 0.0
      %1851 = vmatpush2.msra.mxu0 0.0
      %1852 = vmatprep.subr.mxu0 0.0
      %1853 = vmatpush2.msra.mxu0 0.0
      %1854 = vmatprep.subr.mxu0 0.0
      %1855 = vmatpush2.msra.mxu0 0.0
      %1856 = vmatprep.subr.mxu0 0.0
      %1857 = vmatpush2.msra.mxu0 0.0
      %1858 = vmatprep.subr.mxu0 0.0
      %1859 = vmatpush2.msra.mxu0 0.0
      %1860 = vmatprep.subr.mxu0 0.0
      %1861 = vmatpush2.msra.mxu0 0.0
      %1862 = vmatprep.subr.mxu0 0.0
      %1863 = vmatpush2.msra.mxu0 0.0
      %1864 = vmatprep.mubr.f32.mxu0 0.0
      %1865 = vmatmul.mubr.f32.gmra.mxu0 %v1701
      %v1866 = vpop.f32.mrf.mxu0
      %v1867 = vadd.f32 %v1697, %v1866
      %v1868 = vpop.f32.mrf.mxu0
      %1869 = vmatprep.mubr.f32.mxu0 0.0
      %1870 = vmatmul.mubr.f32.gmra.mxu0 %v1704
      %v1871 = vpop.f32.mrf.mxu0
      %v1872 = vadd.f32 %v1697, %v1871
      %v1873 = vpop.f32.mrf.mxu0
      %1874 = vmatprep.mubr.f32.mxu0 0.0
      %1875 = vmatmul.mubr.f32.gmra.mxu0 %v1707
      %v1876 = vpop.f32.mrf.mxu0
      %v1877 = vadd.f32 %v1697, %v1876
      %v1878 = vpop.f32.mrf.mxu0
      %1879 = vmatprep.mubr.f32.mxu0 0.0
      %1880 = vmatmul.mubr.f32.gmra.mxu0 %v1710
      %v1881 = vpop.f32.mrf.mxu0
      %v1882 = vadd.f32 %v1697, %v1881
      %v1883 = vpop.f32.mrf.mxu0
      %1884 = vmatprep.mubr.f32.mxu0 0.0
      %1885 = vmatmul.mubr.f32.gmra.mxu0 %v1713
      %v1886 = vpop.f32.mrf.mxu0
      %v1887 = vadd.f32 %v1697, %v1886
      %v1888 = vpop.f32.mrf.mxu0
      %1889 = vmatprep.mubr.f32.mxu0 0.0
      %1890 = vmatmul.mubr.f32.gmra.mxu0 %v1716
      %v1891 = vpop.f32.mrf.mxu0
      %v1892 = vadd.f32 %v1697, %v1891
      %v1893 = vpop.f32.mrf.mxu0
      %1894 = vmatprep.mubr.f32.mxu0 0.0
      %1895 = vmatmul.mubr.f32.gmra.mxu0 %v1719
      %v1896 = vpop.f32.mrf.mxu0
      %v1897 = vadd.f32 %v1697, %v1896
      %v1898 = vpop.f32.mrf.mxu0
      %1899 = vmatprep.mubr.f32.mxu0 0.0
      %1900 = vmatmul.mubr.f32.gmra.mxu0 %v1722
      %v1901 = vpop.f32.mrf.mxu0
      %v1902 = vadd.f32 %v1697, %v1901
      %v1903 = vpop.f32.mrf.mxu0
      %1904 = vmatprep.mubr.f32.mxu0 0.0
      %1905 = vmatmul.mubr.f32.gmra.mxu0 %v1725
      %v1906 = vpop.f32.mrf.mxu0
      %v1907 = vadd.f32 %v1697, %v1906
      %v1908 = vpop.f32.mrf.mxu0
      %1909 = vmatprep.mubr.f32.mxu0 0.0
      %1910 = vmatmul.mubr.f32.gmra.mxu0 %v1728
      %v1911 = vpop.f32.mrf.mxu0
      %v1912 = vadd.f32 %v1697, %v1911
      %v1913 = vpop.f32.mrf.mxu0
      %1914 = vmatprep.mubr.f32.mxu0 0.0
      %1915 = vmatmul.mubr.f32.gmra.mxu0 %v1731
      %v1916 = vpop.f32.mrf.mxu0
      %v1917 = vadd.f32 %v1697, %v1916
      %v1918 = vpop.f32.mrf.mxu0
      %1919 = vmatprep.mubr.f32.mxu0 0.0
      %1920 = vmatmul.mubr.f32.gmra.mxu0 %v1734
      %v1921 = vpop.f32.mrf.mxu0
      %v1922 = vadd.f32 %v1697, %v1921
      %v1923 = vpop.f32.mrf.mxu0
      %1924 = vmatprep.mubr.f32.mxu0 0.0
      %1925 = vmatmul.mubr.f32.gmra.mxu0 %v1737
      %v1926 = vpop.f32.mrf.mxu0
      %v1927 = vadd.f32 %v1697, %v1926
      %v1928 = vpop.f32.mrf.mxu0
      %1929 = vmatprep.mubr.f32.mxu0 0.0
      %1930 = vmatmul.mubr.f32.gmra.mxu0 %v1740
      %v1931 = vpop.f32.mrf.mxu0
      %v1932 = vadd.f32 %v1697, %v1931
      %v1933 = vpop.f32.mrf.mxu0
      %1934 = vmatprep.mubr.f32.mxu0 0.0
      %1935 = vmatmul.mubr.f32.gmra.mxu0 %v1743
      %v1936 = vpop.f32.mrf.mxu0
      %v1937 = vadd.f32 %v1697, %v1936
      %v1938 = vpop.f32.mrf.mxu0
      %1939 = vmatprep.mubr.f32.mxu0 0.0
      %1940 = vmatmul.mubr.f32.gmra.mxu0 %v1746
      %v1941 = vpop.f32.mrf.mxu0
      %v1942 = vadd.f32 %v1697, %v1941
      %v1943 = vpop.f32.mrf.mxu0
      %1944 = vmatprep.mubr.f32.mxu0 0.0
      %1945 = vmatmul.mubr.f32.gmra.mxu0 %v1749
      %v1946 = vpop.f32.mrf.mxu0
      %v1947 = vadd.f32 %v1697, %v1946
      %v1948 = vpop.f32.mrf.mxu0
      %1949 = vmatprep.mubr.f32.mxu0 0.0
      %1950 = vmatmul.mubr.f32.gmra.mxu0 %v1752
      %v1951 = vpop.f32.mrf.mxu0
      %v1952 = vadd.f32 %v1697, %v1951
      %v1953 = vpop.f32.mrf.mxu0
      %1954 = vmatprep.mubr.f32.mxu0 0.0
      %1955 = vmatmul.mubr.f32.gmra.mxu0 %v1755
      %v1956 = vpop.f32.mrf.mxu0
      %v1957 = vadd.f32 %v1697, %v1956
      %v1958 = vpop.f32.mrf.mxu0
      %1959 = vmatprep.mubr.f32.mxu0 0.0
      %1960 = vmatmul.mubr.f32.gmra.mxu0 %v1758
      %v1961 = vpop.f32.mrf.mxu0
      %v1962 = vadd.f32 %v1697, %v1961
      %v1963 = vpop.f32.mrf.mxu0
      %1964 = vmatprep.mubr.f32.mxu0 0.0
      %1965 = vmatmul.mubr.f32.gmra.mxu0 %v1761
      %v1966 = vpop.f32.mrf.mxu0
      %v1967 = vadd.f32 %v1697, %v1966
      %v1968 = vpop.f32.mrf.mxu0
      %1969 = vmatprep.mubr.f32.mxu0 0.0
      %1970 = vmatmul.mubr.f32.gmra.mxu0 %v1764
      %v1971 = vpop.f32.mrf.mxu0
      %v1972 = vadd.f32 %v1697, %v1971
      %v1973 = vpop.f32.mrf.mxu0
      %1974 = vmatprep.mubr.f32.mxu0 0.0
      %1975 = vmatmul.mubr.f32.gmra.mxu0 %v1767
      %v1976 = vpop.f32.mrf.mxu0
      %v1977 = vadd.f32 %v1697, %v1976
      %v1978 = vpop.f32.mrf.mxu0
      %1979 = vmatprep.mubr.f32.mxu0 0.0
      %1980 = vmatmul.mubr.f32.gmra.mxu0 %v1770
      %v1981 = vpop.f32.mrf.mxu0
      %v1982 = vadd.f32 %v1697, %v1981
      %v1983 = vpop.f32.mrf.mxu0
      %1984 = vmatprep.mubr.f32.mxu0 0.0
      %1985 = vmatmul.mubr.f32.gmra.mxu0 %v1773
      %v1986 = vpop.f32.mrf.mxu0
      %v1987 = vadd.f32 %v1697, %v1986
      %v1988 = vpop.f32.mrf.mxu0
      %1989 = vmatprep.mubr.f32.mxu0 0.0
      %1990 = vmatmul.mubr.f32.gmra.mxu0 %v1776
      %v1991 = vpop.f32.mrf.mxu0
      %v1992 = vadd.f32 %v1697, %v1991
      %v1993 = vpop.f32.mrf.mxu0
      %1994 = vmatprep.mubr.f32.mxu0 0.0
      %1995 = vmatmul.mubr.f32.gmra.mxu0 %v1779
      %v1996 = vpop.f32.mrf.mxu0
      %v1997 = vadd.f32 %v1697, %v1996
      %v1998 = vpop.f32.mrf.mxu0
      %1999 = vmatprep.mubr.f32.mxu0 0.0
      %2000 = vmatmul.mubr.f32.gmra.mxu0 %v1782
      %v2001 = vpop.f32.mrf.mxu0
      %v2002 = vadd.f32 %v1697, %v2001
      %v2003 = vpop.f32.mrf.mxu0
      %2004 = vmatprep.mubr.f32.mxu0 0.0
      %2005 = vmatmul.mubr.f32.gmra.mxu0 %v1785
      %v2006 = vpop.f32.mrf.mxu0
      %v2007 = vadd.f32 %v1697, %v2006
      %v2008 = vpop.f32.mrf.mxu0
      %2009 = vmatprep.mubr.f32.mxu0 0.0
      %2010 = vmatmul.mubr.f32.gmra.mxu0 %v1788
      %v2011 = vpop.f32.mrf.mxu0
      %v2012 = vadd.f32 %v1697, %v2011
      %v2013 = vpop.f32.mrf.mxu0
      %2014 = vmatprep.mubr.f32.mxu0 0.0
      %2015 = vmatmul.mubr.f32.gmra.mxu0 %v1791
      %v2016 = vpop.f32.mrf.mxu0
      %v2017 = vadd.f32 %v1697, %v2016
      %v2018 = vpop.f32.mrf.mxu0
      %2019 = vmatprep.mubr.f32.mxu0 0.0
      %2020 = vmatmul.mubr.f32.gmra.mxu0 %v1794
      %v2021 = vpop.f32.mrf.mxu0
      %v2022 = vadd.f32 %v1697, %v2021
      %v2023 = vpop.f32.mrf.mxu0
      %2024 = vdwg.mxu0
      %v2025 = vmul.f32 %v1867, 0.01
      %v2026 = vmul.f32 %v1872, 0.01
      %v2027 = vmul.f32 %v1877, 0.01
      %v2028 = vmul.f32 %v1882, 0.01
      %v2029 = vmul.f32 %v1887, 0.01
      %v2030 = vmul.f32 %v1892, 0.01
      %v2031 = vmul.f32 %v1897, 0.01
      %v2032 = vmul.f32 %v1902, 0.01
      %v2033 = vmul.f32 %v1907, 0.01
      %v2034 = vmul.f32 %v1912, 0.01
      %v2035 = vmul.f32 %v1917, 0.01
      %v2036 = vmul.f32 %v1922, 0.01
      %v2037 = vmul.f32 %v1927, 0.01
      %v2038 = vmul.f32 %v1932, 0.01
      %v2039 = vmul.f32 %v1937, 0.01
      %v2040 = vmul.f32 %v1942, 0.01
      %v2041 = vmul.f32 %v1947, 0.01
      %v2042 = vmul.f32 %v1952, 0.01
      %v2043 = vmul.f32 %v1957, 0.01
      %v2044 = vmul.f32 %v1962, 0.01
      %v2045 = vmul.f32 %v1967, 0.01
      %v2046 = vmul.f32 %v1972, 0.01
      %v2047 = vmul.f32 %v1977, 0.01
      %v2048 = vmul.f32 %v1982, 0.01
      %v2049 = vmul.f32 %v1987, 0.01
      %v2050 = vmul.f32 %v1992, 0.01
      %v2051 = vmul.f32 %v1997, 0.01
      %v2052 = vmul.f32 %v2002, 0.01
      %v2053 = vmul.f32 %v2007, 0.01
      %v2054 = vmul.f32 %v2012, 0.01
      %v2055 = vmul.f32 %v2017, 0.01
      %v2056 = vmul.f32 %v2022, 0.01
      %v2057 = vmax.f32 %v1867, %v2025
      %v2058 = vmax.f32 %v1872, %v2026
      %v2059 = vmax.f32 %v1877, %v2027
      %v2060 = vmax.f32 %v1882, %v2028
      %v2061 = vmax.f32 %v1887, %v2029
      %v2062 = vmax.f32 %v1892, %v2030
      %v2063 = vmax.f32 %v1897, %v2031
      %v2064 = vmax.f32 %v1902, %v2032
      %v2065 = vmax.f32 %v1907, %v2033
      %v2066 = vmax.f32 %v1912, %v2034
      %v2067 = vmax.f32 %v1917, %v2035
      %v2068 = vmax.f32 %v1922, %v2036
      %v2069 = vmax.f32 %v1927, %v2037
      %v2070 = vmax.f32 %v1932, %v2038
      %v2071 = vmax.f32 %v1937, %v2039
      %v2072 = vmax.f32 %v1942, %v2040
      %v2073 = vmax.f32 %v1947, %v2041
      %v2074 = vmax.f32 %v1952, %v2042
      %v2075 = vmax.f32 %v1957, %v2043
      %v2076 = vmax.f32 %v1962, %v2044
      %v2077 = vmax.f32 %v1967, %v2045
      %v2078 = vmax.f32 %v1972, %v2046
      %v2079 = vmax.f32 %v1977, %v2047
      %v2080 = vmax.f32 %v1982, %v2048
      %v2081 = vmax.f32 %v1987, %v2049
      %v2082 = vmax.f32 %v1992, %v2050
      %v2083 = vmax.f32 %v1997, %v2051
      %v2084 = vmax.f32 %v2002, %v2052
      %v2085 = vmax.f32 %v2007, %v2053
      %v2086 = vmax.f32 %v2012, %v2054
      %v2087 = vmax.f32 %v2017, %v2055
      %v2088 = vmax.f32 %v2022, %v2056
      %s2089 = scalar_lea.vmem [#allocation2], 24
      %2090 = vst.msk [vmem:[%s2089 + $0x1] sm:$0xff] %vm279, %v2057
      %2091 = vst.msk [vmem:[%s2089 + $0x9] sm:$0xff] %vm279, %v2058
      %2092 = vst.msk [vmem:[%s2089 + $0x19] sm:$0xff] %vm279, %v2059
      %2093 = vst.msk [vmem:[%s2089 + $0x21] sm:$0xff] %vm279, %v2060
      %2094 = vst.msk [vmem:[%s2089 + $0x31] sm:$0xff] %vm279, %v2061
      %2095 = vst.msk [vmem:[%s2089 + $0x39] sm:$0xff] %vm279, %v2062
      %2096 = vst.msk [vmem:[%s2089 + $0x49] sm:$0xff] %vm279, %v2063
      %2097 = vst.msk [vmem:[%s2089 + $0x51] sm:$0xff] %vm279, %v2064
      %2098 = vst.msk [vmem:[%s2089 + $0x61] sm:$0xff] %vm279, %v2065
      %2099 = vst.msk [vmem:[%s2089 + $0x69] sm:$0xff] %vm279, %v2066
      %2100 = vst.msk [vmem:[%s2089 + $0x79] sm:$0xff] %vm279, %v2067
      %2101 = vst.msk [vmem:[%s2089 + $0x81] sm:$0xff] %vm279, %v2068
      %2102 = vst.msk [vmem:[%s2089 + $0x91] sm:$0xff] %vm279, %v2069
      %2103 = vst.msk [vmem:[%s2089 + $0x99] sm:$0xff] %vm279, %v2070
      %2104 = vst.msk [vmem:[%s2089 + $0xa9] sm:$0xff] %vm279, %v2071
      %2105 = vst.msk [vmem:[%s2089 + $0xb1] sm:$0xff] %vm279, %v2072
      %2106 = vst.msk [vmem:[%s2089 + $0xc1] sm:$0xff] %vm279, %v2073
      %2107 = vst.msk [vmem:[%s2089 + $0xc9] sm:$0xff] %vm279, %v2074
      %2108 = vst.msk [vmem:[%s2089 + $0xd9] sm:$0xff] %vm279, %v2075
      %2109 = vst.msk [vmem:[%s2089 + $0xe1] sm:$0xff] %vm279, %v2076
      %2110 = vst.msk [vmem:[%s2089 + $0xf1] sm:$0xff] %vm279, %v2077
      %2111 = vst.msk [vmem:[%s2089 + $0xf9] sm:$0xff] %vm279, %v2078
      %2112 = vst.msk [vmem:[%s2089 + $0x109] sm:$0xff] %vm279, %v2079
      %2113 = vst.msk [vmem:[%s2089 + $0x111] sm:$0xff] %vm279, %v2080
      %2114 = vst.msk [vmem:[%s2089 + $0x121] sm:$0xff] %vm279, %v2081
      %2115 = vst.msk [vmem:[%s2089 + $0x129] sm:$0xff] %vm279, %v2082
      %2116 = vst.msk [vmem:[%s2089 + $0x139] sm:$0xff] %vm279, %v2083
      %2117 = vst.msk [vmem:[%s2089 + $0x141] sm:$0xff] %vm279, %v2084
      %2118 = vst.msk [vmem:[%s2089 + $0x151] sm:$0xff] %vm279, %v2085
      %2119 = vst.msk [vmem:[%s2089 + $0x159] sm:$0xff] %vm279, %v2086
      %2120 = vst.msk [vmem:[%s2089 + $0x169] sm:$0xff] %vm279, %v2087
      %2121 = vst.msk [vmem:[%s2089 + $0x171] sm:$0xff] %vm279, %v2088
      %v2122 = vld [vmem:[#allocation2] sm:$0xff]
      %v2123 = vld [vmem:[#allocation2 + $0x8] sm:$0xff]
      %v2124 = vld [vmem:[#allocation2 + $0x10] sm:$0x3]
      %v2125 = vld [vmem:[#allocation2 + $0x18] sm:$0xff]
      %v2126 = vld [vmem:[#allocation2 + $0x20] sm:$0xff]
      %v2127 = vld [vmem:[#allocation2 + $0x28] sm:$0x3]
      %v2128 = vld [vmem:[#allocation2 + $0x30] sm:$0xff]
      %v2129 = vld [vmem:[#allocation2 + $0x38] sm:$0xff]
      %v2130 = vld [vmem:[#allocation2 + $0x40] sm:$0x3]
      %v2131 = vld [vmem:[#allocation2 + $0x48] sm:$0xff]
      %v2132 = vld [vmem:[#allocation2 + $0x50] sm:$0xff]
      %v2133 = vld [vmem:[#allocation2 + $0x58] sm:$0x3]
      %v2134 = vld [vmem:[#allocation2 + $0x60] sm:$0xff]
      %v2135 = vld [vmem:[#allocation2 + $0x68] sm:$0xff]
      %v2136 = vld [vmem:[#allocation2 + $0x70] sm:$0x3]
      %v2137 = vld [vmem:[#allocation2 + $0x78] sm:$0xff]
      %v2138 = vld [vmem:[#allocation2 + $0x80] sm:$0xff]
      %v2139 = vld [vmem:[#allocation2 + $0x88] sm:$0x3]
      %v2140 = vld [vmem:[#allocation2 + $0x90] sm:$0xff]
      %v2141 = vld [vmem:[#allocation2 + $0x98] sm:$0xff]
      %v2142 = vld [vmem:[#allocation2 + $0xa0] sm:$0x3]
      %v2143 = vld [vmem:[#allocation2 + $0xa8] sm:$0xff]
      %v2144 = vld [vmem:[#allocation2 + $0xb0] sm:$0xff]
      %v2145 = vld [vmem:[#allocation2 + $0xb8] sm:$0x3]
      %v2146 = vld [vmem:[#allocation2 + $0xc0] sm:$0xff]
      %v2147 = vld [vmem:[#allocation2 + $0xc8] sm:$0xff]
      %v2148 = vld [vmem:[#allocation2 + $0xd0] sm:$0x3]
      %v2149 = vld [vmem:[#allocation2 + $0xd8] sm:$0xff]
      %v2150 = vld [vmem:[#allocation2 + $0xe0] sm:$0xff]
      %v2151 = vld [vmem:[#allocation2 + $0xe8] sm:$0x3]
      %v2152 = vld [vmem:[#allocation2 + $0xf0] sm:$0xff]
      %v2153 = vld [vmem:[#allocation2 + $0xf8] sm:$0xff]
      %v2154 = vld [vmem:[#allocation2 + $0x100] sm:$0x3]
      %v2155 = vld [vmem:[#allocation2 + $0x108] sm:$0xff]
      %v2156 = vld [vmem:[#allocation2 + $0x110] sm:$0xff]
      %v2157 = vld [vmem:[#allocation2 + $0x118] sm:$0x3]
      %v2158 = vld [vmem:[#allocation2 + $0x120] sm:$0xff]
      %v2159 = vld [vmem:[#allocation2 + $0x128] sm:$0xff]
      %v2160 = vld [vmem:[#allocation2 + $0x130] sm:$0x3]
      %v2161 = vld [vmem:[#allocation2 + $0x138] sm:$0xff]
      %v2162 = vld [vmem:[#allocation2 + $0x140] sm:$0xff]
      %v2163 = vld [vmem:[#allocation2 + $0x148] sm:$0x3]
      %v2164 = vld [vmem:[#allocation2 + $0x150] sm:$0xff]
      %v2165 = vld [vmem:[#allocation2 + $0x158] sm:$0xff]
      %v2166 = vld [vmem:[#allocation2 + $0x160] sm:$0x3]
      %v2167 = vld [vmem:[#allocation2 + $0x168] sm:$0xff]
      %v2168 = vld [vmem:[#allocation2 + $0x170] sm:$0xff]
      %v2169 = vld [vmem:[#allocation2 + $0x178] sm:$0x3]
      %v2170 = vld [vmem:[#allocation2 + $0x180] sm:$0xff]
      %v2171 = vld [vmem:[#allocation2 + $0x188] sm:$0xff]
      %v2172 = vld [vmem:[#allocation2 + $0x190] sm:$0x3]
      %v2173 = vld [vmem:[#allocation2 + $0x198] sm:$0xff]
      %v2174 = vld [vmem:[#allocation2 + $0x1a0] sm:$0xff]
      %v2175 = vld [vmem:[#allocation2 + $0x1a8] sm:$0x3]
      %v2224 = vrot.slane %v2122, 1
      %v2225 = vrot.slane %v2123, 1
      %v2226 = vsel %vm437, %v2224, %v2225
      %v2227 = vrot.slane %v2124, 1
      %v2228 = vsel %vm437, %v2225, %v2227
      %v2229 = vrot.slane %v2125, 1
      %v2230 = vrot.slane %v2126, 1
      %v2231 = vsel %vm437, %v2229, %v2230
      %v2232 = vrot.slane %v2127, 1
      %v2233 = vsel %vm437, %v2230, %v2232
      %v2234 = vrot.slane %v2128, 1
      %v2235 = vrot.slane %v2129, 1
      %v2236 = vsel %vm437, %v2234, %v2235
      %v2237 = vrot.slane %v2130, 1
      %v2238 = vsel %vm437, %v2235, %v2237
      %v2239 = vrot.slane %v2131, 1
      %v2240 = vrot.slane %v2132, 1
      %v2241 = vsel %vm437, %v2239, %v2240
      %v2242 = vrot.slane %v2133, 1
      %v2243 = vsel %vm437, %v2240, %v2242
      %v2244 = vrot.slane %v2134, 1
      %v2245 = vrot.slane %v2135, 1
      %v2246 = vsel %vm437, %v2244, %v2245
      %v2247 = vrot.slane %v2136, 1
      %v2248 = vsel %vm437, %v2245, %v2247
      %v2249 = vrot.slane %v2137, 1
      %v2250 = vrot.slane %v2138, 1
      %v2251 = vsel %vm437, %v2249, %v2250
      %v2252 = vrot.slane %v2139, 1
      %v2253 = vsel %vm437, %v2250, %v2252
      %v2254 = vrot.slane %v2140, 1
      %v2255 = vrot.slane %v2141, 1
      %v2256 = vsel %vm437, %v2254, %v2255
      %v2257 = vrot.slane %v2142, 1
      %v2258 = vsel %vm437, %v2255, %v2257
      %v2259 = vrot.slane %v2143, 1
      %v2260 = vrot.slane %v2144, 1
      %v2261 = vsel %vm437, %v2259, %v2260
      %v2262 = vrot.slane %v2145, 1
      %v2263 = vsel %vm437, %v2260, %v2262
      %v2264 = vrot.slane %v2146, 1
      %v2265 = vrot.slane %v2147, 1
      %v2266 = vsel %vm437, %v2264, %v2265
      %v2267 = vrot.slane %v2148, 1
      %v2268 = vsel %vm437, %v2265, %v2267
      %v2269 = vrot.slane %v2149, 1
      %v2270 = vrot.slane %v2150, 1
      %v2271 = vsel %vm437, %v2269, %v2270
      %v2272 = vrot.slane %v2151, 1
      %v2273 = vsel %vm437, %v2270, %v2272
      %v2274 = vrot.slane %v2152, 1
      %v2275 = vrot.slane %v2153, 1
      %v2276 = vsel %vm437, %v2274, %v2275
      %v2277 = vrot.slane %v2154, 1
      %v2278 = vsel %vm437, %v2275, %v2277
      %v2279 = vrot.slane %v2155, 1
      %v2280 = vrot.slane %v2156, 1
      %v2281 = vsel %vm437, %v2279, %v2280
      %v2282 = vrot.slane %v2157, 1
      %v2283 = vsel %vm437, %v2280, %v2282
      %v2284 = vrot.slane %v2158, 1
      %v2285 = vrot.slane %v2159, 1
      %v2286 = vsel %vm437, %v2284, %v2285
      %v2287 = vrot.slane %v2160, 1
      %v2288 = vsel %vm437, %v2285, %v2287
      %v2289 = vrot.slane %v2161, 1
      %v2290 = vrot.slane %v2162, 1
      %v2291 = vsel %vm437, %v2289, %v2290
      %v2292 = vrot.slane %v2163, 1
      %v2293 = vsel %vm437, %v2290, %v2292
      %v2294 = vrot.slane %v2164, 1
      %v2295 = vrot.slane %v2165, 1
      %v2296 = vsel %vm437, %v2294, %v2295
      %v2297 = vrot.slane %v2166, 1
      %v2298 = vsel %vm437, %v2295, %v2297
      %v2299 = vrot.slane %v2167, 1
      %v2300 = vrot.slane %v2168, 1
      %v2301 = vsel %vm437, %v2299, %v2300
      %v2302 = vrot.slane %v2169, 1
      %v2303 = vsel %vm437, %v2300, %v2302
      %v2304 = vrot.slane %v2122, 2
      %v2305 = vrot.slane %v2123, 2
      %v2306 = vsel %vm518, %v2304, %v2305
      %v2307 = vrot.slane %v2124, 2
      %v2308 = vsel %vm518, %v2305, %v2307
      %v2309 = vrot.slane %v2125, 2
      %v2310 = vrot.slane %v2126, 2
      %v2311 = vsel %vm518, %v2309, %v2310
      %v2312 = vrot.slane %v2127, 2
      %v2313 = vsel %vm518, %v2310, %v2312
      %v2314 = vrot.slane %v2128, 2
      %v2315 = vrot.slane %v2129, 2
      %v2316 = vsel %vm518, %v2314, %v2315
      %v2317 = vrot.slane %v2130, 2
      %v2318 = vsel %vm518, %v2315, %v2317
      %v2319 = vrot.slane %v2131, 2
      %v2320 = vrot.slane %v2132, 2
      %v2321 = vsel %vm518, %v2319, %v2320
      %v2322 = vrot.slane %v2133, 2
      %v2323 = vsel %vm518, %v2320, %v2322
      %v2324 = vrot.slane %v2134, 2
      %v2325 = vrot.slane %v2135, 2
      %v2326 = vsel %vm518, %v2324, %v2325
      %v2327 = vrot.slane %v2136, 2
      %v2328 = vsel %vm518, %v2325, %v2327
      %v2329 = vrot.slane %v2137, 2
      %v2330 = vrot.slane %v2138, 2
      %v2331 = vsel %vm518, %v2329, %v2330
      %v2332 = vrot.slane %v2139, 2
      %v2333 = vsel %vm518, %v2330, %v2332
      %v2334 = vrot.slane %v2140, 2
      %v2335 = vrot.slane %v2141, 2
      %v2336 = vsel %vm518, %v2334, %v2335
      %v2337 = vrot.slane %v2142, 2
      %v2338 = vsel %vm518, %v2335, %v2337
      %v2339 = vrot.slane %v2143, 2
      %v2340 = vrot.slane %v2144, 2
      %v2341 = vsel %vm518, %v2339, %v2340
      %v2342 = vrot.slane %v2145, 2
      %v2343 = vsel %vm518, %v2340, %v2342
      %v2344 = vrot.slane %v2146, 2
      %v2345 = vrot.slane %v2147, 2
      %v2346 = vsel %vm518, %v2344, %v2345
      %v2347 = vrot.slane %v2148, 2
      %v2348 = vsel %vm518, %v2345, %v2347
      %v2349 = vrot.slane %v2149, 2
      %v2350 = vrot.slane %v2150, 2
      %v2351 = vsel %vm518, %v2349, %v2350
      %v2352 = vrot.slane %v2151, 2
      %v2353 = vsel %vm518, %v2350, %v2352
      %v2354 = vrot.slane %v2152, 2
      %v2355 = vrot.slane %v2153, 2
      %v2356 = vsel %vm518, %v2354, %v2355
      %v2357 = vrot.slane %v2154, 2
      %v2358 = vsel %vm518, %v2355, %v2357
      %v2359 = vrot.slane %v2155, 2
      %v2360 = vrot.slane %v2156, 2
      %v2361 = vsel %vm518, %v2359, %v2360
      %v2362 = vrot.slane %v2157, 2
      %v2363 = vsel %vm518, %v2360, %v2362
      %v2364 = vrot.slane %v2158, 2
      %v2365 = vrot.slane %v2159, 2
      %v2366 = vsel %vm518, %v2364, %v2365
      %v2367 = vrot.slane %v2160, 2
      %v2368 = vsel %vm518, %v2365, %v2367
      %v2369 = vrot.slane %v2161, 2
      %v2370 = vrot.slane %v2162, 2
      %v2371 = vsel %vm518, %v2369, %v2370
      %v2372 = vrot.slane %v2163, 2
      %v2373 = vsel %vm518, %v2370, %v2372
      %v2374 = vrot.slane %v2164, 2
      %v2375 = vrot.slane %v2165, 2
      %v2376 = vsel %vm518, %v2374, %v2375
      %v2377 = vrot.slane %v2166, 2
      %v2378 = vsel %vm518, %v2375, %v2377
      %v2379 = vrot.slane %v2167, 2
      %v2380 = vrot.slane %v2168, 2
      %v2381 = vsel %vm518, %v2379, %v2380
      %v2382 = vrot.slane %v2169, 2
      %v2383 = vsel %vm518, %v2380, %v2382
      %v2387 = vrot.slane %v2170, 1
      %v2388 = vrot.slane %v2171, 1
      %v2389 = vsel %vm437, %v2387, %v2388
      %v2390 = vrot.slane %v2172, 1
      %v2391 = vsel %vm437, %v2388, %v2390
      %v2424 = vrot.slane %v2170, 2
      %v2425 = vrot.slane %v2171, 2
      %v2426 = vsel %vm518, %v2424, %v2425
      %v2427 = vrot.slane %v2172, 2
      %v2428 = vsel %vm518, %v2425, %v2427
      %v2432 = vrot.slane %v2173, 1
      %v2433 = vrot.slane %v2174, 1
      %v2434 = vsel %vm437, %v2432, %v2433
      %v2435 = vrot.slane %v2175, 1
      %v2436 = vsel %vm437, %v2433, %v2435
      %v2437 = vrot.slane %v2173, 2
      %v2438 = vrot.slane %v2174, 2
      %v2439 = vsel %vm518, %v2437, %v2438
      %v2440 = vrot.slane %v2175, 2
      %v2441 = vsel %vm518, %v2438, %v2440
      %2442 = vrot.lane.b32.xlu0 %v2226, 32
      %v2443 = vpop.permute.xlu0 %2442
      %2444 = vrot.lane.b32.xlu0 %v2228, 32
      %v2445 = vpop.permute.xlu0 %2444
      %2446 = vrot.lane.b32.xlu0 %v2231, 32
      %v2447 = vpop.permute.xlu0 %2446
      %2448 = vrot.lane.b32.xlu0 %v2233, 32
      %v2449 = vpop.permute.xlu0 %2448
      %2450 = vrot.lane.b32.xlu0 %v2236, 32
      %v2451 = vpop.permute.xlu0 %2450
      %2452 = vrot.lane.b32.xlu0 %v2238, 32
      %v2453 = vpop.permute.xlu0 %2452
      %2454 = vrot.lane.b32.xlu0 %v2241, 32
      %v2455 = vpop.permute.xlu0 %2454
      %2456 = vrot.lane.b32.xlu0 %v2243, 32
      %v2457 = vpop.permute.xlu0 %2456
      %2458 = vrot.lane.b32.xlu0 %v2246, 32
      %v2459 = vpop.permute.xlu0 %2458
      %2460 = vrot.lane.b32.xlu0 %v2248, 32
      %v2461 = vpop.permute.xlu0 %2460
      %2462 = vrot.lane.b32.xlu0 %v2251, 32
      %v2463 = vpop.permute.xlu0 %2462
      %2464 = vrot.lane.b32.xlu0 %v2253, 32
      %v2465 = vpop.permute.xlu0 %2464
      %2466 = vrot.lane.b32.xlu0 %v2256, 32
      %v2467 = vpop.permute.xlu0 %2466
      %2468 = vrot.lane.b32.xlu0 %v2258, 32
      %v2469 = vpop.permute.xlu0 %2468
      %2470 = vrot.lane.b32.xlu0 %v2261, 32
      %v2471 = vpop.permute.xlu0 %2470
      %2472 = vrot.lane.b32.xlu0 %v2263, 32
      %v2473 = vpop.permute.xlu0 %2472
      %2474 = vrot.lane.b32.xlu0 %v2266, 32
      %v2475 = vpop.permute.xlu0 %2474
      %2476 = vrot.lane.b32.xlu0 %v2268, 32
      %v2477 = vpop.permute.xlu0 %2476
      %2478 = vrot.lane.b32.xlu0 %v2271, 32
      %v2479 = vpop.permute.xlu0 %2478
      %2480 = vrot.lane.b32.xlu0 %v2273, 32
      %v2481 = vpop.permute.xlu0 %2480
      %2482 = vrot.lane.b32.xlu0 %v2276, 32
      %v2483 = vpop.permute.xlu0 %2482
      %2484 = vrot.lane.b32.xlu0 %v2278, 32
      %v2485 = vpop.permute.xlu0 %2484
      %2486 = vrot.lane.b32.xlu0 %v2281, 32
      %v2487 = vpop.permute.xlu0 %2486
      %2488 = vrot.lane.b32.xlu0 %v2283, 32
      %v2489 = vpop.permute.xlu0 %2488
      %2490 = vrot.lane.b32.xlu0 %v2286, 32
      %v2491 = vpop.permute.xlu0 %2490
      %2492 = vrot.lane.b32.xlu0 %v2288, 32
      %v2493 = vpop.permute.xlu0 %2492
      %2494 = vrot.lane.b32.xlu0 %v2291, 32
      %v2495 = vpop.permute.xlu0 %2494
      %2496 = vrot.lane.b32.xlu0 %v2293, 32
      %v2497 = vpop.permute.xlu0 %2496
      %2498 = vrot.lane.b32.xlu0 %v2296, 32
      %v2499 = vpop.permute.xlu0 %2498
      %2500 = vrot.lane.b32.xlu0 %v2298, 32
      %v2501 = vpop.permute.xlu0 %2500
      %2502 = vrot.lane.b32.xlu0 %v2301, 32
      %v2503 = vpop.permute.xlu0 %2502
      %2504 = vrot.lane.b32.xlu0 %v2303, 32
      %v2505 = vpop.permute.xlu0 %2504
      %2538 = vrot.lane.b32.xlu0 %v2306, 64
      %v2539 = vpop.permute.xlu0 %2538
      %2540 = vrot.lane.b32.xlu0 %v2308, 64
      %v2541 = vpop.permute.xlu0 %2540
      %2542 = vrot.lane.b32.xlu0 %v2311, 64
      %v2543 = vpop.permute.xlu0 %2542
      %2544 = vrot.lane.b32.xlu0 %v2313, 64
      %v2545 = vpop.permute.xlu0 %2544
      %2546 = vrot.lane.b32.xlu0 %v2316, 64
      %v2547 = vpop.permute.xlu0 %2546
      %2548 = vrot.lane.b32.xlu0 %v2318, 64
      %v2549 = vpop.permute.xlu0 %2548
      %2550 = vrot.lane.b32.xlu0 %v2321, 64
      %v2551 = vpop.permute.xlu0 %2550
      %2552 = vrot.lane.b32.xlu0 %v2323, 64
      %v2553 = vpop.permute.xlu0 %2552
      %2554 = vrot.lane.b32.xlu0 %v2326, 64
      %v2555 = vpop.permute.xlu0 %2554
      %2556 = vrot.lane.b32.xlu0 %v2328, 64
      %v2557 = vpop.permute.xlu0 %2556
      %2558 = vrot.lane.b32.xlu0 %v2331, 64
      %v2559 = vpop.permute.xlu0 %2558
      %2560 = vrot.lane.b32.xlu0 %v2333, 64
      %v2561 = vpop.permute.xlu0 %2560
      %2562 = vrot.lane.b32.xlu0 %v2336, 64
      %v2563 = vpop.permute.xlu0 %2562
      %2564 = vrot.lane.b32.xlu0 %v2338, 64
      %v2565 = vpop.permute.xlu0 %2564
      %2566 = vrot.lane.b32.xlu0 %v2341, 64
      %v2567 = vpop.permute.xlu0 %2566
      %2568 = vrot.lane.b32.xlu0 %v2343, 64
      %v2569 = vpop.permute.xlu0 %2568
      %2570 = vrot.lane.b32.xlu0 %v2346, 64
      %v2571 = vpop.permute.xlu0 %2570
      %2572 = vrot.lane.b32.xlu0 %v2348, 64
      %v2573 = vpop.permute.xlu0 %2572
      %2574 = vrot.lane.b32.xlu0 %v2351, 64
      %v2575 = vpop.permute.xlu0 %2574
      %2576 = vrot.lane.b32.xlu0 %v2353, 64
      %v2577 = vpop.permute.xlu0 %2576
      %2578 = vrot.lane.b32.xlu0 %v2356, 64
      %v2579 = vpop.permute.xlu0 %2578
      %2580 = vrot.lane.b32.xlu0 %v2358, 64
      %v2581 = vpop.permute.xlu0 %2580
      %2582 = vrot.lane.b32.xlu0 %v2361, 64
      %v2583 = vpop.permute.xlu0 %2582
      %2584 = vrot.lane.b32.xlu0 %v2363, 64
      %v2585 = vpop.permute.xlu0 %2584
      %2586 = vrot.lane.b32.xlu0 %v2366, 64
      %v2587 = vpop.permute.xlu0 %2586
      %2588 = vrot.lane.b32.xlu0 %v2368, 64
      %v2589 = vpop.permute.xlu0 %2588
      %2590 = vrot.lane.b32.xlu0 %v2371, 64
      %v2591 = vpop.permute.xlu0 %2590
      %2592 = vrot.lane.b32.xlu0 %v2373, 64
      %v2593 = vpop.permute.xlu0 %2592
      %2594 = vrot.lane.b32.xlu0 %v2376, 64
      %v2595 = vpop.permute.xlu0 %2594
      %2596 = vrot.lane.b32.xlu0 %v2378, 64
      %v2597 = vpop.permute.xlu0 %2596
      %2598 = vrot.lane.b32.xlu0 %v2381, 64
      %v2599 = vpop.permute.xlu0 %2598
      %2600 = vrot.lane.b32.xlu0 %v2383, 64
      %v2601 = vpop.permute.xlu0 %2600
      %2634 = vrot.lane.b32.xlu0 %v2125, 96
      %v2635 = vpop.permute.xlu0 %2634
      %2636 = vrot.lane.b32.xlu0 %v2126, 96
      %v2637 = vpop.permute.xlu0 %2636
      %2638 = vrot.lane.b32.xlu0 %v2128, 96
      %v2639 = vpop.permute.xlu0 %2638
      %2640 = vrot.lane.b32.xlu0 %v2129, 96
      %v2641 = vpop.permute.xlu0 %2640
      %2642 = vrot.lane.b32.xlu0 %v2131, 96
      %v2643 = vpop.permute.xlu0 %2642
      %2644 = vrot.lane.b32.xlu0 %v2132, 96
      %v2645 = vpop.permute.xlu0 %2644
      %2646 = vrot.lane.b32.xlu0 %v2134, 96
      %v2647 = vpop.permute.xlu0 %2646
      %2648 = vrot.lane.b32.xlu0 %v2135, 96
      %v2649 = vpop.permute.xlu0 %2648
      %2650 = vrot.lane.b32.xlu0 %v2137, 96
      %v2651 = vpop.permute.xlu0 %2650
      %2652 = vrot.lane.b32.xlu0 %v2138, 96
      %v2653 = vpop.permute.xlu0 %2652
      %2654 = vrot.lane.b32.xlu0 %v2140, 96
      %v2655 = vpop.permute.xlu0 %2654
      %2656 = vrot.lane.b32.xlu0 %v2141, 96
      %v2657 = vpop.permute.xlu0 %2656
      %2658 = vrot.lane.b32.xlu0 %v2143, 96
      %v2659 = vpop.permute.xlu0 %2658
      %2660 = vrot.lane.b32.xlu0 %v2144, 96
      %v2661 = vpop.permute.xlu0 %2660
      %2662 = vrot.lane.b32.xlu0 %v2146, 96
      %v2663 = vpop.permute.xlu0 %2662
      %2664 = vrot.lane.b32.xlu0 %v2147, 96
      %v2665 = vpop.permute.xlu0 %2664
      %2666 = vrot.lane.b32.xlu0 %v2149, 96
      %v2667 = vpop.permute.xlu0 %2666
      %2668 = vrot.lane.b32.xlu0 %v2150, 96
      %v2669 = vpop.permute.xlu0 %2668
      %2670 = vrot.lane.b32.xlu0 %v2152, 96
      %v2671 = vpop.permute.xlu0 %2670
      %2672 = vrot.lane.b32.xlu0 %v2153, 96
      %v2673 = vpop.permute.xlu0 %2672
      %2674 = vrot.lane.b32.xlu0 %v2155, 96
      %v2675 = vpop.permute.xlu0 %2674
      %2676 = vrot.lane.b32.xlu0 %v2156, 96
      %v2677 = vpop.permute.xlu0 %2676
      %2678 = vrot.lane.b32.xlu0 %v2158, 96
      %v2679 = vpop.permute.xlu0 %2678
      %2680 = vrot.lane.b32.xlu0 %v2159, 96
      %v2681 = vpop.permute.xlu0 %2680
      %2682 = vrot.lane.b32.xlu0 %v2161, 96
      %v2683 = vpop.permute.xlu0 %2682
      %2684 = vrot.lane.b32.xlu0 %v2162, 96
      %v2685 = vpop.permute.xlu0 %2684
      %2686 = vrot.lane.b32.xlu0 %v2164, 96
      %v2687 = vpop.permute.xlu0 %2686
      %2688 = vrot.lane.b32.xlu0 %v2165, 96
      %v2689 = vpop.permute.xlu0 %2688
      %2690 = vrot.lane.b32.xlu0 %v2167, 96
      %v2691 = vpop.permute.xlu0 %2690
      %2692 = vrot.lane.b32.xlu0 %v2168, 96
      %v2693 = vpop.permute.xlu0 %2692
      %2694 = vrot.lane.b32.xlu0 %v2170, 96
      %v2695 = vpop.permute.xlu0 %2694
      %2696 = vrot.lane.b32.xlu0 %v2171, 96
      %v2697 = vpop.permute.xlu0 %2696
      %2730 = vrot.lane.b32.xlu0 %v2311, 32
      %v2731 = vpop.permute.xlu0 %2730
      %2732 = vrot.lane.b32.xlu0 %v2313, 32
      %v2733 = vpop.permute.xlu0 %2732
      %2734 = vrot.lane.b32.xlu0 %v2316, 32
      %v2735 = vpop.permute.xlu0 %2734
      %2736 = vrot.lane.b32.xlu0 %v2318, 32
      %v2737 = vpop.permute.xlu0 %2736
      %2738 = vrot.lane.b32.xlu0 %v2321, 32
      %v2739 = vpop.permute.xlu0 %2738
      %2740 = vrot.lane.b32.xlu0 %v2323, 32
      %v2741 = vpop.permute.xlu0 %2740
      %2742 = vrot.lane.b32.xlu0 %v2326, 32
      %v2743 = vpop.permute.xlu0 %2742
      %2744 = vrot.lane.b32.xlu0 %v2328, 32
      %v2745 = vpop.permute.xlu0 %2744
      %2746 = vrot.lane.b32.xlu0 %v2331, 32
      %v2747 = vpop.permute.xlu0 %2746
      %2748 = vrot.lane.b32.xlu0 %v2333, 32
      %v2749 = vpop.permute.xlu0 %2748
      %2750 = vrot.lane.b32.xlu0 %v2336, 32
      %v2751 = vpop.permute.xlu0 %2750
      %2752 = vrot.lane.b32.xlu0 %v2338, 32
      %v2753 = vpop.permute.xlu0 %2752
      %2754 = vrot.lane.b32.xlu0 %v2341, 32
      %v2755 = vpop.permute.xlu0 %2754
      %2756 = vrot.lane.b32.xlu0 %v2343, 32
      %v2757 = vpop.permute.xlu0 %2756
      %2758 = vrot.lane.b32.xlu0 %v2346, 32
      %v2759 = vpop.permute.xlu0 %2758
      %2760 = vrot.lane.b32.xlu0 %v2348, 32
      %v2761 = vpop.permute.xlu0 %2760
      %2762 = vrot.lane.b32.xlu0 %v2351, 32
      %v2763 = vpop.permute.xlu0 %2762
      %2764 = vrot.lane.b32.xlu0 %v2353, 32
      %v2765 = vpop.permute.xlu0 %2764
      %2766 = vrot.lane.b32.xlu0 %v2356, 32
      %v2767 = vpop.permute.xlu0 %2766
      %2768 = vrot.lane.b32.xlu0 %v2358, 32
      %v2769 = vpop.permute.xlu0 %2768
      %2770 = vrot.lane.b32.xlu0 %v2361, 32
      %v2771 = vpop.permute.xlu0 %2770
      %2772 = vrot.lane.b32.xlu0 %v2363, 32
      %v2773 = vpop.permute.xlu0 %2772
      %2774 = vrot.lane.b32.xlu0 %v2366, 32
      %v2775 = vpop.permute.xlu0 %2774
      %2776 = vrot.lane.b32.xlu0 %v2368, 32
      %v2777 = vpop.permute.xlu0 %2776
      %2778 = vrot.lane.b32.xlu0 %v2371, 32
      %v2779 = vpop.permute.xlu0 %2778
      %2780 = vrot.lane.b32.xlu0 %v2373, 32
      %v2781 = vpop.permute.xlu0 %2780
      %2782 = vrot.lane.b32.xlu0 %v2376, 32
      %v2783 = vpop.permute.xlu0 %2782
      %2784 = vrot.lane.b32.xlu0 %v2378, 32
      %v2785 = vpop.permute.xlu0 %2784
      %2786 = vrot.lane.b32.xlu0 %v2381, 32
      %v2787 = vpop.permute.xlu0 %2786
      %2788 = vrot.lane.b32.xlu0 %v2383, 32
      %v2789 = vpop.permute.xlu0 %2788
      %2790 = vrot.lane.b32.xlu0 %v2426, 32
      %v2791 = vpop.permute.xlu0 %2790
      %2792 = vrot.lane.b32.xlu0 %v2428, 32
      %v2793 = vpop.permute.xlu0 %2792
      %2826 = vrot.lane.b32.xlu0 %v2128, 64
      %v2827 = vpop.permute.xlu0 %2826
      %2828 = vrot.lane.b32.xlu0 %v2129, 64
      %v2829 = vpop.permute.xlu0 %2828
      %2830 = vrot.lane.b32.xlu0 %v2131, 64
      %v2831 = vpop.permute.xlu0 %2830
      %2832 = vrot.lane.b32.xlu0 %v2132, 64
      %v2833 = vpop.permute.xlu0 %2832
      %2834 = vrot.lane.b32.xlu0 %v2134, 64
      %v2835 = vpop.permute.xlu0 %2834
      %2836 = vrot.lane.b32.xlu0 %v2135, 64
      %v2837 = vpop.permute.xlu0 %2836
      %2838 = vrot.lane.b32.xlu0 %v2137, 64
      %v2839 = vpop.permute.xlu0 %2838
      %2840 = vrot.lane.b32.xlu0 %v2138, 64
      %v2841 = vpop.permute.xlu0 %2840
      %2842 = vrot.lane.b32.xlu0 %v2140, 64
      %v2843 = vpop.permute.xlu0 %2842
      %2844 = vrot.lane.b32.xlu0 %v2141, 64
      %v2845 = vpop.permute.xlu0 %2844
      %2846 = vrot.lane.b32.xlu0 %v2143, 64
      %v2847 = vpop.permute.xlu0 %2846
      %2848 = vrot.lane.b32.xlu0 %v2144, 64
      %v2849 = vpop.permute.xlu0 %2848
      %2850 = vrot.lane.b32.xlu0 %v2146, 64
      %v2851 = vpop.permute.xlu0 %2850
      %2852 = vrot.lane.b32.xlu0 %v2147, 64
      %v2853 = vpop.permute.xlu0 %2852
      %2854 = vrot.lane.b32.xlu0 %v2149, 64
      %v2855 = vpop.permute.xlu0 %2854
      %2856 = vrot.lane.b32.xlu0 %v2150, 64
      %v2857 = vpop.permute.xlu0 %2856
      %2858 = vrot.lane.b32.xlu0 %v2152, 64
      %v2859 = vpop.permute.xlu0 %2858
      %2860 = vrot.lane.b32.xlu0 %v2153, 64
      %v2861 = vpop.permute.xlu0 %2860
      %2862 = vrot.lane.b32.xlu0 %v2155, 64
      %v2863 = vpop.permute.xlu0 %2862
      %2864 = vrot.lane.b32.xlu0 %v2156, 64
      %v2865 = vpop.permute.xlu0 %2864
      %2866 = vrot.lane.b32.xlu0 %v2158, 64
      %v2867 = vpop.permute.xlu0 %2866
      %2868 = vrot.lane.b32.xlu0 %v2159, 64
      %v2869 = vpop.permute.xlu0 %2868
      %2870 = vrot.lane.b32.xlu0 %v2161, 64
      %v2871 = vpop.permute.xlu0 %2870
      %2872 = vrot.lane.b32.xlu0 %v2162, 64
      %v2873 = vpop.permute.xlu0 %2872
      %2874 = vrot.lane.b32.xlu0 %v2164, 64
      %v2875 = vpop.permute.xlu0 %2874
      %2876 = vrot.lane.b32.xlu0 %v2165, 64
      %v2877 = vpop.permute.xlu0 %2876
      %2878 = vrot.lane.b32.xlu0 %v2167, 64
      %v2879 = vpop.permute.xlu0 %2878
      %2880 = vrot.lane.b32.xlu0 %v2168, 64
      %v2881 = vpop.permute.xlu0 %2880
      %2882 = vrot.lane.b32.xlu0 %v2170, 64
      %v2883 = vpop.permute.xlu0 %2882
      %2884 = vrot.lane.b32.xlu0 %v2171, 64
      %v2885 = vpop.permute.xlu0 %2884
      %2886 = vrot.lane.b32.xlu0 %v2173, 64
      %v2887 = vpop.permute.xlu0 %2886
      %2888 = vrot.lane.b32.xlu0 %v2174, 64
      %v2889 = vpop.permute.xlu0 %2888
      %2922 = vrot.lane.b32.xlu0 %v2236, 96
      %v2923 = vpop.permute.xlu0 %2922
      %2924 = vrot.lane.b32.xlu0 %v2238, 96
      %v2925 = vpop.permute.xlu0 %2924
      %2926 = vrot.lane.b32.xlu0 %v2241, 96
      %v2927 = vpop.permute.xlu0 %2926
      %2928 = vrot.lane.b32.xlu0 %v2243, 96
      %v2929 = vpop.permute.xlu0 %2928
      %2930 = vrot.lane.b32.xlu0 %v2246, 96
      %v2931 = vpop.permute.xlu0 %2930
      %2932 = vrot.lane.b32.xlu0 %v2248, 96
      %v2933 = vpop.permute.xlu0 %2932
      %2934 = vrot.lane.b32.xlu0 %v2251, 96
      %v2935 = vpop.permute.xlu0 %2934
      %2936 = vrot.lane.b32.xlu0 %v2253, 96
      %v2937 = vpop.permute.xlu0 %2936
      %2938 = vrot.lane.b32.xlu0 %v2256, 96
      %v2939 = vpop.permute.xlu0 %2938
      %2940 = vrot.lane.b32.xlu0 %v2258, 96
      %v2941 = vpop.permute.xlu0 %2940
      %2942 = vrot.lane.b32.xlu0 %v2261, 96
      %v2943 = vpop.permute.xlu0 %2942
      %2944 = vrot.lane.b32.xlu0 %v2263, 96
      %v2945 = vpop.permute.xlu0 %2944
      %2946 = vrot.lane.b32.xlu0 %v2266, 96
      %v2947 = vpop.permute.xlu0 %2946
      %2948 = vrot.lane.b32.xlu0 %v2268, 96
      %v2949 = vpop.permute.xlu0 %2948
      %2950 = vrot.lane.b32.xlu0 %v2271, 96
      %v2951 = vpop.permute.xlu0 %2950
      %2952 = vrot.lane.b32.xlu0 %v2273, 96
      %v2953 = vpop.permute.xlu0 %2952
      %2954 = vrot.lane.b32.xlu0 %v2276, 96
      %v2955 = vpop.permute.xlu0 %2954
      %2956 = vrot.lane.b32.xlu0 %v2278, 96
      %v2957 = vpop.permute.xlu0 %2956
      %2958 = vrot.lane.b32.xlu0 %v2281, 96
      %v2959 = vpop.permute.xlu0 %2958
      %2960 = vrot.lane.b32.xlu0 %v2283, 96
      %v2961 = vpop.permute.xlu0 %2960
      %2962 = vrot.lane.b32.xlu0 %v2286, 96
      %v2963 = vpop.permute.xlu0 %2962
      %2964 = vrot.lane.b32.xlu0 %v2288, 96
      %v2965 = vpop.permute.xlu0 %2964
      %2966 = vrot.lane.b32.xlu0 %v2291, 96
      %v2967 = vpop.permute.xlu0 %2966
      %2968 = vrot.lane.b32.xlu0 %v2293, 96
      %v2969 = vpop.permute.xlu0 %2968
      %2970 = vrot.lane.b32.xlu0 %v2296, 96
      %v2971 = vpop.permute.xlu0 %2970
      %2972 = vrot.lane.b32.xlu0 %v2298, 96
      %v2973 = vpop.permute.xlu0 %2972
      %2974 = vrot.lane.b32.xlu0 %v2301, 96
      %v2975 = vpop.permute.xlu0 %2974
      %2976 = vrot.lane.b32.xlu0 %v2303, 96
      %v2977 = vpop.permute.xlu0 %2976
      %2978 = vrot.lane.b32.xlu0 %v2389, 96
      %v2979 = vpop.permute.xlu0 %2978
      %2980 = vrot.lane.b32.xlu0 %v2391, 96
      %v2981 = vpop.permute.xlu0 %2980
      %2982 = vrot.lane.b32.xlu0 %v2434, 96
      %v2983 = vpop.permute.xlu0 %2982
      %2984 = vrot.lane.b32.xlu0 %v2436, 96
      %v2985 = vpop.permute.xlu0 %2984
      %v3018 = vsel %vm279, %v2122, %v2443
      %v3019 = vsel %vm279, %v2123, %v2445
      %v3020 = vsel %vm279, %v2125, %v2447
      %v3021 = vsel %vm279, %v2126, %v2449
      %v3022 = vsel %vm279, %v2128, %v2451
      %v3023 = vsel %vm279, %v2129, %v2453
      %v3024 = vsel %vm279, %v2131, %v2455
      %v3025 = vsel %vm279, %v2132, %v2457
      %v3026 = vsel %vm279, %v2134, %v2459
      %v3027 = vsel %vm279, %v2135, %v2461
      %v3028 = vsel %vm279, %v2137, %v2463
      %v3029 = vsel %vm279, %v2138, %v2465
      %v3030 = vsel %vm279, %v2140, %v2467
      %v3031 = vsel %vm279, %v2141, %v2469
      %v3032 = vsel %vm279, %v2143, %v2471
      %v3033 = vsel %vm279, %v2144, %v2473
      %v3034 = vsel %vm279, %v2146, %v2475
      %v3035 = vsel %vm279, %v2147, %v2477
      %v3036 = vsel %vm279, %v2149, %v2479
      %v3037 = vsel %vm279, %v2150, %v2481
      %v3038 = vsel %vm279, %v2152, %v2483
      %v3039 = vsel %vm279, %v2153, %v2485
      %v3040 = vsel %vm279, %v2155, %v2487
      %v3041 = vsel %vm279, %v2156, %v2489
      %v3042 = vsel %vm279, %v2158, %v2491
      %v3043 = vsel %vm279, %v2159, %v2493
      %v3044 = vsel %vm279, %v2161, %v2495
      %v3045 = vsel %vm279, %v2162, %v2497
      %v3046 = vsel %vm279, %v2164, %v2499
      %v3047 = vsel %vm279, %v2165, %v2501
      %v3048 = vsel %vm279, %v2167, %v2503
      %v3049 = vsel %vm279, %v2168, %v2505
      %vm3050 = vcmask 523264
      %v3051 = vsel %vm3050, %v3018, %v2539
      %v3052 = vsel %vm3050, %v3019, %v2541
      %v3053 = vsel %vm3050, %v3020, %v2543
      %v3054 = vsel %vm3050, %v3021, %v2545
      %v3055 = vsel %vm3050, %v3022, %v2547
      %v3056 = vsel %vm3050, %v3023, %v2549
      %v3057 = vsel %vm3050, %v3024, %v2551
      %v3058 = vsel %vm3050, %v3025, %v2553
      %v3059 = vsel %vm3050, %v3026, %v2555
      %v3060 = vsel %vm3050, %v3027, %v2557
      %v3061 = vsel %vm3050, %v3028, %v2559
      %v3062 = vsel %vm3050, %v3029, %v2561
      %v3063 = vsel %vm3050, %v3030, %v2563
      %v3064 = vsel %vm3050, %v3031, %v2565
      %v3065 = vsel %vm3050, %v3032, %v2567
      %v3066 = vsel %vm3050, %v3033, %v2569
      %v3067 = vsel %vm3050, %v3034, %v2571
      %v3068 = vsel %vm3050, %v3035, %v2573
      %v3069 = vsel %vm3050, %v3036, %v2575
      %v3070 = vsel %vm3050, %v3037, %v2577
      %v3071 = vsel %vm3050, %v3038, %v2579
      %v3072 = vsel %vm3050, %v3039, %v2581
      %v3073 = vsel %vm3050, %v3040, %v2583
      %v3074 = vsel %vm3050, %v3041, %v2585
      %v3075 = vsel %vm3050, %v3042, %v2587
      %v3076 = vsel %vm3050, %v3043, %v2589
      %v3077 = vsel %vm3050, %v3044, %v2591
      %v3078 = vsel %vm3050, %v3045, %v2593
      %v3079 = vsel %vm3050, %v3046, %v2595
      %v3080 = vsel %vm3050, %v3047, %v2597
      %v3081 = vsel %vm3050, %v3048, %v2599
      %v3082 = vsel %vm3050, %v3049, %v2601
      %vm3083 = vcmask 785408
      %v3084 = vsel %vm3083, %v3051, %v2635
      %v3085 = vsel %vm3083, %v3052, %v2637
      %v3086 = vsel %vm3083, %v3053, %v2639
      %v3087 = vsel %vm3083, %v3054, %v2641
      %v3088 = vsel %vm3083, %v3055, %v2643
      %v3089 = vsel %vm3083, %v3056, %v2645
      %v3090 = vsel %vm3083, %v3057, %v2647
      %v3091 = vsel %vm3083, %v3058, %v2649
      %v3092 = vsel %vm3083, %v3059, %v2651
      %v3093 = vsel %vm3083, %v3060, %v2653
      %v3094 = vsel %vm3083, %v3061, %v2655
      %v3095 = vsel %vm3083, %v3062, %v2657
      %v3096 = vsel %vm3083, %v3063, %v2659
      %v3097 = vsel %vm3083, %v3064, %v2661
      %v3098 = vsel %vm3083, %v3065, %v2663
      %v3099 = vsel %vm3083, %v3066, %v2665
      %v3100 = vsel %vm3083, %v3067, %v2667
      %v3101 = vsel %vm3083, %v3068, %v2669
      %v3102 = vsel %vm3083, %v3069, %v2671
      %v3103 = vsel %vm3083, %v3070, %v2673
      %v3104 = vsel %vm3083, %v3071, %v2675
      %v3105 = vsel %vm3083, %v3072, %v2677
      %v3106 = vsel %vm3083, %v3073, %v2679
      %v3107 = vsel %vm3083, %v3074, %v2681
      %v3108 = vsel %vm3083, %v3075, %v2683
      %v3109 = vsel %vm3083, %v3076, %v2685
      %v3110 = vsel %vm3083, %v3077, %v2687
      %v3111 = vsel %vm3083, %v3078, %v2689
      %v3112 = vsel %vm3083, %v3079, %v2691
      %v3113 = vsel %vm3083, %v3080, %v2693
      %v3114 = vsel %vm3083, %v3081, %v2695
      %v3115 = vsel %vm3083, %v3082, %v2697
      %v3116 = vsel %vm279, %v2231, %v2731
      %v3117 = vsel %vm279, %v2233, %v2733
      %v3118 = vsel %vm279, %v2236, %v2735
      %v3119 = vsel %vm279, %v2238, %v2737
      %v3120 = vsel %vm279, %v2241, %v2739
      %v3121 = vsel %vm279, %v2243, %v2741
      %v3122 = vsel %vm279, %v2246, %v2743
      %v3123 = vsel %vm279, %v2248, %v2745
      %v3124 = vsel %vm279, %v2251, %v2747
      %v3125 = vsel %vm279, %v2253, %v2749
      %v3126 = vsel %vm279, %v2256, %v2751
      %v3127 = vsel %vm279, %v2258, %v2753
      %v3128 = vsel %vm279, %v2261, %v2755
      %v3129 = vsel %vm279, %v2263, %v2757
      %v3130 = vsel %vm279, %v2266, %v2759
      %v3131 = vsel %vm279, %v2268, %v2761
      %v3132 = vsel %vm279, %v2271, %v2763
      %v3133 = vsel %vm279, %v2273, %v2765
      %v3134 = vsel %vm279, %v2276, %v2767
      %v3135 = vsel %vm279, %v2278, %v2769
      %v3136 = vsel %vm279, %v2281, %v2771
      %v3137 = vsel %vm279, %v2283, %v2773
      %v3138 = vsel %vm279, %v2286, %v2775
      %v3139 = vsel %vm279, %v2288, %v2777
      %v3140 = vsel %vm279, %v2291, %v2779
      %v3141 = vsel %vm279, %v2293, %v2781
      %v3142 = vsel %vm279, %v2296, %v2783
      %v3143 = vsel %vm279, %v2298, %v2785
      %v3144 = vsel %vm279, %v2301, %v2787
      %v3145 = vsel %vm279, %v2303, %v2789
      %v3146 = vsel %vm279, %v2389, %v2791
      %v3147 = vsel %vm279, %v2391, %v2793
      %v3148 = vsel %vm3050, %v3116, %v2827
      %v3149 = vsel %vm3050, %v3117, %v2829
      %v3150 = vsel %vm3050, %v3118, %v2831
      %v3151 = vsel %vm3050, %v3119, %v2833
      %v3152 = vsel %vm3050, %v3120, %v2835
      %v3153 = vsel %vm3050, %v3121, %v2837
      %v3154 = vsel %vm3050, %v3122, %v2839
      %v3155 = vsel %vm3050, %v3123, %v2841
      %v3156 = vsel %vm3050, %v3124, %v2843
      %v3157 = vsel %vm3050, %v3125, %v2845
      %v3158 = vsel %vm3050, %v3126, %v2847
      %v3159 = vsel %vm3050, %v3127, %v2849
      %v3160 = vsel %vm3050, %v3128, %v2851
      %v3161 = vsel %vm3050, %v3129, %v2853
      %v3162 = vsel %vm3050, %v3130, %v2855
      %v3163 = vsel %vm3050, %v3131, %v2857
      %v3164 = vsel %vm3050, %v3132, %v2859
      %v3165 = vsel %vm3050, %v3133, %v2861
      %v3166 = vsel %vm3050, %v3134, %v2863
      %v3167 = vsel %vm3050, %v3135, %v2865
      %v3168 = vsel %vm3050, %v3136, %v2867
      %v3169 = vsel %vm3050, %v3137, %v2869
      %v3170 = vsel %vm3050, %v3138, %v2871
      %v3171 = vsel %vm3050, %v3139, %v2873
      %v3172 = vsel %vm3050, %v3140, %v2875
      %v3173 = vsel %vm3050, %v3141, %v2877
      %v3174 = vsel %vm3050, %v3142, %v2879
      %v3175 = vsel %vm3050, %v3143, %v2881
      %v3176 = vsel %vm3050, %v3144, %v2883
      %v3177 = vsel %vm3050, %v3145, %v2885
      %v3178 = vsel %vm3050, %v3146, %v2887
      %v3179 = vsel %vm3050, %v3147, %v2889
      %v3180 = vsel %vm3083, %v3148, %v2923
      %v3181 = vsel %vm3083, %v3149, %v2925
      %v3182 = vsel %vm3083, %v3150, %v2927
      %v3183 = vsel %vm3083, %v3151, %v2929
      %v3184 = vsel %vm3083, %v3152, %v2931
      %v3185 = vsel %vm3083, %v3153, %v2933
      %v3186 = vsel %vm3083, %v3154, %v2935
      %v3187 = vsel %vm3083, %v3155, %v2937
      %v3188 = vsel %vm3083, %v3156, %v2939
      %v3189 = vsel %vm3083, %v3157, %v2941
      %v3190 = vsel %vm3083, %v3158, %v2943
      %v3191 = vsel %vm3083, %v3159, %v2945
      %v3192 = vsel %vm3083, %v3160, %v2947
      %v3193 = vsel %vm3083, %v3161, %v2949
      %v3194 = vsel %vm3083, %v3162, %v2951
      %v3195 = vsel %vm3083, %v3163, %v2953
      %v3196 = vsel %vm3083, %v3164, %v2955
      %v3197 = vsel %vm3083, %v3165, %v2957
      %v3198 = vsel %vm3083, %v3166, %v2959
      %v3199 = vsel %vm3083, %v3167, %v2961
      %v3200 = vsel %vm3083, %v3168, %v2963
      %v3201 = vsel %vm3083, %v3169, %v2965
      %v3202 = vsel %vm3083, %v3170, %v2967
      %v3203 = vsel %vm3083, %v3171, %v2969
      %v3204 = vsel %vm3083, %v3172, %v2971
      %v3205 = vsel %vm3083, %v3173, %v2973
      %v3206 = vsel %vm3083, %v3174, %v2975
      %v3207 = vsel %vm3083, %v3175, %v2977
      %v3208 = vsel %vm3083, %v3176, %v2979
      %v3209 = vsel %vm3083, %v3177, %v2981
      %v3210 = vsel %vm3083, %v3178, %v2983
      %v3211 = vsel %vm3083, %v3179, %v2985
      %v3212 = vld [vmem:[%s3] sm:$0xff]
      %v3213 = vld [vmem:[%s3 + $0x8] sm:$0xff]
      %v3214 = vld [vmem:[%s3 + $0x10] sm:$0xff]
      %v3215 = vld [vmem:[%s3 + $0x18] sm:$0xff]
      %v3216 = vld [vmem:[%s3 + $0x20] sm:$0xff]
      %v3217 = vld [vmem:[%s3 + $0x28] sm:$0xff]
      %v3218 = vld [vmem:[%s3 + $0x30] sm:$0xff]
      %v3219 = vld [vmem:[%s3 + $0x38] sm:$0xff]
      %v3220 = vld [vmem:[%s3 + $0x40] sm:$0xff]
      %v3221 = vld [vmem:[%s3 + $0x48] sm:$0xff]
      %v3222 = vld [vmem:[%s3 + $0x50] sm:$0xff]
      %v3223 = vld [vmem:[%s3 + $0x58] sm:$0xff]
      %v3224 = vld [vmem:[%s3 + $0x60] sm:$0xff]
      %v3225 = vld [vmem:[%s3 + $0x68] sm:$0xff]
      %v3226 = vld [vmem:[%s3 + $0x70] sm:$0xff]
      %v3227 = vld [vmem:[%s3 + $0x78] sm:$0xff]
      %v3228 = vld [vmem:[%s3 + $0x80] sm:$0xff]
      %v3229 = vld [vmem:[%s3 + $0x88] sm:$0xff]
      %v3230 = vld [vmem:[%s3 + $0x90] sm:$0xff]
      %v3231 = vld [vmem:[%s3 + $0x98] sm:$0xff]
      %v3232 = vld [vmem:[%s3 + $0xa0] sm:$0xff]
      %v3233 = vld [vmem:[%s3 + $0xa8] sm:$0xff]
      %v3234 = vld [vmem:[%s3 + $0xb0] sm:$0xff]
      %v3235 = vld [vmem:[%s3 + $0xb8] sm:$0xff]
      %v3236 = vld [vmem:[%s3 + $0xc0] sm:$0xff]
      %v3237 = vld [vmem:[%s3 + $0xc8] sm:$0xff]
      %v3238 = vld [vmem:[%s3 + $0xd0] sm:$0xff]
      %v3239 = vld [vmem:[%s3 + $0xd8] sm:$0xff]
      %v3240 = vld [vmem:[%s3 + $0xe0] sm:$0xff]
      %v3241 = vld [vmem:[%s3 + $0xe8] sm:$0xff]
      %v3242 = vld [vmem:[%s3 + $0xf0] sm:$0xff]
      %v3243 = vld [vmem:[%s3 + $0xf8] sm:$0xff]
      %v3244 = vld [vmem:[%s3 + $0x100] sm:$0xff]
      %v3245 = vld [vmem:[%s3 + $0x108] sm:$0xff]
      %v3246 = vld [vmem:[%s3 + $0x110] sm:$0xff]
      %v3247 = vld [vmem:[%s3 + $0x118] sm:$0xff]
      %v3248 = vld [vmem:[%s4] sm:$0x1]
      %v3250 = vlaneseq
      %v3251 = vshrl.u32 %v3250, 7
      %v3252 = vsub.s32 0, %v3251
      %v3253 = vrot.slane %v3248, %v3252
      %v3255 = vsel %vm279, %v2316, 0
      %v3257 = vsel %vm279, %v2318, 0
      %v3259 = vsel %vm279, %v2321, 0
      %v3261 = vsel %vm279, %v2323, 0
      %v3263 = vsel %vm279, %v2326, 0
      %v3265 = vsel %vm279, %v2328, 0
      %v3267 = vsel %vm279, %v2331, 0
      %v3269 = vsel %vm279, %v2333, 0
      %v3271 = vsel %vm279, %v2336, 0
      %v3273 = vsel %vm279, %v2338, 0
      %v3275 = vsel %vm279, %v2341, 0
      %v3277 = vsel %vm279, %v2343, 0
      %v3279 = vsel %vm279, %v2346, 0
      %v3281 = vsel %vm279, %v2348, 0
      %v3283 = vsel %vm279, %v2351, 0
      %v3285 = vsel %vm279, %v2353, 0
      %v3287 = vsel %vm279, %v2356, 0
      %v3289 = vsel %vm279, %v2358, 0
      %v3291 = vsel %vm279, %v2361, 0
      %v3293 = vsel %vm279, %v2363, 0
      %v3295 = vsel %vm279, %v2366, 0
      %v3297 = vsel %vm279, %v2368, 0
      %v3299 = vsel %vm279, %v2371, 0
      %v3301 = vsel %vm279, %v2373, 0
      %v3303 = vsel %vm279, %v2376, 0
      %v3305 = vsel %vm279, %v2378, 0
      %v3307 = vsel %vm279, %v2381, 0
      %v3309 = vsel %vm279, %v2383, 0
      %v3311 = vsel %vm279, %v2426, 0
      %v3313 = vsel %vm279, %v2428, 0
      %v3315 = vsel %vm279, %v2439, 0
      %v3317 = vsel %vm279, %v2441, 0
      %3319 = vmatprep.subr.mxu0 0.0
      %3320 = vmatpush1.msra.mxu0 %v3227
      %3321 = vmatprep.subr.mxu0 0.0
      %3322 = vmatpush1.msra.mxu0 %v3226
      %3323 = vmatprep.subr.mxu0 0.0
      %3324 = vmatpush1.msra.mxu0 %v3225
      %3325 = vmatprep.subr.mxu0 0.0
      %3326 = vmatpush1.msra.mxu0 %v3224
      %3327 = vmatprep.subr.mxu0 0.0
      %3328 = vmatpush1.msra.mxu0 %v3223
      %3329 = vmatprep.subr.mxu0 0.0
      %3330 = vmatpush1.msra.mxu0 %v3222
      %3331 = vmatprep.subr.mxu0 0.0
      %3332 = vmatpush1.msra.mxu0 %v3221
      %3333 = vmatprep.subr.mxu0 0.0
      %3334 = vmatpush1.msra.mxu0 %v3220
      %3335 = vmatprep.subr.mxu0 0.0
      %3336 = vmatpush1.msra.mxu0 %v3219
      %3337 = vmatprep.subr.mxu0 0.0
      %3338 = vmatpush1.msra.mxu0 %v3218
      %3339 = vmatprep.subr.mxu0 0.0
      %3340 = vmatpush1.msra.mxu0 %v3217
      %3341 = vmatprep.subr.mxu0 0.0
      %3342 = vmatpush1.msra.mxu0 %v3216
      %3343 = vmatprep.subr.mxu0 0.0
      %3344 = vmatpush1.msra.mxu0 %v3215
      %3345 = vmatprep.subr.mxu0 0.0
      %3346 = vmatpush1.msra.mxu0 %v3214
      %3347 = vmatprep.subr.mxu0 0.0
      %3348 = vmatpush1.msra.mxu0 %v3213
      %3349 = vmatprep.subr.mxu0 0.0
      %3350 = vmatpush1.msra.mxu0 %v3212
      %3351 = vmatprep.subr.mxu0 0.0
      %3352 = vmatpush2.msra.mxu0 %v3243
      %3353 = vmatprep.subr.mxu0 0.0
      %3354 = vmatpush2.msra.mxu0 %v3242
      %3355 = vmatprep.subr.mxu0 0.0
      %3356 = vmatpush2.msra.mxu0 %v3241
      %3357 = vmatprep.subr.mxu0 0.0
      %3358 = vmatpush2.msra.mxu0 %v3240
      %3359 = vmatprep.subr.mxu0 0.0
      %3360 = vmatpush2.msra.mxu0 %v3239
      %3361 = vmatprep.subr.mxu0 0.0
      %3362 = vmatpush2.msra.mxu0 %v3238
      %3363 = vmatprep.subr.mxu0 0.0
      %3364 = vmatpush2.msra.mxu0 %v3237
      %3365 = vmatprep.subr.mxu0 0.0
      %3366 = vmatpush2.msra.mxu0 %v3236
      %3367 = vmatprep.subr.mxu0 0.0
      %3368 = vmatpush2.msra.mxu0 %v3235
      %3369 = vmatprep.subr.mxu0 0.0
      %3370 = vmatpush2.msra.mxu0 %v3234
      %3371 = vmatprep.subr.mxu0 0.0
      %3372 = vmatpush2.msra.mxu0 %v3233
      %3373 = vmatprep.subr.mxu0 0.0
      %3374 = vmatpush2.msra.mxu0 %v3232
      %3375 = vmatprep.subr.mxu0 0.0
      %3376 = vmatpush2.msra.mxu0 %v3231
      %3377 = vmatprep.subr.mxu0 0.0
      %3378 = vmatpush2.msra.mxu0 %v3230
      %3379 = vmatprep.subr.mxu0 0.0
      %3380 = vmatpush2.msra.mxu0 %v3229
      %3381 = vmatprep.subr.mxu0 0.0
      %3382 = vmatpush2.msra.mxu0 %v3228
      %3383 = vmatprep.mubr.f32.mxu0 %v3180
      %3384 = vmatmul.mubr.f32.gmra.mxu0 %v3084
      %v3385 = vpop.f32.mrf.mxu0
      %v3386 = vadd.f32 %v3253, %v3385
      %v3387 = vpop.f32.mrf.mxu0
      %3388 = vmatprep.mubr.f32.mxu0 %v3181
      %3389 = vmatmul.mubr.f32.gmra.mxu0 %v3085
      %v3390 = vpop.f32.mrf.mxu0
      %v3391 = vadd.f32 %v3253, %v3390
      %v3392 = vpop.f32.mrf.mxu0
      %3393 = vmatprep.mubr.f32.mxu0 %v3182
      %3394 = vmatmul.mubr.f32.gmra.mxu0 %v3086
      %v3395 = vpop.f32.mrf.mxu0
      %v3396 = vadd.f32 %v3253, %v3395
      %v3397 = vpop.f32.mrf.mxu0
      %3398 = vmatprep.mubr.f32.mxu0 %v3183
      %3399 = vmatmul.mubr.f32.gmra.mxu0 %v3087
      %v3400 = vpop.f32.mrf.mxu0
      %v3401 = vadd.f32 %v3253, %v3400
      %v3402 = vpop.f32.mrf.mxu0
      %3403 = vmatprep.mubr.f32.mxu0 %v3184
      %3404 = vmatmul.mubr.f32.gmra.mxu0 %v3088
      %v3405 = vpop.f32.mrf.mxu0
      %v3406 = vadd.f32 %v3253, %v3405
      %v3407 = vpop.f32.mrf.mxu0
      %3408 = vmatprep.mubr.f32.mxu0 %v3185
      %3409 = vmatmul.mubr.f32.gmra.mxu0 %v3089
      %v3410 = vpop.f32.mrf.mxu0
      %v3411 = vadd.f32 %v3253, %v3410
      %v3412 = vpop.f32.mrf.mxu0
      %3413 = vmatprep.mubr.f32.mxu0 %v3186
      %3414 = vmatmul.mubr.f32.gmra.mxu0 %v3090
      %v3415 = vpop.f32.mrf.mxu0
      %v3416 = vadd.f32 %v3253, %v3415
      %v3417 = vpop.f32.mrf.mxu0
      %3418 = vmatprep.mubr.f32.mxu0 %v3187
      %3419 = vmatmul.mubr.f32.gmra.mxu0 %v3091
      %v3420 = vpop.f32.mrf.mxu0
      %v3421 = vadd.f32 %v3253, %v3420
      %v3422 = vpop.f32.mrf.mxu0
      %3423 = vmatprep.mubr.f32.mxu0 %v3188
      %3424 = vmatmul.mubr.f32.gmra.mxu0 %v3092
      %v3425 = vpop.f32.mrf.mxu0
      %v3426 = vadd.f32 %v3253, %v3425
      %v3427 = vpop.f32.mrf.mxu0
      %3428 = vmatprep.mubr.f32.mxu0 %v3189
      %3429 = vmatmul.mubr.f32.gmra.mxu0 %v3093
      %v3430 = vpop.f32.mrf.mxu0
      %v3431 = vadd.f32 %v3253, %v3430
      %v3432 = vpop.f32.mrf.mxu0
      %3433 = vmatprep.mubr.f32.mxu0 %v3190
      %3434 = vmatmul.mubr.f32.gmra.mxu0 %v3094
      %v3435 = vpop.f32.mrf.mxu0
      %v3436 = vadd.f32 %v3253, %v3435
      %v3437 = vpop.f32.mrf.mxu0
      %3438 = vmatprep.mubr.f32.mxu0 %v3191
      %3439 = vmatmul.mubr.f32.gmra.mxu0 %v3095
      %v3440 = vpop.f32.mrf.mxu0
      %v3441 = vadd.f32 %v3253, %v3440
      %v3442 = vpop.f32.mrf.mxu0
      %3443 = vmatprep.mubr.f32.mxu0 %v3192
      %3444 = vmatmul.mubr.f32.gmra.mxu0 %v3096
      %v3445 = vpop.f32.mrf.mxu0
      %v3446 = vadd.f32 %v3253, %v3445
      %v3447 = vpop.f32.mrf.mxu0
      %3448 = vmatprep.mubr.f32.mxu0 %v3193
      %3449 = vmatmul.mubr.f32.gmra.mxu0 %v3097
      %v3450 = vpop.f32.mrf.mxu0
      %v3451 = vadd.f32 %v3253, %v3450
      %v3452 = vpop.f32.mrf.mxu0
      %3453 = vmatprep.mubr.f32.mxu0 %v3194
      %3454 = vmatmul.mubr.f32.gmra.mxu0 %v3098
      %v3455 = vpop.f32.mrf.mxu0
      %v3456 = vadd.f32 %v3253, %v3455
      %v3457 = vpop.f32.mrf.mxu0
      %3458 = vmatprep.mubr.f32.mxu0 %v3195
      %3459 = vmatmul.mubr.f32.gmra.mxu0 %v3099
      %v3460 = vpop.f32.mrf.mxu0
      %v3461 = vadd.f32 %v3253, %v3460
      %v3462 = vpop.f32.mrf.mxu0
      %3463 = vmatprep.mubr.f32.mxu0 %v3196
      %3464 = vmatmul.mubr.f32.gmra.mxu0 %v3100
      %v3465 = vpop.f32.mrf.mxu0
      %v3466 = vadd.f32 %v3253, %v3465
      %v3467 = vpop.f32.mrf.mxu0
      %3468 = vmatprep.mubr.f32.mxu0 %v3197
      %3469 = vmatmul.mubr.f32.gmra.mxu0 %v3101
      %v3470 = vpop.f32.mrf.mxu0
      %v3471 = vadd.f32 %v3253, %v3470
      %v3472 = vpop.f32.mrf.mxu0
      %3473 = vmatprep.mubr.f32.mxu0 %v3198
      %3474 = vmatmul.mubr.f32.gmra.mxu0 %v3102
      %v3475 = vpop.f32.mrf.mxu0
      %v3476 = vadd.f32 %v3253, %v3475
      %v3477 = vpop.f32.mrf.mxu0
      %3478 = vmatprep.mubr.f32.mxu0 %v3199
      %3479 = vmatmul.mubr.f32.gmra.mxu0 %v3103
      %v3480 = vpop.f32.mrf.mxu0
      %v3481 = vadd.f32 %v3253, %v3480
      %v3482 = vpop.f32.mrf.mxu0
      %3483 = vmatprep.mubr.f32.mxu0 %v3200
      %3484 = vmatmul.mubr.f32.gmra.mxu0 %v3104
      %v3485 = vpop.f32.mrf.mxu0
      %v3486 = vadd.f32 %v3253, %v3485
      %v3487 = vpop.f32.mrf.mxu0
      %3488 = vmatprep.mubr.f32.mxu0 %v3201
      %3489 = vmatmul.mubr.f32.gmra.mxu0 %v3105
      %v3490 = vpop.f32.mrf.mxu0
      %v3491 = vadd.f32 %v3253, %v3490
      %v3492 = vpop.f32.mrf.mxu0
      %3493 = vmatprep.mubr.f32.mxu0 %v3202
      %3494 = vmatmul.mubr.f32.gmra.mxu0 %v3106
      %v3495 = vpop.f32.mrf.mxu0
      %v3496 = vadd.f32 %v3253, %v3495
      %v3497 = vpop.f32.mrf.mxu0
      %3498 = vmatprep.mubr.f32.mxu0 %v3203
      %3499 = vmatmul.mubr.f32.gmra.mxu0 %v3107
      %v3500 = vpop.f32.mrf.mxu0
      %v3501 = vadd.f32 %v3253, %v3500
      %v3502 = vpop.f32.mrf.mxu0
      %3503 = vmatprep.mubr.f32.mxu0 %v3204
      %3504 = vmatmul.mubr.f32.gmra.mxu0 %v3108
      %v3505 = vpop.f32.mrf.mxu0
      %v3506 = vadd.f32 %v3253, %v3505
      %v3507 = vpop.f32.mrf.mxu0
      %3508 = vmatprep.mubr.f32.mxu0 %v3205
      %3509 = vmatmul.mubr.f32.gmra.mxu0 %v3109
      %v3510 = vpop.f32.mrf.mxu0
      %v3511 = vadd.f32 %v3253, %v3510
      %v3512 = vpop.f32.mrf.mxu0
      %3513 = vmatprep.mubr.f32.mxu0 %v3206
      %3514 = vmatmul.mubr.f32.gmra.mxu0 %v3110
      %v3515 = vpop.f32.mrf.mxu0
      %v3516 = vadd.f32 %v3253, %v3515
      %v3517 = vpop.f32.mrf.mxu0
      %3518 = vmatprep.mubr.f32.mxu0 %v3207
      %3519 = vmatmul.mubr.f32.gmra.mxu0 %v3111
      %v3520 = vpop.f32.mrf.mxu0
      %v3521 = vadd.f32 %v3253, %v3520
      %v3522 = vpop.f32.mrf.mxu0
      %3523 = vmatprep.mubr.f32.mxu0 %v3208
      %3524 = vmatmul.mubr.f32.gmra.mxu0 %v3112
      %v3525 = vpop.f32.mrf.mxu0
      %v3526 = vadd.f32 %v3253, %v3525
      %v3527 = vpop.f32.mrf.mxu0
      %3528 = vmatprep.mubr.f32.mxu0 %v3209
      %3529 = vmatmul.mubr.f32.gmra.mxu0 %v3113
      %v3530 = vpop.f32.mrf.mxu0
      %v3531 = vadd.f32 %v3253, %v3530
      %v3532 = vpop.f32.mrf.mxu0
      %3533 = vmatprep.mubr.f32.mxu0 %v3210
      %3534 = vmatmul.mubr.f32.gmra.mxu0 %v3114
      %v3535 = vpop.f32.mrf.mxu0
      %v3536 = vadd.f32 %v3253, %v3535
      %v3537 = vpop.f32.mrf.mxu0
      %3538 = vmatprep.mubr.f32.mxu0 %v3211
      %3539 = vmatmul.mubr.f32.gmra.mxu0 %v3115
      %v3540 = vpop.f32.mrf.mxu0
      %v3541 = vadd.f32 %v3253, %v3540
      %v3542 = vpop.f32.mrf.mxu0
      %3543 = vdwg.mxu0
      %3544 = vmatprep.subr.mxu0 0.0
      %3545 = vmatpush1.msra.mxu0 0.0
      %3546 = vmatprep.subr.mxu0 0.0
      %3547 = vmatpush1.msra.mxu0 0.0
      %3548 = vmatprep.subr.mxu0 0.0
      %3549 = vmatpush1.msra.mxu0 0.0
      %3550 = vmatprep.subr.mxu0 0.0
      %3551 = vmatpush1.msra.mxu0 0.0
      %3552 = vmatprep.subr.mxu0 0.0
      %3553 = vmatpush1.msra.mxu0 0.0
      %3554 = vmatprep.subr.mxu0 0.0
      %3555 = vmatpush1.msra.mxu0 0.0
      %3556 = vmatprep.subr.mxu0 0.0
      %3557 = vmatpush1.msra.mxu0 0.0
      %3558 = vmatprep.subr.mxu0 0.0
      %3559 = vmatpush1.msra.mxu0 0.0
      %3560 = vmatprep.subr.mxu0 0.0
      %3561 = vmatpush1.msra.mxu0 0.0
      %3562 = vmatprep.subr.mxu0 0.0
      %3563 = vmatpush1.msra.mxu0 0.0
      %3564 = vmatprep.subr.mxu0 0.0
      %3565 = vmatpush1.msra.mxu0 0.0
      %3566 = vmatprep.subr.mxu0 0.0
      %3567 = vmatpush1.msra.mxu0 0.0
      %3568 = vmatprep.subr.mxu0 0.0
      %3569 = vmatpush1.msra.mxu0 %v3247
      %3570 = vmatprep.subr.mxu0 0.0
      %3571 = vmatpush1.msra.mxu0 %v3246
      %3572 = vmatprep.subr.mxu0 0.0
      %3573 = vmatpush1.msra.mxu0 %v3245
      %3574 = vmatprep.subr.mxu0 0.0
      %3575 = vmatpush1.msra.mxu0 %v3244
      %3576 = vmatprep.subr.mxu0 0.0
      %3577 = vmatpush2.msra.mxu0 0.0
      %3578 = vmatprep.subr.mxu0 0.0
      %3579 = vmatpush2.msra.mxu0 0.0
      %3580 = vmatprep.subr.mxu0 0.0
      %3581 = vmatpush2.msra.mxu0 0.0
      %3582 = vmatprep.subr.mxu0 0.0
      %3583 = vmatpush2.msra.mxu0 0.0
      %3584 = vmatprep.subr.mxu0 0.0
      %3585 = vmatpush2.msra.mxu0 0.0
      %3586 = vmatprep.subr.mxu0 0.0
      %3587 = vmatpush2.msra.mxu0 0.0
      %3588 = vmatprep.subr.mxu0 0.0
      %3589 = vmatpush2.msra.mxu0 0.0
      %3590 = vmatprep.subr.mxu0 0.0
      %3591 = vmatpush2.msra.mxu0 0.0
      %3592 = vmatprep.subr.mxu0 0.0
      %3593 = vmatpush2.msra.mxu0 0.0
      %3594 = vmatprep.subr.mxu0 0.0
      %3595 = vmatpush2.msra.mxu0 0.0
      %3596 = vmatprep.subr.mxu0 0.0
      %3597 = vmatpush2.msra.mxu0 0.0
      %3598 = vmatprep.subr.mxu0 0.0
      %3599 = vmatpush2.msra.mxu0 0.0
      %3600 = vmatprep.subr.mxu0 0.0
      %3601 = vmatpush2.msra.mxu0 0.0
      %3602 = vmatprep.subr.mxu0 0.0
      %3603 = vmatpush2.msra.mxu0 0.0
      %3604 = vmatprep.subr.mxu0 0.0
      %3605 = vmatpush2.msra.mxu0 0.0
      %3606 = vmatprep.subr.mxu0 0.0
      %3607 = vmatpush2.msra.mxu0 0.0
      %3608 = vmatprep.mubr.f32.mxu0 0.0
      %3609 = vmatmul.mubr.f32.gmra.mxu0 %v3255
      %v3610 = vpop.f32.mrf.mxu0
      %v3611 = vadd.f32 %v3386, %v3610
      %v3612 = vpop.f32.mrf.mxu0
      %3613 = vmatprep.mubr.f32.mxu0 0.0
      %3614 = vmatmul.mubr.f32.gmra.mxu0 %v3257
      %v3615 = vpop.f32.mrf.mxu0
      %v3616 = vadd.f32 %v3391, %v3615
      %v3617 = vpop.f32.mrf.mxu0
      %3618 = vmatprep.mubr.f32.mxu0 0.0
      %3619 = vmatmul.mubr.f32.gmra.mxu0 %v3259
      %v3620 = vpop.f32.mrf.mxu0
      %v3621 = vadd.f32 %v3396, %v3620
      %v3622 = vpop.f32.mrf.mxu0
      %3623 = vmatprep.mubr.f32.mxu0 0.0
      %3624 = vmatmul.mubr.f32.gmra.mxu0 %v3261
      %v3625 = vpop.f32.mrf.mxu0
      %v3626 = vadd.f32 %v3401, %v3625
      %v3627 = vpop.f32.mrf.mxu0
      %3628 = vmatprep.mubr.f32.mxu0 0.0
      %3629 = vmatmul.mubr.f32.gmra.mxu0 %v3263
      %v3630 = vpop.f32.mrf.mxu0
      %v3631 = vadd.f32 %v3406, %v3630
      %v3632 = vpop.f32.mrf.mxu0
      %3633 = vmatprep.mubr.f32.mxu0 0.0
      %3634 = vmatmul.mubr.f32.gmra.mxu0 %v3265
      %v3635 = vpop.f32.mrf.mxu0
      %v3636 = vadd.f32 %v3411, %v3635
      %v3637 = vpop.f32.mrf.mxu0
      %3638 = vmatprep.mubr.f32.mxu0 0.0
      %3639 = vmatmul.mubr.f32.gmra.mxu0 %v3267
      %v3640 = vpop.f32.mrf.mxu0
      %v3641 = vadd.f32 %v3416, %v3640
      %v3642 = vpop.f32.mrf.mxu0
      %3643 = vmatprep.mubr.f32.mxu0 0.0
      %3644 = vmatmul.mubr.f32.gmra.mxu0 %v3269
      %v3645 = vpop.f32.mrf.mxu0
      %v3646 = vadd.f32 %v3421, %v3645
      %v3647 = vpop.f32.mrf.mxu0
      %3648 = vmatprep.mubr.f32.mxu0 0.0
      %3649 = vmatmul.mubr.f32.gmra.mxu0 %v3271
      %v3650 = vpop.f32.mrf.mxu0
      %v3651 = vadd.f32 %v3426, %v3650
      %v3652 = vpop.f32.mrf.mxu0
      %3653 = vmatprep.mubr.f32.mxu0 0.0
      %3654 = vmatmul.mubr.f32.gmra.mxu0 %v3273
      %v3655 = vpop.f32.mrf.mxu0
      %v3656 = vadd.f32 %v3431, %v3655
      %v3657 = vpop.f32.mrf.mxu0
      %3658 = vmatprep.mubr.f32.mxu0 0.0
      %3659 = vmatmul.mubr.f32.gmra.mxu0 %v3275
      %v3660 = vpop.f32.mrf.mxu0
      %v3661 = vadd.f32 %v3436, %v3660
      %v3662 = vpop.f32.mrf.mxu0
      %3663 = vmatprep.mubr.f32.mxu0 0.0
      %3664 = vmatmul.mubr.f32.gmra.mxu0 %v3277
      %v3665 = vpop.f32.mrf.mxu0
      %v3666 = vadd.f32 %v3441, %v3665
      %v3667 = vpop.f32.mrf.mxu0
      %3668 = vmatprep.mubr.f32.mxu0 0.0
      %3669 = vmatmul.mubr.f32.gmra.mxu0 %v3279
      %v3670 = vpop.f32.mrf.mxu0
      %v3671 = vadd.f32 %v3446, %v3670
      %v3672 = vpop.f32.mrf.mxu0
      %3673 = vmatprep.mubr.f32.mxu0 0.0
      %3674 = vmatmul.mubr.f32.gmra.mxu0 %v3281
      %v3675 = vpop.f32.mrf.mxu0
      %v3676 = vadd.f32 %v3451, %v3675
      %v3677 = vpop.f32.mrf.mxu0
      %3678 = vmatprep.mubr.f32.mxu0 0.0
      %3679 = vmatmul.mubr.f32.gmra.mxu0 %v3283
      %v3680 = vpop.f32.mrf.mxu0
      %v3681 = vadd.f32 %v3456, %v3680
      %v3682 = vpop.f32.mrf.mxu0
      %3683 = vmatprep.mubr.f32.mxu0 0.0
      %3684 = vmatmul.mubr.f32.gmra.mxu0 %v3285
      %v3685 = vpop.f32.mrf.mxu0
      %v3686 = vadd.f32 %v3461, %v3685
      %v3687 = vpop.f32.mrf.mxu0
      %3688 = vmatprep.mubr.f32.mxu0 0.0
      %3689 = vmatmul.mubr.f32.gmra.mxu0 %v3287
      %v3690 = vpop.f32.mrf.mxu0
      %v3691 = vadd.f32 %v3466, %v3690
      %v3692 = vpop.f32.mrf.mxu0
      %3693 = vmatprep.mubr.f32.mxu0 0.0
      %3694 = vmatmul.mubr.f32.gmra.mxu0 %v3289
      %v3695 = vpop.f32.mrf.mxu0
      %v3696 = vadd.f32 %v3471, %v3695
      %v3697 = vpop.f32.mrf.mxu0
      %3698 = vmatprep.mubr.f32.mxu0 0.0
      %3699 = vmatmul.mubr.f32.gmra.mxu0 %v3291
      %v3700 = vpop.f32.mrf.mxu0
      %v3701 = vadd.f32 %v3476, %v3700
      %v3702 = vpop.f32.mrf.mxu0
      %3703 = vmatprep.mubr.f32.mxu0 0.0
      %3704 = vmatmul.mubr.f32.gmra.mxu0 %v3293
      %v3705 = vpop.f32.mrf.mxu0
      %v3706 = vadd.f32 %v3481, %v3705
      %v3707 = vpop.f32.mrf.mxu0
      %3708 = vmatprep.mubr.f32.mxu0 0.0
      %3709 = vmatmul.mubr.f32.gmra.mxu0 %v3295
      %v3710 = vpop.f32.mrf.mxu0
      %v3711 = vadd.f32 %v3486, %v3710
      %v3712 = vpop.f32.mrf.mxu0
      %3713 = vmatprep.mubr.f32.mxu0 0.0
      %3714 = vmatmul.mubr.f32.gmra.mxu0 %v3297
      %v3715 = vpop.f32.mrf.mxu0
      %v3716 = vadd.f32 %v3491, %v3715
      %v3717 = vpop.f32.mrf.mxu0
      %3718 = vmatprep.mubr.f32.mxu0 0.0
      %3719 = vmatmul.mubr.f32.gmra.mxu0 %v3299
      %v3720 = vpop.f32.mrf.mxu0
      %v3721 = vadd.f32 %v3496, %v3720
      %v3722 = vpop.f32.mrf.mxu0
      %3723 = vmatprep.mubr.f32.mxu0 0.0
      %3724 = vmatmul.mubr.f32.gmra.mxu0 %v3301
      %v3725 = vpop.f32.mrf.mxu0
      %v3726 = vadd.f32 %v3501, %v3725
      %v3727 = vpop.f32.mrf.mxu0
      %3728 = vmatprep.mubr.f32.mxu0 0.0
      %3729 = vmatmul.mubr.f32.gmra.mxu0 %v3303
      %v3730 = vpop.f32.mrf.mxu0
      %v3731 = vadd.f32 %v3506, %v3730
      %v3732 = vpop.f32.mrf.mxu0
      %3733 = vmatprep.mubr.f32.mxu0 0.0
      %3734 = vmatmul.mubr.f32.gmra.mxu0 %v3305
      %v3735 = vpop.f32.mrf.mxu0
      %v3736 = vadd.f32 %v3511, %v3735
      %v3737 = vpop.f32.mrf.mxu0
      %3738 = vmatprep.mubr.f32.mxu0 0.0
      %3739 = vmatmul.mubr.f32.gmra.mxu0 %v3307
      %v3740 = vpop.f32.mrf.mxu0
      %v3741 = vadd.f32 %v3516, %v3740
      %v3742 = vpop.f32.mrf.mxu0
      %3743 = vmatprep.mubr.f32.mxu0 0.0
      %3744 = vmatmul.mubr.f32.gmra.mxu0 %v3309
      %v3745 = vpop.f32.mrf.mxu0
      %v3746 = vadd.f32 %v3521, %v3745
      %v3747 = vpop.f32.mrf.mxu0
      %3748 = vmatprep.mubr.f32.mxu0 0.0
      %3749 = vmatmul.mubr.f32.gmra.mxu0 %v3311
      %v3750 = vpop.f32.mrf.mxu0
      %v3751 = vadd.f32 %v3526, %v3750
      %v3752 = vpop.f32.mrf.mxu0
      %3753 = vmatprep.mubr.f32.mxu0 0.0
      %3754 = vmatmul.mubr.f32.gmra.mxu0 %v3313
      %v3755 = vpop.f32.mrf.mxu0
      %v3756 = vadd.f32 %v3531, %v3755
      %v3757 = vpop.f32.mrf.mxu0
      %3758 = vmatprep.mubr.f32.mxu0 0.0
      %3759 = vmatmul.mubr.f32.gmra.mxu0 %v3315
      %v3760 = vpop.f32.mrf.mxu0
      %v3761 = vadd.f32 %v3536, %v3760
      %v3762 = vpop.f32.mrf.mxu0
      %3763 = vmatprep.mubr.f32.mxu0 0.0
      %3764 = vmatmul.mubr.f32.gmra.mxu0 %v3317
      %v3765 = vpop.f32.mrf.mxu0
      %v3766 = vadd.f32 %v3541, %v3765
      %v3767 = vpop.f32.mrf.mxu0
      %3768 = vdwg.mxu0
      %v3769 = vmul.f32 %v3611, 0.01
      %v3770 = vmul.f32 %v3616, 0.01
      %v3771 = vmul.f32 %v3621, 0.01
      %v3772 = vmul.f32 %v3626, 0.01
      %v3773 = vmul.f32 %v3631, 0.01
      %v3774 = vmul.f32 %v3636, 0.01
      %v3775 = vmul.f32 %v3641, 0.01
      %v3776 = vmul.f32 %v3646, 0.01
      %v3777 = vmul.f32 %v3651, 0.01
      %v3778 = vmul.f32 %v3656, 0.01
      %v3779 = vmul.f32 %v3661, 0.01
      %v3780 = vmul.f32 %v3666, 0.01
      %v3781 = vmul.f32 %v3671, 0.01
      %v3782 = vmul.f32 %v3676, 0.01
      %v3783 = vmul.f32 %v3681, 0.01
      %v3784 = vmul.f32 %v3686, 0.01
      %v3785 = vmul.f32 %v3691, 0.01
      %v3786 = vmul.f32 %v3696, 0.01
      %v3787 = vmul.f32 %v3701, 0.01
      %v3788 = vmul.f32 %v3706, 0.01
      %v3789 = vmul.f32 %v3711, 0.01
      %v3790 = vmul.f32 %v3716, 0.01
      %v3791 = vmul.f32 %v3721, 0.01
      %v3792 = vmul.f32 %v3726, 0.01
      %v3793 = vmul.f32 %v3731, 0.01
      %v3794 = vmul.f32 %v3736, 0.01
      %v3795 = vmul.f32 %v3741, 0.01
      %v3796 = vmul.f32 %v3746, 0.01
      %v3797 = vmul.f32 %v3751, 0.01
      %v3798 = vmul.f32 %v3756, 0.01
      %v3799 = vmul.f32 %v3761, 0.01
      %v3800 = vmul.f32 %v3766, 0.01
      %v3801 = vmax.f32 %v3611, %v3769
      %v3802 = vmax.f32 %v3616, %v3770
      %v3803 = vmax.f32 %v3621, %v3771
      %v3804 = vmax.f32 %v3626, %v3772
      %v3805 = vmax.f32 %v3631, %v3773
      %v3806 = vmax.f32 %v3636, %v3774
      %v3807 = vmax.f32 %v3641, %v3775
      %v3808 = vmax.f32 %v3646, %v3776
      %v3809 = vmax.f32 %v3651, %v3777
      %v3810 = vmax.f32 %v3656, %v3778
      %v3811 = vmax.f32 %v3661, %v3779
      %v3812 = vmax.f32 %v3666, %v3780
      %v3813 = vmax.f32 %v3671, %v3781
      %v3814 = vmax.f32 %v3676, %v3782
      %v3815 = vmax.f32 %v3681, %v3783
      %v3816 = vmax.f32 %v3686, %v3784
      %v3817 = vmax.f32 %v3691, %v3785
      %v3818 = vmax.f32 %v3696, %v3786
      %v3819 = vmax.f32 %v3701, %v3787
      %v3820 = vmax.f32 %v3706, %v3788
      %v3821 = vmax.f32 %v3711, %v3789
      %v3822 = vmax.f32 %v3716, %v3790
      %v3823 = vmax.f32 %v3721, %v3791
      %v3824 = vmax.f32 %v3726, %v3792
      %v3825 = vmax.f32 %v3731, %v3793
      %v3826 = vmax.f32 %v3736, %v3794
      %v3827 = vmax.f32 %v3741, %v3795
      %v3828 = vmax.f32 %v3746, %v3796
      %v3829 = vmax.f32 %v3751, %v3797
      %v3830 = vmax.f32 %v3756, %v3798
      %v3831 = vmax.f32 %v3761, %v3799
      %v3832 = vmax.f32 %v3766, %v3800
      %3833 = vst.msk [vmem:[%s2089 + $0x1] sm:$0xff] %vm279, %v3801
      %3834 = vst.msk [vmem:[%s2089 + $0x9] sm:$0xff] %vm279, %v3802
      %3835 = vst.msk [vmem:[%s2089 + $0x19] sm:$0xff] %vm279, %v3803
      %3836 = vst.msk [vmem:[%s2089 + $0x21] sm:$0xff] %vm279, %v3804
      %3837 = vst.msk [vmem:[%s2089 + $0x31] sm:$0xff] %vm279, %v3805
      %3838 = vst.msk [vmem:[%s2089 + $0x39] sm:$0xff] %vm279, %v3806
      %3839 = vst.msk [vmem:[%s2089 + $0x49] sm:$0xff] %vm279, %v3807
      %3840 = vst.msk [vmem:[%s2089 + $0x51] sm:$0xff] %vm279, %v3808
      %3841 = vst.msk [vmem:[%s2089 + $0x61] sm:$0xff] %vm279, %v3809
      %3842 = vst.msk [vmem:[%s2089 + $0x69] sm:$0xff] %vm279, %v3810
      %3843 = vst.msk [vmem:[%s2089 + $0x79] sm:$0xff] %vm279, %v3811
      %3844 = vst.msk [vmem:[%s2089 + $0x81] sm:$0xff] %vm279, %v3812
      %3845 = vst.msk [vmem:[%s2089 + $0x91] sm:$0xff] %vm279, %v3813
      %3846 = vst.msk [vmem:[%s2089 + $0x99] sm:$0xff] %vm279, %v3814
      %3847 = vst.msk [vmem:[%s2089 + $0xa9] sm:$0xff] %vm279, %v3815
      %3848 = vst.msk [vmem:[%s2089 + $0xb1] sm:$0xff] %vm279, %v3816
      %3849 = vst.msk [vmem:[%s2089 + $0xc1] sm:$0xff] %vm279, %v3817
      %3850 = vst.msk [vmem:[%s2089 + $0xc9] sm:$0xff] %vm279, %v3818
      %3851 = vst.msk [vmem:[%s2089 + $0xd9] sm:$0xff] %vm279, %v3819
      %3852 = vst.msk [vmem:[%s2089 + $0xe1] sm:$0xff] %vm279, %v3820
      %3853 = vst.msk [vmem:[%s2089 + $0xf1] sm:$0xff] %vm279, %v3821
      %3854 = vst.msk [vmem:[%s2089 + $0xf9] sm:$0xff] %vm279, %v3822
      %3855 = vst.msk [vmem:[%s2089 + $0x109] sm:$0xff] %vm279, %v3823
      %3856 = vst.msk [vmem:[%s2089 + $0x111] sm:$0xff] %vm279, %v3824
      %3857 = vst.msk [vmem:[%s2089 + $0x121] sm:$0xff] %vm279, %v3825
      %3858 = vst.msk [vmem:[%s2089 + $0x129] sm:$0xff] %vm279, %v3826
      %3859 = vst.msk [vmem:[%s2089 + $0x139] sm:$0xff] %vm279, %v3827
      %3860 = vst.msk [vmem:[%s2089 + $0x141] sm:$0xff] %vm279, %v3828
      %3861 = vst.msk [vmem:[%s2089 + $0x151] sm:$0xff] %vm279, %v3829
      %3862 = vst.msk [vmem:[%s2089 + $0x159] sm:$0xff] %vm279, %v3830
      %3863 = vst.msk [vmem:[%s2089 + $0x169] sm:$0xff] %vm279, %v3831
      %3864 = vst.msk [vmem:[%s2089 + $0x171] sm:$0xff] %vm279, %v3832
      %v3865 = vld [vmem:[#allocation2] sm:$0xff]
      %v3866 = vld [vmem:[#allocation2 + $0x8] sm:$0xff]
      %v3867 = vld [vmem:[#allocation2 + $0x10] sm:$0x3]
      %v3868 = vld [vmem:[#allocation2 + $0x18] sm:$0xff]
      %v3869 = vld [vmem:[#allocation2 + $0x20] sm:$0xff]
      %v3870 = vld [vmem:[#allocation2 + $0x28] sm:$0x3]
      %v3871 = vld [vmem:[#allocation2 + $0x30] sm:$0xff]
      %v3872 = vld [vmem:[#allocation2 + $0x38] sm:$0xff]
      %v3873 = vld [vmem:[#allocation2 + $0x40] sm:$0x3]
      %v3874 = vld [vmem:[#allocation2 + $0x48] sm:$0xff]
      %v3875 = vld [vmem:[#allocation2 + $0x50] sm:$0xff]
      %v3876 = vld [vmem:[#allocation2 + $0x58] sm:$0x3]
      %v3877 = vld [vmem:[#allocation2 + $0x60] sm:$0xff]
      %v3878 = vld [vmem:[#allocation2 + $0x68] sm:$0xff]
      %v3879 = vld [vmem:[#allocation2 + $0x70] sm:$0x3]
      %v3880 = vld [vmem:[#allocation2 + $0x78] sm:$0xff]
      %v3881 = vld [vmem:[#allocation2 + $0x80] sm:$0xff]
      %v3882 = vld [vmem:[#allocation2 + $0x88] sm:$0x3]
      %v3883 = vld [vmem:[#allocation2 + $0x90] sm:$0xff]
      %v3884 = vld [vmem:[#allocation2 + $0x98] sm:$0xff]
      %v3885 = vld [vmem:[#allocation2 + $0xa0] sm:$0x3]
      %v3886 = vld [vmem:[#allocation2 + $0xa8] sm:$0xff]
      %v3887 = vld [vmem:[#allocation2 + $0xb0] sm:$0xff]
      %v3888 = vld [vmem:[#allocation2 + $0xb8] sm:$0x3]
      %v3889 = vld [vmem:[#allocation2 + $0xc0] sm:$0xff]
      %v3890 = vld [vmem:[#allocation2 + $0xc8] sm:$0xff]
      %v3891 = vld [vmem:[#allocation2 + $0xd0] sm:$0x3]
      %v3892 = vld [vmem:[#allocation2 + $0xd8] sm:$0xff]
      %v3893 = vld [vmem:[#allocation2 + $0xe0] sm:$0xff]
      %v3894 = vld [vmem:[#allocation2 + $0xe8] sm:$0x3]
      %v3895 = vld [vmem:[#allocation2 + $0xf0] sm:$0xff]
      %v3896 = vld [vmem:[#allocation2 + $0xf8] sm:$0xff]
      %v3897 = vld [vmem:[#allocation2 + $0x100] sm:$0x3]
      %v3898 = vld [vmem:[#allocation2 + $0x108] sm:$0xff]
      %v3899 = vld [vmem:[#allocation2 + $0x110] sm:$0xff]
      %v3900 = vld [vmem:[#allocation2 + $0x118] sm:$0x3]
      %v3901 = vld [vmem:[#allocation2 + $0x120] sm:$0xff]
      %v3902 = vld [vmem:[#allocation2 + $0x128] sm:$0xff]
      %v3903 = vld [vmem:[#allocation2 + $0x130] sm:$0x3]
      %v3904 = vld [vmem:[#allocation2 + $0x138] sm:$0xff]
      %v3905 = vld [vmem:[#allocation2 + $0x140] sm:$0xff]
      %v3906 = vld [vmem:[#allocation2 + $0x148] sm:$0x3]
      %v3907 = vld [vmem:[#allocation2 + $0x150] sm:$0xff]
      %v3908 = vld [vmem:[#allocation2 + $0x158] sm:$0xff]
      %v3909 = vld [vmem:[#allocation2 + $0x160] sm:$0x3]
      %v3910 = vld [vmem:[#allocation2 + $0x168] sm:$0xff]
      %v3911 = vld [vmem:[#allocation2 + $0x170] sm:$0xff]
      %v3912 = vld [vmem:[#allocation2 + $0x178] sm:$0x3]
      %v3913 = vld [vmem:[#allocation2 + $0x180] sm:$0xff]
      %v3914 = vld [vmem:[#allocation2 + $0x188] sm:$0xff]
      %v3915 = vld [vmem:[#allocation2 + $0x190] sm:$0x3]
      %v3916 = vld [vmem:[#allocation2 + $0x198] sm:$0xff]
      %v3917 = vld [vmem:[#allocation2 + $0x1a0] sm:$0xff]
      %v3918 = vld [vmem:[#allocation2 + $0x1a8] sm:$0x3]
      %v3967 = vrot.slane %v3865, 1
      %v3968 = vrot.slane %v3866, 1
      %v3969 = vsel %vm437, %v3967, %v3968
      %v3970 = vrot.slane %v3867, 1
      %v3971 = vsel %vm437, %v3968, %v3970
      %v3972 = vrot.slane %v3868, 1
      %v3973 = vrot.slane %v3869, 1
      %v3974 = vsel %vm437, %v3972, %v3973
      %v3975 = vrot.slane %v3870, 1
      %v3976 = vsel %vm437, %v3973, %v3975
      %v3977 = vrot.slane %v3871, 1
      %v3978 = vrot.slane %v3872, 1
      %v3979 = vsel %vm437, %v3977, %v3978
      %v3980 = vrot.slane %v3873, 1
      %v3981 = vsel %vm437, %v3978, %v3980
      %v3982 = vrot.slane %v3874, 1
      %v3983 = vrot.slane %v3875, 1
      %v3984 = vsel %vm437, %v3982, %v3983
      %v3985 = vrot.slane %v3876, 1
      %v3986 = vsel %vm437, %v3983, %v3985
      %v3987 = vrot.slane %v3877, 1
      %v3988 = vrot.slane %v3878, 1
      %v3989 = vsel %vm437, %v3987, %v3988
      %v3990 = vrot.slane %v3879, 1
      %v3991 = vsel %vm437, %v3988, %v3990
      %v3992 = vrot.slane %v3880, 1
      %v3993 = vrot.slane %v3881, 1
      %v3994 = vsel %vm437, %v3992, %v3993
      %v3995 = vrot.slane %v3882, 1
      %v3996 = vsel %vm437, %v3993, %v3995
      %v3997 = vrot.slane %v3883, 1
      %v3998 = vrot.slane %v3884, 1
      %v3999 = vsel %vm437, %v3997, %v3998
      %v4000 = vrot.slane %v3885, 1
      %v4001 = vsel %vm437, %v3998, %v4000
      %v4002 = vrot.slane %v3886, 1
      %v4003 = vrot.slane %v3887, 1
      %v4004 = vsel %vm437, %v4002, %v4003
      %v4005 = vrot.slane %v3888, 1
      %v4006 = vsel %vm437, %v4003, %v4005
      %v4007 = vrot.slane %v3889, 1
      %v4008 = vrot.slane %v3890, 1
      %v4009 = vsel %vm437, %v4007, %v4008
      %v4010 = vrot.slane %v3891, 1
      %v4011 = vsel %vm437, %v4008, %v4010
      %v4012 = vrot.slane %v3892, 1
      %v4013 = vrot.slane %v3893, 1
      %v4014 = vsel %vm437, %v4012, %v4013
      %v4015 = vrot.slane %v3894, 1
      %v4016 = vsel %vm437, %v4013, %v4015
      %v4017 = vrot.slane %v3895, 1
      %v4018 = vrot.slane %v3896, 1
      %v4019 = vsel %vm437, %v4017, %v4018
      %v4020 = vrot.slane %v3897, 1
      %v4021 = vsel %vm437, %v4018, %v4020
      %v4022 = vrot.slane %v3898, 1
      %v4023 = vrot.slane %v3899, 1
      %v4024 = vsel %vm437, %v4022, %v4023
      %v4025 = vrot.slane %v3900, 1
      %v4026 = vsel %vm437, %v4023, %v4025
      %v4027 = vrot.slane %v3901, 1
      %v4028 = vrot.slane %v3902, 1
      %v4029 = vsel %vm437, %v4027, %v4028
      %v4030 = vrot.slane %v3903, 1
      %v4031 = vsel %vm437, %v4028, %v4030
      %v4032 = vrot.slane %v3904, 1
      %v4033 = vrot.slane %v3905, 1
      %v4034 = vsel %vm437, %v4032, %v4033
      %v4035 = vrot.slane %v3906, 1
      %v4036 = vsel %vm437, %v4033, %v4035
      %v4037 = vrot.slane %v3907, 1
      %v4038 = vrot.slane %v3908, 1
      %v4039 = vsel %vm437, %v4037, %v4038
      %v4040 = vrot.slane %v3909, 1
      %v4041 = vsel %vm437, %v4038, %v4040
      %v4042 = vrot.slane %v3910, 1
      %v4043 = vrot.slane %v3911, 1
      %v4044 = vsel %vm437, %v4042, %v4043
      %v4045 = vrot.slane %v3912, 1
      %v4046 = vsel %vm437, %v4043, %v4045
      %v4047 = vrot.slane %v3865, 2
      %v4048 = vrot.slane %v3866, 2
      %v4049 = vsel %vm518, %v4047, %v4048
      %v4050 = vrot.slane %v3867, 2
      %v4051 = vsel %vm518, %v4048, %v4050
      %v4052 = vrot.slane %v3868, 2
      %v4053 = vrot.slane %v3869, 2
      %v4054 = vsel %vm518, %v4052, %v4053
      %v4055 = vrot.slane %v3870, 2
      %v4056 = vsel %vm518, %v4053, %v4055
      %v4057 = vrot.slane %v3871, 2
      %v4058 = vrot.slane %v3872, 2
      %v4059 = vsel %vm518, %v4057, %v4058
      %v4060 = vrot.slane %v3873, 2
      %v4061 = vsel %vm518, %v4058, %v4060
      %v4062 = vrot.slane %v3874, 2
      %v4063 = vrot.slane %v3875, 2
      %v4064 = vsel %vm518, %v4062, %v4063
      %v4065 = vrot.slane %v3876, 2
      %v4066 = vsel %vm518, %v4063, %v4065
      %v4067 = vrot.slane %v3877, 2
      %v4068 = vrot.slane %v3878, 2
      %v4069 = vsel %vm518, %v4067, %v4068
      %v4070 = vrot.slane %v3879, 2
      %v4071 = vsel %vm518, %v4068, %v4070
      %v4072 = vrot.slane %v3880, 2
      %v4073 = vrot.slane %v3881, 2
      %v4074 = vsel %vm518, %v4072, %v4073
      %v4075 = vrot.slane %v3882, 2
      %v4076 = vsel %vm518, %v4073, %v4075
      %v4077 = vrot.slane %v3883, 2
      %v4078 = vrot.slane %v3884, 2
      %v4079 = vsel %vm518, %v4077, %v4078
      %v4080 = vrot.slane %v3885, 2
      %v4081 = vsel %vm518, %v4078, %v4080
      %v4082 = vrot.slane %v3886, 2
      %v4083 = vrot.slane %v3887, 2
      %v4084 = vsel %vm518, %v4082, %v4083
      %v4085 = vrot.slane %v3888, 2
      %v4086 = vsel %vm518, %v4083, %v4085
      %v4087 = vrot.slane %v3889, 2
      %v4088 = vrot.slane %v3890, 2
      %v4089 = vsel %vm518, %v4087, %v4088
      %v4090 = vrot.slane %v3891, 2
      %v4091 = vsel %vm518, %v4088, %v4090
      %v4092 = vrot.slane %v3892, 2
      %v4093 = vrot.slane %v3893, 2
      %v4094 = vsel %vm518, %v4092, %v4093
      %v4095 = vrot.slane %v3894, 2
      %v4096 = vsel %vm518, %v4093, %v4095
      %v4097 = vrot.slane %v3895, 2
      %v4098 = vrot.slane %v3896, 2
      %v4099 = vsel %vm518, %v4097, %v4098
      %v4100 = vrot.slane %v3897, 2
      %v4101 = vsel %vm518, %v4098, %v4100
      %v4102 = vrot.slane %v3898, 2
      %v4103 = vrot.slane %v3899, 2
      %v4104 = vsel %vm518, %v4102, %v4103
      %v4105 = vrot.slane %v3900, 2
      %v4106 = vsel %vm518, %v4103, %v4105
      %v4107 = vrot.slane %v3901, 2
      %v4108 = vrot.slane %v3902, 2
      %v4109 = vsel %vm518, %v4107, %v4108
      %v4110 = vrot.slane %v3903, 2
      %v4111 = vsel %vm518, %v4108, %v4110
      %v4112 = vrot.slane %v3904, 2
      %v4113 = vrot.slane %v3905, 2
      %v4114 = vsel %vm518, %v4112, %v4113
      %v4115 = vrot.slane %v3906, 2
      %v4116 = vsel %vm518, %v4113, %v4115
      %v4117 = vrot.slane %v3907, 2
      %v4118 = vrot.slane %v3908, 2
      %v4119 = vsel %vm518, %v4117, %v4118
      %v4120 = vrot.slane %v3909, 2
      %v4121 = vsel %vm518, %v4118, %v4120
      %v4122 = vrot.slane %v3910, 2
      %v4123 = vrot.slane %v3911, 2
      %v4124 = vsel %vm518, %v4122, %v4123
      %v4125 = vrot.slane %v3912, 2
      %v4126 = vsel %vm518, %v4123, %v4125
      %v4130 = vrot.slane %v3913, 1
      %v4131 = vrot.slane %v3914, 1
      %v4132 = vsel %vm437, %v4130, %v4131
      %v4133 = vrot.slane %v3915, 1
      %v4134 = vsel %vm437, %v4131, %v4133
      %v4167 = vrot.slane %v3913, 2
      %v4168 = vrot.slane %v3914, 2
      %v4169 = vsel %vm518, %v4167, %v4168
      %v4170 = vrot.slane %v3915, 2
      %v4171 = vsel %vm518, %v4168, %v4170
      %v4175 = vrot.slane %v3916, 1
      %v4176 = vrot.slane %v3917, 1
      %v4177 = vsel %vm437, %v4175, %v4176
      %v4178 = vrot.slane %v3918, 1
      %v4179 = vsel %vm437, %v4176, %v4178
      %v4180 = vrot.slane %v3916, 2
      %v4181 = vrot.slane %v3917, 2
      %v4182 = vsel %vm518, %v4180, %v4181
      %v4183 = vrot.slane %v3918, 2
      %v4184 = vsel %vm518, %v4181, %v4183
      %4185 = vrot.lane.b32.xlu0 %v3969, 32
      %v4186 = vpop.permute.xlu0 %4185
      %4187 = vrot.lane.b32.xlu0 %v3971, 32
      %v4188 = vpop.permute.xlu0 %4187
      %4189 = vrot.lane.b32.xlu0 %v3974, 32
      %v4190 = vpop.permute.xlu0 %4189
      %4191 = vrot.lane.b32.xlu0 %v3976, 32
      %v4192 = vpop.permute.xlu0 %4191
      %4193 = vrot.lane.b32.xlu0 %v3979, 32
      %v4194 = vpop.permute.xlu0 %4193
      %4195 = vrot.lane.b32.xlu0 %v3981, 32
      %v4196 = vpop.permute.xlu0 %4195
      %4197 = vrot.lane.b32.xlu0 %v3984, 32
      %v4198 = vpop.permute.xlu0 %4197
      %4199 = vrot.lane.b32.xlu0 %v3986, 32
      %v4200 = vpop.permute.xlu0 %4199
      %4201 = vrot.lane.b32.xlu0 %v3989, 32
      %v4202 = vpop.permute.xlu0 %4201
      %4203 = vrot.lane.b32.xlu0 %v3991, 32
      %v4204 = vpop.permute.xlu0 %4203
      %4205 = vrot.lane.b32.xlu0 %v3994, 32
      %v4206 = vpop.permute.xlu0 %4205
      %4207 = vrot.lane.b32.xlu0 %v3996, 32
      %v4208 = vpop.permute.xlu0 %4207
      %4209 = vrot.lane.b32.xlu0 %v3999, 32
      %v4210 = vpop.permute.xlu0 %4209
      %4211 = vrot.lane.b32.xlu0 %v4001, 32
      %v4212 = vpop.permute.xlu0 %4211
      %4213 = vrot.lane.b32.xlu0 %v4004, 32
      %v4214 = vpop.permute.xlu0 %4213
      %4215 = vrot.lane.b32.xlu0 %v4006, 32
      %v4216 = vpop.permute.xlu0 %4215
      %4217 = vrot.lane.b32.xlu0 %v4009, 32
      %v4218 = vpop.permute.xlu0 %4217
      %4219 = vrot.lane.b32.xlu0 %v4011, 32
      %v4220 = vpop.permute.xlu0 %4219
      %4221 = vrot.lane.b32.xlu0 %v4014, 32
      %v4222 = vpop.permute.xlu0 %4221
      %4223 = vrot.lane.b32.xlu0 %v4016, 32
      %v4224 = vpop.permute.xlu0 %4223
      %4225 = vrot.lane.b32.xlu0 %v4019, 32
      %v4226 = vpop.permute.xlu0 %4225
      %4227 = vrot.lane.b32.xlu0 %v4021, 32
      %v4228 = vpop.permute.xlu0 %4227
      %4229 = vrot.lane.b32.xlu0 %v4024, 32
      %v4230 = vpop.permute.xlu0 %4229
      %4231 = vrot.lane.b32.xlu0 %v4026, 32
      %v4232 = vpop.permute.xlu0 %4231
      %4233 = vrot.lane.b32.xlu0 %v4029, 32
      %v4234 = vpop.permute.xlu0 %4233
      %4235 = vrot.lane.b32.xlu0 %v4031, 32
      %v4236 = vpop.permute.xlu0 %4235
      %4237 = vrot.lane.b32.xlu0 %v4034, 32
      %v4238 = vpop.permute.xlu0 %4237
      %4239 = vrot.lane.b32.xlu0 %v4036, 32
      %v4240 = vpop.permute.xlu0 %4239
      %4241 = vrot.lane.b32.xlu0 %v4039, 32
      %v4242 = vpop.permute.xlu0 %4241
      %4243 = vrot.lane.b32.xlu0 %v4041, 32
      %v4244 = vpop.permute.xlu0 %4243
      %4245 = vrot.lane.b32.xlu0 %v4044, 32
      %v4246 = vpop.permute.xlu0 %4245
      %4247 = vrot.lane.b32.xlu0 %v4046, 32
      %v4248 = vpop.permute.xlu0 %4247
      %4281 = vrot.lane.b32.xlu0 %v4049, 64
      %v4282 = vpop.permute.xlu0 %4281
      %4283 = vrot.lane.b32.xlu0 %v4051, 64
      %v4284 = vpop.permute.xlu0 %4283
      %4285 = vrot.lane.b32.xlu0 %v4054, 64
      %v4286 = vpop.permute.xlu0 %4285
      %4287 = vrot.lane.b32.xlu0 %v4056, 64
      %v4288 = vpop.permute.xlu0 %4287
      %4289 = vrot.lane.b32.xlu0 %v4059, 64
      %v4290 = vpop.permute.xlu0 %4289
      %4291 = vrot.lane.b32.xlu0 %v4061, 64
      %v4292 = vpop.permute.xlu0 %4291
      %4293 = vrot.lane.b32.xlu0 %v4064, 64
      %v4294 = vpop.permute.xlu0 %4293
      %4295 = vrot.lane.b32.xlu0 %v4066, 64
      %v4296 = vpop.permute.xlu0 %4295
      %4297 = vrot.lane.b32.xlu0 %v4069, 64
      %v4298 = vpop.permute.xlu0 %4297
      %4299 = vrot.lane.b32.xlu0 %v4071, 64
      %v4300 = vpop.permute.xlu0 %4299
      %4301 = vrot.lane.b32.xlu0 %v4074, 64
      %v4302 = vpop.permute.xlu0 %4301
      %4303 = vrot.lane.b32.xlu0 %v4076, 64
      %v4304 = vpop.permute.xlu0 %4303
      %4305 = vrot.lane.b32.xlu0 %v4079, 64
      %v4306 = vpop.permute.xlu0 %4305
      %4307 = vrot.lane.b32.xlu0 %v4081, 64
      %v4308 = vpop.permute.xlu0 %4307
      %4309 = vrot.lane.b32.xlu0 %v4084, 64
      %v4310 = vpop.permute.xlu0 %4309
      %4311 = vrot.lane.b32.xlu0 %v4086, 64
      %v4312 = vpop.permute.xlu0 %4311
      %4313 = vrot.lane.b32.xlu0 %v4089, 64
      %v4314 = vpop.permute.xlu0 %4313
      %4315 = vrot.lane.b32.xlu0 %v4091, 64
      %v4316 = vpop.permute.xlu0 %4315
      %4317 = vrot.lane.b32.xlu0 %v4094, 64
      %v4318 = vpop.permute.xlu0 %4317
      %4319 = vrot.lane.b32.xlu0 %v4096, 64
      %v4320 = vpop.permute.xlu0 %4319
      %4321 = vrot.lane.b32.xlu0 %v4099, 64
      %v4322 = vpop.permute.xlu0 %4321
      %4323 = vrot.lane.b32.xlu0 %v4101, 64
      %v4324 = vpop.permute.xlu0 %4323
      %4325 = vrot.lane.b32.xlu0 %v4104, 64
      %v4326 = vpop.permute.xlu0 %4325
      %4327 = vrot.lane.b32.xlu0 %v4106, 64
      %v4328 = vpop.permute.xlu0 %4327
      %4329 = vrot.lane.b32.xlu0 %v4109, 64
      %v4330 = vpop.permute.xlu0 %4329
      %4331 = vrot.lane.b32.xlu0 %v4111, 64
      %v4332 = vpop.permute.xlu0 %4331
      %4333 = vrot.lane.b32.xlu0 %v4114, 64
      %v4334 = vpop.permute.xlu0 %4333
      %4335 = vrot.lane.b32.xlu0 %v4116, 64
      %v4336 = vpop.permute.xlu0 %4335
      %4337 = vrot.lane.b32.xlu0 %v4119, 64
      %v4338 = vpop.permute.xlu0 %4337
      %4339 = vrot.lane.b32.xlu0 %v4121, 64
      %v4340 = vpop.permute.xlu0 %4339
      %4341 = vrot.lane.b32.xlu0 %v4124, 64
      %v4342 = vpop.permute.xlu0 %4341
      %4343 = vrot.lane.b32.xlu0 %v4126, 64
      %v4344 = vpop.permute.xlu0 %4343
      %4377 = vrot.lane.b32.xlu0 %v3868, 96
      %v4378 = vpop.permute.xlu0 %4377
      %4379 = vrot.lane.b32.xlu0 %v3869, 96
      %v4380 = vpop.permute.xlu0 %4379
      %4381 = vrot.lane.b32.xlu0 %v3871, 96
      %v4382 = vpop.permute.xlu0 %4381
      %4383 = vrot.lane.b32.xlu0 %v3872, 96
      %v4384 = vpop.permute.xlu0 %4383
      %4385 = vrot.lane.b32.xlu0 %v3874, 96
      %v4386 = vpop.permute.xlu0 %4385
      %4387 = vrot.lane.b32.xlu0 %v3875, 96
      %v4388 = vpop.permute.xlu0 %4387
      %4389 = vrot.lane.b32.xlu0 %v3877, 96
      %v4390 = vpop.permute.xlu0 %4389
      %4391 = vrot.lane.b32.xlu0 %v3878, 96
      %v4392 = vpop.permute.xlu0 %4391
      %4393 = vrot.lane.b32.xlu0 %v3880, 96
      %v4394 = vpop.permute.xlu0 %4393
      %4395 = vrot.lane.b32.xlu0 %v3881, 96
      %v4396 = vpop.permute.xlu0 %4395
      %4397 = vrot.lane.b32.xlu0 %v3883, 96
      %v4398 = vpop.permute.xlu0 %4397
      %4399 = vrot.lane.b32.xlu0 %v3884, 96
      %v4400 = vpop.permute.xlu0 %4399
      %4401 = vrot.lane.b32.xlu0 %v3886, 96
      %v4402 = vpop.permute.xlu0 %4401
      %4403 = vrot.lane.b32.xlu0 %v3887, 96
      %v4404 = vpop.permute.xlu0 %4403
      %4405 = vrot.lane.b32.xlu0 %v3889, 96
      %v4406 = vpop.permute.xlu0 %4405
      %4407 = vrot.lane.b32.xlu0 %v3890, 96
      %v4408 = vpop.permute.xlu0 %4407
      %4409 = vrot.lane.b32.xlu0 %v3892, 96
      %v4410 = vpop.permute.xlu0 %4409
      %4411 = vrot.lane.b32.xlu0 %v3893, 96
      %v4412 = vpop.permute.xlu0 %4411
      %4413 = vrot.lane.b32.xlu0 %v3895, 96
      %v4414 = vpop.permute.xlu0 %4413
      %4415 = vrot.lane.b32.xlu0 %v3896, 96
      %v4416 = vpop.permute.xlu0 %4415
      %4417 = vrot.lane.b32.xlu0 %v3898, 96
      %v4418 = vpop.permute.xlu0 %4417
      %4419 = vrot.lane.b32.xlu0 %v3899, 96
      %v4420 = vpop.permute.xlu0 %4419
      %4421 = vrot.lane.b32.xlu0 %v3901, 96
      %v4422 = vpop.permute.xlu0 %4421
      %4423 = vrot.lane.b32.xlu0 %v3902, 96
      %v4424 = vpop.permute.xlu0 %4423
      %4425 = vrot.lane.b32.xlu0 %v3904, 96
      %v4426 = vpop.permute.xlu0 %4425
      %4427 = vrot.lane.b32.xlu0 %v3905, 96
      %v4428 = vpop.permute.xlu0 %4427
      %4429 = vrot.lane.b32.xlu0 %v3907, 96
      %v4430 = vpop.permute.xlu0 %4429
      %4431 = vrot.lane.b32.xlu0 %v3908, 96
      %v4432 = vpop.permute.xlu0 %4431
      %4433 = vrot.lane.b32.xlu0 %v3910, 96
      %v4434 = vpop.permute.xlu0 %4433
      %4435 = vrot.lane.b32.xlu0 %v3911, 96
      %v4436 = vpop.permute.xlu0 %4435
      %4437 = vrot.lane.b32.xlu0 %v3913, 96
      %v4438 = vpop.permute.xlu0 %4437
      %4439 = vrot.lane.b32.xlu0 %v3914, 96
      %v4440 = vpop.permute.xlu0 %4439
      %4473 = vrot.lane.b32.xlu0 %v4054, 32
      %v4474 = vpop.permute.xlu0 %4473
      %4475 = vrot.lane.b32.xlu0 %v4056, 32
      %v4476 = vpop.permute.xlu0 %4475
      %4477 = vrot.lane.b32.xlu0 %v4059, 32
      %v4478 = vpop.permute.xlu0 %4477
      %4479 = vrot.lane.b32.xlu0 %v4061, 32
      %v4480 = vpop.permute.xlu0 %4479
      %4481 = vrot.lane.b32.xlu0 %v4064, 32
      %v4482 = vpop.permute.xlu0 %4481
      %4483 = vrot.lane.b32.xlu0 %v4066, 32
      %v4484 = vpop.permute.xlu0 %4483
      %4485 = vrot.lane.b32.xlu0 %v4069, 32
      %v4486 = vpop.permute.xlu0 %4485
      %4487 = vrot.lane.b32.xlu0 %v4071, 32
      %v4488 = vpop.permute.xlu0 %4487
      %4489 = vrot.lane.b32.xlu0 %v4074, 32
      %v4490 = vpop.permute.xlu0 %4489
      %4491 = vrot.lane.b32.xlu0 %v4076, 32
      %v4492 = vpop.permute.xlu0 %4491
      %4493 = vrot.lane.b32.xlu0 %v4079, 32
      %v4494 = vpop.permute.xlu0 %4493
      %4495 = vrot.lane.b32.xlu0 %v4081, 32
      %v4496 = vpop.permute.xlu0 %4495
      %4497 = vrot.lane.b32.xlu0 %v4084, 32
      %v4498 = vpop.permute.xlu0 %4497
      %4499 = vrot.lane.b32.xlu0 %v4086, 32
      %v4500 = vpop.permute.xlu0 %4499
      %4501 = vrot.lane.b32.xlu0 %v4089, 32
      %v4502 = vpop.permute.xlu0 %4501
      %4503 = vrot.lane.b32.xlu0 %v4091, 32
      %v4504 = vpop.permute.xlu0 %4503
      %4505 = vrot.lane.b32.xlu0 %v4094, 32
      %v4506 = vpop.permute.xlu0 %4505
      %4507 = vrot.lane.b32.xlu0 %v4096, 32
      %v4508 = vpop.permute.xlu0 %4507
      %4509 = vrot.lane.b32.xlu0 %v4099, 32
      %v4510 = vpop.permute.xlu0 %4509
      %4511 = vrot.lane.b32.xlu0 %v4101, 32
      %v4512 = vpop.permute.xlu0 %4511
      %4513 = vrot.lane.b32.xlu0 %v4104, 32
      %v4514 = vpop.permute.xlu0 %4513
      %4515 = vrot.lane.b32.xlu0 %v4106, 32
      %v4516 = vpop.permute.xlu0 %4515
      %4517 = vrot.lane.b32.xlu0 %v4109, 32
      %v4518 = vpop.permute.xlu0 %4517
      %4519 = vrot.lane.b32.xlu0 %v4111, 32
      %v4520 = vpop.permute.xlu0 %4519
      %4521 = vrot.lane.b32.xlu0 %v4114, 32
      %v4522 = vpop.permute.xlu0 %4521
      %4523 = vrot.lane.b32.xlu0 %v4116, 32
      %v4524 = vpop.permute.xlu0 %4523
      %4525 = vrot.lane.b32.xlu0 %v4119, 32
      %v4526 = vpop.permute.xlu0 %4525
      %4527 = vrot.lane.b32.xlu0 %v4121, 32
      %v4528 = vpop.permute.xlu0 %4527
      %4529 = vrot.lane.b32.xlu0 %v4124, 32
      %v4530 = vpop.permute.xlu0 %4529
      %4531 = vrot.lane.b32.xlu0 %v4126, 32
      %v4532 = vpop.permute.xlu0 %4531
      %4533 = vrot.lane.b32.xlu0 %v4169, 32
      %v4534 = vpop.permute.xlu0 %4533
      %4535 = vrot.lane.b32.xlu0 %v4171, 32
      %v4536 = vpop.permute.xlu0 %4535
      %4569 = vrot.lane.b32.xlu0 %v3871, 64
      %v4570 = vpop.permute.xlu0 %4569
      %4571 = vrot.lane.b32.xlu0 %v3872, 64
      %v4572 = vpop.permute.xlu0 %4571
      %4573 = vrot.lane.b32.xlu0 %v3874, 64
      %v4574 = vpop.permute.xlu0 %4573
      %4575 = vrot.lane.b32.xlu0 %v3875, 64
      %v4576 = vpop.permute.xlu0 %4575
      %4577 = vrot.lane.b32.xlu0 %v3877, 64
      %v4578 = vpop.permute.xlu0 %4577
      %4579 = vrot.lane.b32.xlu0 %v3878, 64
      %v4580 = vpop.permute.xlu0 %4579
      %4581 = vrot.lane.b32.xlu0 %v3880, 64
      %v4582 = vpop.permute.xlu0 %4581
      %4583 = vrot.lane.b32.xlu0 %v3881, 64
      %v4584 = vpop.permute.xlu0 %4583
      %4585 = vrot.lane.b32.xlu0 %v3883, 64
      %v4586 = vpop.permute.xlu0 %4585
      %4587 = vrot.lane.b32.xlu0 %v3884, 64
      %v4588 = vpop.permute.xlu0 %4587
      %4589 = vrot.lane.b32.xlu0 %v3886, 64
      %v4590 = vpop.permute.xlu0 %4589
      %4591 = vrot.lane.b32.xlu0 %v3887, 64
      %v4592 = vpop.permute.xlu0 %4591
      %4593 = vrot.lane.b32.xlu0 %v3889, 64
      %v4594 = vpop.permute.xlu0 %4593
      %4595 = vrot.lane.b32.xlu0 %v3890, 64
      %v4596 = vpop.permute.xlu0 %4595
      %4597 = vrot.lane.b32.xlu0 %v3892, 64
      %v4598 = vpop.permute.xlu0 %4597
      %4599 = vrot.lane.b32.xlu0 %v3893, 64
      %v4600 = vpop.permute.xlu0 %4599
      %4601 = vrot.lane.b32.xlu0 %v3895, 64
      %v4602 = vpop.permute.xlu0 %4601
      %4603 = vrot.lane.b32.xlu0 %v3896, 64
      %v4604 = vpop.permute.xlu0 %4603
      %4605 = vrot.lane.b32.xlu0 %v3898, 64
      %v4606 = vpop.permute.xlu0 %4605
      %4607 = vrot.lane.b32.xlu0 %v3899, 64
      %v4608 = vpop.permute.xlu0 %4607
      %4609 = vrot.lane.b32.xlu0 %v3901, 64
      %v4610 = vpop.permute.xlu0 %4609
      %4611 = vrot.lane.b32.xlu0 %v3902, 64
      %v4612 = vpop.permute.xlu0 %4611
      %4613 = vrot.lane.b32.xlu0 %v3904, 64
      %v4614 = vpop.permute.xlu0 %4613
      %4615 = vrot.lane.b32.xlu0 %v3905, 64
      %v4616 = vpop.permute.xlu0 %4615
      %4617 = vrot.lane.b32.xlu0 %v3907, 64
      %v4618 = vpop.permute.xlu0 %4617
      %4619 = vrot.lane.b32.xlu0 %v3908, 64
      %v4620 = vpop.permute.xlu0 %4619
      %4621 = vrot.lane.b32.xlu0 %v3910, 64
      %v4622 = vpop.permute.xlu0 %4621
      %4623 = vrot.lane.b32.xlu0 %v3911, 64
      %v4624 = vpop.permute.xlu0 %4623
      %4625 = vrot.lane.b32.xlu0 %v3913, 64
      %v4626 = vpop.permute.xlu0 %4625
      %4627 = vrot.lane.b32.xlu0 %v3914, 64
      %v4628 = vpop.permute.xlu0 %4627
      %4629 = vrot.lane.b32.xlu0 %v3916, 64
      %v4630 = vpop.permute.xlu0 %4629
      %4631 = vrot.lane.b32.xlu0 %v3917, 64
      %v4632 = vpop.permute.xlu0 %4631
      %4665 = vrot.lane.b32.xlu0 %v3979, 96
      %v4666 = vpop.permute.xlu0 %4665
      %4667 = vrot.lane.b32.xlu0 %v3981, 96
      %v4668 = vpop.permute.xlu0 %4667
      %4669 = vrot.lane.b32.xlu0 %v3984, 96
      %v4670 = vpop.permute.xlu0 %4669
      %4671 = vrot.lane.b32.xlu0 %v3986, 96
      %v4672 = vpop.permute.xlu0 %4671
      %4673 = vrot.lane.b32.xlu0 %v3989, 96
      %v4674 = vpop.permute.xlu0 %4673
      %4675 = vrot.lane.b32.xlu0 %v3991, 96
      %v4676 = vpop.permute.xlu0 %4675
      %4677 = vrot.lane.b32.xlu0 %v3994, 96
      %v4678 = vpop.permute.xlu0 %4677
      %4679 = vrot.lane.b32.xlu0 %v3996, 96
      %v4680 = vpop.permute.xlu0 %4679
      %4681 = vrot.lane.b32.xlu0 %v3999, 96
      %v4682 = vpop.permute.xlu0 %4681
      %4683 = vrot.lane.b32.xlu0 %v4001, 96
      %v4684 = vpop.permute.xlu0 %4683
      %4685 = vrot.lane.b32.xlu0 %v4004, 96
      %v4686 = vpop.permute.xlu0 %4685
      %4687 = vrot.lane.b32.xlu0 %v4006, 96
      %v4688 = vpop.permute.xlu0 %4687
      %4689 = vrot.lane.b32.xlu0 %v4009, 96
      %v4690 = vpop.permute.xlu0 %4689
      %4691 = vrot.lane.b32.xlu0 %v4011, 96
      %v4692 = vpop.permute.xlu0 %4691
      %4693 = vrot.lane.b32.xlu0 %v4014, 96
      %v4694 = vpop.permute.xlu0 %4693
      %4695 = vrot.lane.b32.xlu0 %v4016, 96
      %v4696 = vpop.permute.xlu0 %4695
      %4697 = vrot.lane.b32.xlu0 %v4019, 96
      %v4698 = vpop.permute.xlu0 %4697
      %4699 = vrot.lane.b32.xlu0 %v4021, 96
      %v4700 = vpop.permute.xlu0 %4699
      %4701 = vrot.lane.b32.xlu0 %v4024, 96
      %v4702 = vpop.permute.xlu0 %4701
      %4703 = vrot.lane.b32.xlu0 %v4026, 96
      %v4704 = vpop.permute.xlu0 %4703
      %4705 = vrot.lane.b32.xlu0 %v4029, 96
      %v4706 = vpop.permute.xlu0 %4705
      %4707 = vrot.lane.b32.xlu0 %v4031, 96
      %v4708 = vpop.permute.xlu0 %4707
      %4709 = vrot.lane.b32.xlu0 %v4034, 96
      %v4710 = vpop.permute.xlu0 %4709
      %4711 = vrot.lane.b32.xlu0 %v4036, 96
      %v4712 = vpop.permute.xlu0 %4711
      %4713 = vrot.lane.b32.xlu0 %v4039, 96
      %v4714 = vpop.permute.xlu0 %4713
      %4715 = vrot.lane.b32.xlu0 %v4041, 96
      %v4716 = vpop.permute.xlu0 %4715
      %4717 = vrot.lane.b32.xlu0 %v4044, 96
      %v4718 = vpop.permute.xlu0 %4717
      %4719 = vrot.lane.b32.xlu0 %v4046, 96
      %v4720 = vpop.permute.xlu0 %4719
      %4721 = vrot.lane.b32.xlu0 %v4132, 96
      %v4722 = vpop.permute.xlu0 %4721
      %4723 = vrot.lane.b32.xlu0 %v4134, 96
      %v4724 = vpop.permute.xlu0 %4723
      %4725 = vrot.lane.b32.xlu0 %v4177, 96
      %v4726 = vpop.permute.xlu0 %4725
      %4727 = vrot.lane.b32.xlu0 %v4179, 96
      %v4728 = vpop.permute.xlu0 %4727
      %v4761 = vsel %vm279, %v3865, %v4186
      %v4762 = vsel %vm279, %v3866, %v4188
      %v4763 = vsel %vm279, %v3868, %v4190
      %v4764 = vsel %vm279, %v3869, %v4192
      %v4765 = vsel %vm279, %v3871, %v4194
      %v4766 = vsel %vm279, %v3872, %v4196
      %v4767 = vsel %vm279, %v3874, %v4198
      %v4768 = vsel %vm279, %v3875, %v4200
      %v4769 = vsel %vm279, %v3877, %v4202
      %v4770 = vsel %vm279, %v3878, %v4204
      %v4771 = vsel %vm279, %v3880, %v4206
      %v4772 = vsel %vm279, %v3881, %v4208
      %v4773 = vsel %vm279, %v3883, %v4210
      %v4774 = vsel %vm279, %v3884, %v4212
      %v4775 = vsel %vm279, %v3886, %v4214
      %v4776 = vsel %vm279, %v3887, %v4216
      %v4777 = vsel %vm279, %v3889, %v4218
      %v4778 = vsel %vm279, %v3890, %v4220
      %v4779 = vsel %vm279, %v3892, %v4222
      %v4780 = vsel %vm279, %v3893, %v4224
      %v4781 = vsel %vm279, %v3895, %v4226
      %v4782 = vsel %vm279, %v3896, %v4228
      %v4783 = vsel %vm279, %v3898, %v4230
      %v4784 = vsel %vm279, %v3899, %v4232
      %v4785 = vsel %vm279, %v3901, %v4234
      %v4786 = vsel %vm279, %v3902, %v4236
      %v4787 = vsel %vm279, %v3904, %v4238
      %v4788 = vsel %vm279, %v3905, %v4240
      %v4789 = vsel %vm279, %v3907, %v4242
      %v4790 = vsel %vm279, %v3908, %v4244
      %v4791 = vsel %vm279, %v3910, %v4246
      %v4792 = vsel %vm279, %v3911, %v4248
      %v4793 = vsel %vm3050, %v4761, %v4282
      %v4794 = vsel %vm3050, %v4762, %v4284
      %v4795 = vsel %vm3050, %v4763, %v4286
      %v4796 = vsel %vm3050, %v4764, %v4288
      %v4797 = vsel %vm3050, %v4765, %v4290
      %v4798 = vsel %vm3050, %v4766, %v4292
      %v4799 = vsel %vm3050, %v4767, %v4294
      %v4800 = vsel %vm3050, %v4768, %v4296
      %v4801 = vsel %vm3050, %v4769, %v4298
      %v4802 = vsel %vm3050, %v4770, %v4300
      %v4803 = vsel %vm3050, %v4771, %v4302
      %v4804 = vsel %vm3050, %v4772, %v4304
      %v4805 = vsel %vm3050, %v4773, %v4306
      %v4806 = vsel %vm3050, %v4774, %v4308
      %v4807 = vsel %vm3050, %v4775, %v4310
      %v4808 = vsel %vm3050, %v4776, %v4312
      %v4809 = vsel %vm3050, %v4777, %v4314
      %v4810 = vsel %vm3050, %v4778, %v4316
      %v4811 = vsel %vm3050, %v4779, %v4318
      %v4812 = vsel %vm3050, %v4780, %v4320
      %v4813 = vsel %vm3050, %v4781, %v4322
      %v4814 = vsel %vm3050, %v4782, %v4324
      %v4815 = vsel %vm3050, %v4783, %v4326
      %v4816 = vsel %vm3050, %v4784, %v4328
      %v4817 = vsel %vm3050, %v4785, %v4330
      %v4818 = vsel %vm3050, %v4786, %v4332
      %v4819 = vsel %vm3050, %v4787, %v4334
      %v4820 = vsel %vm3050, %v4788, %v4336
      %v4821 = vsel %vm3050, %v4789, %v4338
      %v4822 = vsel %vm3050, %v4790, %v4340
      %v4823 = vsel %vm3050, %v4791, %v4342
      %v4824 = vsel %vm3050, %v4792, %v4344
      %v4825 = vsel %vm3083, %v4793, %v4378
      %v4826 = vsel %vm3083, %v4794, %v4380
      %v4827 = vsel %vm3083, %v4795, %v4382
      %v4828 = vsel %vm3083, %v4796, %v4384
      %v4829 = vsel %vm3083, %v4797, %v4386
      %v4830 = vsel %vm3083, %v4798, %v4388
      %v4831 = vsel %vm3083, %v4799, %v4390
      %v4832 = vsel %vm3083, %v4800, %v4392
      %v4833 = vsel %vm3083, %v4801, %v4394
      %v4834 = vsel %vm3083, %v4802, %v4396
      %v4835 = vsel %vm3083, %v4803, %v4398
      %v4836 = vsel %vm3083, %v4804, %v4400
      %v4837 = vsel %vm3083, %v4805, %v4402
      %v4838 = vsel %vm3083, %v4806, %v4404
      %v4839 = vsel %vm3083, %v4807, %v4406
      %v4840 = vsel %vm3083, %v4808, %v4408
      %v4841 = vsel %vm3083, %v4809, %v4410
      %v4842 = vsel %vm3083, %v4810, %v4412
      %v4843 = vsel %vm3083, %v4811, %v4414
      %v4844 = vsel %vm3083, %v4812, %v4416
      %v4845 = vsel %vm3083, %v4813, %v4418
      %v4846 = vsel %vm3083, %v4814, %v4420
      %v4847 = vsel %vm3083, %v4815, %v4422
      %v4848 = vsel %vm3083, %v4816, %v4424
      %v4849 = vsel %vm3083, %v4817, %v4426
      %v4850 = vsel %vm3083, %v4818, %v4428
      %v4851 = vsel %vm3083, %v4819, %v4430
      %v4852 = vsel %vm3083, %v4820, %v4432
      %v4853 = vsel %vm3083, %v4821, %v4434
      %v4854 = vsel %vm3083, %v4822, %v4436
      %v4855 = vsel %vm3083, %v4823, %v4438
      %v4856 = vsel %vm3083, %v4824, %v4440
      %v4857 = vsel %vm279, %v3974, %v4474
      %v4858 = vsel %vm279, %v3976, %v4476
      %v4859 = vsel %vm279, %v3979, %v4478
      %v4860 = vsel %vm279, %v3981, %v4480
      %v4861 = vsel %vm279, %v3984, %v4482
      %v4862 = vsel %vm279, %v3986, %v4484
      %v4863 = vsel %vm279, %v3989, %v4486
      %v4864 = vsel %vm279, %v3991, %v4488
      %v4865 = vsel %vm279, %v3994, %v4490
      %v4866 = vsel %vm279, %v3996, %v4492
      %v4867 = vsel %vm279, %v3999, %v4494
      %v4868 = vsel %vm279, %v4001, %v4496
      %v4869 = vsel %vm279, %v4004, %v4498
      %v4870 = vsel %vm279, %v4006, %v4500
      %v4871 = vsel %vm279, %v4009, %v4502
      %v4872 = vsel %vm279, %v4011, %v4504
      %v4873 = vsel %vm279, %v4014, %v4506
      %v4874 = vsel %vm279, %v4016, %v4508
      %v4875 = vsel %vm279, %v4019, %v4510
      %v4876 = vsel %vm279, %v4021, %v4512
      %v4877 = vsel %vm279, %v4024, %v4514
      %v4878 = vsel %vm279, %v4026, %v4516
      %v4879 = vsel %vm279, %v4029, %v4518
      %v4880 = vsel %vm279, %v4031, %v4520
      %v4881 = vsel %vm279, %v4034, %v4522
      %v4882 = vsel %vm279, %v4036, %v4524
      %v4883 = vsel %vm279, %v4039, %v4526
      %v4884 = vsel %vm279, %v4041, %v4528
      %v4885 = vsel %vm279, %v4044, %v4530
      %v4886 = vsel %vm279, %v4046, %v4532
      %v4887 = vsel %vm279, %v4132, %v4534
      %v4888 = vsel %vm279, %v4134, %v4536
      %v4889 = vsel %vm3050, %v4857, %v4570
      %v4890 = vsel %vm3050, %v4858, %v4572
      %v4891 = vsel %vm3050, %v4859, %v4574
      %v4892 = vsel %vm3050, %v4860, %v4576
      %v4893 = vsel %vm3050, %v4861, %v4578
      %v4894 = vsel %vm3050, %v4862, %v4580
      %v4895 = vsel %vm3050, %v4863, %v4582
      %v4896 = vsel %vm3050, %v4864, %v4584
      %v4897 = vsel %vm3050, %v4865, %v4586
      %v4898 = vsel %vm3050, %v4866, %v4588
      %v4899 = vsel %vm3050, %v4867, %v4590
      %v4900 = vsel %vm3050, %v4868, %v4592
      %v4901 = vsel %vm3050, %v4869, %v4594
      %v4902 = vsel %vm3050, %v4870, %v4596
      %v4903 = vsel %vm3050, %v4871, %v4598
      %v4904 = vsel %vm3050, %v4872, %v4600
      %v4905 = vsel %vm3050, %v4873, %v4602
      %v4906 = vsel %vm3050, %v4874, %v4604
      %v4907 = vsel %vm3050, %v4875, %v4606
      %v4908 = vsel %vm3050, %v4876, %v4608
      %v4909 = vsel %vm3050, %v4877, %v4610
      %v4910 = vsel %vm3050, %v4878, %v4612
      %v4911 = vsel %vm3050, %v4879, %v4614
      %v4912 = vsel %vm3050, %v4880, %v4616
      %v4913 = vsel %vm3050, %v4881, %v4618
      %v4914 = vsel %vm3050, %v4882, %v4620
      %v4915 = vsel %vm3050, %v4883, %v4622
      %v4916 = vsel %vm3050, %v4884, %v4624
      %v4917 = vsel %vm3050, %v4885, %v4626
      %v4918 = vsel %vm3050, %v4886, %v4628
      %v4919 = vsel %vm3050, %v4887, %v4630
      %v4920 = vsel %vm3050, %v4888, %v4632
      %v4921 = vsel %vm3083, %v4889, %v4666
      %v4922 = vsel %vm3083, %v4890, %v4668
      %v4923 = vsel %vm3083, %v4891, %v4670
      %v4924 = vsel %vm3083, %v4892, %v4672
      %v4925 = vsel %vm3083, %v4893, %v4674
      %v4926 = vsel %vm3083, %v4894, %v4676
      %v4927 = vsel %vm3083, %v4895, %v4678
      %v4928 = vsel %vm3083, %v4896, %v4680
      %v4929 = vsel %vm3083, %v4897, %v4682
      %v4930 = vsel %vm3083, %v4898, %v4684
      %v4931 = vsel %vm3083, %v4899, %v4686
      %v4932 = vsel %vm3083, %v4900, %v4688
      %v4933 = vsel %vm3083, %v4901, %v4690
      %v4934 = vsel %vm3083, %v4902, %v4692
      %v4935 = vsel %vm3083, %v4903, %v4694
      %v4936 = vsel %vm3083, %v4904, %v4696
      %v4937 = vsel %vm3083, %v4905, %v4698
      %v4938 = vsel %vm3083, %v4906, %v4700
      %v4939 = vsel %vm3083, %v4907, %v4702
      %v4940 = vsel %vm3083, %v4908, %v4704
      %v4941 = vsel %vm3083, %v4909, %v4706
      %v4942 = vsel %vm3083, %v4910, %v4708
      %v4943 = vsel %vm3083, %v4911, %v4710
      %v4944 = vsel %vm3083, %v4912, %v4712
      %v4945 = vsel %vm3083, %v4913, %v4714
      %v4946 = vsel %vm3083, %v4914, %v4716
      %v4947 = vsel %vm3083, %v4915, %v4718
      %v4948 = vsel %vm3083, %v4916, %v4720
      %v4949 = vsel %vm3083, %v4917, %v4722
      %v4950 = vsel %vm3083, %v4918, %v4724
      %v4951 = vsel %vm3083, %v4919, %v4726
      %v4952 = vsel %vm3083, %v4920, %v4728
      %s4953 = scalar_lea.vmem %s3, 288
      %v4954 = vld [vmem:[%s4953] sm:$0xff]
      %v4955 = vld [vmem:[%s4953 + $0x8] sm:$0xff]
      %v4956 = vld [vmem:[%s4953 + $0x10] sm:$0xff]
      %v4957 = vld [vmem:[%s4953 + $0x18] sm:$0xff]
      %v4958 = vld [vmem:[%s4953 + $0x20] sm:$0xff]
      %v4959 = vld [vmem:[%s4953 + $0x28] sm:$0xff]
      %v4960 = vld [vmem:[%s4953 + $0x30] sm:$0xff]
      %v4961 = vld [vmem:[%s4953 + $0x38] sm:$0xff]
      %v4962 = vld [vmem:[%s4953 + $0x40] sm:$0xff]
      %v4963 = vld [vmem:[%s4953 + $0x48] sm:$0xff]
      %v4964 = vld [vmem:[%s4953 + $0x50] sm:$0xff]
      %v4965 = vld [vmem:[%s4953 + $0x58] sm:$0xff]
      %v4966 = vld [vmem:[%s4953 + $0x60] sm:$0xff]
      %v4967 = vld [vmem:[%s4953 + $0x68] sm:$0xff]
      %v4968 = vld [vmem:[%s4953 + $0x70] sm:$0xff]
      %v4969 = vld [vmem:[%s4953 + $0x78] sm:$0xff]
      %v4970 = vld [vmem:[%s4953 + $0x80] sm:$0xff]
      %v4971 = vld [vmem:[%s4953 + $0x88] sm:$0xff]
      %v4972 = vld [vmem:[%s4953 + $0x90] sm:$0xff]
      %v4973 = vld [vmem:[%s4953 + $0x98] sm:$0xff]
      %v4974 = vld [vmem:[%s4953 + $0xa0] sm:$0xff]
      %v4975 = vld [vmem:[%s4953 + $0xa8] sm:$0xff]
      %v4976 = vld [vmem:[%s4953 + $0xb0] sm:$0xff]
      %v4977 = vld [vmem:[%s4953 + $0xb8] sm:$0xff]
      %v4978 = vld [vmem:[%s4953 + $0xc0] sm:$0xff]
      %v4979 = vld [vmem:[%s4953 + $0xc8] sm:$0xff]
      %v4980 = vld [vmem:[%s4953 + $0xd0] sm:$0xff]
      %v4981 = vld [vmem:[%s4953 + $0xd8] sm:$0xff]
      %v4982 = vld [vmem:[%s4953 + $0xe0] sm:$0xff]
      %v4983 = vld [vmem:[%s4953 + $0xe8] sm:$0xff]
      %v4984 = vld [vmem:[%s4953 + $0xf0] sm:$0xff]
      %v4985 = vld [vmem:[%s4953 + $0xf8] sm:$0xff]
      %v4986 = vld [vmem:[%s4953 + $0x100] sm:$0xff]
      %v4987 = vld [vmem:[%s4953 + $0x108] sm:$0xff]
      %v4988 = vld [vmem:[%s4953 + $0x110] sm:$0xff]
      %v4989 = vld [vmem:[%s4953 + $0x118] sm:$0xff]
      %s4990 = scalar_lea.vmem %s4, 1
      %v4991 = vld [vmem:[%s4990] sm:$0x1]
      %v4993 = vlaneseq
      %v4994 = vshrl.u32 %v4993, 7
      %v4995 = vsub.s32 0, %v4994
      %v4996 = vrot.slane %v4991, %v4995
      %v4998 = vsel %vm279, %v4059, 0
      %v5000 = vsel %vm279, %v4061, 0
      %v5002 = vsel %vm279, %v4064, 0
      %v5004 = vsel %vm279, %v4066, 0
      %v5006 = vsel %vm279, %v4069, 0
      %v5008 = vsel %vm279, %v4071, 0
      %v5010 = vsel %vm279, %v4074, 0
      %v5012 = vsel %vm279, %v4076, 0
      %v5014 = vsel %vm279, %v4079, 0
      %v5016 = vsel %vm279, %v4081, 0
      %v5018 = vsel %vm279, %v4084, 0
      %v5020 = vsel %vm279, %v4086, 0
      %v5022 = vsel %vm279, %v4089, 0
      %v5024 = vsel %vm279, %v4091, 0
      %v5026 = vsel %vm279, %v4094, 0
      %v5028 = vsel %vm279, %v4096, 0
      %v5030 = vsel %vm279, %v4099, 0
      %v5032 = vsel %vm279, %v4101, 0
      %v5034 = vsel %vm279, %v4104, 0
      %v5036 = vsel %vm279, %v4106, 0
      %v5038 = vsel %vm279, %v4109, 0
      %v5040 = vsel %vm279, %v4111, 0
      %v5042 = vsel %vm279, %v4114, 0
      %v5044 = vsel %vm279, %v4116, 0
      %v5046 = vsel %vm279, %v4119, 0
      %v5048 = vsel %vm279, %v4121, 0
      %v5050 = vsel %vm279, %v4124, 0
      %v5052 = vsel %vm279, %v4126, 0
      %v5054 = vsel %vm279, %v4169, 0
      %v5056 = vsel %vm279, %v4171, 0
      %v5058 = vsel %vm279, %v4182, 0
      %v5060 = vsel %vm279, %v4184, 0
      %5062 = vmatprep.subr.mxu0 0.0
      %5063 = vmatpush1.msra.mxu0 %v4969
      %5064 = vmatprep.subr.mxu0 0.0
      %5065 = vmatpush1.msra.mxu0 %v4968
      %5066 = vmatprep.subr.mxu0 0.0
      %5067 = vmatpush1.msra.mxu0 %v4967
      %5068 = vmatprep.subr.mxu0 0.0
      %5069 = vmatpush1.msra.mxu0 %v4966
      %5070 = vmatprep.subr.mxu0 0.0
      %5071 = vmatpush1.msra.mxu0 %v4965
      %5072 = vmatprep.subr.mxu0 0.0
      %5073 = vmatpush1.msra.mxu0 %v4964
      %5074 = vmatprep.subr.mxu0 0.0
      %5075 = vmatpush1.msra.mxu0 %v4963
      %5076 = vmatprep.subr.mxu0 0.0
      %5077 = vmatpush1.msra.mxu0 %v4962
      %5078 = vmatprep.subr.mxu0 0.0
      %5079 = vmatpush1.msra.mxu0 %v4961
      %5080 = vmatprep.subr.mxu0 0.0
      %5081 = vmatpush1.msra.mxu0 %v4960
      %5082 = vmatprep.subr.mxu0 0.0
      %5083 = vmatpush1.msra.mxu0 %v4959
      %5084 = vmatprep.subr.mxu0 0.0
      %5085 = vmatpush1.msra.mxu0 %v4958
      %5086 = vmatprep.subr.mxu0 0.0
      %5087 = vmatpush1.msra.mxu0 %v4957
      %5088 = vmatprep.subr.mxu0 0.0
      %5089 = vmatpush1.msra.mxu0 %v4956
      %5090 = vmatprep.subr.mxu0 0.0
      %5091 = vmatpush1.msra.mxu0 %v4955
      %5092 = vmatprep.subr.mxu0 0.0
      %5093 = vmatpush1.msra.mxu0 %v4954
      %5094 = vmatprep.subr.mxu0 0.0
      %5095 = vmatpush2.msra.mxu0 %v4985
      %5096 = vmatprep.subr.mxu0 0.0
      %5097 = vmatpush2.msra.mxu0 %v4984
      %5098 = vmatprep.subr.mxu0 0.0
      %5099 = vmatpush2.msra.mxu0 %v4983
      %5100 = vmatprep.subr.mxu0 0.0
      %5101 = vmatpush2.msra.mxu0 %v4982
      %5102 = vmatprep.subr.mxu0 0.0
      %5103 = vmatpush2.msra.mxu0 %v4981
      %5104 = vmatprep.subr.mxu0 0.0
      %5105 = vmatpush2.msra.mxu0 %v4980
      %5106 = vmatprep.subr.mxu0 0.0
      %5107 = vmatpush2.msra.mxu0 %v4979
      %5108 = vmatprep.subr.mxu0 0.0
      %5109 = vmatpush2.msra.mxu0 %v4978
      %5110 = vmatprep.subr.mxu0 0.0
      %5111 = vmatpush2.msra.mxu0 %v4977
      %5112 = vmatprep.subr.mxu0 0.0
      %5113 = vmatpush2.msra.mxu0 %v4976
      %5114 = vmatprep.subr.mxu0 0.0
      %5115 = vmatpush2.msra.mxu0 %v4975
      %5116 = vmatprep.subr.mxu0 0.0
      %5117 = vmatpush2.msra.mxu0 %v4974
      %5118 = vmatprep.subr.mxu0 0.0
      %5119 = vmatpush2.msra.mxu0 %v4973
      %5120 = vmatprep.subr.mxu0 0.0
      %5121 = vmatpush2.msra.mxu0 %v4972
      %5122 = vmatprep.subr.mxu0 0.0
      %5123 = vmatpush2.msra.mxu0 %v4971
      %5124 = vmatprep.subr.mxu0 0.0
      %5125 = vmatpush2.msra.mxu0 %v4970
      %5126 = vmatprep.mubr.f32.mxu0 %v4921
      %5127 = vmatmul.mubr.f32.gmra.mxu0 %v4825
      %v5128 = vpop.f32.mrf.mxu0
      %v5129 = vadd.f32 %v4996, %v5128
      %v5130 = vpop.f32.mrf.mxu0
      %5131 = vmatprep.mubr.f32.mxu0 %v4922
      %5132 = vmatmul.mubr.f32.gmra.mxu0 %v4826
      %v5133 = vpop.f32.mrf.mxu0
      %v5134 = vadd.f32 %v4996, %v5133
      %v5135 = vpop.f32.mrf.mxu0
      %5136 = vmatprep.mubr.f32.mxu0 %v4923
      %5137 = vmatmul.mubr.f32.gmra.mxu0 %v4827
      %v5138 = vpop.f32.mrf.mxu0
      %v5139 = vadd.f32 %v4996, %v5138
      %v5140 = vpop.f32.mrf.mxu0
      %5141 = vmatprep.mubr.f32.mxu0 %v4924
      %5142 = vmatmul.mubr.f32.gmra.mxu0 %v4828
      %v5143 = vpop.f32.mrf.mxu0
      %v5144 = vadd.f32 %v4996, %v5143
      %v5145 = vpop.f32.mrf.mxu0
      %5146 = vmatprep.mubr.f32.mxu0 %v4925
      %5147 = vmatmul.mubr.f32.gmra.mxu0 %v4829
      %v5148 = vpop.f32.mrf.mxu0
      %v5149 = vadd.f32 %v4996, %v5148
      %v5150 = vpop.f32.mrf.mxu0
      %5151 = vmatprep.mubr.f32.mxu0 %v4926
      %5152 = vmatmul.mubr.f32.gmra.mxu0 %v4830
      %v5153 = vpop.f32.mrf.mxu0
      %v5154 = vadd.f32 %v4996, %v5153
      %v5155 = vpop.f32.mrf.mxu0
      %5156 = vmatprep.mubr.f32.mxu0 %v4927
      %5157 = vmatmul.mubr.f32.gmra.mxu0 %v4831
      %v5158 = vpop.f32.mrf.mxu0
      %v5159 = vadd.f32 %v4996, %v5158
      %v5160 = vpop.f32.mrf.mxu0
      %5161 = vmatprep.mubr.f32.mxu0 %v4928
      %5162 = vmatmul.mubr.f32.gmra.mxu0 %v4832
      %v5163 = vpop.f32.mrf.mxu0
      %v5164 = vadd.f32 %v4996, %v5163
      %v5165 = vpop.f32.mrf.mxu0
      %5166 = vmatprep.mubr.f32.mxu0 %v4929
      %5167 = vmatmul.mubr.f32.gmra.mxu0 %v4833
      %v5168 = vpop.f32.mrf.mxu0
      %v5169 = vadd.f32 %v4996, %v5168
      %v5170 = vpop.f32.mrf.mxu0
      %5171 = vmatprep.mubr.f32.mxu0 %v4930
      %5172 = vmatmul.mubr.f32.gmra.mxu0 %v4834
      %v5173 = vpop.f32.mrf.mxu0
      %v5174 = vadd.f32 %v4996, %v5173
      %v5175 = vpop.f32.mrf.mxu0
      %5176 = vmatprep.mubr.f32.mxu0 %v4931
      %5177 = vmatmul.mubr.f32.gmra.mxu0 %v4835
      %v5178 = vpop.f32.mrf.mxu0
      %v5179 = vadd.f32 %v4996, %v5178
      %v5180 = vpop.f32.mrf.mxu0
      %5181 = vmatprep.mubr.f32.mxu0 %v4932
      %5182 = vmatmul.mubr.f32.gmra.mxu0 %v4836
      %v5183 = vpop.f32.mrf.mxu0
      %v5184 = vadd.f32 %v4996, %v5183
      %v5185 = vpop.f32.mrf.mxu0
      %5186 = vmatprep.mubr.f32.mxu0 %v4933
      %5187 = vmatmul.mubr.f32.gmra.mxu0 %v4837
      %v5188 = vpop.f32.mrf.mxu0
      %v5189 = vadd.f32 %v4996, %v5188
      %v5190 = vpop.f32.mrf.mxu0
      %5191 = vmatprep.mubr.f32.mxu0 %v4934
      %5192 = vmatmul.mubr.f32.gmra.mxu0 %v4838
      %v5193 = vpop.f32.mrf.mxu0
      %v5194 = vadd.f32 %v4996, %v5193
      %v5195 = vpop.f32.mrf.mxu0
      %5196 = vmatprep.mubr.f32.mxu0 %v4935
      %5197 = vmatmul.mubr.f32.gmra.mxu0 %v4839
      %v5198 = vpop.f32.mrf.mxu0
      %v5199 = vadd.f32 %v4996, %v5198
      %v5200 = vpop.f32.mrf.mxu0
      %5201 = vmatprep.mubr.f32.mxu0 %v4936
      %5202 = vmatmul.mubr.f32.gmra.mxu0 %v4840
      %v5203 = vpop.f32.mrf.mxu0
      %v5204 = vadd.f32 %v4996, %v5203
      %v5205 = vpop.f32.mrf.mxu0
      %5206 = vmatprep.mubr.f32.mxu0 %v4937
      %5207 = vmatmul.mubr.f32.gmra.mxu0 %v4841
      %v5208 = vpop.f32.mrf.mxu0
      %v5209 = vadd.f32 %v4996, %v5208
      %v5210 = vpop.f32.mrf.mxu0
      %5211 = vmatprep.mubr.f32.mxu0 %v4938
      %5212 = vmatmul.mubr.f32.gmra.mxu0 %v4842
      %v5213 = vpop.f32.mrf.mxu0
      %v5214 = vadd.f32 %v4996, %v5213
      %v5215 = vpop.f32.mrf.mxu0
      %5216 = vmatprep.mubr.f32.mxu0 %v4939
      %5217 = vmatmul.mubr.f32.gmra.mxu0 %v4843
      %v5218 = vpop.f32.mrf.mxu0
      %v5219 = vadd.f32 %v4996, %v5218
      %v5220 = vpop.f32.mrf.mxu0
      %5221 = vmatprep.mubr.f32.mxu0 %v4940
      %5222 = vmatmul.mubr.f32.gmra.mxu0 %v4844
      %v5223 = vpop.f32.mrf.mxu0
      %v5224 = vadd.f32 %v4996, %v5223
      %v5225 = vpop.f32.mrf.mxu0
      %5226 = vmatprep.mubr.f32.mxu0 %v4941
      %5227 = vmatmul.mubr.f32.gmra.mxu0 %v4845
      %v5228 = vpop.f32.mrf.mxu0
      %v5229 = vadd.f32 %v4996, %v5228
      %v5230 = vpop.f32.mrf.mxu0
      %5231 = vmatprep.mubr.f32.mxu0 %v4942
      %5232 = vmatmul.mubr.f32.gmra.mxu0 %v4846
      %v5233 = vpop.f32.mrf.mxu0
      %v5234 = vadd.f32 %v4996, %v5233
      %v5235 = vpop.f32.mrf.mxu0
      %5236 = vmatprep.mubr.f32.mxu0 %v4943
      %5237 = vmatmul.mubr.f32.gmra.mxu0 %v4847
      %v5238 = vpop.f32.mrf.mxu0
      %v5239 = vadd.f32 %v4996, %v5238
      %v5240 = vpop.f32.mrf.mxu0
      %5241 = vmatprep.mubr.f32.mxu0 %v4944
      %5242 = vmatmul.mubr.f32.gmra.mxu0 %v4848
      %v5243 = vpop.f32.mrf.mxu0
      %v5244 = vadd.f32 %v4996, %v5243
      %v5245 = vpop.f32.mrf.mxu0
      %5246 = vmatprep.mubr.f32.mxu0 %v4945
      %5247 = vmatmul.mubr.f32.gmra.mxu0 %v4849
      %v5248 = vpop.f32.mrf.mxu0
      %v5249 = vadd.f32 %v4996, %v5248
      %v5250 = vpop.f32.mrf.mxu0
      %5251 = vmatprep.mubr.f32.mxu0 %v4946
      %5252 = vmatmul.mubr.f32.gmra.mxu0 %v4850
      %v5253 = vpop.f32.mrf.mxu0
      %v5254 = vadd.f32 %v4996, %v5253
      %v5255 = vpop.f32.mrf.mxu0
      %5256 = vmatprep.mubr.f32.mxu0 %v4947
      %5257 = vmatmul.mubr.f32.gmra.mxu0 %v4851
      %v5258 = vpop.f32.mrf.mxu0
      %v5259 = vadd.f32 %v4996, %v5258
      %v5260 = vpop.f32.mrf.mxu0
      %5261 = vmatprep.mubr.f32.mxu0 %v4948
      %5262 = vmatmul.mubr.f32.gmra.mxu0 %v4852
      %v5263 = vpop.f32.mrf.mxu0
      %v5264 = vadd.f32 %v4996, %v5263
      %v5265 = vpop.f32.mrf.mxu0
      %5266 = vmatprep.mubr.f32.mxu0 %v4949
      %5267 = vmatmul.mubr.f32.gmra.mxu0 %v4853
      %v5268 = vpop.f32.mrf.mxu0
      %v5269 = vadd.f32 %v4996, %v5268
      %v5270 = vpop.f32.mrf.mxu0
      %5271 = vmatprep.mubr.f32.mxu0 %v4950
      %5272 = vmatmul.mubr.f32.gmra.mxu0 %v4854
      %v5273 = vpop.f32.mrf.mxu0
      %v5274 = vadd.f32 %v4996, %v5273
      %v5275 = vpop.f32.mrf.mxu0
      %5276 = vmatprep.mubr.f32.mxu0 %v4951
      %5277 = vmatmul.mubr.f32.gmra.mxu0 %v4855
      %v5278 = vpop.f32.mrf.mxu0
      %v5279 = vadd.f32 %v4996, %v5278
      %v5280 = vpop.f32.mrf.mxu0
      %5281 = vmatprep.mubr.f32.mxu0 %v4952
      %5282 = vmatmul.mubr.f32.gmra.mxu0 %v4856
      %v5283 = vpop.f32.mrf.mxu0
      %v5284 = vadd.f32 %v4996, %v5283
      %v5285 = vpop.f32.mrf.mxu0
      %5286 = vdwg.mxu0
      %5287 = vmatprep.subr.mxu0 0.0
      %5288 = vmatpush1.msra.mxu0 0.0
      %5289 = vmatprep.subr.mxu0 0.0
      %5290 = vmatpush1.msra.mxu0 0.0
      %5291 = vmatprep.subr.mxu0 0.0
      %5292 = vmatpush1.msra.mxu0 0.0
      %5293 = vmatprep.subr.mxu0 0.0
      %5294 = vmatpush1.msra.mxu0 0.0
      %5295 = vmatprep.subr.mxu0 0.0
      %5296 = vmatpush1.msra.mxu0 0.0
      %5297 = vmatprep.subr.mxu0 0.0
      %5298 = vmatpush1.msra.mxu0 0.0
      %5299 = vmatprep.subr.mxu0 0.0
      %5300 = vmatpush1.msra.mxu0 0.0
      %5301 = vmatprep.subr.mxu0 0.0
      %5302 = vmatpush1.msra.mxu0 0.0
      %5303 = vmatprep.subr.mxu0 0.0
      %5304 = vmatpush1.msra.mxu0 0.0
      %5305 = vmatprep.subr.mxu0 0.0
      %5306 = vmatpush1.msra.mxu0 0.0
      %5307 = vmatprep.subr.mxu0 0.0
      %5308 = vmatpush1.msra.mxu0 0.0
      %5309 = vmatprep.subr.mxu0 0.0
      %5310 = vmatpush1.msra.mxu0 0.0
      %5311 = vmatprep.subr.mxu0 0.0
      %5312 = vmatpush1.msra.mxu0 %v4989
      %5313 = vmatprep.subr.mxu0 0.0
      %5314 = vmatpush1.msra.mxu0 %v4988
      %5315 = vmatprep.subr.mxu0 0.0
      %5316 = vmatpush1.msra.mxu0 %v4987
      %5317 = vmatprep.subr.mxu0 0.0
      %5318 = vmatpush1.msra.mxu0 %v4986
      %5319 = vmatprep.subr.mxu0 0.0
      %5320 = vmatpush2.msra.mxu0 0.0
      %5321 = vmatprep.subr.mxu0 0.0
      %5322 = vmatpush2.msra.mxu0 0.0
      %5323 = vmatprep.subr.mxu0 0.0
      %5324 = vmatpush2.msra.mxu0 0.0
      %5325 = vmatprep.subr.mxu0 0.0
      %5326 = vmatpush2.msra.mxu0 0.0
      %5327 = vmatprep.subr.mxu0 0.0
      %5328 = vmatpush2.msra.mxu0 0.0
      %5329 = vmatprep.subr.mxu0 0.0
      %5330 = vmatpush2.msra.mxu0 0.0
      %5331 = vmatprep.subr.mxu0 0.0
      %5332 = vmatpush2.msra.mxu0 0.0
      %5333 = vmatprep.subr.mxu0 0.0
      %5334 = vmatpush2.msra.mxu0 0.0
      %5335 = vmatprep.subr.mxu0 0.0
      %5336 = vmatpush2.msra.mxu0 0.0
      %5337 = vmatprep.subr.mxu0 0.0
      %5338 = vmatpush2.msra.mxu0 0.0
      %5339 = vmatprep.subr.mxu0 0.0
      %5340 = vmatpush2.msra.mxu0 0.0
      %5341 = vmatprep.subr.mxu0 0.0
      %5342 = vmatpush2.msra.mxu0 0.0
      %5343 = vmatprep.subr.mxu0 0.0
      %5344 = vmatpush2.msra.mxu0 0.0
      %5345 = vmatprep.subr.mxu0 0.0
      %5346 = vmatpush2.msra.mxu0 0.0
      %5347 = vmatprep.subr.mxu0 0.0
      %5348 = vmatpush2.msra.mxu0 0.0
      %5349 = vmatprep.subr.mxu0 0.0
      %5350 = vmatpush2.msra.mxu0 0.0
      %5351 = vmatprep.mubr.f32.mxu0 0.0
      %5352 = vmatmul.mubr.f32.gmra.mxu0 %v4998
      %v5353 = vpop.f32.mrf.mxu0
      %v5354 = vadd.f32 %v5129, %v5353
      %v5355 = vpop.f32.mrf.mxu0
      %5356 = vmatprep.mubr.f32.mxu0 0.0
      %5357 = vmatmul.mubr.f32.gmra.mxu0 %v5000
      %v5358 = vpop.f32.mrf.mxu0
      %v5359 = vadd.f32 %v5134, %v5358
      %v5360 = vpop.f32.mrf.mxu0
      %5361 = vmatprep.mubr.f32.mxu0 0.0
      %5362 = vmatmul.mubr.f32.gmra.mxu0 %v5002
      %v5363 = vpop.f32.mrf.mxu0
      %v5364 = vadd.f32 %v5139, %v5363
      %v5365 = vpop.f32.mrf.mxu0
      %5366 = vmatprep.mubr.f32.mxu0 0.0
      %5367 = vmatmul.mubr.f32.gmra.mxu0 %v5004
      %v5368 = vpop.f32.mrf.mxu0
      %v5369 = vadd.f32 %v5144, %v5368
      %v5370 = vpop.f32.mrf.mxu0
      %5371 = vmatprep.mubr.f32.mxu0 0.0
      %5372 = vmatmul.mubr.f32.gmra.mxu0 %v5006
      %v5373 = vpop.f32.mrf.mxu0
      %v5374 = vadd.f32 %v5149, %v5373
      %v5375 = vpop.f32.mrf.mxu0
      %5376 = vmatprep.mubr.f32.mxu0 0.0
      %5377 = vmatmul.mubr.f32.gmra.mxu0 %v5008
      %v5378 = vpop.f32.mrf.mxu0
      %v5379 = vadd.f32 %v5154, %v5378
      %v5380 = vpop.f32.mrf.mxu0
      %5381 = vmatprep.mubr.f32.mxu0 0.0
      %5382 = vmatmul.mubr.f32.gmra.mxu0 %v5010
      %v5383 = vpop.f32.mrf.mxu0
      %v5384 = vadd.f32 %v5159, %v5383
      %v5385 = vpop.f32.mrf.mxu0
      %5386 = vmatprep.mubr.f32.mxu0 0.0
      %5387 = vmatmul.mubr.f32.gmra.mxu0 %v5012
      %v5388 = vpop.f32.mrf.mxu0
      %v5389 = vadd.f32 %v5164, %v5388
      %v5390 = vpop.f32.mrf.mxu0
      %5391 = vmatprep.mubr.f32.mxu0 0.0
      %5392 = vmatmul.mubr.f32.gmra.mxu0 %v5014
      %v5393 = vpop.f32.mrf.mxu0
      %v5394 = vadd.f32 %v5169, %v5393
      %v5395 = vpop.f32.mrf.mxu0
      %5396 = vmatprep.mubr.f32.mxu0 0.0
      %5397 = vmatmul.mubr.f32.gmra.mxu0 %v5016
      %v5398 = vpop.f32.mrf.mxu0
      %v5399 = vadd.f32 %v5174, %v5398
      %v5400 = vpop.f32.mrf.mxu0
      %5401 = vmatprep.mubr.f32.mxu0 0.0
      %5402 = vmatmul.mubr.f32.gmra.mxu0 %v5018
      %v5403 = vpop.f32.mrf.mxu0
      %v5404 = vadd.f32 %v5179, %v5403
      %v5405 = vpop.f32.mrf.mxu0
      %5406 = vmatprep.mubr.f32.mxu0 0.0
      %5407 = vmatmul.mubr.f32.gmra.mxu0 %v5020
      %v5408 = vpop.f32.mrf.mxu0
      %v5409 = vadd.f32 %v5184, %v5408
      %v5410 = vpop.f32.mrf.mxu0
      %5411 = vmatprep.mubr.f32.mxu0 0.0
      %5412 = vmatmul.mubr.f32.gmra.mxu0 %v5022
      %v5413 = vpop.f32.mrf.mxu0
      %v5414 = vadd.f32 %v5189, %v5413
      %v5415 = vpop.f32.mrf.mxu0
      %5416 = vmatprep.mubr.f32.mxu0 0.0
      %5417 = vmatmul.mubr.f32.gmra.mxu0 %v5024
      %v5418 = vpop.f32.mrf.mxu0
      %v5419 = vadd.f32 %v5194, %v5418
      %v5420 = vpop.f32.mrf.mxu0
      %5421 = vmatprep.mubr.f32.mxu0 0.0
      %5422 = vmatmul.mubr.f32.gmra.mxu0 %v5026
      %v5423 = vpop.f32.mrf.mxu0
      %v5424 = vadd.f32 %v5199, %v5423
      %v5425 = vpop.f32.mrf.mxu0
      %5426 = vmatprep.mubr.f32.mxu0 0.0
      %5427 = vmatmul.mubr.f32.gmra.mxu0 %v5028
      %v5428 = vpop.f32.mrf.mxu0
      %v5429 = vadd.f32 %v5204, %v5428
      %v5430 = vpop.f32.mrf.mxu0
      %5431 = vmatprep.mubr.f32.mxu0 0.0
      %5432 = vmatmul.mubr.f32.gmra.mxu0 %v5030
      %v5433 = vpop.f32.mrf.mxu0
      %v5434 = vadd.f32 %v5209, %v5433
      %v5435 = vpop.f32.mrf.mxu0
      %5436 = vmatprep.mubr.f32.mxu0 0.0
      %5437 = vmatmul.mubr.f32.gmra.mxu0 %v5032
      %v5438 = vpop.f32.mrf.mxu0
      %v5439 = vadd.f32 %v5214, %v5438
      %v5440 = vpop.f32.mrf.mxu0
      %5441 = vmatprep.mubr.f32.mxu0 0.0
      %5442 = vmatmul.mubr.f32.gmra.mxu0 %v5034
      %v5443 = vpop.f32.mrf.mxu0
      %v5444 = vadd.f32 %v5219, %v5443
      %v5445 = vpop.f32.mrf.mxu0
      %5446 = vmatprep.mubr.f32.mxu0 0.0
      %5447 = vmatmul.mubr.f32.gmra.mxu0 %v5036
      %v5448 = vpop.f32.mrf.mxu0
      %v5449 = vadd.f32 %v5224, %v5448
      %v5450 = vpop.f32.mrf.mxu0
      %5451 = vmatprep.mubr.f32.mxu0 0.0
      %5452 = vmatmul.mubr.f32.gmra.mxu0 %v5038
      %v5453 = vpop.f32.mrf.mxu0
      %v5454 = vadd.f32 %v5229, %v5453
      %v5455 = vpop.f32.mrf.mxu0
      %5456 = vmatprep.mubr.f32.mxu0 0.0
      %5457 = vmatmul.mubr.f32.gmra.mxu0 %v5040
      %v5458 = vpop.f32.mrf.mxu0
      %v5459 = vadd.f32 %v5234, %v5458
      %v5460 = vpop.f32.mrf.mxu0
      %5461 = vmatprep.mubr.f32.mxu0 0.0
      %5462 = vmatmul.mubr.f32.gmra.mxu0 %v5042
      %v5463 = vpop.f32.mrf.mxu0
      %v5464 = vadd.f32 %v5239, %v5463
      %v5465 = vpop.f32.mrf.mxu0
      %5466 = vmatprep.mubr.f32.mxu0 0.0
      %5467 = vmatmul.mubr.f32.gmra.mxu0 %v5044
      %v5468 = vpop.f32.mrf.mxu0
      %v5469 = vadd.f32 %v5244, %v5468
      %v5470 = vpop.f32.mrf.mxu0
      %5471 = vmatprep.mubr.f32.mxu0 0.0
      %5472 = vmatmul.mubr.f32.gmra.mxu0 %v5046
      %v5473 = vpop.f32.mrf.mxu0
      %v5474 = vadd.f32 %v5249, %v5473
      %v5475 = vpop.f32.mrf.mxu0
      %5476 = vmatprep.mubr.f32.mxu0 0.0
      %5477 = vmatmul.mubr.f32.gmra.mxu0 %v5048
      %v5478 = vpop.f32.mrf.mxu0
      %v5479 = vadd.f32 %v5254, %v5478
      %v5480 = vpop.f32.mrf.mxu0
      %5481 = vmatprep.mubr.f32.mxu0 0.0
      %5482 = vmatmul.mubr.f32.gmra.mxu0 %v5050
      %v5483 = vpop.f32.mrf.mxu0
      %v5484 = vadd.f32 %v5259, %v5483
      %v5485 = vpop.f32.mrf.mxu0
      %5486 = vmatprep.mubr.f32.mxu0 0.0
      %5487 = vmatmul.mubr.f32.gmra.mxu0 %v5052
      %v5488 = vpop.f32.mrf.mxu0
      %v5489 = vadd.f32 %v5264, %v5488
      %v5490 = vpop.f32.mrf.mxu0
      %5491 = vmatprep.mubr.f32.mxu0 0.0
      %5492 = vmatmul.mubr.f32.gmra.mxu0 %v5054
      %v5493 = vpop.f32.mrf.mxu0
      %v5494 = vadd.f32 %v5269, %v5493
      %v5495 = vpop.f32.mrf.mxu0
      %5496 = vmatprep.mubr.f32.mxu0 0.0
      %5497 = vmatmul.mubr.f32.gmra.mxu0 %v5056
      %v5498 = vpop.f32.mrf.mxu0
      %v5499 = vadd.f32 %v5274, %v5498
      %v5500 = vpop.f32.mrf.mxu0
      %5501 = vmatprep.mubr.f32.mxu0 0.0
      %5502 = vmatmul.mubr.f32.gmra.mxu0 %v5058
      %v5503 = vpop.f32.mrf.mxu0
      %v5504 = vadd.f32 %v5279, %v5503
      %v5505 = vpop.f32.mrf.mxu0
      %5506 = vmatprep.mubr.f32.mxu0 0.0
      %5507 = vmatmul.mubr.f32.gmra.mxu0 %v5060
      %v5508 = vpop.f32.mrf.mxu0
      %v5509 = vadd.f32 %v5284, %v5508
      %v5510 = vpop.f32.mrf.mxu0
      %5511 = vdwg.mxu0
      %v5512 = vmul.f32 %v5354, 0.01
      %v5513 = vmul.f32 %v5359, 0.01
      %v5514 = vmul.f32 %v5364, 0.01
      %v5515 = vmul.f32 %v5369, 0.01
      %v5516 = vmul.f32 %v5374, 0.01
      %v5517 = vmul.f32 %v5379, 0.01
      %v5518 = vmul.f32 %v5384, 0.01
      %v5519 = vmul.f32 %v5389, 0.01
      %v5520 = vmul.f32 %v5394, 0.01
      %v5521 = vmul.f32 %v5399, 0.01
      %v5522 = vmul.f32 %v5404, 0.01
      %v5523 = vmul.f32 %v5409, 0.01
      %v5524 = vmul.f32 %v5414, 0.01
      %v5525 = vmul.f32 %v5419, 0.01
      %v5526 = vmul.f32 %v5424, 0.01
      %v5527 = vmul.f32 %v5429, 0.01
      %v5528 = vmul.f32 %v5434, 0.01
      %v5529 = vmul.f32 %v5439, 0.01
      %v5530 = vmul.f32 %v5444, 0.01
      %v5531 = vmul.f32 %v5449, 0.01
      %v5532 = vmul.f32 %v5454, 0.01
      %v5533 = vmul.f32 %v5459, 0.01
      %v5534 = vmul.f32 %v5464, 0.01
      %v5535 = vmul.f32 %v5469, 0.01
      %v5536 = vmul.f32 %v5474, 0.01
      %v5537 = vmul.f32 %v5479, 0.01
      %v5538 = vmul.f32 %v5484, 0.01
      %v5539 = vmul.f32 %v5489, 0.01
      %v5540 = vmul.f32 %v5494, 0.01
      %v5541 = vmul.f32 %v5499, 0.01
      %v5542 = vmul.f32 %v5504, 0.01
      %v5543 = vmul.f32 %v5509, 0.01
      %v5544 = vmax.f32 %v5354, %v5512
      %v5545 = vmax.f32 %v5359, %v5513
      %v5546 = vmax.f32 %v5364, %v5514
      %v5547 = vmax.f32 %v5369, %v5515
      %v5548 = vmax.f32 %v5374, %v5516
      %v5549 = vmax.f32 %v5379, %v5517
      %v5550 = vmax.f32 %v5384, %v5518
      %v5551 = vmax.f32 %v5389, %v5519
      %v5552 = vmax.f32 %v5394, %v5520
      %v5553 = vmax.f32 %v5399, %v5521
      %v5554 = vmax.f32 %v5404, %v5522
      %v5555 = vmax.f32 %v5409, %v5523
      %v5556 = vmax.f32 %v5414, %v5524
      %v5557 = vmax.f32 %v5419, %v5525
      %v5558 = vmax.f32 %v5424, %v5526
      %v5559 = vmax.f32 %v5429, %v5527
      %v5560 = vmax.f32 %v5434, %v5528
      %v5561 = vmax.f32 %v5439, %v5529
      %v5562 = vmax.f32 %v5444, %v5530
      %v5563 = vmax.f32 %v5449, %v5531
      %v5564 = vmax.f32 %v5454, %v5532
      %v5565 = vmax.f32 %v5459, %v5533
      %v5566 = vmax.f32 %v5464, %v5534
      %v5567 = vmax.f32 %v5469, %v5535
      %v5568 = vmax.f32 %v5474, %v5536
      %v5569 = vmax.f32 %v5479, %v5537
      %v5570 = vmax.f32 %v5484, %v5538
      %v5571 = vmax.f32 %v5489, %v5539
      %v5572 = vmax.f32 %v5494, %v5540
      %v5573 = vmax.f32 %v5499, %v5541
      %v5574 = vmax.f32 %v5504, %v5542
      %v5575 = vmax.f32 %v5509, %v5543
      %5576 = vst.msk [vmem:[%s2089 + $0x1] sm:$0xff] %vm279, %v5544
      %5577 = vst.msk [vmem:[%s2089 + $0x9] sm:$0xff] %vm279, %v5545
      %5578 = vst.msk [vmem:[%s2089 + $0x19] sm:$0xff] %vm279, %v5546
      %5579 = vst.msk [vmem:[%s2089 + $0x21] sm:$0xff] %vm279, %v5547
      %5580 = vst.msk [vmem:[%s2089 + $0x31] sm:$0xff] %vm279, %v5548
      %5581 = vst.msk [vmem:[%s2089 + $0x39] sm:$0xff] %vm279, %v5549
      %5582 = vst.msk [vmem:[%s2089 + $0x49] sm:$0xff] %vm279, %v5550
      %5583 = vst.msk [vmem:[%s2089 + $0x51] sm:$0xff] %vm279, %v5551
      %5584 = vst.msk [vmem:[%s2089 + $0x61] sm:$0xff] %vm279, %v5552
      %5585 = vst.msk [vmem:[%s2089 + $0x69] sm:$0xff] %vm279, %v5553
      %5586 = vst.msk [vmem:[%s2089 + $0x79] sm:$0xff] %vm279, %v5554
      %5587 = vst.msk [vmem:[%s2089 + $0x81] sm:$0xff] %vm279, %v5555
      %5588 = vst.msk [vmem:[%s2089 + $0x91] sm:$0xff] %vm279, %v5556
      %5589 = vst.msk [vmem:[%s2089 + $0x99] sm:$0xff] %vm279, %v5557
      %5590 = vst.msk [vmem:[%s2089 + $0xa9] sm:$0xff] %vm279, %v5558
      %5591 = vst.msk [vmem:[%s2089 + $0xb1] sm:$0xff] %vm279, %v5559
      %5592 = vst.msk [vmem:[%s2089 + $0xc1] sm:$0xff] %vm279, %v5560
      %5593 = vst.msk [vmem:[%s2089 + $0xc9] sm:$0xff] %vm279, %v5561
      %5594 = vst.msk [vmem:[%s2089 + $0xd9] sm:$0xff] %vm279, %v5562
      %5595 = vst.msk [vmem:[%s2089 + $0xe1] sm:$0xff] %vm279, %v5563
      %5596 = vst.msk [vmem:[%s2089 + $0xf1] sm:$0xff] %vm279, %v5564
      %5597 = vst.msk [vmem:[%s2089 + $0xf9] sm:$0xff] %vm279, %v5565
      %5598 = vst.msk [vmem:[%s2089 + $0x109] sm:$0xff] %vm279, %v5566
      %5599 = vst.msk [vmem:[%s2089 + $0x111] sm:$0xff] %vm279, %v5567
      %5600 = vst.msk [vmem:[%s2089 + $0x121] sm:$0xff] %vm279, %v5568
      %5601 = vst.msk [vmem:[%s2089 + $0x129] sm:$0xff] %vm279, %v5569
      %5602 = vst.msk [vmem:[%s2089 + $0x139] sm:$0xff] %vm279, %v5570
      %5603 = vst.msk [vmem:[%s2089 + $0x141] sm:$0xff] %vm279, %v5571
      %5604 = vst.msk [vmem:[%s2089 + $0x151] sm:$0xff] %vm279, %v5572
      %5605 = vst.msk [vmem:[%s2089 + $0x159] sm:$0xff] %vm279, %v5573
      %5606 = vst.msk [vmem:[%s2089 + $0x169] sm:$0xff] %vm279, %v5574
      %5607 = vst.msk [vmem:[%s2089 + $0x171] sm:$0xff] %vm279, %v5575
      %v5608 = vld [vmem:[#allocation2] sm:$0xff]
      %v5609 = vld [vmem:[#allocation2 + $0x8] sm:$0xff]
      %v5610 = vld [vmem:[#allocation2 + $0x10] sm:$0x3]
      %v5611 = vld [vmem:[#allocation2 + $0x18] sm:$0xff]
      %v5612 = vld [vmem:[#allocation2 + $0x20] sm:$0xff]
      %v5613 = vld [vmem:[#allocation2 + $0x28] sm:$0x3]
      %v5614 = vld [vmem:[#allocation2 + $0x30] sm:$0xff]
      %v5615 = vld [vmem:[#allocation2 + $0x38] sm:$0xff]
      %v5616 = vld [vmem:[#allocation2 + $0x40] sm:$0x3]
      %v5617 = vld [vmem:[#allocation2 + $0x48] sm:$0xff]
      %v5618 = vld [vmem:[#allocation2 + $0x50] sm:$0xff]
      %v5619 = vld [vmem:[#allocation2 + $0x58] sm:$0x3]
      %v5620 = vld [vmem:[#allocation2 + $0x60] sm:$0xff]
      %v5621 = vld [vmem:[#allocation2 + $0x68] sm:$0xff]
      %v5622 = vld [vmem:[#allocation2 + $0x70] sm:$0x3]
      %v5623 = vld [vmem:[#allocation2 + $0x78] sm:$0xff]
      %v5624 = vld [vmem:[#allocation2 + $0x80] sm:$0xff]
      %v5625 = vld [vmem:[#allocation2 + $0x88] sm:$0x3]
      %v5626 = vld [vmem:[#allocation2 + $0x90] sm:$0xff]
      %v5627 = vld [vmem:[#allocation2 + $0x98] sm:$0xff]
      %v5628 = vld [vmem:[#allocation2 + $0xa0] sm:$0x3]
      %v5629 = vld [vmem:[#allocation2 + $0xa8] sm:$0xff]
      %v5630 = vld [vmem:[#allocation2 + $0xb0] sm:$0xff]
      %v5631 = vld [vmem:[#allocation2 + $0xb8] sm:$0x3]
      %v5632 = vld [vmem:[#allocation2 + $0xc0] sm:$0xff]
      %v5633 = vld [vmem:[#allocation2 + $0xc8] sm:$0xff]
      %v5634 = vld [vmem:[#allocation2 + $0xd0] sm:$0x3]
      %v5635 = vld [vmem:[#allocation2 + $0xd8] sm:$0xff]
      %v5636 = vld [vmem:[#allocation2 + $0xe0] sm:$0xff]
      %v5637 = vld [vmem:[#allocation2 + $0xe8] sm:$0x3]
      %v5638 = vld [vmem:[#allocation2 + $0xf0] sm:$0xff]
      %v5639 = vld [vmem:[#allocation2 + $0xf8] sm:$0xff]
      %v5640 = vld [vmem:[#allocation2 + $0x100] sm:$0x3]
      %v5641 = vld [vmem:[#allocation2 + $0x108] sm:$0xff]
      %v5642 = vld [vmem:[#allocation2 + $0x110] sm:$0xff]
      %v5643 = vld [vmem:[#allocation2 + $0x118] sm:$0x3]
      %v5644 = vld [vmem:[#allocation2 + $0x120] sm:$0xff]
      %v5645 = vld [vmem:[#allocation2 + $0x128] sm:$0xff]
      %v5646 = vld [vmem:[#allocation2 + $0x130] sm:$0x3]
      %v5647 = vld [vmem:[#allocation2 + $0x138] sm:$0xff]
      %v5648 = vld [vmem:[#allocation2 + $0x140] sm:$0xff]
      %v5649 = vld [vmem:[#allocation2 + $0x148] sm:$0x3]
      %v5650 = vld [vmem:[#allocation2 + $0x150] sm:$0xff]
      %v5651 = vld [vmem:[#allocation2 + $0x158] sm:$0xff]
      %v5652 = vld [vmem:[#allocation2 + $0x160] sm:$0x3]
      %v5653 = vld [vmem:[#allocation2 + $0x168] sm:$0xff]
      %v5654 = vld [vmem:[#allocation2 + $0x170] sm:$0xff]
      %v5655 = vld [vmem:[#allocation2 + $0x178] sm:$0x3]
      %v5656 = vld [vmem:[#allocation2 + $0x180] sm:$0xff]
      %v5657 = vld [vmem:[#allocation2 + $0x188] sm:$0xff]
      %v5658 = vld [vmem:[#allocation2 + $0x190] sm:$0x3]
      %v5659 = vld [vmem:[#allocation2 + $0x198] sm:$0xff]
      %v5660 = vld [vmem:[#allocation2 + $0x1a0] sm:$0xff]
      %v5661 = vld [vmem:[#allocation2 + $0x1a8] sm:$0x3]
      %v5710 = vrot.slane %v5608, 1
      %v5711 = vrot.slane %v5609, 1
      %v5712 = vsel %vm437, %v5710, %v5711
      %v5713 = vrot.slane %v5610, 1
      %v5714 = vsel %vm437, %v5711, %v5713
      %v5715 = vrot.slane %v5611, 1
      %v5716 = vrot.slane %v5612, 1
      %v5717 = vsel %vm437, %v5715, %v5716
      %v5718 = vrot.slane %v5613, 1
      %v5719 = vsel %vm437, %v5716, %v5718
      %v5720 = vrot.slane %v5614, 1
      %v5721 = vrot.slane %v5615, 1
      %v5722 = vsel %vm437, %v5720, %v5721
      %v5723 = vrot.slane %v5616, 1
      %v5724 = vsel %vm437, %v5721, %v5723
      %v5725 = vrot.slane %v5617, 1
      %v5726 = vrot.slane %v5618, 1
      %v5727 = vsel %vm437, %v5725, %v5726
      %v5728 = vrot.slane %v5619, 1
      %v5729 = vsel %vm437, %v5726, %v5728
      %v5730 = vrot.slane %v5620, 1
      %v5731 = vrot.slane %v5621, 1
      %v5732 = vsel %vm437, %v5730, %v5731
      %v5733 = vrot.slane %v5622, 1
      %v5734 = vsel %vm437, %v5731, %v5733
      %v5735 = vrot.slane %v5623, 1
      %v5736 = vrot.slane %v5624, 1
      %v5737 = vsel %vm437, %v5735, %v5736
      %v5738 = vrot.slane %v5625, 1
      %v5739 = vsel %vm437, %v5736, %v5738
      %v5740 = vrot.slane %v5626, 1
      %v5741 = vrot.slane %v5627, 1
      %v5742 = vsel %vm437, %v5740, %v5741
      %v5743 = vrot.slane %v5628, 1
      %v5744 = vsel %vm437, %v5741, %v5743
      %v5745 = vrot.slane %v5629, 1
      %v5746 = vrot.slane %v5630, 1
      %v5747 = vsel %vm437, %v5745, %v5746
      %v5748 = vrot.slane %v5631, 1
      %v5749 = vsel %vm437, %v5746, %v5748
      %v5750 = vrot.slane %v5632, 1
      %v5751 = vrot.slane %v5633, 1
      %v5752 = vsel %vm437, %v5750, %v5751
      %v5753 = vrot.slane %v5634, 1
      %v5754 = vsel %vm437, %v5751, %v5753
      %v5755 = vrot.slane %v5635, 1
      %v5756 = vrot.slane %v5636, 1
      %v5757 = vsel %vm437, %v5755, %v5756
      %v5758 = vrot.slane %v5637, 1
      %v5759 = vsel %vm437, %v5756, %v5758
      %v5760 = vrot.slane %v5638, 1
      %v5761 = vrot.slane %v5639, 1
      %v5762 = vsel %vm437, %v5760, %v5761
      %v5763 = vrot.slane %v5640, 1
      %v5764 = vsel %vm437, %v5761, %v5763
      %v5765 = vrot.slane %v5641, 1
      %v5766 = vrot.slane %v5642, 1
      %v5767 = vsel %vm437, %v5765, %v5766
      %v5768 = vrot.slane %v5643, 1
      %v5769 = vsel %vm437, %v5766, %v5768
      %v5770 = vrot.slane %v5644, 1
      %v5771 = vrot.slane %v5645, 1
      %v5772 = vsel %vm437, %v5770, %v5771
      %v5773 = vrot.slane %v5646, 1
      %v5774 = vsel %vm437, %v5771, %v5773
      %v5775 = vrot.slane %v5647, 1
      %v5776 = vrot.slane %v5648, 1
      %v5777 = vsel %vm437, %v5775, %v5776
      %v5778 = vrot.slane %v5649, 1
      %v5779 = vsel %vm437, %v5776, %v5778
      %v5780 = vrot.slane %v5650, 1
      %v5781 = vrot.slane %v5651, 1
      %v5782 = vsel %vm437, %v5780, %v5781
      %v5783 = vrot.slane %v5652, 1
      %v5784 = vsel %vm437, %v5781, %v5783
      %v5785 = vrot.slane %v5653, 1
      %v5786 = vrot.slane %v5654, 1
      %v5787 = vsel %vm437, %v5785, %v5786
      %v5788 = vrot.slane %v5655, 1
      %v5789 = vsel %vm437, %v5786, %v5788
      %v5790 = vrot.slane %v5608, 2
      %v5791 = vrot.slane %v5609, 2
      %v5792 = vsel %vm518, %v5790, %v5791
      %v5793 = vrot.slane %v5610, 2
      %v5794 = vsel %vm518, %v5791, %v5793
      %v5795 = vrot.slane %v5611, 2
      %v5796 = vrot.slane %v5612, 2
      %v5797 = vsel %vm518, %v5795, %v5796
      %v5798 = vrot.slane %v5613, 2
      %v5799 = vsel %vm518, %v5796, %v5798
      %v5800 = vrot.slane %v5614, 2
      %v5801 = vrot.slane %v5615, 2
      %v5802 = vsel %vm518, %v5800, %v5801
      %v5803 = vrot.slane %v5616, 2
      %v5804 = vsel %vm518, %v5801, %v5803
      %v5805 = vrot.slane %v5617, 2
      %v5806 = vrot.slane %v5618, 2
      %v5807 = vsel %vm518, %v5805, %v5806
      %v5808 = vrot.slane %v5619, 2
      %v5809 = vsel %vm518, %v5806, %v5808
      %v5810 = vrot.slane %v5620, 2
      %v5811 = vrot.slane %v5621, 2
      %v5812 = vsel %vm518, %v5810, %v5811
      %v5813 = vrot.slane %v5622, 2
      %v5814 = vsel %vm518, %v5811, %v5813
      %v5815 = vrot.slane %v5623, 2
      %v5816 = vrot.slane %v5624, 2
      %v5817 = vsel %vm518, %v5815, %v5816
      %v5818 = vrot.slane %v5625, 2
      %v5819 = vsel %vm518, %v5816, %v5818
      %v5820 = vrot.slane %v5626, 2
      %v5821 = vrot.slane %v5627, 2
      %v5822 = vsel %vm518, %v5820, %v5821
      %v5823 = vrot.slane %v5628, 2
      %v5824 = vsel %vm518, %v5821, %v5823
      %v5825 = vrot.slane %v5629, 2
      %v5826 = vrot.slane %v5630, 2
      %v5827 = vsel %vm518, %v5825, %v5826
      %v5828 = vrot.slane %v5631, 2
      %v5829 = vsel %vm518, %v5826, %v5828
      %v5830 = vrot.slane %v5632, 2
      %v5831 = vrot.slane %v5633, 2
      %v5832 = vsel %vm518, %v5830, %v5831
      %v5833 = vrot.slane %v5634, 2
      %v5834 = vsel %vm518, %v5831, %v5833
      %v5835 = vrot.slane %v5635, 2
      %v5836 = vrot.slane %v5636, 2
      %v5837 = vsel %vm518, %v5835, %v5836
      %v5838 = vrot.slane %v5637, 2
      %v5839 = vsel %vm518, %v5836, %v5838
      %v5840 = vrot.slane %v5638, 2
      %v5841 = vrot.slane %v5639, 2
      %v5842 = vsel %vm518, %v5840, %v5841
      %v5843 = vrot.slane %v5640, 2
      %v5844 = vsel %vm518, %v5841, %v5843
      %v5845 = vrot.slane %v5641, 2
      %v5846 = vrot.slane %v5642, 2
      %v5847 = vsel %vm518, %v5845, %v5846
      %v5848 = vrot.slane %v5643, 2
      %v5849 = vsel %vm518, %v5846, %v5848
      %v5850 = vrot.slane %v5644, 2
      %v5851 = vrot.slane %v5645, 2
      %v5852 = vsel %vm518, %v5850, %v5851
      %v5853 = vrot.slane %v5646, 2
      %v5854 = vsel %vm518, %v5851, %v5853
      %v5855 = vrot.slane %v5647, 2
      %v5856 = vrot.slane %v5648, 2
      %v5857 = vsel %vm518, %v5855, %v5856
      %v5858 = vrot.slane %v5649, 2
      %v5859 = vsel %vm518, %v5856, %v5858
      %v5860 = vrot.slane %v5650, 2
      %v5861 = vrot.slane %v5651, 2
      %v5862 = vsel %vm518, %v5860, %v5861
      %v5863 = vrot.slane %v5652, 2
      %v5864 = vsel %vm518, %v5861, %v5863
      %v5865 = vrot.slane %v5653, 2
      %v5866 = vrot.slane %v5654, 2
      %v5867 = vsel %vm518, %v5865, %v5866
      %v5868 = vrot.slane %v5655, 2
      %v5869 = vsel %vm518, %v5866, %v5868
      %v5873 = vrot.slane %v5656, 1
      %v5874 = vrot.slane %v5657, 1
      %v5875 = vsel %vm437, %v5873, %v5874
      %v5876 = vrot.slane %v5658, 1
      %v5877 = vsel %vm437, %v5874, %v5876
      %v5910 = vrot.slane %v5656, 2
      %v5911 = vrot.slane %v5657, 2
      %v5912 = vsel %vm518, %v5910, %v5911
      %v5913 = vrot.slane %v5658, 2
      %v5914 = vsel %vm518, %v5911, %v5913
      %v5918 = vrot.slane %v5659, 1
      %v5919 = vrot.slane %v5660, 1
      %v5920 = vsel %vm437, %v5918, %v5919
      %v5921 = vrot.slane %v5661, 1
      %v5922 = vsel %vm437, %v5919, %v5921
      %v5923 = vrot.slane %v5659, 2
      %v5924 = vrot.slane %v5660, 2
      %v5925 = vsel %vm518, %v5923, %v5924
      %v5926 = vrot.slane %v5661, 2
      %v5927 = vsel %vm518, %v5924, %v5926
      %5928 = vrot.lane.b32.xlu0 %v5712, 32
      %v5929 = vpop.permute.xlu0 %5928
      %5930 = vrot.lane.b32.xlu0 %v5714, 32
      %v5931 = vpop.permute.xlu0 %5930
      %5932 = vrot.lane.b32.xlu0 %v5717, 32
      %v5933 = vpop.permute.xlu0 %5932
      %5934 = vrot.lane.b32.xlu0 %v5719, 32
      %v5935 = vpop.permute.xlu0 %5934
      %5936 = vrot.lane.b32.xlu0 %v5722, 32
      %v5937 = vpop.permute.xlu0 %5936
      %5938 = vrot.lane.b32.xlu0 %v5724, 32
      %v5939 = vpop.permute.xlu0 %5938
      %5940 = vrot.lane.b32.xlu0 %v5727, 32
      %v5941 = vpop.permute.xlu0 %5940
      %5942 = vrot.lane.b32.xlu0 %v5729, 32
      %v5943 = vpop.permute.xlu0 %5942
      %5944 = vrot.lane.b32.xlu0 %v5732, 32
      %v5945 = vpop.permute.xlu0 %5944
      %5946 = vrot.lane.b32.xlu0 %v5734, 32
      %v5947 = vpop.permute.xlu0 %5946
      %5948 = vrot.lane.b32.xlu0 %v5737, 32
      %v5949 = vpop.permute.xlu0 %5948
      %5950 = vrot.lane.b32.xlu0 %v5739, 32
      %v5951 = vpop.permute.xlu0 %5950
      %5952 = vrot.lane.b32.xlu0 %v5742, 32
      %v5953 = vpop.permute.xlu0 %5952
      %5954 = vrot.lane.b32.xlu0 %v5744, 32
      %v5955 = vpop.permute.xlu0 %5954
      %5956 = vrot.lane.b32.xlu0 %v5747, 32
      %v5957 = vpop.permute.xlu0 %5956
      %5958 = vrot.lane.b32.xlu0 %v5749, 32
      %v5959 = vpop.permute.xlu0 %5958
      %5960 = vrot.lane.b32.xlu0 %v5752, 32
      %v5961 = vpop.permute.xlu0 %5960
      %5962 = vrot.lane.b32.xlu0 %v5754, 32
      %v5963 = vpop.permute.xlu0 %5962
      %5964 = vrot.lane.b32.xlu0 %v5757, 32
      %v5965 = vpop.permute.xlu0 %5964
      %5966 = vrot.lane.b32.xlu0 %v5759, 32
      %v5967 = vpop.permute.xlu0 %5966
      %5968 = vrot.lane.b32.xlu0 %v5762, 32
      %v5969 = vpop.permute.xlu0 %5968
      %5970 = vrot.lane.b32.xlu0 %v5764, 32
      %v5971 = vpop.permute.xlu0 %5970
      %5972 = vrot.lane.b32.xlu0 %v5767, 32
      %v5973 = vpop.permute.xlu0 %5972
      %5974 = vrot.lane.b32.xlu0 %v5769, 32
      %v5975 = vpop.permute.xlu0 %5974
      %5976 = vrot.lane.b32.xlu0 %v5772, 32
      %v5977 = vpop.permute.xlu0 %5976
      %5978 = vrot.lane.b32.xlu0 %v5774, 32
      %v5979 = vpop.permute.xlu0 %5978
      %5980 = vrot.lane.b32.xlu0 %v5777, 32
      %v5981 = vpop.permute.xlu0 %5980
      %5982 = vrot.lane.b32.xlu0 %v5779, 32
      %v5983 = vpop.permute.xlu0 %5982
      %5984 = vrot.lane.b32.xlu0 %v5782, 32
      %v5985 = vpop.permute.xlu0 %5984
      %5986 = vrot.lane.b32.xlu0 %v5784, 32
      %v5987 = vpop.permute.xlu0 %5986
      %5988 = vrot.lane.b32.xlu0 %v5787, 32
      %v5989 = vpop.permute.xlu0 %5988
      %5990 = vrot.lane.b32.xlu0 %v5789, 32
      %v5991 = vpop.permute.xlu0 %5990
      %6024 = vrot.lane.b32.xlu0 %v5792, 64
      %v6025 = vpop.permute.xlu0 %6024
      %6026 = vrot.lane.b32.xlu0 %v5794, 64
      %v6027 = vpop.permute.xlu0 %6026
      %6028 = vrot.lane.b32.xlu0 %v5797, 64
      %v6029 = vpop.permute.xlu0 %6028
      %6030 = vrot.lane.b32.xlu0 %v5799, 64
      %v6031 = vpop.permute.xlu0 %6030
      %6032 = vrot.lane.b32.xlu0 %v5802, 64
      %v6033 = vpop.permute.xlu0 %6032
      %6034 = vrot.lane.b32.xlu0 %v5804, 64
      %v6035 = vpop.permute.xlu0 %6034
      %6036 = vrot.lane.b32.xlu0 %v5807, 64
      %v6037 = vpop.permute.xlu0 %6036
      %6038 = vrot.lane.b32.xlu0 %v5809, 64
      %v6039 = vpop.permute.xlu0 %6038
      %6040 = vrot.lane.b32.xlu0 %v5812, 64
      %v6041 = vpop.permute.xlu0 %6040
      %6042 = vrot.lane.b32.xlu0 %v5814, 64
      %v6043 = vpop.permute.xlu0 %6042
      %6044 = vrot.lane.b32.xlu0 %v5817, 64
      %v6045 = vpop.permute.xlu0 %6044
      %6046 = vrot.lane.b32.xlu0 %v5819, 64
      %v6047 = vpop.permute.xlu0 %6046
      %6048 = vrot.lane.b32.xlu0 %v5822, 64
      %v6049 = vpop.permute.xlu0 %6048
      %6050 = vrot.lane.b32.xlu0 %v5824, 64
      %v6051 = vpop.permute.xlu0 %6050
      %6052 = vrot.lane.b32.xlu0 %v5827, 64
      %v6053 = vpop.permute.xlu0 %6052
      %6054 = vrot.lane.b32.xlu0 %v5829, 64
      %v6055 = vpop.permute.xlu0 %6054
      %6056 = vrot.lane.b32.xlu0 %v5832, 64
      %v6057 = vpop.permute.xlu0 %6056
      %6058 = vrot.lane.b32.xlu0 %v5834, 64
      %v6059 = vpop.permute.xlu0 %6058
      %6060 = vrot.lane.b32.xlu0 %v5837, 64
      %v6061 = vpop.permute.xlu0 %6060
      %6062 = vrot.lane.b32.xlu0 %v5839, 64
      %v6063 = vpop.permute.xlu0 %6062
      %6064 = vrot.lane.b32.xlu0 %v5842, 64
      %v6065 = vpop.permute.xlu0 %6064
      %6066 = vrot.lane.b32.xlu0 %v5844, 64
      %v6067 = vpop.permute.xlu0 %6066
      %6068 = vrot.lane.b32.xlu0 %v5847, 64
      %v6069 = vpop.permute.xlu0 %6068
      %6070 = vrot.lane.b32.xlu0 %v5849, 64
      %v6071 = vpop.permute.xlu0 %6070
      %6072 = vrot.lane.b32.xlu0 %v5852, 64
      %v6073 = vpop.permute.xlu0 %6072
      %6074 = vrot.lane.b32.xlu0 %v5854, 64
      %v6075 = vpop.permute.xlu0 %6074
      %6076 = vrot.lane.b32.xlu0 %v5857, 64
      %v6077 = vpop.permute.xlu0 %6076
      %6078 = vrot.lane.b32.xlu0 %v5859, 64
      %v6079 = vpop.permute.xlu0 %6078
      %6080 = vrot.lane.b32.xlu0 %v5862, 64
      %v6081 = vpop.permute.xlu0 %6080
      %6082 = vrot.lane.b32.xlu0 %v5864, 64
      %v6083 = vpop.permute.xlu0 %6082
      %6084 = vrot.lane.b32.xlu0 %v5867, 64
      %v6085 = vpop.permute.xlu0 %6084
      %6086 = vrot.lane.b32.xlu0 %v5869, 64
      %v6087 = vpop.permute.xlu0 %6086
      %6120 = vrot.lane.b32.xlu0 %v5611, 96
      %v6121 = vpop.permute.xlu0 %6120
      %6122 = vrot.lane.b32.xlu0 %v5612, 96
      %v6123 = vpop.permute.xlu0 %6122
      %6124 = vrot.lane.b32.xlu0 %v5614, 96
      %v6125 = vpop.permute.xlu0 %6124
      %6126 = vrot.lane.b32.xlu0 %v5615, 96
      %v6127 = vpop.permute.xlu0 %6126
      %6128 = vrot.lane.b32.xlu0 %v5617, 96
      %v6129 = vpop.permute.xlu0 %6128
      %6130 = vrot.lane.b32.xlu0 %v5618, 96
      %v6131 = vpop.permute.xlu0 %6130
      %6132 = vrot.lane.b32.xlu0 %v5620, 96
      %v6133 = vpop.permute.xlu0 %6132
      %6134 = vrot.lane.b32.xlu0 %v5621, 96
      %v6135 = vpop.permute.xlu0 %6134
      %6136 = vrot.lane.b32.xlu0 %v5623, 96
      %v6137 = vpop.permute.xlu0 %6136
      %6138 = vrot.lane.b32.xlu0 %v5624, 96
      %v6139 = vpop.permute.xlu0 %6138
      %6140 = vrot.lane.b32.xlu0 %v5626, 96
      %v6141 = vpop.permute.xlu0 %6140
      %6142 = vrot.lane.b32.xlu0 %v5627, 96
      %v6143 = vpop.permute.xlu0 %6142
      %6144 = vrot.lane.b32.xlu0 %v5629, 96
      %v6145 = vpop.permute.xlu0 %6144
      %6146 = vrot.lane.b32.xlu0 %v5630, 96
      %v6147 = vpop.permute.xlu0 %6146
      %6148 = vrot.lane.b32.xlu0 %v5632, 96
      %v6149 = vpop.permute.xlu0 %6148
      %6150 = vrot.lane.b32.xlu0 %v5633, 96
      %v6151 = vpop.permute.xlu0 %6150
      %6152 = vrot.lane.b32.xlu0 %v5635, 96
      %v6153 = vpop.permute.xlu0 %6152
      %6154 = vrot.lane.b32.xlu0 %v5636, 96
      %v6155 = vpop.permute.xlu0 %6154
      %6156 = vrot.lane.b32.xlu0 %v5638, 96
      %v6157 = vpop.permute.xlu0 %6156
      %6158 = vrot.lane.b32.xlu0 %v5639, 96
      %v6159 = vpop.permute.xlu0 %6158
      %6160 = vrot.lane.b32.xlu0 %v5641, 96
      %v6161 = vpop.permute.xlu0 %6160
      %6162 = vrot.lane.b32.xlu0 %v5642, 96
      %v6163 = vpop.permute.xlu0 %6162
      %6164 = vrot.lane.b32.xlu0 %v5644, 96
      %v6165 = vpop.permute.xlu0 %6164
      %6166 = vrot.lane.b32.xlu0 %v5645, 96
      %v6167 = vpop.permute.xlu0 %6166
      %6168 = vrot.lane.b32.xlu0 %v5647, 96
      %v6169 = vpop.permute.xlu0 %6168
      %6170 = vrot.lane.b32.xlu0 %v5648, 96
      %v6171 = vpop.permute.xlu0 %6170
      %6172 = vrot.lane.b32.xlu0 %v5650, 96
      %v6173 = vpop.permute.xlu0 %6172
      %6174 = vrot.lane.b32.xlu0 %v5651, 96
      %v6175 = vpop.permute.xlu0 %6174
      %6176 = vrot.lane.b32.xlu0 %v5653, 96
      %v6177 = vpop.permute.xlu0 %6176
      %6178 = vrot.lane.b32.xlu0 %v5654, 96
      %v6179 = vpop.permute.xlu0 %6178
      %6180 = vrot.lane.b32.xlu0 %v5656, 96
      %v6181 = vpop.permute.xlu0 %6180
      %6182 = vrot.lane.b32.xlu0 %v5657, 96
      %v6183 = vpop.permute.xlu0 %6182
      %6216 = vrot.lane.b32.xlu0 %v5797, 32
      %v6217 = vpop.permute.xlu0 %6216
      %6218 = vrot.lane.b32.xlu0 %v5799, 32
      %v6219 = vpop.permute.xlu0 %6218
      %6220 = vrot.lane.b32.xlu0 %v5802, 32
      %v6221 = vpop.permute.xlu0 %6220
      %6222 = vrot.lane.b32.xlu0 %v5804, 32
      %v6223 = vpop.permute.xlu0 %6222
      %6224 = vrot.lane.b32.xlu0 %v5807, 32
      %v6225 = vpop.permute.xlu0 %6224
      %6226 = vrot.lane.b32.xlu0 %v5809, 32
      %v6227 = vpop.permute.xlu0 %6226
      %6228 = vrot.lane.b32.xlu0 %v5812, 32
      %v6229 = vpop.permute.xlu0 %6228
      %6230 = vrot.lane.b32.xlu0 %v5814, 32
      %v6231 = vpop.permute.xlu0 %6230
      %6232 = vrot.lane.b32.xlu0 %v5817, 32
      %v6233 = vpop.permute.xlu0 %6232
      %6234 = vrot.lane.b32.xlu0 %v5819, 32
      %v6235 = vpop.permute.xlu0 %6234
      %6236 = vrot.lane.b32.xlu0 %v5822, 32
      %v6237 = vpop.permute.xlu0 %6236
      %6238 = vrot.lane.b32.xlu0 %v5824, 32
      %v6239 = vpop.permute.xlu0 %6238
      %6240 = vrot.lane.b32.xlu0 %v5827, 32
      %v6241 = vpop.permute.xlu0 %6240
      %6242 = vrot.lane.b32.xlu0 %v5829, 32
      %v6243 = vpop.permute.xlu0 %6242
      %6244 = vrot.lane.b32.xlu0 %v5832, 32
      %v6245 = vpop.permute.xlu0 %6244
      %6246 = vrot.lane.b32.xlu0 %v5834, 32
      %v6247 = vpop.permute.xlu0 %6246
      %6248 = vrot.lane.b32.xlu0 %v5837, 32
      %v6249 = vpop.permute.xlu0 %6248
      %6250 = vrot.lane.b32.xlu0 %v5839, 32
      %v6251 = vpop.permute.xlu0 %6250
      %6252 = vrot.lane.b32.xlu0 %v5842, 32
      %v6253 = vpop.permute.xlu0 %6252
      %6254 = vrot.lane.b32.xlu0 %v5844, 32
      %v6255 = vpop.permute.xlu0 %6254
      %6256 = vrot.lane.b32.xlu0 %v5847, 32
      %v6257 = vpop.permute.xlu0 %6256
      %6258 = vrot.lane.b32.xlu0 %v5849, 32
      %v6259 = vpop.permute.xlu0 %6258
      %6260 = vrot.lane.b32.xlu0 %v5852, 32
      %v6261 = vpop.permute.xlu0 %6260
      %6262 = vrot.lane.b32.xlu0 %v5854, 32
      %v6263 = vpop.permute.xlu0 %6262
      %6264 = vrot.lane.b32.xlu0 %v5857, 32
      %v6265 = vpop.permute.xlu0 %6264
      %6266 = vrot.lane.b32.xlu0 %v5859, 32
      %v6267 = vpop.permute.xlu0 %6266
      %6268 = vrot.lane.b32.xlu0 %v5862, 32
      %v6269 = vpop.permute.xlu0 %6268
      %6270 = vrot.lane.b32.xlu0 %v5864, 32
      %v6271 = vpop.permute.xlu0 %6270
      %6272 = vrot.lane.b32.xlu0 %v5867, 32
      %v6273 = vpop.permute.xlu0 %6272
      %6274 = vrot.lane.b32.xlu0 %v5869, 32
      %v6275 = vpop.permute.xlu0 %6274
      %6276 = vrot.lane.b32.xlu0 %v5912, 32
      %v6277 = vpop.permute.xlu0 %6276
      %6278 = vrot.lane.b32.xlu0 %v5914, 32
      %v6279 = vpop.permute.xlu0 %6278
      %6312 = vrot.lane.b32.xlu0 %v5614, 64
      %v6313 = vpop.permute.xlu0 %6312
      %6314 = vrot.lane.b32.xlu0 %v5615, 64
      %v6315 = vpop.permute.xlu0 %6314
      %6316 = vrot.lane.b32.xlu0 %v5617, 64
      %v6317 = vpop.permute.xlu0 %6316
      %6318 = vrot.lane.b32.xlu0 %v5618, 64
      %v6319 = vpop.permute.xlu0 %6318
      %6320 = vrot.lane.b32.xlu0 %v5620, 64
      %v6321 = vpop.permute.xlu0 %6320
      %6322 = vrot.lane.b32.xlu0 %v5621, 64
      %v6323 = vpop.permute.xlu0 %6322
      %6324 = vrot.lane.b32.xlu0 %v5623, 64
      %v6325 = vpop.permute.xlu0 %6324
      %6326 = vrot.lane.b32.xlu0 %v5624, 64
      %v6327 = vpop.permute.xlu0 %6326
      %6328 = vrot.lane.b32.xlu0 %v5626, 64
      %v6329 = vpop.permute.xlu0 %6328
      %6330 = vrot.lane.b32.xlu0 %v5627, 64
      %v6331 = vpop.permute.xlu0 %6330
      %6332 = vrot.lane.b32.xlu0 %v5629, 64
      %v6333 = vpop.permute.xlu0 %6332
      %6334 = vrot.lane.b32.xlu0 %v5630, 64
      %v6335 = vpop.permute.xlu0 %6334
      %6336 = vrot.lane.b32.xlu0 %v5632, 64
      %v6337 = vpop.permute.xlu0 %6336
      %6338 = vrot.lane.b32.xlu0 %v5633, 64
      %v6339 = vpop.permute.xlu0 %6338
      %6340 = vrot.lane.b32.xlu0 %v5635, 64
      %v6341 = vpop.permute.xlu0 %6340
      %6342 = vrot.lane.b32.xlu0 %v5636, 64
      %v6343 = vpop.permute.xlu0 %6342
      %6344 = vrot.lane.b32.xlu0 %v5638, 64
      %v6345 = vpop.permute.xlu0 %6344
      %6346 = vrot.lane.b32.xlu0 %v5639, 64
      %v6347 = vpop.permute.xlu0 %6346
      %6348 = vrot.lane.b32.xlu0 %v5641, 64
      %v6349 = vpop.permute.xlu0 %6348
      %6350 = vrot.lane.b32.xlu0 %v5642, 64
      %v6351 = vpop.permute.xlu0 %6350
      %6352 = vrot.lane.b32.xlu0 %v5644, 64
      %v6353 = vpop.permute.xlu0 %6352
      %6354 = vrot.lane.b32.xlu0 %v5645, 64
      %v6355 = vpop.permute.xlu0 %6354
      %6356 = vrot.lane.b32.xlu0 %v5647, 64
      %v6357 = vpop.permute.xlu0 %6356
      %6358 = vrot.lane.b32.xlu0 %v5648, 64
      %v6359 = vpop.permute.xlu0 %6358
      %6360 = vrot.lane.b32.xlu0 %v5650, 64
      %v6361 = vpop.permute.xlu0 %6360
      %6362 = vrot.lane.b32.xlu0 %v5651, 64
      %v6363 = vpop.permute.xlu0 %6362
      %6364 = vrot.lane.b32.xlu0 %v5653, 64
      %v6365 = vpop.permute.xlu0 %6364
      %6366 = vrot.lane.b32.xlu0 %v5654, 64
      %v6367 = vpop.permute.xlu0 %6366
      %6368 = vrot.lane.b32.xlu0 %v5656, 64
      %v6369 = vpop.permute.xlu0 %6368
      %6370 = vrot.lane.b32.xlu0 %v5657, 64
      %v6371 = vpop.permute.xlu0 %6370
      %6372 = vrot.lane.b32.xlu0 %v5659, 64
      %v6373 = vpop.permute.xlu0 %6372
      %6374 = vrot.lane.b32.xlu0 %v5660, 64
      %v6375 = vpop.permute.xlu0 %6374
      %6408 = vrot.lane.b32.xlu0 %v5722, 96
      %v6409 = vpop.permute.xlu0 %6408
      %6410 = vrot.lane.b32.xlu0 %v5724, 96
      %v6411 = vpop.permute.xlu0 %6410
      %6412 = vrot.lane.b32.xlu0 %v5727, 96
      %v6413 = vpop.permute.xlu0 %6412
      %6414 = vrot.lane.b32.xlu0 %v5729, 96
      %v6415 = vpop.permute.xlu0 %6414
      %6416 = vrot.lane.b32.xlu0 %v5732, 96
      %v6417 = vpop.permute.xlu0 %6416
      %6418 = vrot.lane.b32.xlu0 %v5734, 96
      %v6419 = vpop.permute.xlu0 %6418
      %6420 = vrot.lane.b32.xlu0 %v5737, 96
      %v6421 = vpop.permute.xlu0 %6420
      %6422 = vrot.lane.b32.xlu0 %v5739, 96
      %v6423 = vpop.permute.xlu0 %6422
      %6424 = vrot.lane.b32.xlu0 %v5742, 96
      %v6425 = vpop.permute.xlu0 %6424
      %6426 = vrot.lane.b32.xlu0 %v5744, 96
      %v6427 = vpop.permute.xlu0 %6426
      %6428 = vrot.lane.b32.xlu0 %v5747, 96
      %v6429 = vpop.permute.xlu0 %6428
      %6430 = vrot.lane.b32.xlu0 %v5749, 96
      %v6431 = vpop.permute.xlu0 %6430
      %6432 = vrot.lane.b32.xlu0 %v5752, 96
      %v6433 = vpop.permute.xlu0 %6432
      %6434 = vrot.lane.b32.xlu0 %v5754, 96
      %v6435 = vpop.permute.xlu0 %6434
      %6436 = vrot.lane.b32.xlu0 %v5757, 96
      %v6437 = vpop.permute.xlu0 %6436
      %6438 = vrot.lane.b32.xlu0 %v5759, 96
      %v6439 = vpop.permute.xlu0 %6438
      %6440 = vrot.lane.b32.xlu0 %v5762, 96
      %v6441 = vpop.permute.xlu0 %6440
      %6442 = vrot.lane.b32.xlu0 %v5764, 96
      %v6443 = vpop.permute.xlu0 %6442
      %6444 = vrot.lane.b32.xlu0 %v5767, 96
      %v6445 = vpop.permute.xlu0 %6444
      %6446 = vrot.lane.b32.xlu0 %v5769, 96
      %v6447 = vpop.permute.xlu0 %6446
      %6448 = vrot.lane.b32.xlu0 %v5772, 96
      %v6449 = vpop.permute.xlu0 %6448
      %6450 = vrot.lane.b32.xlu0 %v5774, 96
      %v6451 = vpop.permute.xlu0 %6450
      %6452 = vrot.lane.b32.xlu0 %v5777, 96
      %v6453 = vpop.permute.xlu0 %6452
      %6454 = vrot.lane.b32.xlu0 %v5779, 96
      %v6455 = vpop.permute.xlu0 %6454
      %6456 = vrot.lane.b32.xlu0 %v5782, 96
      %v6457 = vpop.permute.xlu0 %6456
      %6458 = vrot.lane.b32.xlu0 %v5784, 96
      %v6459 = vpop.permute.xlu0 %6458
      %6460 = vrot.lane.b32.xlu0 %v5787, 96
      %v6461 = vpop.permute.xlu0 %6460
      %6462 = vrot.lane.b32.xlu0 %v5789, 96
      %v6463 = vpop.permute.xlu0 %6462
      %6464 = vrot.lane.b32.xlu0 %v5875, 96
      %v6465 = vpop.permute.xlu0 %6464
      %6466 = vrot.lane.b32.xlu0 %v5877, 96
      %v6467 = vpop.permute.xlu0 %6466
      %6468 = vrot.lane.b32.xlu0 %v5920, 96
      %v6469 = vpop.permute.xlu0 %6468
      %6470 = vrot.lane.b32.xlu0 %v5922, 96
      %v6471 = vpop.permute.xlu0 %6470
      %v6504 = vsel %vm279, %v5608, %v5929
      %v6505 = vsel %vm279, %v5609, %v5931
      %v6506 = vsel %vm279, %v5611, %v5933
      %v6507 = vsel %vm279, %v5612, %v5935
      %v6508 = vsel %vm279, %v5614, %v5937
      %v6509 = vsel %vm279, %v5615, %v5939
      %v6510 = vsel %vm279, %v5617, %v5941
      %v6511 = vsel %vm279, %v5618, %v5943
      %v6512 = vsel %vm279, %v5620, %v5945
      %v6513 = vsel %vm279, %v5621, %v5947
      %v6514 = vsel %vm279, %v5623, %v5949
      %v6515 = vsel %vm279, %v5624, %v5951
      %v6516 = vsel %vm279, %v5626, %v5953
      %v6517 = vsel %vm279, %v5627, %v5955
      %v6518 = vsel %vm279, %v5629, %v5957
      %v6519 = vsel %vm279, %v5630, %v5959
      %v6520 = vsel %vm279, %v5632, %v5961
      %v6521 = vsel %vm279, %v5633, %v5963
      %v6522 = vsel %vm279, %v5635, %v5965
      %v6523 = vsel %vm279, %v5636, %v5967
      %v6524 = vsel %vm279, %v5638, %v5969
      %v6525 = vsel %vm279, %v5639, %v5971
      %v6526 = vsel %vm279, %v5641, %v5973
      %v6527 = vsel %vm279, %v5642, %v5975
      %v6528 = vsel %vm279, %v5644, %v5977
      %v6529 = vsel %vm279, %v5645, %v5979
      %v6530 = vsel %vm279, %v5647, %v5981
      %v6531 = vsel %vm279, %v5648, %v5983
      %v6532 = vsel %vm279, %v5650, %v5985
      %v6533 = vsel %vm279, %v5651, %v5987
      %v6534 = vsel %vm279, %v5653, %v5989
      %v6535 = vsel %vm279, %v5654, %v5991
      %v6536 = vsel %vm3050, %v6504, %v6025
      %v6537 = vsel %vm3050, %v6505, %v6027
      %v6538 = vsel %vm3050, %v6506, %v6029
      %v6539 = vsel %vm3050, %v6507, %v6031
      %v6540 = vsel %vm3050, %v6508, %v6033
      %v6541 = vsel %vm3050, %v6509, %v6035
      %v6542 = vsel %vm3050, %v6510, %v6037
      %v6543 = vsel %vm3050, %v6511, %v6039
      %v6544 = vsel %vm3050, %v6512, %v6041
      %v6545 = vsel %vm3050, %v6513, %v6043
      %v6546 = vsel %vm3050, %v6514, %v6045
      %v6547 = vsel %vm3050, %v6515, %v6047
      %v6548 = vsel %vm3050, %v6516, %v6049
      %v6549 = vsel %vm3050, %v6517, %v6051
      %v6550 = vsel %vm3050, %v6518, %v6053
      %v6551 = vsel %vm3050, %v6519, %v6055
      %v6552 = vsel %vm3050, %v6520, %v6057
      %v6553 = vsel %vm3050, %v6521, %v6059
      %v6554 = vsel %vm3050, %v6522, %v6061
      %v6555 = vsel %vm3050, %v6523, %v6063
      %v6556 = vsel %vm3050, %v6524, %v6065
      %v6557 = vsel %vm3050, %v6525, %v6067
      %v6558 = vsel %vm3050, %v6526, %v6069
      %v6559 = vsel %vm3050, %v6527, %v6071
      %v6560 = vsel %vm3050, %v6528, %v6073
      %v6561 = vsel %vm3050, %v6529, %v6075
      %v6562 = vsel %vm3050, %v6530, %v6077
      %v6563 = vsel %vm3050, %v6531, %v6079
      %v6564 = vsel %vm3050, %v6532, %v6081
      %v6565 = vsel %vm3050, %v6533, %v6083
      %v6566 = vsel %vm3050, %v6534, %v6085
      %v6567 = vsel %vm3050, %v6535, %v6087
      %v6568 = vsel %vm3083, %v6536, %v6121
      %v6569 = vsel %vm3083, %v6537, %v6123
      %v6570 = vsel %vm3083, %v6538, %v6125
      %v6571 = vsel %vm3083, %v6539, %v6127
      %v6572 = vsel %vm3083, %v6540, %v6129
      %v6573 = vsel %vm3083, %v6541, %v6131
      %v6574 = vsel %vm3083, %v6542, %v6133
      %v6575 = vsel %vm3083, %v6543, %v6135
      %v6576 = vsel %vm3083, %v6544, %v6137
      %v6577 = vsel %vm3083, %v6545, %v6139
      %v6578 = vsel %vm3083, %v6546, %v6141
      %v6579 = vsel %vm3083, %v6547, %v6143
      %v6580 = vsel %vm3083, %v6548, %v6145
      %v6581 = vsel %vm3083, %v6549, %v6147
      %v6582 = vsel %vm3083, %v6550, %v6149
      %v6583 = vsel %vm3083, %v6551, %v6151
      %v6584 = vsel %vm3083, %v6552, %v6153
      %v6585 = vsel %vm3083, %v6553, %v6155
      %v6586 = vsel %vm3083, %v6554, %v6157
      %v6587 = vsel %vm3083, %v6555, %v6159
      %v6588 = vsel %vm3083, %v6556, %v6161
      %v6589 = vsel %vm3083, %v6557, %v6163
      %v6590 = vsel %vm3083, %v6558, %v6165
      %v6591 = vsel %vm3083, %v6559, %v6167
      %v6592 = vsel %vm3083, %v6560, %v6169
      %v6593 = vsel %vm3083, %v6561, %v6171
      %v6594 = vsel %vm3083, %v6562, %v6173
      %v6595 = vsel %vm3083, %v6563, %v6175
      %v6596 = vsel %vm3083, %v6564, %v6177
      %v6597 = vsel %vm3083, %v6565, %v6179
      %v6598 = vsel %vm3083, %v6566, %v6181
      %v6599 = vsel %vm3083, %v6567, %v6183
      %v6600 = vsel %vm279, %v5717, %v6217
      %v6601 = vsel %vm279, %v5719, %v6219
      %v6602 = vsel %vm279, %v5722, %v6221
      %v6603 = vsel %vm279, %v5724, %v6223
      %v6604 = vsel %vm279, %v5727, %v6225
      %v6605 = vsel %vm279, %v5729, %v6227
      %v6606 = vsel %vm279, %v5732, %v6229
      %v6607 = vsel %vm279, %v5734, %v6231
      %v6608 = vsel %vm279, %v5737, %v6233
      %v6609 = vsel %vm279, %v5739, %v6235
      %v6610 = vsel %vm279, %v5742, %v6237
      %v6611 = vsel %vm279, %v5744, %v6239
      %v6612 = vsel %vm279, %v5747, %v6241
      %v6613 = vsel %vm279, %v5749, %v6243
      %v6614 = vsel %vm279, %v5752, %v6245
      %v6615 = vsel %vm279, %v5754, %v6247
      %v6616 = vsel %vm279, %v5757, %v6249
      %v6617 = vsel %vm279, %v5759, %v6251
      %v6618 = vsel %vm279, %v5762, %v6253
      %v6619 = vsel %vm279, %v5764, %v6255
      %v6620 = vsel %vm279, %v5767, %v6257
      %v6621 = vsel %vm279, %v5769, %v6259
      %v6622 = vsel %vm279, %v5772, %v6261
      %v6623 = vsel %vm279, %v5774, %v6263
      %v6624 = vsel %vm279, %v5777, %v6265
      %v6625 = vsel %vm279, %v5779, %v6267
      %v6626 = vsel %vm279, %v5782, %v6269
      %v6627 = vsel %vm279, %v5784, %v6271
      %v6628 = vsel %vm279, %v5787, %v6273
      %v6629 = vsel %vm279, %v5789, %v6275
      %v6630 = vsel %vm279, %v5875, %v6277
      %v6631 = vsel %vm279, %v5877, %v6279
      %v6632 = vsel %vm3050, %v6600, %v6313
      %v6633 = vsel %vm3050, %v6601, %v6315
      %v6634 = vsel %vm3050, %v6602, %v6317
      %v6635 = vsel %vm3050, %v6603, %v6319
      %v6636 = vsel %vm3050, %v6604, %v6321
      %v6637 = vsel %vm3050, %v6605, %v6323
      %v6638 = vsel %vm3050, %v6606, %v6325
      %v6639 = vsel %vm3050, %v6607, %v6327
      %v6640 = vsel %vm3050, %v6608, %v6329
      %v6641 = vsel %vm3050, %v6609, %v6331
      %v6642 = vsel %vm3050, %v6610, %v6333
      %v6643 = vsel %vm3050, %v6611, %v6335
      %v6644 = vsel %vm3050, %v6612, %v6337
      %v6645 = vsel %vm3050, %v6613, %v6339
      %v6646 = vsel %vm3050, %v6614, %v6341
      %v6647 = vsel %vm3050, %v6615, %v6343
      %v6648 = vsel %vm3050, %v6616, %v6345
      %v6649 = vsel %vm3050, %v6617, %v6347
      %v6650 = vsel %vm3050, %v6618, %v6349
      %v6651 = vsel %vm3050, %v6619, %v6351
      %v6652 = vsel %vm3050, %v6620, %v6353
      %v6653 = vsel %vm3050, %v6621, %v6355
      %v6654 = vsel %vm3050, %v6622, %v6357
      %v6655 = vsel %vm3050, %v6623, %v6359
      %v6656 = vsel %vm3050, %v6624, %v6361
      %v6657 = vsel %vm3050, %v6625, %v6363
      %v6658 = vsel %vm3050, %v6626, %v6365
      %v6659 = vsel %vm3050, %v6627, %v6367
      %v6660 = vsel %vm3050, %v6628, %v6369
      %v6661 = vsel %vm3050, %v6629, %v6371
      %v6662 = vsel %vm3050, %v6630, %v6373
      %v6663 = vsel %vm3050, %v6631, %v6375
      %v6664 = vsel %vm3083, %v6632, %v6409
      %v6665 = vsel %vm3083, %v6633, %v6411
      %v6666 = vsel %vm3083, %v6634, %v6413
      %v6667 = vsel %vm3083, %v6635, %v6415
      %v6668 = vsel %vm3083, %v6636, %v6417
      %v6669 = vsel %vm3083, %v6637, %v6419
      %v6670 = vsel %vm3083, %v6638, %v6421
      %v6671 = vsel %vm3083, %v6639, %v6423
      %v6672 = vsel %vm3083, %v6640, %v6425
      %v6673 = vsel %vm3083, %v6641, %v6427
      %v6674 = vsel %vm3083, %v6642, %v6429
      %v6675 = vsel %vm3083, %v6643, %v6431
      %v6676 = vsel %vm3083, %v6644, %v6433
      %v6677 = vsel %vm3083, %v6645, %v6435
      %v6678 = vsel %vm3083, %v6646, %v6437
      %v6679 = vsel %vm3083, %v6647, %v6439
      %v6680 = vsel %vm3083, %v6648, %v6441
      %v6681 = vsel %vm3083, %v6649, %v6443
      %v6682 = vsel %vm3083, %v6650, %v6445
      %v6683 = vsel %vm3083, %v6651, %v6447
      %v6684 = vsel %vm3083, %v6652, %v6449
      %v6685 = vsel %vm3083, %v6653, %v6451
      %v6686 = vsel %vm3083, %v6654, %v6453
      %v6687 = vsel %vm3083, %v6655, %v6455
      %v6688 = vsel %vm3083, %v6656, %v6457
      %v6689 = vsel %vm3083, %v6657, %v6459
      %v6690 = vsel %vm3083, %v6658, %v6461
      %v6691 = vsel %vm3083, %v6659, %v6463
      %v6692 = vsel %vm3083, %v6660, %v6465
      %v6693 = vsel %vm3083, %v6661, %v6467
      %v6694 = vsel %vm3083, %v6662, %v6469
      %v6695 = vsel %vm3083, %v6663, %v6471
      %s6696 = scalar_lea.vmem %s3, 576
      %v6697 = vld [vmem:[%s6696] sm:$0xff]
      %v6698 = vld [vmem:[%s6696 + $0x8] sm:$0xff]
      %v6699 = vld [vmem:[%s6696 + $0x10] sm:$0xff]
      %v6700 = vld [vmem:[%s6696 + $0x18] sm:$0xff]
      %v6701 = vld [vmem:[%s6696 + $0x20] sm:$0xff]
      %v6702 = vld [vmem:[%s6696 + $0x28] sm:$0xff]
      %v6703 = vld [vmem:[%s6696 + $0x30] sm:$0xff]
      %v6704 = vld [vmem:[%s6696 + $0x38] sm:$0xff]
      %v6705 = vld [vmem:[%s6696 + $0x40] sm:$0xff]
      %v6706 = vld [vmem:[%s6696 + $0x48] sm:$0xff]
      %v6707 = vld [vmem:[%s6696 + $0x50] sm:$0xff]
      %v6708 = vld [vmem:[%s6696 + $0x58] sm:$0xff]
      %v6709 = vld [vmem:[%s6696 + $0x60] sm:$0xff]
      %v6710 = vld [vmem:[%s6696 + $0x68] sm:$0xff]
      %v6711 = vld [vmem:[%s6696 + $0x70] sm:$0xff]
      %v6712 = vld [vmem:[%s6696 + $0x78] sm:$0xff]
      %v6713 = vld [vmem:[%s6696 + $0x80] sm:$0xff]
      %v6714 = vld [vmem:[%s6696 + $0x88] sm:$0xff]
      %v6715 = vld [vmem:[%s6696 + $0x90] sm:$0xff]
      %v6716 = vld [vmem:[%s6696 + $0x98] sm:$0xff]
      %v6717 = vld [vmem:[%s6696 + $0xa0] sm:$0xff]
      %v6718 = vld [vmem:[%s6696 + $0xa8] sm:$0xff]
      %v6719 = vld [vmem:[%s6696 + $0xb0] sm:$0xff]
      %v6720 = vld [vmem:[%s6696 + $0xb8] sm:$0xff]
      %v6721 = vld [vmem:[%s6696 + $0xc0] sm:$0xff]
      %v6722 = vld [vmem:[%s6696 + $0xc8] sm:$0xff]
      %v6723 = vld [vmem:[%s6696 + $0xd0] sm:$0xff]
      %v6724 = vld [vmem:[%s6696 + $0xd8] sm:$0xff]
      %v6725 = vld [vmem:[%s6696 + $0xe0] sm:$0xff]
      %v6726 = vld [vmem:[%s6696 + $0xe8] sm:$0xff]
      %v6727 = vld [vmem:[%s6696 + $0xf0] sm:$0xff]
      %v6728 = vld [vmem:[%s6696 + $0xf8] sm:$0xff]
      %v6729 = vld [vmem:[%s6696 + $0x100] sm:$0xff]
      %v6730 = vld [vmem:[%s6696 + $0x108] sm:$0xff]
      %v6731 = vld [vmem:[%s6696 + $0x110] sm:$0xff]
      %v6732 = vld [vmem:[%s6696 + $0x118] sm:$0xff]
      %s6733 = scalar_lea.vmem %s4, 2
      %v6734 = vld [vmem:[%s6733] sm:$0x1]
      %v6736 = vlaneseq
      %v6737 = vshrl.u32 %v6736, 7
      %v6738 = vsub.s32 0, %v6737
      %v6739 = vrot.slane %v6734, %v6738
      %v6741 = vsel %vm279, %v5802, 0
      %v6743 = vsel %vm279, %v5804, 0
      %v6745 = vsel %vm279, %v5807, 0
      %v6747 = vsel %vm279, %v5809, 0
      %v6749 = vsel %vm279, %v5812, 0
      %v6751 = vsel %vm279, %v5814, 0
      %v6753 = vsel %vm279, %v5817, 0
      %v6755 = vsel %vm279, %v5819, 0
      %v6757 = vsel %vm279, %v5822, 0
      %v6759 = vsel %vm279, %v5824, 0
      %v6761 = vsel %vm279, %v5827, 0
      %v6763 = vsel %vm279, %v5829, 0
      %v6765 = vsel %vm279, %v5832, 0
      %v6767 = vsel %vm279, %v5834, 0
      %v6769 = vsel %vm279, %v5837, 0
      %v6771 = vsel %vm279, %v5839, 0
      %v6773 = vsel %vm279, %v5842, 0
      %v6775 = vsel %vm279, %v5844, 0
      %v6777 = vsel %vm279, %v5847, 0
      %v6779 = vsel %vm279, %v5849, 0
      %v6781 = vsel %vm279, %v5852, 0
      %v6783 = vsel %vm279, %v5854, 0
      %v6785 = vsel %vm279, %v5857, 0
      %v6787 = vsel %vm279, %v5859, 0
      %v6789 = vsel %vm279, %v5862, 0
      %v6791 = vsel %vm279, %v5864, 0
      %v6793 = vsel %vm279, %v5867, 0
      %v6795 = vsel %vm279, %v5869, 0
      %v6797 = vsel %vm279, %v5912, 0
      %v6799 = vsel %vm279, %v5914, 0
      %v6801 = vsel %vm279, %v5925, 0
      %v6803 = vsel %vm279, %v5927, 0
      %6805 = vmatprep.subr.mxu0 0.0
      %6806 = vmatpush1.msra.mxu0 %v6712
      %6807 = vmatprep.subr.mxu0 0.0
      %6808 = vmatpush1.msra.mxu0 %v6711
      %6809 = vmatprep.subr.mxu0 0.0
      %6810 = vmatpush1.msra.mxu0 %v6710
      %6811 = vmatprep.subr.mxu0 0.0
      %6812 = vmatpush1.msra.mxu0 %v6709
      %6813 = vmatprep.subr.mxu0 0.0
      %6814 = vmatpush1.msra.mxu0 %v6708
      %6815 = vmatprep.subr.mxu0 0.0
      %6816 = vmatpush1.msra.mxu0 %v6707
      %6817 = vmatprep.subr.mxu0 0.0
      %6818 = vmatpush1.msra.mxu0 %v6706
      %6819 = vmatprep.subr.mxu0 0.0
      %6820 = vmatpush1.msra.mxu0 %v6705
      %6821 = vmatprep.subr.mxu0 0.0
      %6822 = vmatpush1.msra.mxu0 %v6704
      %6823 = vmatprep.subr.mxu0 0.0
      %6824 = vmatpush1.msra.mxu0 %v6703
      %6825 = vmatprep.subr.mxu0 0.0
      %6826 = vmatpush1.msra.mxu0 %v6702
      %6827 = vmatprep.subr.mxu0 0.0
      %6828 = vmatpush1.msra.mxu0 %v6701
      %6829 = vmatprep.subr.mxu0 0.0
      %6830 = vmatpush1.msra.mxu0 %v6700
      %6831 = vmatprep.subr.mxu0 0.0
      %6832 = vmatpush1.msra.mxu0 %v6699
      %6833 = vmatprep.subr.mxu0 0.0
      %6834 = vmatpush1.msra.mxu0 %v6698
      %6835 = vmatprep.subr.mxu0 0.0
      %6836 = vmatpush1.msra.mxu0 %v6697
      %6837 = vmatprep.subr.mxu0 0.0
      %6838 = vmatpush2.msra.mxu0 %v6728
      %6839 = vmatprep.subr.mxu0 0.0
      %6840 = vmatpush2.msra.mxu0 %v6727
      %6841 = vmatprep.subr.mxu0 0.0
      %6842 = vmatpush2.msra.mxu0 %v6726
      %6843 = vmatprep.subr.mxu0 0.0
      %6844 = vmatpush2.msra.mxu0 %v6725
      %6845 = vmatprep.subr.mxu0 0.0
      %6846 = vmatpush2.msra.mxu0 %v6724
      %6847 = vmatprep.subr.mxu0 0.0
      %6848 = vmatpush2.msra.mxu0 %v6723
      %6849 = vmatprep.subr.mxu0 0.0
      %6850 = vmatpush2.msra.mxu0 %v6722
      %6851 = vmatprep.subr.mxu0 0.0
      %6852 = vmatpush2.msra.mxu0 %v6721
      %6853 = vmatprep.subr.mxu0 0.0
      %6854 = vmatpush2.msra.mxu0 %v6720
      %6855 = vmatprep.subr.mxu0 0.0
      %6856 = vmatpush2.msra.mxu0 %v6719
      %6857 = vmatprep.subr.mxu0 0.0
      %6858 = vmatpush2.msra.mxu0 %v6718
      %6859 = vmatprep.subr.mxu0 0.0
      %6860 = vmatpush2.msra.mxu0 %v6717
      %6861 = vmatprep.subr.mxu0 0.0
      %6862 = vmatpush2.msra.mxu0 %v6716
      %6863 = vmatprep.subr.mxu0 0.0
      %6864 = vmatpush2.msra.mxu0 %v6715
      %6865 = vmatprep.subr.mxu0 0.0
      %6866 = vmatpush2.msra.mxu0 %v6714
      %6867 = vmatprep.subr.mxu0 0.0
      %6868 = vmatpush2.msra.mxu0 %v6713
      %6869 = vmatprep.mubr.f32.mxu0 %v6664
      %6870 = vmatmul.mubr.f32.gmra.mxu0 %v6568
      %v6871 = vpop.f32.mrf.mxu0
      %v6872 = vadd.f32 %v6739, %v6871
      %v6873 = vpop.f32.mrf.mxu0
      %6874 = vmatprep.mubr.f32.mxu0 %v6665
      %6875 = vmatmul.mubr.f32.gmra.mxu0 %v6569
      %v6876 = vpop.f32.mrf.mxu0
      %v6877 = vadd.f32 %v6739, %v6876
      %v6878 = vpop.f32.mrf.mxu0
      %6879 = vmatprep.mubr.f32.mxu0 %v6666
      %6880 = vmatmul.mubr.f32.gmra.mxu0 %v6570
      %v6881 = vpop.f32.mrf.mxu0
      %v6882 = vadd.f32 %v6739, %v6881
      %v6883 = vpop.f32.mrf.mxu0
      %6884 = vmatprep.mubr.f32.mxu0 %v6667
      %6885 = vmatmul.mubr.f32.gmra.mxu0 %v6571
      %v6886 = vpop.f32.mrf.mxu0
      %v6887 = vadd.f32 %v6739, %v6886
      %v6888 = vpop.f32.mrf.mxu0
      %6889 = vmatprep.mubr.f32.mxu0 %v6668
      %6890 = vmatmul.mubr.f32.gmra.mxu0 %v6572
      %v6891 = vpop.f32.mrf.mxu0
      %v6892 = vadd.f32 %v6739, %v6891
      %v6893 = vpop.f32.mrf.mxu0
      %6894 = vmatprep.mubr.f32.mxu0 %v6669
      %6895 = vmatmul.mubr.f32.gmra.mxu0 %v6573
      %v6896 = vpop.f32.mrf.mxu0
      %v6897 = vadd.f32 %v6739, %v6896
      %v6898 = vpop.f32.mrf.mxu0
      %6899 = vmatprep.mubr.f32.mxu0 %v6670
      %6900 = vmatmul.mubr.f32.gmra.mxu0 %v6574
      %v6901 = vpop.f32.mrf.mxu0
      %v6902 = vadd.f32 %v6739, %v6901
      %v6903 = vpop.f32.mrf.mxu0
      %6904 = vmatprep.mubr.f32.mxu0 %v6671
      %6905 = vmatmul.mubr.f32.gmra.mxu0 %v6575
      %v6906 = vpop.f32.mrf.mxu0
      %v6907 = vadd.f32 %v6739, %v6906
      %v6908 = vpop.f32.mrf.mxu0
      %6909 = vmatprep.mubr.f32.mxu0 %v6672
      %6910 = vmatmul.mubr.f32.gmra.mxu0 %v6576
      %v6911 = vpop.f32.mrf.mxu0
      %v6912 = vadd.f32 %v6739, %v6911
      %v6913 = vpop.f32.mrf.mxu0
      %6914 = vmatprep.mubr.f32.mxu0 %v6673
      %6915 = vmatmul.mubr.f32.gmra.mxu0 %v6577
      %v6916 = vpop.f32.mrf.mxu0
      %v6917 = vadd.f32 %v6739, %v6916
      %v6918 = vpop.f32.mrf.mxu0
      %6919 = vmatprep.mubr.f32.mxu0 %v6674
      %6920 = vmatmul.mubr.f32.gmra.mxu0 %v6578
      %v6921 = vpop.f32.mrf.mxu0
      %v6922 = vadd.f32 %v6739, %v6921
      %v6923 = vpop.f32.mrf.mxu0
      %6924 = vmatprep.mubr.f32.mxu0 %v6675
      %6925 = vmatmul.mubr.f32.gmra.mxu0 %v6579
      %v6926 = vpop.f32.mrf.mxu0
      %v6927 = vadd.f32 %v6739, %v6926
      %v6928 = vpop.f32.mrf.mxu0
      %6929 = vmatprep.mubr.f32.mxu0 %v6676
      %6930 = vmatmul.mubr.f32.gmra.mxu0 %v6580
      %v6931 = vpop.f32.mrf.mxu0
      %v6932 = vadd.f32 %v6739, %v6931
      %v6933 = vpop.f32.mrf.mxu0
      %6934 = vmatprep.mubr.f32.mxu0 %v6677
      %6935 = vmatmul.mubr.f32.gmra.mxu0 %v6581
      %v6936 = vpop.f32.mrf.mxu0
      %v6937 = vadd.f32 %v6739, %v6936
      %v6938 = vpop.f32.mrf.mxu0
      %6939 = vmatprep.mubr.f32.mxu0 %v6678
      %6940 = vmatmul.mubr.f32.gmra.mxu0 %v6582
      %v6941 = vpop.f32.mrf.mxu0
      %v6942 = vadd.f32 %v6739, %v6941
      %v6943 = vpop.f32.mrf.mxu0
      %6944 = vmatprep.mubr.f32.mxu0 %v6679
      %6945 = vmatmul.mubr.f32.gmra.mxu0 %v6583
      %v6946 = vpop.f32.mrf.mxu0
      %v6947 = vadd.f32 %v6739, %v6946
      %v6948 = vpop.f32.mrf.mxu0
      %6949 = vmatprep.mubr.f32.mxu0 %v6680
      %6950 = vmatmul.mubr.f32.gmra.mxu0 %v6584
      %v6951 = vpop.f32.mrf.mxu0
      %v6952 = vadd.f32 %v6739, %v6951
      %v6953 = vpop.f32.mrf.mxu0
      %6954 = vmatprep.mubr.f32.mxu0 %v6681
      %6955 = vmatmul.mubr.f32.gmra.mxu0 %v6585
      %v6956 = vpop.f32.mrf.mxu0
      %v6957 = vadd.f32 %v6739, %v6956
      %v6958 = vpop.f32.mrf.mxu0
      %6959 = vmatprep.mubr.f32.mxu0 %v6682
      %6960 = vmatmul.mubr.f32.gmra.mxu0 %v6586
      %v6961 = vpop.f32.mrf.mxu0
      %v6962 = vadd.f32 %v6739, %v6961
      %v6963 = vpop.f32.mrf.mxu0
      %6964 = vmatprep.mubr.f32.mxu0 %v6683
      %6965 = vmatmul.mubr.f32.gmra.mxu0 %v6587
      %v6966 = vpop.f32.mrf.mxu0
      %v6967 = vadd.f32 %v6739, %v6966
      %v6968 = vpop.f32.mrf.mxu0
      %6969 = vmatprep.mubr.f32.mxu0 %v6684
      %6970 = vmatmul.mubr.f32.gmra.mxu0 %v6588
      %v6971 = vpop.f32.mrf.mxu0
      %v6972 = vadd.f32 %v6739, %v6971
      %v6973 = vpop.f32.mrf.mxu0
      %6974 = vmatprep.mubr.f32.mxu0 %v6685
      %6975 = vmatmul.mubr.f32.gmra.mxu0 %v6589
      %v6976 = vpop.f32.mrf.mxu0
      %v6977 = vadd.f32 %v6739, %v6976
      %v6978 = vpop.f32.mrf.mxu0
      %6979 = vmatprep.mubr.f32.mxu0 %v6686
      %6980 = vmatmul.mubr.f32.gmra.mxu0 %v6590
      %v6981 = vpop.f32.mrf.mxu0
      %v6982 = vadd.f32 %v6739, %v6981
      %v6983 = vpop.f32.mrf.mxu0
      %6984 = vmatprep.mubr.f32.mxu0 %v6687
      %6985 = vmatmul.mubr.f32.gmra.mxu0 %v6591
      %v6986 = vpop.f32.mrf.mxu0
      %v6987 = vadd.f32 %v6739, %v6986
      %v6988 = vpop.f32.mrf.mxu0
      %6989 = vmatprep.mubr.f32.mxu0 %v6688
      %6990 = vmatmul.mubr.f32.gmra.mxu0 %v6592
      %v6991 = vpop.f32.mrf.mxu0
      %v6992 = vadd.f32 %v6739, %v6991
      %v6993 = vpop.f32.mrf.mxu0
      %6994 = vmatprep.mubr.f32.mxu0 %v6689
      %6995 = vmatmul.mubr.f32.gmra.mxu0 %v6593
      %v6996 = vpop.f32.mrf.mxu0
      %v6997 = vadd.f32 %v6739, %v6996
      %v6998 = vpop.f32.mrf.mxu0
      %6999 = vmatprep.mubr.f32.mxu0 %v6690
      %7000 = vmatmul.mubr.f32.gmra.mxu0 %v6594
      %v7001 = vpop.f32.mrf.mxu0
      %v7002 = vadd.f32 %v6739, %v7001
      %v7003 = vpop.f32.mrf.mxu0
      %7004 = vmatprep.mubr.f32.mxu0 %v6691
      %7005 = vmatmul.mubr.f32.gmra.mxu0 %v6595
      %v7006 = vpop.f32.mrf.mxu0
      %v7007 = vadd.f32 %v6739, %v7006
      %v7008 = vpop.f32.mrf.mxu0
      %7009 = vmatprep.mubr.f32.mxu0 %v6692
      %7010 = vmatmul.mubr.f32.gmra.mxu0 %v6596
      %v7011 = vpop.f32.mrf.mxu0
      %v7012 = vadd.f32 %v6739, %v7011
      %v7013 = vpop.f32.mrf.mxu0
      %7014 = vmatprep.mubr.f32.mxu0 %v6693
      %7015 = vmatmul.mubr.f32.gmra.mxu0 %v6597
      %v7016 = vpop.f32.mrf.mxu0
      %v7017 = vadd.f32 %v6739, %v7016
      %v7018 = vpop.f32.mrf.mxu0
      %7019 = vmatprep.mubr.f32.mxu0 %v6694
      %7020 = vmatmul.mubr.f32.gmra.mxu0 %v6598
      %v7021 = vpop.f32.mrf.mxu0
      %v7022 = vadd.f32 %v6739, %v7021
      %v7023 = vpop.f32.mrf.mxu0
      %7024 = vmatprep.mubr.f32.mxu0 %v6695
      %7025 = vmatmul.mubr.f32.gmra.mxu0 %v6599
      %v7026 = vpop.f32.mrf.mxu0
      %v7027 = vadd.f32 %v6739, %v7026
      %v7028 = vpop.f32.mrf.mxu0
      %7029 = vdwg.mxu0
      %7030 = vmatprep.subr.mxu0 0.0
      %7031 = vmatpush1.msra.mxu0 0.0
      %7032 = vmatprep.subr.mxu0 0.0
      %7033 = vmatpush1.msra.mxu0 0.0
      %7034 = vmatprep.subr.mxu0 0.0
      %7035 = vmatpush1.msra.mxu0 0.0
      %7036 = vmatprep.subr.mxu0 0.0
      %7037 = vmatpush1.msra.mxu0 0.0
      %7038 = vmatprep.subr.mxu0 0.0
      %7039 = vmatpush1.msra.mxu0 0.0
      %7040 = vmatprep.subr.mxu0 0.0
      %7041 = vmatpush1.msra.mxu0 0.0
      %7042 = vmatprep.subr.mxu0 0.0
      %7043 = vmatpush1.msra.mxu0 0.0
      %7044 = vmatprep.subr.mxu0 0.0
      %7045 = vmatpush1.msra.mxu0 0.0
      %7046 = vmatprep.subr.mxu0 0.0
      %7047 = vmatpush1.msra.mxu0 0.0
      %7048 = vmatprep.subr.mxu0 0.0
      %7049 = vmatpush1.msra.mxu0 0.0
      %7050 = vmatprep.subr.mxu0 0.0
      %7051 = vmatpush1.msra.mxu0 0.0
      %7052 = vmatprep.subr.mxu0 0.0
      %7053 = vmatpush1.msra.mxu0 0.0
      %7054 = vmatprep.subr.mxu0 0.0
      %7055 = vmatpush1.msra.mxu0 %v6732
      %7056 = vmatprep.subr.mxu0 0.0
      %7057 = vmatpush1.msra.mxu0 %v6731
      %7058 = vmatprep.subr.mxu0 0.0
      %7059 = vmatpush1.msra.mxu0 %v6730
      %7060 = vmatprep.subr.mxu0 0.0
      %7061 = vmatpush1.msra.mxu0 %v6729
      %7062 = vmatprep.subr.mxu0 0.0
      %7063 = vmatpush2.msra.mxu0 0.0
      %7064 = vmatprep.subr.mxu0 0.0
      %7065 = vmatpush2.msra.mxu0 0.0
      %7066 = vmatprep.subr.mxu0 0.0
      %7067 = vmatpush2.msra.mxu0 0.0
      %7068 = vmatprep.subr.mxu0 0.0
      %7069 = vmatpush2.msra.mxu0 0.0
      %7070 = vmatprep.subr.mxu0 0.0
      %7071 = vmatpush2.msra.mxu0 0.0
      %7072 = vmatprep.subr.mxu0 0.0
      %7073 = vmatpush2.msra.mxu0 0.0
      %7074 = vmatprep.subr.mxu0 0.0
      %7075 = vmatpush2.msra.mxu0 0.0
      %7076 = vmatprep.subr.mxu0 0.0
      %7077 = vmatpush2.msra.mxu0 0.0
      %7078 = vmatprep.subr.mxu0 0.0
      %7079 = vmatpush2.msra.mxu0 0.0
      %7080 = vmatprep.subr.mxu0 0.0
      %7081 = vmatpush2.msra.mxu0 0.0
      %7082 = vmatprep.subr.mxu0 0.0
      %7083 = vmatpush2.msra.mxu0 0.0
      %7084 = vmatprep.subr.mxu0 0.0
      %7085 = vmatpush2.msra.mxu0 0.0
      %7086 = vmatprep.subr.mxu0 0.0
      %7087 = vmatpush2.msra.mxu0 0.0
      %7088 = vmatprep.subr.mxu0 0.0
      %7089 = vmatpush2.msra.mxu0 0.0
      %7090 = vmatprep.subr.mxu0 0.0
      %7091 = vmatpush2.msra.mxu0 0.0
      %7092 = vmatprep.subr.mxu0 0.0
      %7093 = vmatpush2.msra.mxu0 0.0
      %7094 = vmatprep.mubr.f32.mxu0 0.0
      %7095 = vmatmul.mubr.f32.gmra.mxu0 %v6741
      %v7096 = vpop.f32.mrf.mxu0
      %v7097 = vadd.f32 %v6872, %v7096
      %v7098 = vpop.f32.mrf.mxu0
      %7099 = vmatprep.mubr.f32.mxu0 0.0
      %7100 = vmatmul.mubr.f32.gmra.mxu0 %v6743
      %v7101 = vpop.f32.mrf.mxu0
      %v7102 = vadd.f32 %v6877, %v7101
      %v7103 = vpop.f32.mrf.mxu0
      %7104 = vmatprep.mubr.f32.mxu0 0.0
      %7105 = vmatmul.mubr.f32.gmra.mxu0 %v6745
      %v7106 = vpop.f32.mrf.mxu0
      %v7107 = vadd.f32 %v6882, %v7106
      %v7108 = vpop.f32.mrf.mxu0
      %7109 = vmatprep.mubr.f32.mxu0 0.0
      %7110 = vmatmul.mubr.f32.gmra.mxu0 %v6747
      %v7111 = vpop.f32.mrf.mxu0
      %v7112 = vadd.f32 %v6887, %v7111
      %v7113 = vpop.f32.mrf.mxu0
      %7114 = vmatprep.mubr.f32.mxu0 0.0
      %7115 = vmatmul.mubr.f32.gmra.mxu0 %v6749
      %v7116 = vpop.f32.mrf.mxu0
      %v7117 = vadd.f32 %v6892, %v7116
      %v7118 = vpop.f32.mrf.mxu0
      %7119 = vmatprep.mubr.f32.mxu0 0.0
      %7120 = vmatmul.mubr.f32.gmra.mxu0 %v6751
      %v7121 = vpop.f32.mrf.mxu0
      %v7122 = vadd.f32 %v6897, %v7121
      %v7123 = vpop.f32.mrf.mxu0
      %7124 = vmatprep.mubr.f32.mxu0 0.0
      %7125 = vmatmul.mubr.f32.gmra.mxu0 %v6753
      %v7126 = vpop.f32.mrf.mxu0
      %v7127 = vadd.f32 %v6902, %v7126
      %v7128 = vpop.f32.mrf.mxu0
      %7129 = vmatprep.mubr.f32.mxu0 0.0
      %7130 = vmatmul.mubr.f32.gmra.mxu0 %v6755
      %v7131 = vpop.f32.mrf.mxu0
      %v7132 = vadd.f32 %v6907, %v7131
      %v7133 = vpop.f32.mrf.mxu0
      %7134 = vmatprep.mubr.f32.mxu0 0.0
      %7135 = vmatmul.mubr.f32.gmra.mxu0 %v6757
      %v7136 = vpop.f32.mrf.mxu0
      %v7137 = vadd.f32 %v6912, %v7136
      %v7138 = vpop.f32.mrf.mxu0
      %7139 = vmatprep.mubr.f32.mxu0 0.0
      %7140 = vmatmul.mubr.f32.gmra.mxu0 %v6759
      %v7141 = vpop.f32.mrf.mxu0
      %v7142 = vadd.f32 %v6917, %v7141
      %v7143 = vpop.f32.mrf.mxu0
      %7144 = vmatprep.mubr.f32.mxu0 0.0
      %7145 = vmatmul.mubr.f32.gmra.mxu0 %v6761
      %v7146 = vpop.f32.mrf.mxu0
      %v7147 = vadd.f32 %v6922, %v7146
      %v7148 = vpop.f32.mrf.mxu0
      %7149 = vmatprep.mubr.f32.mxu0 0.0
      %7150 = vmatmul.mubr.f32.gmra.mxu0 %v6763
      %v7151 = vpop.f32.mrf.mxu0
      %v7152 = vadd.f32 %v6927, %v7151
      %v7153 = vpop.f32.mrf.mxu0
      %7154 = vmatprep.mubr.f32.mxu0 0.0
      %7155 = vmatmul.mubr.f32.gmra.mxu0 %v6765
      %v7156 = vpop.f32.mrf.mxu0
      %v7157 = vadd.f32 %v6932, %v7156
      %v7158 = vpop.f32.mrf.mxu0
      %7159 = vmatprep.mubr.f32.mxu0 0.0
      %7160 = vmatmul.mubr.f32.gmra.mxu0 %v6767
      %v7161 = vpop.f32.mrf.mxu0
      %v7162 = vadd.f32 %v6937, %v7161
      %v7163 = vpop.f32.mrf.mxu0
      %7164 = vmatprep.mubr.f32.mxu0 0.0
      %7165 = vmatmul.mubr.f32.gmra.mxu0 %v6769
      %v7166 = vpop.f32.mrf.mxu0
      %v7167 = vadd.f32 %v6942, %v7166
      %v7168 = vpop.f32.mrf.mxu0
      %7169 = vmatprep.mubr.f32.mxu0 0.0
      %7170 = vmatmul.mubr.f32.gmra.mxu0 %v6771
      %v7171 = vpop.f32.mrf.mxu0
      %v7172 = vadd.f32 %v6947, %v7171
      %v7173 = vpop.f32.mrf.mxu0
      %7174 = vmatprep.mubr.f32.mxu0 0.0
      %7175 = vmatmul.mubr.f32.gmra.mxu0 %v6773
      %v7176 = vpop.f32.mrf.mxu0
      %v7177 = vadd.f32 %v6952, %v7176
      %v7178 = vpop.f32.mrf.mxu0
      %7179 = vmatprep.mubr.f32.mxu0 0.0
      %7180 = vmatmul.mubr.f32.gmra.mxu0 %v6775
      %v7181 = vpop.f32.mrf.mxu0
      %v7182 = vadd.f32 %v6957, %v7181
      %v7183 = vpop.f32.mrf.mxu0
      %7184 = vmatprep.mubr.f32.mxu0 0.0
      %7185 = vmatmul.mubr.f32.gmra.mxu0 %v6777
      %v7186 = vpop.f32.mrf.mxu0
      %v7187 = vadd.f32 %v6962, %v7186
      %v7188 = vpop.f32.mrf.mxu0
      %7189 = vmatprep.mubr.f32.mxu0 0.0
      %7190 = vmatmul.mubr.f32.gmra.mxu0 %v6779
      %v7191 = vpop.f32.mrf.mxu0
      %v7192 = vadd.f32 %v6967, %v7191
      %v7193 = vpop.f32.mrf.mxu0
      %7194 = vmatprep.mubr.f32.mxu0 0.0
      %7195 = vmatmul.mubr.f32.gmra.mxu0 %v6781
      %v7196 = vpop.f32.mrf.mxu0
      %v7197 = vadd.f32 %v6972, %v7196
      %v7198 = vpop.f32.mrf.mxu0
      %7199 = vmatprep.mubr.f32.mxu0 0.0
      %7200 = vmatmul.mubr.f32.gmra.mxu0 %v6783
      %v7201 = vpop.f32.mrf.mxu0
      %v7202 = vadd.f32 %v6977, %v7201
      %v7203 = vpop.f32.mrf.mxu0
      %7204 = vmatprep.mubr.f32.mxu0 0.0
      %7205 = vmatmul.mubr.f32.gmra.mxu0 %v6785
      %v7206 = vpop.f32.mrf.mxu0
      %v7207 = vadd.f32 %v6982, %v7206
      %v7208 = vpop.f32.mrf.mxu0
      %7209 = vmatprep.mubr.f32.mxu0 0.0
      %7210 = vmatmul.mubr.f32.gmra.mxu0 %v6787
      %v7211 = vpop.f32.mrf.mxu0
      %v7212 = vadd.f32 %v6987, %v7211
      %v7213 = vpop.f32.mrf.mxu0
      %7214 = vmatprep.mubr.f32.mxu0 0.0
      %7215 = vmatmul.mubr.f32.gmra.mxu0 %v6789
      %v7216 = vpop.f32.mrf.mxu0
      %v7217 = vadd.f32 %v6992, %v7216
      %v7218 = vpop.f32.mrf.mxu0
      %7219 = vmatprep.mubr.f32.mxu0 0.0
      %7220 = vmatmul.mubr.f32.gmra.mxu0 %v6791
      %v7221 = vpop.f32.mrf.mxu0
      %v7222 = vadd.f32 %v6997, %v7221
      %v7223 = vpop.f32.mrf.mxu0
      %7224 = vmatprep.mubr.f32.mxu0 0.0
      %7225 = vmatmul.mubr.f32.gmra.mxu0 %v6793
      %v7226 = vpop.f32.mrf.mxu0
      %v7227 = vadd.f32 %v7002, %v7226
      %v7228 = vpop.f32.mrf.mxu0
      %7229 = vmatprep.mubr.f32.mxu0 0.0
      %7230 = vmatmul.mubr.f32.gmra.mxu0 %v6795
      %v7231 = vpop.f32.mrf.mxu0
      %v7232 = vadd.f32 %v7007, %v7231
      %v7233 = vpop.f32.mrf.mxu0
      %7234 = vmatprep.mubr.f32.mxu0 0.0
      %7235 = vmatmul.mubr.f32.gmra.mxu0 %v6797
      %v7236 = vpop.f32.mrf.mxu0
      %v7237 = vadd.f32 %v7012, %v7236
      %v7238 = vpop.f32.mrf.mxu0
      %7239 = vmatprep.mubr.f32.mxu0 0.0
      %7240 = vmatmul.mubr.f32.gmra.mxu0 %v6799
      %v7241 = vpop.f32.mrf.mxu0
      %v7242 = vadd.f32 %v7017, %v7241
      %v7243 = vpop.f32.mrf.mxu0
      %7244 = vmatprep.mubr.f32.mxu0 0.0
      %7245 = vmatmul.mubr.f32.gmra.mxu0 %v6801
      %v7246 = vpop.f32.mrf.mxu0
      %v7247 = vadd.f32 %v7022, %v7246
      %v7248 = vpop.f32.mrf.mxu0
      %7249 = vmatprep.mubr.f32.mxu0 0.0
      %7250 = vmatmul.mubr.f32.gmra.mxu0 %v6803
      %v7251 = vpop.f32.mrf.mxu0
      %v7252 = vadd.f32 %v7027, %v7251
      %v7253 = vpop.f32.mrf.mxu0
      %7254 = vdwg.mxu0
      %v7255 = vmul.f32 %v7097, 0.01
      %v7256 = vmul.f32 %v7102, 0.01
      %v7257 = vmul.f32 %v7107, 0.01
      %v7258 = vmul.f32 %v7112, 0.01
      %v7259 = vmul.f32 %v7117, 0.01
      %v7260 = vmul.f32 %v7122, 0.01
      %v7261 = vmul.f32 %v7127, 0.01
      %v7262 = vmul.f32 %v7132, 0.01
      %v7263 = vmul.f32 %v7137, 0.01
      %v7264 = vmul.f32 %v7142, 0.01
      %v7265 = vmul.f32 %v7147, 0.01
      %v7266 = vmul.f32 %v7152, 0.01
      %v7267 = vmul.f32 %v7157, 0.01
      %v7268 = vmul.f32 %v7162, 0.01
      %v7269 = vmul.f32 %v7167, 0.01
      %v7270 = vmul.f32 %v7172, 0.01
      %v7271 = vmul.f32 %v7177, 0.01
      %v7272 = vmul.f32 %v7182, 0.01
      %v7273 = vmul.f32 %v7187, 0.01
      %v7274 = vmul.f32 %v7192, 0.01
      %v7275 = vmul.f32 %v7197, 0.01
      %v7276 = vmul.f32 %v7202, 0.01
      %v7277 = vmul.f32 %v7207, 0.01
      %v7278 = vmul.f32 %v7212, 0.01
      %v7279 = vmul.f32 %v7217, 0.01
      %v7280 = vmul.f32 %v7222, 0.01
      %v7281 = vmul.f32 %v7227, 0.01
      %v7282 = vmul.f32 %v7232, 0.01
      %v7283 = vmul.f32 %v7237, 0.01
      %v7284 = vmul.f32 %v7242, 0.01
      %v7285 = vmul.f32 %v7247, 0.01
      %v7286 = vmul.f32 %v7252, 0.01
      %v7287 = vmax.f32 %v7097, %v7255
      %v7288 = vmax.f32 %v7102, %v7256
      %v7289 = vmax.f32 %v7107, %v7257
      %v7290 = vmax.f32 %v7112, %v7258
      %v7291 = vmax.f32 %v7117, %v7259
      %v7292 = vmax.f32 %v7122, %v7260
      %v7293 = vmax.f32 %v7127, %v7261
      %v7294 = vmax.f32 %v7132, %v7262
      %v7295 = vmax.f32 %v7137, %v7263
      %v7296 = vmax.f32 %v7142, %v7264
      %v7297 = vmax.f32 %v7147, %v7265
      %v7298 = vmax.f32 %v7152, %v7266
      %v7299 = vmax.f32 %v7157, %v7267
      %v7300 = vmax.f32 %v7162, %v7268
      %v7301 = vmax.f32 %v7167, %v7269
      %v7302 = vmax.f32 %v7172, %v7270
      %v7303 = vmax.f32 %v7177, %v7271
      %v7304 = vmax.f32 %v7182, %v7272
      %v7305 = vmax.f32 %v7187, %v7273
      %v7306 = vmax.f32 %v7192, %v7274
      %v7307 = vmax.f32 %v7197, %v7275
      %v7308 = vmax.f32 %v7202, %v7276
      %v7309 = vmax.f32 %v7207, %v7277
      %v7310 = vmax.f32 %v7212, %v7278
      %v7311 = vmax.f32 %v7217, %v7279
      %v7312 = vmax.f32 %v7222, %v7280
      %v7313 = vmax.f32 %v7227, %v7281
      %v7314 = vmax.f32 %v7232, %v7282
      %v7315 = vmax.f32 %v7237, %v7283
      %v7316 = vmax.f32 %v7242, %v7284
      %v7317 = vmax.f32 %v7247, %v7285
      %v7318 = vmax.f32 %v7252, %v7286
      %7319 = vst.msk [vmem:[%s2089 + $0x1] sm:$0xff] %vm279, %v7287
      %7320 = vst.msk [vmem:[%s2089 + $0x9] sm:$0xff] %vm279, %v7288
      %7321 = vst.msk [vmem:[%s2089 + $0x19] sm:$0xff] %vm279, %v7289
      %7322 = vst.msk [vmem:[%s2089 + $0x21] sm:$0xff] %vm279, %v7290
      %7323 = vst.msk [vmem:[%s2089 + $0x31] sm:$0xff] %vm279, %v7291
      %7324 = vst.msk [vmem:[%s2089 + $0x39] sm:$0xff] %vm279, %v7292
      %7325 = vst.msk [vmem:[%s2089 + $0x49] sm:$0xff] %vm279, %v7293
      %7326 = vst.msk [vmem:[%s2089 + $0x51] sm:$0xff] %vm279, %v7294
      %7327 = vst.msk [vmem:[%s2089 + $0x61] sm:$0xff] %vm279, %v7295
      %7328 = vst.msk [vmem:[%s2089 + $0x69] sm:$0xff] %vm279, %v7296
      %7329 = vst.msk [vmem:[%s2089 + $0x79] sm:$0xff] %vm279, %v7297
      %7330 = vst.msk [vmem:[%s2089 + $0x81] sm:$0xff] %vm279, %v7298
      %7331 = vst.msk [vmem:[%s2089 + $0x91] sm:$0xff] %vm279, %v7299
      %7332 = vst.msk [vmem:[%s2089 + $0x99] sm:$0xff] %vm279, %v7300
      %7333 = vst.msk [vmem:[%s2089 + $0xa9] sm:$0xff] %vm279, %v7301
      %7334 = vst.msk [vmem:[%s2089 + $0xb1] sm:$0xff] %vm279, %v7302
      %7335 = vst.msk [vmem:[%s2089 + $0xc1] sm:$0xff] %vm279, %v7303
      %7336 = vst.msk [vmem:[%s2089 + $0xc9] sm:$0xff] %vm279, %v7304
      %7337 = vst.msk [vmem:[%s2089 + $0xd9] sm:$0xff] %vm279, %v7305
      %7338 = vst.msk [vmem:[%s2089 + $0xe1] sm:$0xff] %vm279, %v7306
      %7339 = vst.msk [vmem:[%s2089 + $0xf1] sm:$0xff] %vm279, %v7307
      %7340 = vst.msk [vmem:[%s2089 + $0xf9] sm:$0xff] %vm279, %v7308
      %7341 = vst.msk [vmem:[%s2089 + $0x109] sm:$0xff] %vm279, %v7309
      %7342 = vst.msk [vmem:[%s2089 + $0x111] sm:$0xff] %vm279, %v7310
      %7343 = vst.msk [vmem:[%s2089 + $0x121] sm:$0xff] %vm279, %v7311
      %7344 = vst.msk [vmem:[%s2089 + $0x129] sm:$0xff] %vm279, %v7312
      %7345 = vst.msk [vmem:[%s2089 + $0x139] sm:$0xff] %vm279, %v7313
      %7346 = vst.msk [vmem:[%s2089 + $0x141] sm:$0xff] %vm279, %v7314
      %7347 = vst.msk [vmem:[%s2089 + $0x151] sm:$0xff] %vm279, %v7315
      %7348 = vst.msk [vmem:[%s2089 + $0x159] sm:$0xff] %vm279, %v7316
      %7349 = vst.msk [vmem:[%s2089 + $0x169] sm:$0xff] %vm279, %v7317
      %7350 = vst.msk [vmem:[%s2089 + $0x171] sm:$0xff] %vm279, %v7318
      %v7351 = vld [vmem:[#allocation2] sm:$0xff]
      %v7352 = vld [vmem:[#allocation2 + $0x8] sm:$0xff]
      %v7353 = vld [vmem:[#allocation2 + $0x10] sm:$0x3]
      %v7354 = vld [vmem:[#allocation2 + $0x18] sm:$0xff]
      %v7355 = vld [vmem:[#allocation2 + $0x20] sm:$0xff]
      %v7356 = vld [vmem:[#allocation2 + $0x28] sm:$0x3]
      %v7357 = vld [vmem:[#allocation2 + $0x30] sm:$0xff]
      %v7358 = vld [vmem:[#allocation2 + $0x38] sm:$0xff]
      %v7359 = vld [vmem:[#allocation2 + $0x40] sm:$0x3]
      %v7360 = vld [vmem:[#allocation2 + $0x48] sm:$0xff]
      %v7361 = vld [vmem:[#allocation2 + $0x50] sm:$0xff]
      %v7362 = vld [vmem:[#allocation2 + $0x58] sm:$0x3]
      %v7363 = vld [vmem:[#allocation2 + $0x60] sm:$0xff]
      %v7364 = vld [vmem:[#allocation2 + $0x68] sm:$0xff]
      %v7365 = vld [vmem:[#allocation2 + $0x70] sm:$0x3]
      %v7366 = vld [vmem:[#allocation2 + $0x78] sm:$0xff]
      %v7367 = vld [vmem:[#allocation2 + $0x80] sm:$0xff]
      %v7368 = vld [vmem:[#allocation2 + $0x88] sm:$0x3]
      %v7369 = vld [vmem:[#allocation2 + $0x90] sm:$0xff]
      %v7370 = vld [vmem:[#allocation2 + $0x98] sm:$0xff]
      %v7371 = vld [vmem:[#allocation2 + $0xa0] sm:$0x3]
      %v7372 = vld [vmem:[#allocation2 + $0xa8] sm:$0xff]
      %v7373 = vld [vmem:[#allocation2 + $0xb0] sm:$0xff]
      %v7374 = vld [vmem:[#allocation2 + $0xb8] sm:$0x3]
      %v7375 = vld [vmem:[#allocation2 + $0xc0] sm:$0xff]
      %v7376 = vld [vmem:[#allocation2 + $0xc8] sm:$0xff]
      %v7377 = vld [vmem:[#allocation2 + $0xd0] sm:$0x3]
      %v7378 = vld [vmem:[#allocation2 + $0xd8] sm:$0xff]
      %v7379 = vld [vmem:[#allocation2 + $0xe0] sm:$0xff]
      %v7380 = vld [vmem:[#allocation2 + $0xe8] sm:$0x3]
      %v7381 = vld [vmem:[#allocation2 + $0xf0] sm:$0xff]
      %v7382 = vld [vmem:[#allocation2 + $0xf8] sm:$0xff]
      %v7383 = vld [vmem:[#allocation2 + $0x100] sm:$0x3]
      %v7384 = vld [vmem:[#allocation2 + $0x108] sm:$0xff]
      %v7385 = vld [vmem:[#allocation2 + $0x110] sm:$0xff]
      %v7386 = vld [vmem:[#allocation2 + $0x118] sm:$0x3]
      %v7387 = vld [vmem:[#allocation2 + $0x120] sm:$0xff]
      %v7388 = vld [vmem:[#allocation2 + $0x128] sm:$0xff]
      %v7389 = vld [vmem:[#allocation2 + $0x130] sm:$0x3]
      %v7390 = vld [vmem:[#allocation2 + $0x138] sm:$0xff]
      %v7391 = vld [vmem:[#allocation2 + $0x140] sm:$0xff]
      %v7392 = vld [vmem:[#allocation2 + $0x148] sm:$0x3]
      %v7393 = vld [vmem:[#allocation2 + $0x150] sm:$0xff]
      %v7394 = vld [vmem:[#allocation2 + $0x158] sm:$0xff]
      %v7395 = vld [vmem:[#allocation2 + $0x160] sm:$0x3]
      %v7396 = vld [vmem:[#allocation2 + $0x168] sm:$0xff]
      %v7397 = vld [vmem:[#allocation2 + $0x170] sm:$0xff]
      %v7398 = vld [vmem:[#allocation2 + $0x178] sm:$0x3]
      %v7399 = vld [vmem:[#allocation2 + $0x180] sm:$0xff]
      %v7400 = vld [vmem:[#allocation2 + $0x188] sm:$0xff]
      %v7401 = vld [vmem:[#allocation2 + $0x190] sm:$0x3]
      %v7402 = vld [vmem:[#allocation2 + $0x198] sm:$0xff]
      %v7403 = vld [vmem:[#allocation2 + $0x1a0] sm:$0xff]
      %v7404 = vld [vmem:[#allocation2 + $0x1a8] sm:$0x3]
      %v7453 = vrot.slane %v7351, 1
      %v7454 = vrot.slane %v7352, 1
      %v7455 = vsel %vm437, %v7453, %v7454
      %v7456 = vrot.slane %v7353, 1
      %v7457 = vsel %vm437, %v7454, %v7456
      %v7458 = vrot.slane %v7354, 1
      %v7459 = vrot.slane %v7355, 1
      %v7460 = vsel %vm437, %v7458, %v7459
      %v7461 = vrot.slane %v7356, 1
      %v7462 = vsel %vm437, %v7459, %v7461
      %v7463 = vrot.slane %v7357, 1
      %v7464 = vrot.slane %v7358, 1
      %v7465 = vsel %vm437, %v7463, %v7464
      %v7466 = vrot.slane %v7359, 1
      %v7467 = vsel %vm437, %v7464, %v7466
      %v7468 = vrot.slane %v7360, 1
      %v7469 = vrot.slane %v7361, 1
      %v7470 = vsel %vm437, %v7468, %v7469
      %v7471 = vrot.slane %v7362, 1
      %v7472 = vsel %vm437, %v7469, %v7471
      %v7473 = vrot.slane %v7363, 1
      %v7474 = vrot.slane %v7364, 1
      %v7475 = vsel %vm437, %v7473, %v7474
      %v7476 = vrot.slane %v7365, 1
      %v7477 = vsel %vm437, %v7474, %v7476
      %v7478 = vrot.slane %v7366, 1
      %v7479 = vrot.slane %v7367, 1
      %v7480 = vsel %vm437, %v7478, %v7479
      %v7481 = vrot.slane %v7368, 1
      %v7482 = vsel %vm437, %v7479, %v7481
      %v7483 = vrot.slane %v7369, 1
      %v7484 = vrot.slane %v7370, 1
      %v7485 = vsel %vm437, %v7483, %v7484
      %v7486 = vrot.slane %v7371, 1
      %v7487 = vsel %vm437, %v7484, %v7486
      %v7488 = vrot.slane %v7372, 1
      %v7489 = vrot.slane %v7373, 1
      %v7490 = vsel %vm437, %v7488, %v7489
      %v7491 = vrot.slane %v7374, 1
      %v7492 = vsel %vm437, %v7489, %v7491
      %v7493 = vrot.slane %v7375, 1
      %v7494 = vrot.slane %v7376, 1
      %v7495 = vsel %vm437, %v7493, %v7494
      %v7496 = vrot.slane %v7377, 1
      %v7497 = vsel %vm437, %v7494, %v7496
      %v7498 = vrot.slane %v7378, 1
      %v7499 = vrot.slane %v7379, 1
      %v7500 = vsel %vm437, %v7498, %v7499
      %v7501 = vrot.slane %v7380, 1
      %v7502 = vsel %vm437, %v7499, %v7501
      %v7503 = vrot.slane %v7381, 1
      %v7504 = vrot.slane %v7382, 1
      %v7505 = vsel %vm437, %v7503, %v7504
      %v7506 = vrot.slane %v7383, 1
      %v7507 = vsel %vm437, %v7504, %v7506
      %v7508 = vrot.slane %v7384, 1
      %v7509 = vrot.slane %v7385, 1
      %v7510 = vsel %vm437, %v7508, %v7509
      %v7511 = vrot.slane %v7386, 1
      %v7512 = vsel %vm437, %v7509, %v7511
      %v7513 = vrot.slane %v7387, 1
      %v7514 = vrot.slane %v7388, 1
      %v7515 = vsel %vm437, %v7513, %v7514
      %v7516 = vrot.slane %v7389, 1
      %v7517 = vsel %vm437, %v7514, %v7516
      %v7518 = vrot.slane %v7390, 1
      %v7519 = vrot.slane %v7391, 1
      %v7520 = vsel %vm437, %v7518, %v7519
      %v7521 = vrot.slane %v7392, 1
      %v7522 = vsel %vm437, %v7519, %v7521
      %v7523 = vrot.slane %v7393, 1
      %v7524 = vrot.slane %v7394, 1
      %v7525 = vsel %vm437, %v7523, %v7524
      %v7526 = vrot.slane %v7395, 1
      %v7527 = vsel %vm437, %v7524, %v7526
      %v7528 = vrot.slane %v7396, 1
      %v7529 = vrot.slane %v7397, 1
      %v7530 = vsel %vm437, %v7528, %v7529
      %v7531 = vrot.slane %v7398, 1
      %v7532 = vsel %vm437, %v7529, %v7531
      %v7533 = vrot.slane %v7351, 2
      %v7534 = vrot.slane %v7352, 2
      %v7535 = vsel %vm518, %v7533, %v7534
      %v7536 = vrot.slane %v7353, 2
      %v7537 = vsel %vm518, %v7534, %v7536
      %v7538 = vrot.slane %v7354, 2
      %v7539 = vrot.slane %v7355, 2
      %v7540 = vsel %vm518, %v7538, %v7539
      %v7541 = vrot.slane %v7356, 2
      %v7542 = vsel %vm518, %v7539, %v7541
      %v7543 = vrot.slane %v7357, 2
      %v7544 = vrot.slane %v7358, 2
      %v7545 = vsel %vm518, %v7543, %v7544
      %v7546 = vrot.slane %v7359, 2
      %v7547 = vsel %vm518, %v7544, %v7546
      %v7548 = vrot.slane %v7360, 2
      %v7549 = vrot.slane %v7361, 2
      %v7550 = vsel %vm518, %v7548, %v7549
      %v7551 = vrot.slane %v7362, 2
      %v7552 = vsel %vm518, %v7549, %v7551
      %v7553 = vrot.slane %v7363, 2
      %v7554 = vrot.slane %v7364, 2
      %v7555 = vsel %vm518, %v7553, %v7554
      %v7556 = vrot.slane %v7365, 2
      %v7557 = vsel %vm518, %v7554, %v7556
      %v7558 = vrot.slane %v7366, 2
      %v7559 = vrot.slane %v7367, 2
      %v7560 = vsel %vm518, %v7558, %v7559
      %v7561 = vrot.slane %v7368, 2
      %v7562 = vsel %vm518, %v7559, %v7561
      %v7563 = vrot.slane %v7369, 2
      %v7564 = vrot.slane %v7370, 2
      %v7565 = vsel %vm518, %v7563, %v7564
      %v7566 = vrot.slane %v7371, 2
      %v7567 = vsel %vm518, %v7564, %v7566
      %v7568 = vrot.slane %v7372, 2
      %v7569 = vrot.slane %v7373, 2
      %v7570 = vsel %vm518, %v7568, %v7569
      %v7571 = vrot.slane %v7374, 2
      %v7572 = vsel %vm518, %v7569, %v7571
      %v7573 = vrot.slane %v7375, 2
      %v7574 = vrot.slane %v7376, 2
      %v7575 = vsel %vm518, %v7573, %v7574
      %v7576 = vrot.slane %v7377, 2
      %v7577 = vsel %vm518, %v7574, %v7576
      %v7578 = vrot.slane %v7378, 2
      %v7579 = vrot.slane %v7379, 2
      %v7580 = vsel %vm518, %v7578, %v7579
      %v7581 = vrot.slane %v7380, 2
      %v7582 = vsel %vm518, %v7579, %v7581
      %v7583 = vrot.slane %v7381, 2
      %v7584 = vrot.slane %v7382, 2
      %v7585 = vsel %vm518, %v7583, %v7584
      %v7586 = vrot.slane %v7383, 2
      %v7587 = vsel %vm518, %v7584, %v7586
      %v7588 = vrot.slane %v7384, 2
      %v7589 = vrot.slane %v7385, 2
      %v7590 = vsel %vm518, %v7588, %v7589
      %v7591 = vrot.slane %v7386, 2
      %v7592 = vsel %vm518, %v7589, %v7591
      %v7593 = vrot.slane %v7387, 2
      %v7594 = vrot.slane %v7388, 2
      %v7595 = vsel %vm518, %v7593, %v7594
      %v7596 = vrot.slane %v7389, 2
      %v7597 = vsel %vm518, %v7594, %v7596
      %v7598 = vrot.slane %v7390, 2
      %v7599 = vrot.slane %v7391, 2
      %v7600 = vsel %vm518, %v7598, %v7599
      %v7601 = vrot.slane %v7392, 2
      %v7602 = vsel %vm518, %v7599, %v7601
      %v7603 = vrot.slane %v7393, 2
      %v7604 = vrot.slane %v7394, 2
      %v7605 = vsel %vm518, %v7603, %v7604
      %v7606 = vrot.slane %v7395, 2
      %v7607 = vsel %vm518, %v7604, %v7606
      %v7608 = vrot.slane %v7396, 2
      %v7609 = vrot.slane %v7397, 2
      %v7610 = vsel %vm518, %v7608, %v7609
      %v7611 = vrot.slane %v7398, 2
      %v7612 = vsel %vm518, %v7609, %v7611
      %v7616 = vrot.slane %v7399, 1
      %v7617 = vrot.slane %v7400, 1
      %v7618 = vsel %vm437, %v7616, %v7617
      %v7619 = vrot.slane %v7401, 1
      %v7620 = vsel %vm437, %v7617, %v7619
      %v7653 = vrot.slane %v7399, 2
      %v7654 = vrot.slane %v7400, 2
      %v7655 = vsel %vm518, %v7653, %v7654
      %v7656 = vrot.slane %v7401, 2
      %v7657 = vsel %vm518, %v7654, %v7656
      %v7661 = vrot.slane %v7402, 1
      %v7662 = vrot.slane %v7403, 1
      %v7663 = vsel %vm437, %v7661, %v7662
      %v7664 = vrot.slane %v7404, 1
      %v7665 = vsel %vm437, %v7662, %v7664
      %v7666 = vrot.slane %v7402, 2
      %v7667 = vrot.slane %v7403, 2
      %v7668 = vsel %vm518, %v7666, %v7667
      %v7669 = vrot.slane %v7404, 2
      %v7670 = vsel %vm518, %v7667, %v7669
      %7671 = vrot.lane.b32.xlu0 %v7455, 32
      %v7672 = vpop.permute.xlu0 %7671
      %7673 = vrot.lane.b32.xlu0 %v7457, 32
      %v7674 = vpop.permute.xlu0 %7673
      %7675 = vrot.lane.b32.xlu0 %v7460, 32
      %v7676 = vpop.permute.xlu0 %7675
      %7677 = vrot.lane.b32.xlu0 %v7462, 32
      %v7678 = vpop.permute.xlu0 %7677
      %7679 = vrot.lane.b32.xlu0 %v7465, 32
      %v7680 = vpop.permute.xlu0 %7679
      %7681 = vrot.lane.b32.xlu0 %v7467, 32
      %v7682 = vpop.permute.xlu0 %7681
      %7683 = vrot.lane.b32.xlu0 %v7470, 32
      %v7684 = vpop.permute.xlu0 %7683
      %7685 = vrot.lane.b32.xlu0 %v7472, 32
      %v7686 = vpop.permute.xlu0 %7685
      %7687 = vrot.lane.b32.xlu0 %v7475, 32
      %v7688 = vpop.permute.xlu0 %7687
      %7689 = vrot.lane.b32.xlu0 %v7477, 32
      %v7690 = vpop.permute.xlu0 %7689
      %7691 = vrot.lane.b32.xlu0 %v7480, 32
      %v7692 = vpop.permute.xlu0 %7691
      %7693 = vrot.lane.b32.xlu0 %v7482, 32
      %v7694 = vpop.permute.xlu0 %7693
      %7695 = vrot.lane.b32.xlu0 %v7485, 32
      %v7696 = vpop.permute.xlu0 %7695
      %7697 = vrot.lane.b32.xlu0 %v7487, 32
      %v7698 = vpop.permute.xlu0 %7697
      %7699 = vrot.lane.b32.xlu0 %v7490, 32
      %v7700 = vpop.permute.xlu0 %7699
      %7701 = vrot.lane.b32.xlu0 %v7492, 32
      %v7702 = vpop.permute.xlu0 %7701
      %7703 = vrot.lane.b32.xlu0 %v7495, 32
      %v7704 = vpop.permute.xlu0 %7703
      %7705 = vrot.lane.b32.xlu0 %v7497, 32
      %v7706 = vpop.permute.xlu0 %7705
      %7707 = vrot.lane.b32.xlu0 %v7500, 32
      %v7708 = vpop.permute.xlu0 %7707
      %7709 = vrot.lane.b32.xlu0 %v7502, 32
      %v7710 = vpop.permute.xlu0 %7709
      %7711 = vrot.lane.b32.xlu0 %v7505, 32
      %v7712 = vpop.permute.xlu0 %7711
      %7713 = vrot.lane.b32.xlu0 %v7507, 32
      %v7714 = vpop.permute.xlu0 %7713
      %7715 = vrot.lane.b32.xlu0 %v7510, 32
      %v7716 = vpop.permute.xlu0 %7715
      %7717 = vrot.lane.b32.xlu0 %v7512, 32
      %v7718 = vpop.permute.xlu0 %7717
      %7719 = vrot.lane.b32.xlu0 %v7515, 32
      %v7720 = vpop.permute.xlu0 %7719
      %7721 = vrot.lane.b32.xlu0 %v7517, 32
      %v7722 = vpop.permute.xlu0 %7721
      %7723 = vrot.lane.b32.xlu0 %v7520, 32
      %v7724 = vpop.permute.xlu0 %7723
      %7725 = vrot.lane.b32.xlu0 %v7522, 32
      %v7726 = vpop.permute.xlu0 %7725
      %7727 = vrot.lane.b32.xlu0 %v7525, 32
      %v7728 = vpop.permute.xlu0 %7727
      %7729 = vrot.lane.b32.xlu0 %v7527, 32
      %v7730 = vpop.permute.xlu0 %7729
      %7731 = vrot.lane.b32.xlu0 %v7530, 32
      %v7732 = vpop.permute.xlu0 %7731
      %7733 = vrot.lane.b32.xlu0 %v7532, 32
      %v7734 = vpop.permute.xlu0 %7733
      %7767 = vrot.lane.b32.xlu0 %v7535, 64
      %v7768 = vpop.permute.xlu0 %7767
      %7769 = vrot.lane.b32.xlu0 %v7537, 64
      %v7770 = vpop.permute.xlu0 %7769
      %7771 = vrot.lane.b32.xlu0 %v7540, 64
      %v7772 = vpop.permute.xlu0 %7771
      %7773 = vrot.lane.b32.xlu0 %v7542, 64
      %v7774 = vpop.permute.xlu0 %7773
      %7775 = vrot.lane.b32.xlu0 %v7545, 64
      %v7776 = vpop.permute.xlu0 %7775
      %7777 = vrot.lane.b32.xlu0 %v7547, 64
      %v7778 = vpop.permute.xlu0 %7777
      %7779 = vrot.lane.b32.xlu0 %v7550, 64
      %v7780 = vpop.permute.xlu0 %7779
      %7781 = vrot.lane.b32.xlu0 %v7552, 64
      %v7782 = vpop.permute.xlu0 %7781
      %7783 = vrot.lane.b32.xlu0 %v7555, 64
      %v7784 = vpop.permute.xlu0 %7783
      %7785 = vrot.lane.b32.xlu0 %v7557, 64
      %v7786 = vpop.permute.xlu0 %7785
      %7787 = vrot.lane.b32.xlu0 %v7560, 64
      %v7788 = vpop.permute.xlu0 %7787
      %7789 = vrot.lane.b32.xlu0 %v7562, 64
      %v7790 = vpop.permute.xlu0 %7789
      %7791 = vrot.lane.b32.xlu0 %v7565, 64
      %v7792 = vpop.permute.xlu0 %7791
      %7793 = vrot.lane.b32.xlu0 %v7567, 64
      %v7794 = vpop.permute.xlu0 %7793
      %7795 = vrot.lane.b32.xlu0 %v7570, 64
      %v7796 = vpop.permute.xlu0 %7795
      %7797 = vrot.lane.b32.xlu0 %v7572, 64
      %v7798 = vpop.permute.xlu0 %7797
      %7799 = vrot.lane.b32.xlu0 %v7575, 64
      %v7800 = vpop.permute.xlu0 %7799
      %7801 = vrot.lane.b32.xlu0 %v7577, 64
      %v7802 = vpop.permute.xlu0 %7801
      %7803 = vrot.lane.b32.xlu0 %v7580, 64
      %v7804 = vpop.permute.xlu0 %7803
      %7805 = vrot.lane.b32.xlu0 %v7582, 64
      %v7806 = vpop.permute.xlu0 %7805
      %7807 = vrot.lane.b32.xlu0 %v7585, 64
      %v7808 = vpop.permute.xlu0 %7807
      %7809 = vrot.lane.b32.xlu0 %v7587, 64
      %v7810 = vpop.permute.xlu0 %7809
      %7811 = vrot.lane.b32.xlu0 %v7590, 64
      %v7812 = vpop.permute.xlu0 %7811
      %7813 = vrot.lane.b32.xlu0 %v7592, 64
      %v7814 = vpop.permute.xlu0 %7813
      %7815 = vrot.lane.b32.xlu0 %v7595, 64
      %v7816 = vpop.permute.xlu0 %7815
      %7817 = vrot.lane.b32.xlu0 %v7597, 64
      %v7818 = vpop.permute.xlu0 %7817
      %7819 = vrot.lane.b32.xlu0 %v7600, 64
      %v7820 = vpop.permute.xlu0 %7819
      %7821 = vrot.lane.b32.xlu0 %v7602, 64
      %v7822 = vpop.permute.xlu0 %7821
      %7823 = vrot.lane.b32.xlu0 %v7605, 64
      %v7824 = vpop.permute.xlu0 %7823
      %7825 = vrot.lane.b32.xlu0 %v7607, 64
      %v7826 = vpop.permute.xlu0 %7825
      %7827 = vrot.lane.b32.xlu0 %v7610, 64
      %v7828 = vpop.permute.xlu0 %7827
      %7829 = vrot.lane.b32.xlu0 %v7612, 64
      %v7830 = vpop.permute.xlu0 %7829
      %7863 = vrot.lane.b32.xlu0 %v7354, 96
      %v7864 = vpop.permute.xlu0 %7863
      %7865 = vrot.lane.b32.xlu0 %v7355, 96
      %v7866 = vpop.permute.xlu0 %7865
      %7867 = vrot.lane.b32.xlu0 %v7357, 96
      %v7868 = vpop.permute.xlu0 %7867
      %7869 = vrot.lane.b32.xlu0 %v7358, 96
      %v7870 = vpop.permute.xlu0 %7869
      %7871 = vrot.lane.b32.xlu0 %v7360, 96
      %v7872 = vpop.permute.xlu0 %7871
      %7873 = vrot.lane.b32.xlu0 %v7361, 96
      %v7874 = vpop.permute.xlu0 %7873
      %7875 = vrot.lane.b32.xlu0 %v7363, 96
      %v7876 = vpop.permute.xlu0 %7875
      %7877 = vrot.lane.b32.xlu0 %v7364, 96
      %v7878 = vpop.permute.xlu0 %7877
      %7879 = vrot.lane.b32.xlu0 %v7366, 96
      %v7880 = vpop.permute.xlu0 %7879
      %7881 = vrot.lane.b32.xlu0 %v7367, 96
      %v7882 = vpop.permute.xlu0 %7881
      %7883 = vrot.lane.b32.xlu0 %v7369, 96
      %v7884 = vpop.permute.xlu0 %7883
      %7885 = vrot.lane.b32.xlu0 %v7370, 96
      %v7886 = vpop.permute.xlu0 %7885
      %7887 = vrot.lane.b32.xlu0 %v7372, 96
      %v7888 = vpop.permute.xlu0 %7887
      %7889 = vrot.lane.b32.xlu0 %v7373, 96
      %v7890 = vpop.permute.xlu0 %7889
      %7891 = vrot.lane.b32.xlu0 %v7375, 96
      %v7892 = vpop.permute.xlu0 %7891
      %7893 = vrot.lane.b32.xlu0 %v7376, 96
      %v7894 = vpop.permute.xlu0 %7893
      %7895 = vrot.lane.b32.xlu0 %v7378, 96
      %v7896 = vpop.permute.xlu0 %7895
      %7897 = vrot.lane.b32.xlu0 %v7379, 96
      %v7898 = vpop.permute.xlu0 %7897
      %7899 = vrot.lane.b32.xlu0 %v7381, 96
      %v7900 = vpop.permute.xlu0 %7899
      %7901 = vrot.lane.b32.xlu0 %v7382, 96
      %v7902 = vpop.permute.xlu0 %7901
      %7903 = vrot.lane.b32.xlu0 %v7384, 96
      %v7904 = vpop.permute.xlu0 %7903
      %7905 = vrot.lane.b32.xlu0 %v7385, 96
      %v7906 = vpop.permute.xlu0 %7905
      %7907 = vrot.lane.b32.xlu0 %v7387, 96
      %v7908 = vpop.permute.xlu0 %7907
      %7909 = vrot.lane.b32.xlu0 %v7388, 96
      %v7910 = vpop.permute.xlu0 %7909
      %7911 = vrot.lane.b32.xlu0 %v7390, 96
      %v7912 = vpop.permute.xlu0 %7911
      %7913 = vrot.lane.b32.xlu0 %v7391, 96
      %v7914 = vpop.permute.xlu0 %7913
      %7915 = vrot.lane.b32.xlu0 %v7393, 96
      %v7916 = vpop.permute.xlu0 %7915
      %7917 = vrot.lane.b32.xlu0 %v7394, 96
      %v7918 = vpop.permute.xlu0 %7917
      %7919 = vrot.lane.b32.xlu0 %v7396, 96
      %v7920 = vpop.permute.xlu0 %7919
      %7921 = vrot.lane.b32.xlu0 %v7397, 96
      %v7922 = vpop.permute.xlu0 %7921
      %7923 = vrot.lane.b32.xlu0 %v7399, 96
      %v7924 = vpop.permute.xlu0 %7923
      %7925 = vrot.lane.b32.xlu0 %v7400, 96
      %v7926 = vpop.permute.xlu0 %7925
      %7959 = vrot.lane.b32.xlu0 %v7540, 32
      %v7960 = vpop.permute.xlu0 %7959
      %7961 = vrot.lane.b32.xlu0 %v7542, 32
      %v7962 = vpop.permute.xlu0 %7961
      %7963 = vrot.lane.b32.xlu0 %v7545, 32
      %v7964 = vpop.permute.xlu0 %7963
      %7965 = vrot.lane.b32.xlu0 %v7547, 32
      %v7966 = vpop.permute.xlu0 %7965
      %7967 = vrot.lane.b32.xlu0 %v7550, 32
      %v7968 = vpop.permute.xlu0 %7967
      %7969 = vrot.lane.b32.xlu0 %v7552, 32
      %v7970 = vpop.permute.xlu0 %7969
      %7971 = vrot.lane.b32.xlu0 %v7555, 32
      %v7972 = vpop.permute.xlu0 %7971
      %7973 = vrot.lane.b32.xlu0 %v7557, 32
      %v7974 = vpop.permute.xlu0 %7973
      %7975 = vrot.lane.b32.xlu0 %v7560, 32
      %v7976 = vpop.permute.xlu0 %7975
      %7977 = vrot.lane.b32.xlu0 %v7562, 32
      %v7978 = vpop.permute.xlu0 %7977
      %7979 = vrot.lane.b32.xlu0 %v7565, 32
      %v7980 = vpop.permute.xlu0 %7979
      %7981 = vrot.lane.b32.xlu0 %v7567, 32
      %v7982 = vpop.permute.xlu0 %7981
      %7983 = vrot.lane.b32.xlu0 %v7570, 32
      %v7984 = vpop.permute.xlu0 %7983
      %7985 = vrot.lane.b32.xlu0 %v7572, 32
      %v7986 = vpop.permute.xlu0 %7985
      %7987 = vrot.lane.b32.xlu0 %v7575, 32
      %v7988 = vpop.permute.xlu0 %7987
      %7989 = vrot.lane.b32.xlu0 %v7577, 32
      %v7990 = vpop.permute.xlu0 %7989
      %7991 = vrot.lane.b32.xlu0 %v7580, 32
      %v7992 = vpop.permute.xlu0 %7991
      %7993 = vrot.lane.b32.xlu0 %v7582, 32
      %v7994 = vpop.permute.xlu0 %7993
      %7995 = vrot.lane.b32.xlu0 %v7585, 32
      %v7996 = vpop.permute.xlu0 %7995
      %7997 = vrot.lane.b32.xlu0 %v7587, 32
      %v7998 = vpop.permute.xlu0 %7997
      %7999 = vrot.lane.b32.xlu0 %v7590, 32
      %v8000 = vpop.permute.xlu0 %7999
      %8001 = vrot.lane.b32.xlu0 %v7592, 32
      %v8002 = vpop.permute.xlu0 %8001
      %8003 = vrot.lane.b32.xlu0 %v7595, 32
      %v8004 = vpop.permute.xlu0 %8003
      %8005 = vrot.lane.b32.xlu0 %v7597, 32
      %v8006 = vpop.permute.xlu0 %8005
      %8007 = vrot.lane.b32.xlu0 %v7600, 32
      %v8008 = vpop.permute.xlu0 %8007
      %8009 = vrot.lane.b32.xlu0 %v7602, 32
      %v8010 = vpop.permute.xlu0 %8009
      %8011 = vrot.lane.b32.xlu0 %v7605, 32
      %v8012 = vpop.permute.xlu0 %8011
      %8013 = vrot.lane.b32.xlu0 %v7607, 32
      %v8014 = vpop.permute.xlu0 %8013
      %8015 = vrot.lane.b32.xlu0 %v7610, 32
      %v8016 = vpop.permute.xlu0 %8015
      %8017 = vrot.lane.b32.xlu0 %v7612, 32
      %v8018 = vpop.permute.xlu0 %8017
      %8019 = vrot.lane.b32.xlu0 %v7655, 32
      %v8020 = vpop.permute.xlu0 %8019
      %8021 = vrot.lane.b32.xlu0 %v7657, 32
      %v8022 = vpop.permute.xlu0 %8021
      %8055 = vrot.lane.b32.xlu0 %v7357, 64
      %v8056 = vpop.permute.xlu0 %8055
      %8057 = vrot.lane.b32.xlu0 %v7358, 64
      %v8058 = vpop.permute.xlu0 %8057
      %8059 = vrot.lane.b32.xlu0 %v7360, 64
      %v8060 = vpop.permute.xlu0 %8059
      %8061 = vrot.lane.b32.xlu0 %v7361, 64
      %v8062 = vpop.permute.xlu0 %8061
      %8063 = vrot.lane.b32.xlu0 %v7363, 64
      %v8064 = vpop.permute.xlu0 %8063
      %8065 = vrot.lane.b32.xlu0 %v7364, 64
      %v8066 = vpop.permute.xlu0 %8065
      %8067 = vrot.lane.b32.xlu0 %v7366, 64
      %v8068 = vpop.permute.xlu0 %8067
      %8069 = vrot.lane.b32.xlu0 %v7367, 64
      %v8070 = vpop.permute.xlu0 %8069
      %8071 = vrot.lane.b32.xlu0 %v7369, 64
      %v8072 = vpop.permute.xlu0 %8071
      %8073 = vrot.lane.b32.xlu0 %v7370, 64
      %v8074 = vpop.permute.xlu0 %8073
      %8075 = vrot.lane.b32.xlu0 %v7372, 64
      %v8076 = vpop.permute.xlu0 %8075
      %8077 = vrot.lane.b32.xlu0 %v7373, 64
      %v8078 = vpop.permute.xlu0 %8077
      %8079 = vrot.lane.b32.xlu0 %v7375, 64
      %v8080 = vpop.permute.xlu0 %8079
      %8081 = vrot.lane.b32.xlu0 %v7376, 64
      %v8082 = vpop.permute.xlu0 %8081
      %8083 = vrot.lane.b32.xlu0 %v7378, 64
      %v8084 = vpop.permute.xlu0 %8083
      %8085 = vrot.lane.b32.xlu0 %v7379, 64
      %v8086 = vpop.permute.xlu0 %8085
      %8087 = vrot.lane.b32.xlu0 %v7381, 64
      %v8088 = vpop.permute.xlu0 %8087
      %8089 = vrot.lane.b32.xlu0 %v7382, 64
      %v8090 = vpop.permute.xlu0 %8089
      %8091 = vrot.lane.b32.xlu0 %v7384, 64
      %v8092 = vpop.permute.xlu0 %8091
      %8093 = vrot.lane.b32.xlu0 %v7385, 64
      %v8094 = vpop.permute.xlu0 %8093
      %8095 = vrot.lane.b32.xlu0 %v7387, 64
      %v8096 = vpop.permute.xlu0 %8095
      %8097 = vrot.lane.b32.xlu0 %v7388, 64
      %v8098 = vpop.permute.xlu0 %8097
      %8099 = vrot.lane.b32.xlu0 %v7390, 64
      %v8100 = vpop.permute.xlu0 %8099
      %8101 = vrot.lane.b32.xlu0 %v7391, 64
      %v8102 = vpop.permute.xlu0 %8101
      %8103 = vrot.lane.b32.xlu0 %v7393, 64
      %v8104 = vpop.permute.xlu0 %8103
      %8105 = vrot.lane.b32.xlu0 %v7394, 64
      %v8106 = vpop.permute.xlu0 %8105
      %8107 = vrot.lane.b32.xlu0 %v7396, 64
      %v8108 = vpop.permute.xlu0 %8107
      %8109 = vrot.lane.b32.xlu0 %v7397, 64
      %v8110 = vpop.permute.xlu0 %8109
      %8111 = vrot.lane.b32.xlu0 %v7399, 64
      %v8112 = vpop.permute.xlu0 %8111
      %8113 = vrot.lane.b32.xlu0 %v7400, 64
      %v8114 = vpop.permute.xlu0 %8113
      %8115 = vrot.lane.b32.xlu0 %v7402, 64
      %v8116 = vpop.permute.xlu0 %8115
      %8117 = vrot.lane.b32.xlu0 %v7403, 64
      %v8118 = vpop.permute.xlu0 %8117
      %8151 = vrot.lane.b32.xlu0 %v7465, 96
      %v8152 = vpop.permute.xlu0 %8151
      %8153 = vrot.lane.b32.xlu0 %v7467, 96
      %v8154 = vpop.permute.xlu0 %8153
      %8155 = vrot.lane.b32.xlu0 %v7470, 96
      %v8156 = vpop.permute.xlu0 %8155
      %8157 = vrot.lane.b32.xlu0 %v7472, 96
      %v8158 = vpop.permute.xlu0 %8157
      %8159 = vrot.lane.b32.xlu0 %v7475, 96
      %v8160 = vpop.permute.xlu0 %8159
      %8161 = vrot.lane.b32.xlu0 %v7477, 96
      %v8162 = vpop.permute.xlu0 %8161
      %8163 = vrot.lane.b32.xlu0 %v7480, 96
      %v8164 = vpop.permute.xlu0 %8163
      %8165 = vrot.lane.b32.xlu0 %v7482, 96
      %v8166 = vpop.permute.xlu0 %8165
      %8167 = vrot.lane.b32.xlu0 %v7485, 96
      %v8168 = vpop.permute.xlu0 %8167
      %8169 = vrot.lane.b32.xlu0 %v7487, 96
      %v8170 = vpop.permute.xlu0 %8169
      %8171 = vrot.lane.b32.xlu0 %v7490, 96
      %v8172 = vpop.permute.xlu0 %8171
      %8173 = vrot.lane.b32.xlu0 %v7492, 96
      %v8174 = vpop.permute.xlu0 %8173
      %8175 = vrot.lane.b32.xlu0 %v7495, 96
      %v8176 = vpop.permute.xlu0 %8175
      %8177 = vrot.lane.b32.xlu0 %v7497, 96
      %v8178 = vpop.permute.xlu0 %8177
      %8179 = vrot.lane.b32.xlu0 %v7500, 96
      %v8180 = vpop.permute.xlu0 %8179
      %8181 = vrot.lane.b32.xlu0 %v7502, 96
      %v8182 = vpop.permute.xlu0 %8181
      %8183 = vrot.lane.b32.xlu0 %v7505, 96
      %v8184 = vpop.permute.xlu0 %8183
      %8185 = vrot.lane.b32.xlu0 %v7507, 96
      %v8186 = vpop.permute.xlu0 %8185
      %8187 = vrot.lane.b32.xlu0 %v7510, 96
      %v8188 = vpop.permute.xlu0 %8187
      %8189 = vrot.lane.b32.xlu0 %v7512, 96
      %v8190 = vpop.permute.xlu0 %8189
      %8191 = vrot.lane.b32.xlu0 %v7515, 96
      %v8192 = vpop.permute.xlu0 %8191
      %8193 = vrot.lane.b32.xlu0 %v7517, 96
      %v8194 = vpop.permute.xlu0 %8193
      %8195 = vrot.lane.b32.xlu0 %v7520, 96
      %v8196 = vpop.permute.xlu0 %8195
      %8197 = vrot.lane.b32.xlu0 %v7522, 96
      %v8198 = vpop.permute.xlu0 %8197
      %8199 = vrot.lane.b32.xlu0 %v7525, 96
      %v8200 = vpop.permute.xlu0 %8199
      %8201 = vrot.lane.b32.xlu0 %v7527, 96
      %v8202 = vpop.permute.xlu0 %8201
      %8203 = vrot.lane.b32.xlu0 %v7530, 96
      %v8204 = vpop.permute.xlu0 %8203
      %8205 = vrot.lane.b32.xlu0 %v7532, 96
      %v8206 = vpop.permute.xlu0 %8205
      %8207 = vrot.lane.b32.xlu0 %v7618, 96
      %v8208 = vpop.permute.xlu0 %8207
      %8209 = vrot.lane.b32.xlu0 %v7620, 96
      %v8210 = vpop.permute.xlu0 %8209
      %8211 = vrot.lane.b32.xlu0 %v7663, 96
      %v8212 = vpop.permute.xlu0 %8211
      %8213 = vrot.lane.b32.xlu0 %v7665, 96
      %v8214 = vpop.permute.xlu0 %8213
      %v8247 = vsel %vm279, %v7351, %v7672
      %v8248 = vsel %vm279, %v7352, %v7674
      %v8249 = vsel %vm279, %v7354, %v7676
      %v8250 = vsel %vm279, %v7355, %v7678
      %v8251 = vsel %vm279, %v7357, %v7680
      %v8252 = vsel %vm279, %v7358, %v7682
      %v8253 = vsel %vm279, %v7360, %v7684
      %v8254 = vsel %vm279, %v7361, %v7686
      %v8255 = vsel %vm279, %v7363, %v7688
      %v8256 = vsel %vm279, %v7364, %v7690
      %v8257 = vsel %vm279, %v7366, %v7692
      %v8258 = vsel %vm279, %v7367, %v7694
      %v8259 = vsel %vm279, %v7369, %v7696
      %v8260 = vsel %vm279, %v7370, %v7698
      %v8261 = vsel %vm279, %v7372, %v7700
      %v8262 = vsel %vm279, %v7373, %v7702
      %v8263 = vsel %vm279, %v7375, %v7704
      %v8264 = vsel %vm279, %v7376, %v7706
      %v8265 = vsel %vm279, %v7378, %v7708
      %v8266 = vsel %vm279, %v7379, %v7710
      %v8267 = vsel %vm279, %v7381, %v7712
      %v8268 = vsel %vm279, %v7382, %v7714
      %v8269 = vsel %vm279, %v7384, %v7716
      %v8270 = vsel %vm279, %v7385, %v7718
      %v8271 = vsel %vm279, %v7387, %v7720
      %v8272 = vsel %vm279, %v7388, %v7722
      %v8273 = vsel %vm279, %v7390, %v7724
      %v8274 = vsel %vm279, %v7391, %v7726
      %v8275 = vsel %vm279, %v7393, %v7728
      %v8276 = vsel %vm279, %v7394, %v7730
      %v8277 = vsel %vm279, %v7396, %v7732
      %v8278 = vsel %vm279, %v7397, %v7734
      %v8279 = vsel %vm3050, %v8247, %v7768
      %v8280 = vsel %vm3050, %v8248, %v7770
      %v8281 = vsel %vm3050, %v8249, %v7772
      %v8282 = vsel %vm3050, %v8250, %v7774
      %v8283 = vsel %vm3050, %v8251, %v7776
      %v8284 = vsel %vm3050, %v8252, %v7778
      %v8285 = vsel %vm3050, %v8253, %v7780
      %v8286 = vsel %vm3050, %v8254, %v7782
      %v8287 = vsel %vm3050, %v8255, %v7784
      %v8288 = vsel %vm3050, %v8256, %v7786
      %v8289 = vsel %vm3050, %v8257, %v7788
      %v8290 = vsel %vm3050, %v8258, %v7790
      %v8291 = vsel %vm3050, %v8259, %v7792
      %v8292 = vsel %vm3050, %v8260, %v7794
      %v8293 = vsel %vm3050, %v8261, %v7796
      %v8294 = vsel %vm3050, %v8262, %v7798
      %v8295 = vsel %vm3050, %v8263, %v7800
      %v8296 = vsel %vm3050, %v8264, %v7802
      %v8297 = vsel %vm3050, %v8265, %v7804
      %v8298 = vsel %vm3050, %v8266, %v7806
      %v8299 = vsel %vm3050, %v8267, %v7808
      %v8300 = vsel %vm3050, %v8268, %v7810
      %v8301 = vsel %vm3050, %v8269, %v7812
      %v8302 = vsel %vm3050, %v8270, %v7814
      %v8303 = vsel %vm3050, %v8271, %v7816
      %v8304 = vsel %vm3050, %v8272, %v7818
      %v8305 = vsel %vm3050, %v8273, %v7820
      %v8306 = vsel %vm3050, %v8274, %v7822
      %v8307 = vsel %vm3050, %v8275, %v7824
      %v8308 = vsel %vm3050, %v8276, %v7826
      %v8309 = vsel %vm3050, %v8277, %v7828
      %v8310 = vsel %vm3050, %v8278, %v7830
      %v8311 = vsel %vm3083, %v8279, %v7864
      %v8312 = vsel %vm3083, %v8280, %v7866
      %v8313 = vsel %vm3083, %v8281, %v7868
      %v8314 = vsel %vm3083, %v8282, %v7870
      %v8315 = vsel %vm3083, %v8283, %v7872
      %v8316 = vsel %vm3083, %v8284, %v7874
      %v8317 = vsel %vm3083, %v8285, %v7876
      %v8318 = vsel %vm3083, %v8286, %v7878
      %v8319 = vsel %vm3083, %v8287, %v7880
      %v8320 = vsel %vm3083, %v8288, %v7882
      %v8321 = vsel %vm3083, %v8289, %v7884
      %v8322 = vsel %vm3083, %v8290, %v7886
      %v8323 = vsel %vm3083, %v8291, %v7888
      %v8324 = vsel %vm3083, %v8292, %v7890
      %v8325 = vsel %vm3083, %v8293, %v7892
      %v8326 = vsel %vm3083, %v8294, %v7894
      %v8327 = vsel %vm3083, %v8295, %v7896
      %v8328 = vsel %vm3083, %v8296, %v7898
      %v8329 = vsel %vm3083, %v8297, %v7900
      %v8330 = vsel %vm3083, %v8298, %v7902
      %v8331 = vsel %vm3083, %v8299, %v7904
      %v8332 = vsel %vm3083, %v8300, %v7906
      %v8333 = vsel %vm3083, %v8301, %v7908
      %v8334 = vsel %vm3083, %v8302, %v7910
      %v8335 = vsel %vm3083, %v8303, %v7912
      %v8336 = vsel %vm3083, %v8304, %v7914
      %v8337 = vsel %vm3083, %v8305, %v7916
      %v8338 = vsel %vm3083, %v8306, %v7918
      %v8339 = vsel %vm3083, %v8307, %v7920
      %v8340 = vsel %vm3083, %v8308, %v7922
      %v8341 = vsel %vm3083, %v8309, %v7924
      %v8342 = vsel %vm3083, %v8310, %v7926
      %v8343 = vsel %vm279, %v7460, %v7960
      %v8344 = vsel %vm279, %v7462, %v7962
      %v8345 = vsel %vm279, %v7465, %v7964
      %v8346 = vsel %vm279, %v7467, %v7966
      %v8347 = vsel %vm279, %v7470, %v7968
      %v8348 = vsel %vm279, %v7472, %v7970
      %v8349 = vsel %vm279, %v7475, %v7972
      %v8350 = vsel %vm279, %v7477, %v7974
      %v8351 = vsel %vm279, %v7480, %v7976
      %v8352 = vsel %vm279, %v7482, %v7978
      %v8353 = vsel %vm279, %v7485, %v7980
      %v8354 = vsel %vm279, %v7487, %v7982
      %v8355 = vsel %vm279, %v7490, %v7984
      %v8356 = vsel %vm279, %v7492, %v7986
      %v8357 = vsel %vm279, %v7495, %v7988
      %v8358 = vsel %vm279, %v7497, %v7990
      %v8359 = vsel %vm279, %v7500, %v7992
      %v8360 = vsel %vm279, %v7502, %v7994
      %v8361 = vsel %vm279, %v7505, %v7996
      %v8362 = vsel %vm279, %v7507, %v7998
      %v8363 = vsel %vm279, %v7510, %v8000
      %v8364 = vsel %vm279, %v7512, %v8002
      %v8365 = vsel %vm279, %v7515, %v8004
      %v8366 = vsel %vm279, %v7517, %v8006
      %v8367 = vsel %vm279, %v7520, %v8008
      %v8368 = vsel %vm279, %v7522, %v8010
      %v8369 = vsel %vm279, %v7525, %v8012
      %v8370 = vsel %vm279, %v7527, %v8014
      %v8371 = vsel %vm279, %v7530, %v8016
      %v8372 = vsel %vm279, %v7532, %v8018
      %v8373 = vsel %vm279, %v7618, %v8020
      %v8374 = vsel %vm279, %v7620, %v8022
      %v8375 = vsel %vm3050, %v8343, %v8056
      %v8376 = vsel %vm3050, %v8344, %v8058
      %v8377 = vsel %vm3050, %v8345, %v8060
      %v8378 = vsel %vm3050, %v8346, %v8062
      %v8379 = vsel %vm3050, %v8347, %v8064
      %v8380 = vsel %vm3050, %v8348, %v8066
      %v8381 = vsel %vm3050, %v8349, %v8068
      %v8382 = vsel %vm3050, %v8350, %v8070
      %v8383 = vsel %vm3050, %v8351, %v8072
      %v8384 = vsel %vm3050, %v8352, %v8074
      %v8385 = vsel %vm3050, %v8353, %v8076
      %v8386 = vsel %vm3050, %v8354, %v8078
      %v8387 = vsel %vm3050, %v8355, %v8080
      %v8388 = vsel %vm3050, %v8356, %v8082
      %v8389 = vsel %vm3050, %v8357, %v8084
      %v8390 = vsel %vm3050, %v8358, %v8086
      %v8391 = vsel %vm3050, %v8359, %v8088
      %v8392 = vsel %vm3050, %v8360, %v8090
      %v8393 = vsel %vm3050, %v8361, %v8092
      %v8394 = vsel %vm3050, %v8362, %v8094
      %v8395 = vsel %vm3050, %v8363, %v8096
      %v8396 = vsel %vm3050, %v8364, %v8098
      %v8397 = vsel %vm3050, %v8365, %v8100
      %v8398 = vsel %vm3050, %v8366, %v8102
      %v8399 = vsel %vm3050, %v8367, %v8104
      %v8400 = vsel %vm3050, %v8368, %v8106
      %v8401 = vsel %vm3050, %v8369, %v8108
      %v8402 = vsel %vm3050, %v8370, %v8110
      %v8403 = vsel %vm3050, %v8371, %v8112
      %v8404 = vsel %vm3050, %v8372, %v8114
      %v8405 = vsel %vm3050, %v8373, %v8116
      %v8406 = vsel %vm3050, %v8374, %v8118
      %v8407 = vsel %vm3083, %v8375, %v8152
      %v8408 = vsel %vm3083, %v8376, %v8154
      %v8409 = vsel %vm3083, %v8377, %v8156
      %v8410 = vsel %vm3083, %v8378, %v8158
      %v8411 = vsel %vm3083, %v8379, %v8160
      %v8412 = vsel %vm3083, %v8380, %v8162
      %v8413 = vsel %vm3083, %v8381, %v8164
      %v8414 = vsel %vm3083, %v8382, %v8166
      %v8415 = vsel %vm3083, %v8383, %v8168
      %v8416 = vsel %vm3083, %v8384, %v8170
      %v8417 = vsel %vm3083, %v8385, %v8172
      %v8418 = vsel %vm3083, %v8386, %v8174
      %v8419 = vsel %vm3083, %v8387, %v8176
      %v8420 = vsel %vm3083, %v8388, %v8178
      %v8421 = vsel %vm3083, %v8389, %v8180
      %v8422 = vsel %vm3083, %v8390, %v8182
      %v8423 = vsel %vm3083, %v8391, %v8184
      %v8424 = vsel %vm3083, %v8392, %v8186
      %v8425 = vsel %vm3083, %v8393, %v8188
      %v8426 = vsel %vm3083, %v8394, %v8190
      %v8427 = vsel %vm3083, %v8395, %v8192
      %v8428 = vsel %vm3083, %v8396, %v8194
      %v8429 = vsel %vm3083, %v8397, %v8196
      %v8430 = vsel %vm3083, %v8398, %v8198
      %v8431 = vsel %vm3083, %v8399, %v8200
      %v8432 = vsel %vm3083, %v8400, %v8202
      %v8433 = vsel %vm3083, %v8401, %v8204
      %v8434 = vsel %vm3083, %v8402, %v8206
      %v8435 = vsel %vm3083, %v8403, %v8208
      %v8436 = vsel %vm3083, %v8404, %v8210
      %v8437 = vsel %vm3083, %v8405, %v8212
      %v8438 = vsel %vm3083, %v8406, %v8214
      %v8439 = vld [vmem:[%s5] sm:$0xff]
      %v8440 = vld [vmem:[%s5 + $0x8] sm:$0xff]
      %v8441 = vld [vmem:[%s5 + $0x10] sm:$0xff]
      %v8442 = vld [vmem:[%s5 + $0x18] sm:$0xff]
      %v8443 = vld [vmem:[%s5 + $0x20] sm:$0xff]
      %v8444 = vld [vmem:[%s5 + $0x28] sm:$0xff]
      %v8445 = vld [vmem:[%s5 + $0x30] sm:$0xff]
      %v8446 = vld [vmem:[%s5 + $0x38] sm:$0xff]
      %v8447 = vld [vmem:[%s5 + $0x40] sm:$0xff]
      %v8448 = vld [vmem:[%s5 + $0x48] sm:$0xff]
      %v8449 = vld [vmem:[%s5 + $0x50] sm:$0xff]
      %v8450 = vld [vmem:[%s5 + $0x58] sm:$0xff]
      %v8451 = vld [vmem:[%s5 + $0x60] sm:$0xff]
      %v8452 = vld [vmem:[%s5 + $0x68] sm:$0xff]
      %v8453 = vld [vmem:[%s5 + $0x70] sm:$0xff]
      %v8454 = vld [vmem:[%s5 + $0x78] sm:$0xff]
      %v8455 = vld [vmem:[%s5 + $0x80] sm:$0xff]
      %v8456 = vld [vmem:[%s5 + $0x88] sm:$0xff]
      %v8457 = vld [vmem:[%s5 + $0x90] sm:$0xff]
      %v8458 = vld [vmem:[%s5 + $0x98] sm:$0xff]
      %v8459 = vld [vmem:[%s5 + $0xa0] sm:$0xff]
      %v8460 = vld [vmem:[%s5 + $0xa8] sm:$0xff]
      %v8461 = vld [vmem:[%s5 + $0xb0] sm:$0xff]
      %v8462 = vld [vmem:[%s5 + $0xb8] sm:$0xff]
      %v8463 = vld [vmem:[%s5 + $0xc0] sm:$0xff]
      %v8464 = vld [vmem:[%s5 + $0xc8] sm:$0xff]
      %v8465 = vld [vmem:[%s5 + $0xd0] sm:$0xff]
      %v8466 = vld [vmem:[%s5 + $0xd8] sm:$0xff]
      %v8467 = vld [vmem:[%s5 + $0xe0] sm:$0xff]
      %v8468 = vld [vmem:[%s5 + $0xe8] sm:$0xff]
      %v8469 = vld [vmem:[%s5 + $0xf0] sm:$0xff]
      %v8470 = vld [vmem:[%s5 + $0xf8] sm:$0xff]
      %v8471 = vld [vmem:[%s5 + $0x100] sm:$0xff]
      %v8472 = vld [vmem:[%s5 + $0x108] sm:$0xff]
      %v8473 = vld [vmem:[%s5 + $0x110] sm:$0xff]
      %v8474 = vld [vmem:[%s5 + $0x118] sm:$0xff]
      %v8475 = vld [vmem:[%s6] sm:$0x1]
      %v8477 = vlaneseq
      %v8478 = vshrl.u32 %v8477, 7
      %v8479 = vsub.s32 0, %v8478
      %v8480 = vrot.slane %v8475, %v8479
      %v8482 = vsel %vm279, %v7545, 0
      %v8484 = vsel %vm279, %v7547, 0
      %v8486 = vsel %vm279, %v7550, 0
      %v8488 = vsel %vm279, %v7552, 0
      %v8490 = vsel %vm279, %v7555, 0
      %v8492 = vsel %vm279, %v7557, 0
      %v8494 = vsel %vm279, %v7560, 0
      %v8496 = vsel %vm279, %v7562, 0
      %v8498 = vsel %vm279, %v7565, 0
      %v8500 = vsel %vm279, %v7567, 0
      %v8502 = vsel %vm279, %v7570, 0
      %v8504 = vsel %vm279, %v7572, 0
      %v8506 = vsel %vm279, %v7575, 0
      %v8508 = vsel %vm279, %v7577, 0
      %v8510 = vsel %vm279, %v7580, 0
      %v8512 = vsel %vm279, %v7582, 0
      %v8514 = vsel %vm279, %v7585, 0
      %v8516 = vsel %vm279, %v7587, 0
      %v8518 = vsel %vm279, %v7590, 0
      %v8520 = vsel %vm279, %v7592, 0
      %v8522 = vsel %vm279, %v7595, 0
      %v8524 = vsel %vm279, %v7597, 0
      %v8526 = vsel %vm279, %v7600, 0
      %v8528 = vsel %vm279, %v7602, 0
      %v8530 = vsel %vm279, %v7605, 0
      %v8532 = vsel %vm279, %v7607, 0
      %v8534 = vsel %vm279, %v7610, 0
      %v8536 = vsel %vm279, %v7612, 0
      %v8538 = vsel %vm279, %v7655, 0
      %v8540 = vsel %vm279, %v7657, 0
      %v8542 = vsel %vm279, %v7668, 0
      %v8544 = vsel %vm279, %v7670, 0
      %8546 = vmatprep.subr.mxu0 0.0
      %8547 = vmatpush1.msra.mxu0 %v8454
      %8548 = vmatprep.subr.mxu0 0.0
      %8549 = vmatpush1.msra.mxu0 %v8453
      %8550 = vmatprep.subr.mxu0 0.0
      %8551 = vmatpush1.msra.mxu0 %v8452
      %8552 = vmatprep.subr.mxu0 0.0
      %8553 = vmatpush1.msra.mxu0 %v8451
      %8554 = vmatprep.subr.mxu0 0.0
      %8555 = vmatpush1.msra.mxu0 %v8450
      %8556 = vmatprep.subr.mxu0 0.0
      %8557 = vmatpush1.msra.mxu0 %v8449
      %8558 = vmatprep.subr.mxu0 0.0
      %8559 = vmatpush1.msra.mxu0 %v8448
      %8560 = vmatprep.subr.mxu0 0.0
      %8561 = vmatpush1.msra.mxu0 %v8447
      %8562 = vmatprep.subr.mxu0 0.0
      %8563 = vmatpush1.msra.mxu0 %v8446
      %8564 = vmatprep.subr.mxu0 0.0
      %8565 = vmatpush1.msra.mxu0 %v8445
      %8566 = vmatprep.subr.mxu0 0.0
      %8567 = vmatpush1.msra.mxu0 %v8444
      %8568 = vmatprep.subr.mxu0 0.0
      %8569 = vmatpush1.msra.mxu0 %v8443
      %8570 = vmatprep.subr.mxu0 0.0
      %8571 = vmatpush1.msra.mxu0 %v8442
      %8572 = vmatprep.subr.mxu0 0.0
      %8573 = vmatpush1.msra.mxu0 %v8441
      %8574 = vmatprep.subr.mxu0 0.0
      %8575 = vmatpush1.msra.mxu0 %v8440
      %8576 = vmatprep.subr.mxu0 0.0
      %8577 = vmatpush1.msra.mxu0 %v8439
      %8578 = vmatprep.subr.mxu0 0.0
      %8579 = vmatpush2.msra.mxu0 %v8470
      %8580 = vmatprep.subr.mxu0 0.0
      %8581 = vmatpush2.msra.mxu0 %v8469
      %8582 = vmatprep.subr.mxu0 0.0
      %8583 = vmatpush2.msra.mxu0 %v8468
      %8584 = vmatprep.subr.mxu0 0.0
      %8585 = vmatpush2.msra.mxu0 %v8467
      %8586 = vmatprep.subr.mxu0 0.0
      %8587 = vmatpush2.msra.mxu0 %v8466
      %8588 = vmatprep.subr.mxu0 0.0
      %8589 = vmatpush2.msra.mxu0 %v8465
      %8590 = vmatprep.subr.mxu0 0.0
      %8591 = vmatpush2.msra.mxu0 %v8464
      %8592 = vmatprep.subr.mxu0 0.0
      %8593 = vmatpush2.msra.mxu0 %v8463
      %8594 = vmatprep.subr.mxu0 0.0
      %8595 = vmatpush2.msra.mxu0 %v8462
      %8596 = vmatprep.subr.mxu0 0.0
      %8597 = vmatpush2.msra.mxu0 %v8461
      %8598 = vmatprep.subr.mxu0 0.0
      %8599 = vmatpush2.msra.mxu0 %v8460
      %8600 = vmatprep.subr.mxu0 0.0
      %8601 = vmatpush2.msra.mxu0 %v8459
      %8602 = vmatprep.subr.mxu0 0.0
      %8603 = vmatpush2.msra.mxu0 %v8458
      %8604 = vmatprep.subr.mxu0 0.0
      %8605 = vmatpush2.msra.mxu0 %v8457
      %8606 = vmatprep.subr.mxu0 0.0
      %8607 = vmatpush2.msra.mxu0 %v8456
      %8608 = vmatprep.subr.mxu0 0.0
      %8609 = vmatpush2.msra.mxu0 %v8455
      %8610 = vmatprep.mubr.f32.mxu0 %v8407
      %8611 = vmatmul.mubr.f32.gmra.mxu0 %v8311
      %v8612 = vpop.f32.mrf.mxu0
      %v8613 = vadd.f32 %v8480, %v8612
      %v8614 = vpop.f32.mrf.mxu0
      %8615 = vmatprep.mubr.f32.mxu0 %v8408
      %8616 = vmatmul.mubr.f32.gmra.mxu0 %v8312
      %v8617 = vpop.f32.mrf.mxu0
      %v8618 = vadd.f32 %v8480, %v8617
      %v8619 = vpop.f32.mrf.mxu0
      %8620 = vmatprep.mubr.f32.mxu0 %v8409
      %8621 = vmatmul.mubr.f32.gmra.mxu0 %v8313
      %v8622 = vpop.f32.mrf.mxu0
      %v8623 = vadd.f32 %v8480, %v8622
      %v8624 = vpop.f32.mrf.mxu0
      %8625 = vmatprep.mubr.f32.mxu0 %v8410
      %8626 = vmatmul.mubr.f32.gmra.mxu0 %v8314
      %v8627 = vpop.f32.mrf.mxu0
      %v8628 = vadd.f32 %v8480, %v8627
      %v8629 = vpop.f32.mrf.mxu0
      %8630 = vmatprep.mubr.f32.mxu0 %v8411
      %8631 = vmatmul.mubr.f32.gmra.mxu0 %v8315
      %v8632 = vpop.f32.mrf.mxu0
      %v8633 = vadd.f32 %v8480, %v8632
      %v8634 = vpop.f32.mrf.mxu0
      %8635 = vmatprep.mubr.f32.mxu0 %v8412
      %8636 = vmatmul.mubr.f32.gmra.mxu0 %v8316
      %v8637 = vpop.f32.mrf.mxu0
      %v8638 = vadd.f32 %v8480, %v8637
      %v8639 = vpop.f32.mrf.mxu0
      %8640 = vmatprep.mubr.f32.mxu0 %v8413
      %8641 = vmatmul.mubr.f32.gmra.mxu0 %v8317
      %v8642 = vpop.f32.mrf.mxu0
      %v8643 = vadd.f32 %v8480, %v8642
      %v8644 = vpop.f32.mrf.mxu0
      %8645 = vmatprep.mubr.f32.mxu0 %v8414
      %8646 = vmatmul.mubr.f32.gmra.mxu0 %v8318
      %v8647 = vpop.f32.mrf.mxu0
      %v8648 = vadd.f32 %v8480, %v8647
      %v8649 = vpop.f32.mrf.mxu0
      %8650 = vmatprep.mubr.f32.mxu0 %v8415
      %8651 = vmatmul.mubr.f32.gmra.mxu0 %v8319
      %v8652 = vpop.f32.mrf.mxu0
      %v8653 = vadd.f32 %v8480, %v8652
      %v8654 = vpop.f32.mrf.mxu0
      %8655 = vmatprep.mubr.f32.mxu0 %v8416
      %8656 = vmatmul.mubr.f32.gmra.mxu0 %v8320
      %v8657 = vpop.f32.mrf.mxu0
      %v8658 = vadd.f32 %v8480, %v8657
      %v8659 = vpop.f32.mrf.mxu0
      %8660 = vmatprep.mubr.f32.mxu0 %v8417
      %8661 = vmatmul.mubr.f32.gmra.mxu0 %v8321
      %v8662 = vpop.f32.mrf.mxu0
      %v8663 = vadd.f32 %v8480, %v8662
      %v8664 = vpop.f32.mrf.mxu0
      %8665 = vmatprep.mubr.f32.mxu0 %v8418
      %8666 = vmatmul.mubr.f32.gmra.mxu0 %v8322
      %v8667 = vpop.f32.mrf.mxu0
      %v8668 = vadd.f32 %v8480, %v8667
      %v8669 = vpop.f32.mrf.mxu0
      %8670 = vmatprep.mubr.f32.mxu0 %v8419
      %8671 = vmatmul.mubr.f32.gmra.mxu0 %v8323
      %v8672 = vpop.f32.mrf.mxu0
      %v8673 = vadd.f32 %v8480, %v8672
      %v8674 = vpop.f32.mrf.mxu0
      %8675 = vmatprep.mubr.f32.mxu0 %v8420
      %8676 = vmatmul.mubr.f32.gmra.mxu0 %v8324
      %v8677 = vpop.f32.mrf.mxu0
      %v8678 = vadd.f32 %v8480, %v8677
      %v8679 = vpop.f32.mrf.mxu0
      %8680 = vmatprep.mubr.f32.mxu0 %v8421
      %8681 = vmatmul.mubr.f32.gmra.mxu0 %v8325
      %v8682 = vpop.f32.mrf.mxu0
      %v8683 = vadd.f32 %v8480, %v8682
      %v8684 = vpop.f32.mrf.mxu0
      %8685 = vmatprep.mubr.f32.mxu0 %v8422
      %8686 = vmatmul.mubr.f32.gmra.mxu0 %v8326
      %v8687 = vpop.f32.mrf.mxu0
      %v8688 = vadd.f32 %v8480, %v8687
      %v8689 = vpop.f32.mrf.mxu0
      %8690 = vmatprep.mubr.f32.mxu0 %v8423
      %8691 = vmatmul.mubr.f32.gmra.mxu0 %v8327
      %v8692 = vpop.f32.mrf.mxu0
      %v8693 = vadd.f32 %v8480, %v8692
      %v8694 = vpop.f32.mrf.mxu0
      %8695 = vmatprep.mubr.f32.mxu0 %v8424
      %8696 = vmatmul.mubr.f32.gmra.mxu0 %v8328
      %v8697 = vpop.f32.mrf.mxu0
      %v8698 = vadd.f32 %v8480, %v8697
      %v8699 = vpop.f32.mrf.mxu0
      %8700 = vmatprep.mubr.f32.mxu0 %v8425
      %8701 = vmatmul.mubr.f32.gmra.mxu0 %v8329
      %v8702 = vpop.f32.mrf.mxu0
      %v8703 = vadd.f32 %v8480, %v8702
      %v8704 = vpop.f32.mrf.mxu0
      %8705 = vmatprep.mubr.f32.mxu0 %v8426
      %8706 = vmatmul.mubr.f32.gmra.mxu0 %v8330
      %v8707 = vpop.f32.mrf.mxu0
      %v8708 = vadd.f32 %v8480, %v8707
      %v8709 = vpop.f32.mrf.mxu0
      %8710 = vmatprep.mubr.f32.mxu0 %v8427
      %8711 = vmatmul.mubr.f32.gmra.mxu0 %v8331
      %v8712 = vpop.f32.mrf.mxu0
      %v8713 = vadd.f32 %v8480, %v8712
      %v8714 = vpop.f32.mrf.mxu0
      %8715 = vmatprep.mubr.f32.mxu0 %v8428
      %8716 = vmatmul.mubr.f32.gmra.mxu0 %v8332
      %v8717 = vpop.f32.mrf.mxu0
      %v8718 = vadd.f32 %v8480, %v8717
      %v8719 = vpop.f32.mrf.mxu0
      %8720 = vmatprep.mubr.f32.mxu0 %v8429
      %8721 = vmatmul.mubr.f32.gmra.mxu0 %v8333
      %v8722 = vpop.f32.mrf.mxu0
      %v8723 = vadd.f32 %v8480, %v8722
      %v8724 = vpop.f32.mrf.mxu0
      %8725 = vmatprep.mubr.f32.mxu0 %v8430
      %8726 = vmatmul.mubr.f32.gmra.mxu0 %v8334
      %v8727 = vpop.f32.mrf.mxu0
      %v8728 = vadd.f32 %v8480, %v8727
      %v8729 = vpop.f32.mrf.mxu0
      %8730 = vmatprep.mubr.f32.mxu0 %v8431
      %8731 = vmatmul.mubr.f32.gmra.mxu0 %v8335
      %v8732 = vpop.f32.mrf.mxu0
      %v8733 = vadd.f32 %v8480, %v8732
      %v8734 = vpop.f32.mrf.mxu0
      %8735 = vmatprep.mubr.f32.mxu0 %v8432
      %8736 = vmatmul.mubr.f32.gmra.mxu0 %v8336
      %v8737 = vpop.f32.mrf.mxu0
      %v8738 = vadd.f32 %v8480, %v8737
      %v8739 = vpop.f32.mrf.mxu0
      %8740 = vmatprep.mubr.f32.mxu0 %v8433
      %8741 = vmatmul.mubr.f32.gmra.mxu0 %v8337
      %v8742 = vpop.f32.mrf.mxu0
      %v8743 = vadd.f32 %v8480, %v8742
      %v8744 = vpop.f32.mrf.mxu0
      %8745 = vmatprep.mubr.f32.mxu0 %v8434
      %8746 = vmatmul.mubr.f32.gmra.mxu0 %v8338
      %v8747 = vpop.f32.mrf.mxu0
      %v8748 = vadd.f32 %v8480, %v8747
      %v8749 = vpop.f32.mrf.mxu0
      %8750 = vmatprep.mubr.f32.mxu0 %v8435
      %8751 = vmatmul.mubr.f32.gmra.mxu0 %v8339
      %v8752 = vpop.f32.mrf.mxu0
      %v8753 = vadd.f32 %v8480, %v8752
      %v8754 = vpop.f32.mrf.mxu0
      %8755 = vmatprep.mubr.f32.mxu0 %v8436
      %8756 = vmatmul.mubr.f32.gmra.mxu0 %v8340
      %v8757 = vpop.f32.mrf.mxu0
      %v8758 = vadd.f32 %v8480, %v8757
      %v8759 = vpop.f32.mrf.mxu0
      %8760 = vmatprep.mubr.f32.mxu0 %v8437
      %8761 = vmatmul.mubr.f32.gmra.mxu0 %v8341
      %v8762 = vpop.f32.mrf.mxu0
      %v8763 = vadd.f32 %v8480, %v8762
      %v8764 = vpop.f32.mrf.mxu0
      %8765 = vmatprep.mubr.f32.mxu0 %v8438
      %8766 = vmatmul.mubr.f32.gmra.mxu0 %v8342
      %v8767 = vpop.f32.mrf.mxu0
      %v8768 = vadd.f32 %v8480, %v8767
      %v8769 = vpop.f32.mrf.mxu0
      %8770 = vdwg.mxu0
      %8771 = vmatprep.subr.mxu0 0.0
      %8772 = vmatpush1.msra.mxu0 0.0
      %8773 = vmatprep.subr.mxu0 0.0
      %8774 = vmatpush1.msra.mxu0 0.0
      %8775 = vmatprep.subr.mxu0 0.0
      %8776 = vmatpush1.msra.mxu0 0.0
      %8777 = vmatprep.subr.mxu0 0.0
      %8778 = vmatpush1.msra.mxu0 0.0
      %8779 = vmatprep.subr.mxu0 0.0
      %8780 = vmatpush1.msra.mxu0 0.0
      %8781 = vmatprep.subr.mxu0 0.0
      %8782 = vmatpush1.msra.mxu0 0.0
      %8783 = vmatprep.subr.mxu0 0.0
      %8784 = vmatpush1.msra.mxu0 0.0
      %8785 = vmatprep.subr.mxu0 0.0
      %8786 = vmatpush1.msra.mxu0 0.0
      %8787 = vmatprep.subr.mxu0 0.0
      %8788 = vmatpush1.msra.mxu0 0.0
      %8789 = vmatprep.subr.mxu0 0.0
      %8790 = vmatpush1.msra.mxu0 0.0
      %8791 = vmatprep.subr.mxu0 0.0
      %8792 = vmatpush1.msra.mxu0 0.0
      %8793 = vmatprep.subr.mxu0 0.0
      %8794 = vmatpush1.msra.mxu0 0.0
      %8795 = vmatprep.subr.mxu0 0.0
      %8796 = vmatpush1.msra.mxu0 %v8474
      %8797 = vmatprep.subr.mxu0 0.0
      %8798 = vmatpush1.msra.mxu0 %v8473
      %8799 = vmatprep.subr.mxu0 0.0
      %8800 = vmatpush1.msra.mxu0 %v8472
      %8801 = vmatprep.subr.mxu0 0.0
      %8802 = vmatpush1.msra.mxu0 %v8471
      %8803 = vmatprep.subr.mxu0 0.0
      %8804 = vmatpush2.msra.mxu0 0.0
      %8805 = vmatprep.subr.mxu0 0.0
      %8806 = vmatpush2.msra.mxu0 0.0
      %8807 = vmatprep.subr.mxu0 0.0
      %8808 = vmatpush2.msra.mxu0 0.0
      %8809 = vmatprep.subr.mxu0 0.0
      %8810 = vmatpush2.msra.mxu0 0.0
      %8811 = vmatprep.subr.mxu0 0.0
      %8812 = vmatpush2.msra.mxu0 0.0
      %8813 = vmatprep.subr.mxu0 0.0
      %8814 = vmatpush2.msra.mxu0 0.0
      %8815 = vmatprep.subr.mxu0 0.0
      %8816 = vmatpush2.msra.mxu0 0.0
      %8817 = vmatprep.subr.mxu0 0.0
      %8818 = vmatpush2.msra.mxu0 0.0
      %8819 = vmatprep.subr.mxu0 0.0
      %8820 = vmatpush2.msra.mxu0 0.0
      %8821 = vmatprep.subr.mxu0 0.0
      %8822 = vmatpush2.msra.mxu0 0.0
      %8823 = vmatprep.subr.mxu0 0.0
      %8824 = vmatpush2.msra.mxu0 0.0
      %8825 = vmatprep.subr.mxu0 0.0
      %8826 = vmatpush2.msra.mxu0 0.0
      %8827 = vmatprep.subr.mxu0 0.0
      %8828 = vmatpush2.msra.mxu0 0.0
      %8829 = vmatprep.subr.mxu0 0.0
      %8830 = vmatpush2.msra.mxu0 0.0
      %8831 = vmatprep.subr.mxu0 0.0
      %8832 = vmatpush2.msra.mxu0 0.0
      %8833 = vmatprep.subr.mxu0 0.0
      %8834 = vmatpush2.msra.mxu0 0.0
      %8835 = vmatprep.mubr.f32.mxu0 0.0
      %8836 = vmatmul.mubr.f32.gmra.mxu0 %v8482
      %v8837 = vpop.f32.mrf.mxu0
      %v8838 = vadd.f32 %v8613, %v8837
      %v8839 = vpop.f32.mrf.mxu0
      %8840 = vmatprep.mubr.f32.mxu0 0.0
      %8841 = vmatmul.mubr.f32.gmra.mxu0 %v8484
      %v8842 = vpop.f32.mrf.mxu0
      %v8843 = vadd.f32 %v8618, %v8842
      %v8844 = vpop.f32.mrf.mxu0
      %8845 = vmatprep.mubr.f32.mxu0 0.0
      %8846 = vmatmul.mubr.f32.gmra.mxu0 %v8486
      %v8847 = vpop.f32.mrf.mxu0
      %v8848 = vadd.f32 %v8623, %v8847
      %v8849 = vpop.f32.mrf.mxu0
      %8850 = vmatprep.mubr.f32.mxu0 0.0
      %8851 = vmatmul.mubr.f32.gmra.mxu0 %v8488
      %v8852 = vpop.f32.mrf.mxu0
      %v8853 = vadd.f32 %v8628, %v8852
      %v8854 = vpop.f32.mrf.mxu0
      %8855 = vmatprep.mubr.f32.mxu0 0.0
      %8856 = vmatmul.mubr.f32.gmra.mxu0 %v8490
      %v8857 = vpop.f32.mrf.mxu0
      %v8858 = vadd.f32 %v8633, %v8857
      %v8859 = vpop.f32.mrf.mxu0
      %8860 = vmatprep.mubr.f32.mxu0 0.0
      %8861 = vmatmul.mubr.f32.gmra.mxu0 %v8492
      %v8862 = vpop.f32.mrf.mxu0
      %v8863 = vadd.f32 %v8638, %v8862
      %v8864 = vpop.f32.mrf.mxu0
      %8865 = vmatprep.mubr.f32.mxu0 0.0
      %8866 = vmatmul.mubr.f32.gmra.mxu0 %v8494
      %v8867 = vpop.f32.mrf.mxu0
      %v8868 = vadd.f32 %v8643, %v8867
      %v8869 = vpop.f32.mrf.mxu0
      %8870 = vmatprep.mubr.f32.mxu0 0.0
      %8871 = vmatmul.mubr.f32.gmra.mxu0 %v8496
      %v8872 = vpop.f32.mrf.mxu0
      %v8873 = vadd.f32 %v8648, %v8872
      %v8874 = vpop.f32.mrf.mxu0
      %8875 = vmatprep.mubr.f32.mxu0 0.0
      %8876 = vmatmul.mubr.f32.gmra.mxu0 %v8498
      %v8877 = vpop.f32.mrf.mxu0
      %v8878 = vadd.f32 %v8653, %v8877
      %v8879 = vpop.f32.mrf.mxu0
      %8880 = vmatprep.mubr.f32.mxu0 0.0
      %8881 = vmatmul.mubr.f32.gmra.mxu0 %v8500
      %v8882 = vpop.f32.mrf.mxu0
      %v8883 = vadd.f32 %v8658, %v8882
      %v8884 = vpop.f32.mrf.mxu0
      %8885 = vmatprep.mubr.f32.mxu0 0.0
      %8886 = vmatmul.mubr.f32.gmra.mxu0 %v8502
      %v8887 = vpop.f32.mrf.mxu0
      %v8888 = vadd.f32 %v8663, %v8887
      %v8889 = vpop.f32.mrf.mxu0
      %8890 = vmatprep.mubr.f32.mxu0 0.0
      %8891 = vmatmul.mubr.f32.gmra.mxu0 %v8504
      %v8892 = vpop.f32.mrf.mxu0
      %v8893 = vadd.f32 %v8668, %v8892
      %v8894 = vpop.f32.mrf.mxu0
      %8895 = vmatprep.mubr.f32.mxu0 0.0
      %8896 = vmatmul.mubr.f32.gmra.mxu0 %v8506
      %v8897 = vpop.f32.mrf.mxu0
      %v8898 = vadd.f32 %v8673, %v8897
      %v8899 = vpop.f32.mrf.mxu0
      %8900 = vmatprep.mubr.f32.mxu0 0.0
      %8901 = vmatmul.mubr.f32.gmra.mxu0 %v8508
      %v8902 = vpop.f32.mrf.mxu0
      %v8903 = vadd.f32 %v8678, %v8902
      %v8904 = vpop.f32.mrf.mxu0
      %8905 = vmatprep.mubr.f32.mxu0 0.0
      %8906 = vmatmul.mubr.f32.gmra.mxu0 %v8510
      %v8907 = vpop.f32.mrf.mxu0
      %v8908 = vadd.f32 %v8683, %v8907
      %v8909 = vpop.f32.mrf.mxu0
      %8910 = vmatprep.mubr.f32.mxu0 0.0
      %8911 = vmatmul.mubr.f32.gmra.mxu0 %v8512
      %v8912 = vpop.f32.mrf.mxu0
      %v8913 = vadd.f32 %v8688, %v8912
      %v8914 = vpop.f32.mrf.mxu0
      %8915 = vmatprep.mubr.f32.mxu0 0.0
      %8916 = vmatmul.mubr.f32.gmra.mxu0 %v8514
      %v8917 = vpop.f32.mrf.mxu0
      %v8918 = vadd.f32 %v8693, %v8917
      %v8919 = vpop.f32.mrf.mxu0
      %8920 = vmatprep.mubr.f32.mxu0 0.0
      %8921 = vmatmul.mubr.f32.gmra.mxu0 %v8516
      %v8922 = vpop.f32.mrf.mxu0
      %v8923 = vadd.f32 %v8698, %v8922
      %v8924 = vpop.f32.mrf.mxu0
      %8925 = vmatprep.mubr.f32.mxu0 0.0
      %8926 = vmatmul.mubr.f32.gmra.mxu0 %v8518
      %v8927 = vpop.f32.mrf.mxu0
      %v8928 = vadd.f32 %v8703, %v8927
      %v8929 = vpop.f32.mrf.mxu0
      %8930 = vmatprep.mubr.f32.mxu0 0.0
      %8931 = vmatmul.mubr.f32.gmra.mxu0 %v8520
      %v8932 = vpop.f32.mrf.mxu0
      %v8933 = vadd.f32 %v8708, %v8932
      %v8934 = vpop.f32.mrf.mxu0
      %8935 = vmatprep.mubr.f32.mxu0 0.0
      %8936 = vmatmul.mubr.f32.gmra.mxu0 %v8522
      %v8937 = vpop.f32.mrf.mxu0
      %v8938 = vadd.f32 %v8713, %v8937
      %v8939 = vpop.f32.mrf.mxu0
      %8940 = vmatprep.mubr.f32.mxu0 0.0
      %8941 = vmatmul.mubr.f32.gmra.mxu0 %v8524
      %v8942 = vpop.f32.mrf.mxu0
      %v8943 = vadd.f32 %v8718, %v8942
      %v8944 = vpop.f32.mrf.mxu0
      %8945 = vmatprep.mubr.f32.mxu0 0.0
      %8946 = vmatmul.mubr.f32.gmra.mxu0 %v8526
      %v8947 = vpop.f32.mrf.mxu0
      %v8948 = vadd.f32 %v8723, %v8947
      %v8949 = vpop.f32.mrf.mxu0
      %8950 = vmatprep.mubr.f32.mxu0 0.0
      %8951 = vmatmul.mubr.f32.gmra.mxu0 %v8528
      %v8952 = vpop.f32.mrf.mxu0
      %v8953 = vadd.f32 %v8728, %v8952
      %v8954 = vpop.f32.mrf.mxu0
      %8955 = vmatprep.mubr.f32.mxu0 0.0
      %8956 = vmatmul.mubr.f32.gmra.mxu0 %v8530
      %v8957 = vpop.f32.mrf.mxu0
      %v8958 = vadd.f32 %v8733, %v8957
      %v8959 = vpop.f32.mrf.mxu0
      %8960 = vmatprep.mubr.f32.mxu0 0.0
      %8961 = vmatmul.mubr.f32.gmra.mxu0 %v8532
      %v8962 = vpop.f32.mrf.mxu0
      %v8963 = vadd.f32 %v8738, %v8962
      %v8964 = vpop.f32.mrf.mxu0
      %8965 = vmatprep.mubr.f32.mxu0 0.0
      %8966 = vmatmul.mubr.f32.gmra.mxu0 %v8534
      %v8967 = vpop.f32.mrf.mxu0
      %v8968 = vadd.f32 %v8743, %v8967
      %v8969 = vpop.f32.mrf.mxu0
      %8970 = vmatprep.mubr.f32.mxu0 0.0
      %8971 = vmatmul.mubr.f32.gmra.mxu0 %v8536
      %v8972 = vpop.f32.mrf.mxu0
      %v8973 = vadd.f32 %v8748, %v8972
      %v8974 = vpop.f32.mrf.mxu0
      %8975 = vmatprep.mubr.f32.mxu0 0.0
      %8976 = vmatmul.mubr.f32.gmra.mxu0 %v8538
      %v8977 = vpop.f32.mrf.mxu0
      %v8978 = vadd.f32 %v8753, %v8977
      %v8979 = vpop.f32.mrf.mxu0
      %8980 = vmatprep.mubr.f32.mxu0 0.0
      %8981 = vmatmul.mubr.f32.gmra.mxu0 %v8540
      %v8982 = vpop.f32.mrf.mxu0
      %v8983 = vadd.f32 %v8758, %v8982
      %v8984 = vpop.f32.mrf.mxu0
      %8985 = vmatprep.mubr.f32.mxu0 0.0
      %8986 = vmatmul.mubr.f32.gmra.mxu0 %v8542
      %v8987 = vpop.f32.mrf.mxu0
      %v8988 = vadd.f32 %v8763, %v8987
      %v8989 = vpop.f32.mrf.mxu0
      %8990 = vmatprep.mubr.f32.mxu0 0.0
      %8991 = vmatmul.mubr.f32.gmra.mxu0 %v8544
      %v8992 = vpop.f32.mrf.mxu0
      %v8993 = vadd.f32 %v8768, %v8992
      %v8994 = vpop.f32.mrf.mxu0
      %8995 = vdwg.mxu0
      %v8996 = vadd.f32 %v445, %v8838
      %v8997 = vadd.f32 %v447, %v8843
      %v8998 = vadd.f32 %v450, %v8848
      %v8999 = vadd.f32 %v452, %v8853
      %v9000 = vadd.f32 %v455, %v8858
      %v9001 = vadd.f32 %v457, %v8863
      %v9002 = vadd.f32 %v460, %v8868
      %v9003 = vadd.f32 %v462, %v8873
      %v9004 = vadd.f32 %v465, %v8878
      %v9005 = vadd.f32 %v467, %v8883
      %v9006 = vadd.f32 %v470, %v8888
      %v9007 = vadd.f32 %v472, %v8893
      %v9008 = vadd.f32 %v475, %v8898
      %v9009 = vadd.f32 %v477, %v8903
      %v9010 = vadd.f32 %v480, %v8908
      %v9011 = vadd.f32 %v482, %v8913
      %v9012 = vadd.f32 %v485, %v8918
      %v9013 = vadd.f32 %v487, %v8923
      %v9014 = vadd.f32 %v490, %v8928
      %v9015 = vadd.f32 %v492, %v8933
      %v9016 = vadd.f32 %v495, %v8938
      %v9017 = vadd.f32 %v497, %v8943
      %v9018 = vadd.f32 %v500, %v8948
      %v9019 = vadd.f32 %v502, %v8953
      %v9020 = vadd.f32 %v505, %v8958
      %v9021 = vadd.f32 %v507, %v8963
      %v9022 = vadd.f32 %v510, %v8968
      %v9023 = vadd.f32 %v512, %v8973
      %v9024 = vadd.f32 %v515, %v8978
      %v9025 = vadd.f32 %v517, %v8983
      %v9026 = vadd.f32 %v604, %v8988
      %v9027 = vadd.f32 %v606, %v8993
      %9028 = vst.msk [vmem:[%s278] sm:$0xff] %vm1425, %v8996
      %9029 = vst.msk [vmem:[%s278 + $0x8] sm:$0xff] %vm1425, %v8997
      %9030 = vst.msk [vmem:[%s278 + $0x10] sm:$0xff] %vm1425, %v8998
      %9031 = vst.msk [vmem:[%s278 + $0x18] sm:$0xff] %vm1425, %v8999
      %9032 = vst.msk [vmem:[%s278 + $0x20] sm:$0xff] %vm1425, %v9000
      %9033 = vst.msk [vmem:[%s278 + $0x28] sm:$0xff] %vm1425, %v9001
      %9034 = vst.msk [vmem:[%s278 + $0x30] sm:$0xff] %vm1425, %v9002
      %9035 = vst.msk [vmem:[%s278 + $0x38] sm:$0xff] %vm1425, %v9003
      %9036 = vst.msk [vmem:[%s278 + $0x40] sm:$0xff] %vm1425, %v9004
      %9037 = vst.msk [vmem:[%s278 + $0x48] sm:$0xff] %vm1425, %v9005
      %9038 = vst.msk [vmem:[%s278 + $0x50] sm:$0xff] %vm1425, %v9006
      %9039 = vst.msk [vmem:[%s278 + $0x58] sm:$0xff] %vm1425, %v9007
      %9040 = vst.msk [vmem:[%s278 + $0x60] sm:$0xff] %vm1425, %v9008
      %9041 = vst.msk [vmem:[%s278 + $0x68] sm:$0xff] %vm1425, %v9009
      %9042 = vst.msk [vmem:[%s278 + $0x70] sm:$0xff] %vm1425, %v9010
      %9043 = vst.msk [vmem:[%s278 + $0x78] sm:$0xff] %vm1425, %v9011
      %9044 = vst.msk [vmem:[%s278 + $0x80] sm:$0xff] %vm1425, %v9012
      %9045 = vst.msk [vmem:[%s278 + $0x88] sm:$0xff] %vm1425, %v9013
      %9046 = vst.msk [vmem:[%s278 + $0x90] sm:$0xff] %vm1425, %v9014
      %9047 = vst.msk [vmem:[%s278 + $0x98] sm:$0xff] %vm1425, %v9015
      %9048 = vst.msk [vmem:[%s278 + $0xa0] sm:$0xff] %vm1425, %v9016
      %9049 = vst.msk [vmem:[%s278 + $0xa8] sm:$0xff] %vm1425, %v9017
      %9050 = vst.msk [vmem:[%s278 + $0xb0] sm:$0xff] %vm1425, %v9018
      %9051 = vst.msk [vmem:[%s278 + $0xb8] sm:$0xff] %vm1425, %v9019
      %9052 = vst.msk [vmem:[%s278 + $0xc0] sm:$0xff] %vm1425, %v9020
      %9053 = vst.msk [vmem:[%s278 + $0xc8] sm:$0xff] %vm1425, %v9021
      %9054 = vst.msk [vmem:[%s278 + $0xd0] sm:$0xff] %vm1425, %v9022
      %9055 = vst.msk [vmem:[%s278 + $0xd8] sm:$0xff] %vm1425, %v9023
      %9056 = vst.msk [vmem:[%s278 + $0xe0] sm:$0xff] %vm1425, %v9024
      %9057 = vst.msk [vmem:[%s278 + $0xe8] sm:$0xff] %vm1425, %v9025
      %9058 = vst.msk [vmem:[%s278 + $0xf0] sm:$0xff] %vm1425, %v9026
      %9059 = vst.msk [vmem:[%s278 + $0xf8] sm:$0xff] %vm1425, %v9027
      %p9060 = scmp.lt.s32.totalorder %s18, 1
      %s9061 = scalar_select %p9060, %s18, 1
      %s9062 = smul.addr %s9061, 32
      %s9063 = smul.addr %s9062, 8
      %s9064 = scalar_lea.vmem %s7, %s9063
      // Predicated region
      $region49: #{tpu_custom_call.1} parent=47 // pred_check
        %p9065 = pneg %p188
      $region50: #{tpu_custom_call.1} parent=47 // pred_check_branch
        %9067 = sbr.rel (%p9065) target = $region52
      $region51: #{tpu_custom_call.1} parent=47 // pred_region
        _
      $region52: #{tpu_custom_call.1} parent=47 // pred_fallthru
        _
    $region48: #{tpu_custom_call.1} parent=5 // pred_fallthru
      _
    %p9068 = scmp.le.s32.totalorder 2, %s13
    // Predicated region
    $region53: #{tpu_custom_call.1} parent=5 // pred_check
      %p9069 = pneg %p9068
    $region54: #{tpu_custom_call.1} parent=5 // pred_check_branch
      %9071 = sbr.rel (%p9069) target = $region56
    $region55: #{tpu_custom_call.1} parent=5 // pred_region
      %s9072 = ssub.s32 %s13, 2
      // Predicated region
      $region57: #{tpu_custom_call.1} parent=55 // pred_check
        %p9073 = pneg %p194
      $region58: #{tpu_custom_call.1} parent=55 // pred_check_branch
        %9075 = sbr.rel (%p9073) target = $region60
      $region59: #{tpu_custom_call.1} parent=55 // pred_region
        %p9076 = scmp.lt.s32.totalorder %s19, 1
        %s9077 = scalar_select %p9076, %s19, 1
        %s9078 = smul.addr %s9077, 32
        %s9079 = smul.addr %s9078, 8
        %s9080 = scalar_lea.vmem %s7, %s9079
      $region60: #{tpu_custom_call.1} parent=55 // pred_fallthru
        _
    $region56: #{tpu_custom_call.1} parent=5 // pred_fallthru
      _
  $region6: #{tpu_custom_call.1} parent=0 // loop_footer
    %s17 = sadd.s32 1, %s13
  $region7: #{tpu_custom_call.1} parent=0 // loop_footer_branch
    %12 = sbr.rel target = $region3
  $region8: #{tpu_custom_call.1} parent=0 // loop_exit
    _

</llo_original>
